<compile_context>
chip_gen: v7x
topology: tpu7x:2x2x1
jax: 0.10.0
libtpu: 0.0.40
codegen_flags: <defaults>
</compile_context>

<pallas_src>
import functools

import jax
import jax.numpy as jnp
from jax.experimental import pallas as pl
from jax.experimental.pallas import tpu as pltpu

_EPS = 1e-5


# ----------------------------------------------------------------------------
# In-kernel helpers (operate on f32 values)
# ----------------------------------------------------------------------------
def _ln(x, g, b, eps):
    mean = jnp.mean(x, axis=-1, keepdims=True)
    var = jnp.mean((x - mean) ** 2, axis=-1, keepdims=True)
    return (x - mean) * jax.lax.rsqrt(var + eps) * g + b


def _bf16_dot(a, b):
    # bf16 operands for the MXU, f32 accumulation.
    return jnp.dot(a.astype(jnp.bfloat16), b.astype(jnp.bfloat16),
                   preferred_element_type=jnp.float32)


def _per_image_spec(rows, cols):
    # one image per grid step; batch dim squeezed out of the kernel view
    return pl.BlockSpec((None, rows, cols), lambda n: (n, 0, 0))


def _shared_spec(shape):
    # weights/biases: same block every grid step -> fetched once, stays VMEM-resident
    nd = len(shape)
    return pl.BlockSpec(shape, lambda n: (0,) * nd)


# ----------------------------------------------------------------------------
# Fused kernels
# ----------------------------------------------------------------------------
def _stem_kernel(patches_ref, convw_ref, cls_ref, pos_ref, g_ref, b_ref, o_ref, *, eps):
    """patch-embed matmul + class token + positional embedding + ln_pre (one image)."""
    patch_tok = _bf16_dot(patches_ref[...], convw_ref[...])          # [Gp, D] f32
    gp = patch_tok.shape[0]
    g = g_ref[...].astype(jnp.float32)
    b = b_ref[...].astype(jnp.float32)
    cls_tok = cls_ref[...].astype(jnp.float32) + pos_ref[0:1, :].astype(jnp.float32)
    patch_tok = patch_tok + pos_ref[1:1 + gp, :].astype(jnp.float32)
    # LayerNorm is row-wise, so the class row and patch rows are normalized independently.
    o_ref[0:1, :] = _ln(cls_tok, g, b, eps).astype(o_ref.dtype)
    o_ref[1:1 + gp, :] = _ln(patch_tok, g, b, eps).astype(o_ref.dtype)


def _attn_block_kernel(x_ref, g_ref, b_ref, wqkv_ref, bqkv_ref, wout_ref, bout_ref,
                       o_ref, attn_scratch, *, num_heads, eps):
    """x + out_proj( MHA( ln_1(x) ) )   for one image."""
    L, D = x_ref.shape
    Dh = D // num_heads
    scale = Dh ** -0.5

    x = x_ref[...].astype(jnp.float32)                               # [L, D]
    h = _ln(x, g_ref[...].astype(jnp.float32), b_ref[...].astype(jnp.float32), eps)
    qkv = _bf16_dot(h, wqkv_ref[...]) + bqkv_ref[...].astype(jnp.float32)   # [L, 3D]

    for hh in range(num_heads):                                      # static, unrolled
        q = qkv[:, hh * Dh:(hh + 1) * Dh]                            # 128-lane aligned slices
        k = qkv[:, D + hh * Dh:D + (hh + 1) * Dh]
        v = qkv[:, 2 * D + hh * Dh:2 * D + (hh + 1) * Dh]
        s = jax.lax.dot_general(
            q.astype(jnp.bfloat16), k.astype(jnp.bfloat16),
            (((1,), (1,)), ((), ())), preferred_element_type=jnp.float32) * scale
        s = s - jnp.max(s, axis=-1, keepdims=True)
        p = jnp.exp(s)
        p = p * pl.reciprocal(jnp.sum(p, axis=-1, keepdims=True), approx=True)
        oh = _bf16_dot(p, v)                                         # [L, Dh]
        attn_scratch[:, hh * Dh:(hh + 1) * Dh] = oh                  # assemble heads in VMEM

    attn = attn_scratch[...]                                         # [L, D]
    out = _bf16_dot(attn, wout_ref[...]) + bout_ref[...].astype(jnp.float32)
    o_ref[...] = (x + out).astype(o_ref.dtype)                       # fused residual add


def _mlp_block_kernel(x_ref, g_ref, b_ref, wfc_ref, bfc_ref, wproj_ref, bproj_ref,
                      lnpg_ref, lnpb_ref, o_ref, *, eps, final_ln):
    """x + proj( QuickGELU( fc( ln_2(x) ) ) )   (+ ln_post on the last block)."""
    x = x_ref[...].astype(jnp.float32)                               # [L, D]
    h = _ln(x, g_ref[...].astype(jnp.float32), b_ref[...].astype(jnp.float32), eps)
    h = _bf16_dot(h, wfc_ref[...]) + bfc_ref[...].astype(jnp.float32)       # [L, 4D]
    h = h * jax.nn.sigmoid(1.702 * h)                                # QuickGELU, f32 vector math
    h = _bf16_dot(h, wproj_ref[...]) + bproj_ref[...].astype(jnp.float32)   # [L, D]
    y = x + h                                                        # fused residual add
    if final_ln:
        y = _ln(y, lnpg_ref[...].astype(jnp.float32), lnpb_ref[...].astype(jnp.float32), eps)
    o_ref[...] = y.astype(o_ref.dtype)


# ----------------------------------------------------------------------------
# pallas_call wrappers (grid over batch, "parallel")
# ----------------------------------------------------------------------------
_PARALLEL = pltpu.CompilerParams(dimension_semantics=("parallel",))


def stem(patches, conv_w, cls_emb, pos_emb, ln_g, ln_b):
    N, Gp, CPP = patches.shape
    L, D = pos_emb.shape
    return pl.pallas_call(
        functools.partial(_stem_kernel, eps=_EPS),
        out_shape=jax.ShapeDtypeStruct((N, L, D), jnp.float32),
        grid=(N,),
        in_specs=[
            _per_image_spec(Gp, CPP),
            _shared_spec((CPP, D)),
            _shared_spec((1, D)),
            _shared_spec((L, D)),
            _shared_spec((1, D)),
            _shared_spec((1, D)),
        ],
        out_specs=_per_image_spec(L, D),
        compiler_params=_PARALLEL,
    )(patches, conv_w, cls_emb, pos_emb, ln_g, ln_b)


def attn_block(x, blk, num_heads):
    N, L, D = x.shape
    return pl.pallas_call(
        functools.partial(_attn_block_kernel, num_heads=num_heads, eps=_EPS),
        out_shape=jax.ShapeDtypeStruct((N, L, D), x.dtype),
        grid=(N,),
        in_specs=[
            _per_image_spec(L, D),
            _shared_spec((1, D)), _shared_spec((1, D)),
            _shared_spec((D, 3 * D)), _shared_spec((1, 3 * D)),
            _shared_spec((D, D)), _shared_spec((1, D)),
        ],
        out_specs=_per_image_spec(L, D),
        scratch_shapes=[pltpu.VMEM((L, D), jnp.float32)],
        compiler_params=_PARALLEL,
    )(x, blk["ln1_g"], blk["ln1_b"], blk["in_proj_w"], blk["in_proj_b"],
      blk["out_proj_w"], blk["out_proj_b"])


def mlp_block(x, blk, ln_post_g, ln_post_b, *, final_ln):
    N, L, D = x.shape
    Dm = blk["fc_w"].shape[1]
    return pl.pallas_call(
        functools.partial(_mlp_block_kernel, eps=_EPS, final_ln=final_ln),
        out_shape=jax.ShapeDtypeStruct((N, L, D), x.dtype),
        grid=(N,),
        in_specs=[
            _per_image_spec(L, D),
            _shared_spec((1, D)), _shared_spec((1, D)),
            _shared_spec((D, Dm)), _shared_spec((1, Dm)),
            _shared_spec((Dm, D)), _shared_spec((1, D)),
            _shared_spec((1, D)), _shared_spec((1, D)),
        ],
        out_specs=_per_image_spec(L, D),
        compiler_params=_PARALLEL,
    )(x, blk["ln2_g"], blk["ln2_b"], blk["fc_w"], blk["fc_b"],
      blk["proj_w"], blk["proj_b"], ln_post_g, ln_post_b)


# ----------------------------------------------------------------------------
# CLIP visual branch forward (synthetic parameters)
# ----------------------------------------------------------------------------
def init_params(key, *, in_chans, patch_size, width, num_heads, num_layers, grid_len):
    # TODO(synk): real ClipTargeter downloads and loads the OpenAI CLIP checkpoint
    # (torch.jit.load / state_dict) -- host-side I/O with no Pallas equivalent;
    # parameters are synthesized deterministically instead.
    del num_heads
    std = 0.02
    L = grid_len * grid_len + 1
    keys = iter(jax.random.split(key, 3 + 8 * num_layers))

    def rnd(shape):
        return (std * jax.random.normal(next(keys), shape)).astype(jnp.float32)

    params = {
        "conv1_w": rnd((in_chans * patch_size * patch_size, width)),  # [C*P*P, D]
        "class_embedding": rnd((1, width)),
        "positional_embedding": rnd((L, width)),
        "ln_pre_g": jnp.ones((1, width), jnp.float32),
        "ln_pre_b": jnp.zeros((1, width), jnp.float32),
        "ln_post_g": jnp.ones((1, width), jnp.float32),
        "ln_post_b": jnp.zeros((1, width), jnp.float32),
        "blocks": [],
    }
    for _ in range(num_layers):
        params["blocks"].append({
            "ln1_g": jnp.ones((1, width), jnp.float32),
            "ln1_b": jnp.zeros((1, width), jnp.float32),
            "in_proj_w": rnd((width, 3 * width)),     # stored pre-transposed: x @ W
            "in_proj_b": rnd((1, 3 * width)),
            "out_proj_w": rnd((width, width)),
            "out_proj_b": rnd((1, width)),
            "ln2_g": jnp.ones((1, width), jnp.float32),
            "ln2_b": jnp.zeros((1, width), jnp.float32),
            "fc_w": rnd((width, 4 * width)),
            "fc_b": rnd((1, 4 * width)),
            "proj_w": rnd((4 * width, width)),
            "proj_b": rnd((1, width)),
        })
    return params


def clip_targeter_forward(image, params, *, patch_size, num_heads):
    """image: NCHW float32 -> token features [N, 1 + (H/P)*(W/P), width]."""
    N, C, H, W = image.shape
    P = patch_size
    Gh, Gw = H // P, W // P

    # Patch extraction (pure layout glue, plain JAX); the patch-embed matmul itself
    # runs fused inside the stem kernel.
    patches = image.reshape(N, C, Gh, P, Gw, P)
    patches = jnp.transpose(patches, (0, 2, 4, 1, 3, 5)).reshape(N, Gh * Gw, C * P * P)

    x = stem(patches, params["conv1_w"], params["class_embedding"],
             params["positional_embedding"], params["ln_pre_g"], params["ln_pre_b"])

    n_blocks = len(params["blocks"])
    for i, blk in enumerate(params["blocks"]):
        x = attn_block(x, blk, num_heads)
        x = mlp_block(x, blk, params["ln_post_g"], params["ln_post_b"],
                      final_ln=(i == n_blocks - 1))
    # forward returns encode_image(image) == clip_model.visual(image)[0]
    # (the attention map, index [1], is discarded).
    return x


# ----------------------------------------------------------------------------
# Pure-JAX f32 reference (for a loose numerical sanity check)
# ----------------------------------------------------------------------------
def _ln_ref(x, g, b, eps=_EPS):
    m = x.mean(-1, keepdims=True)
    v = ((x - m) ** 2).mean(-1, keepdims=True)
    return (x - m) / jnp.sqrt(v + eps) * g + b


def clip_forward_ref(image, params, *, patch_size, num_heads):
    N, C, H, W = image.shape
    P = patch_size
    Gh, Gw = H // P, W // P
    patches = image.reshape(N, C, Gh, P, Gw, P)
    patches = jnp.transpose(patches, (0, 2, 4, 1, 3, 5)).reshape(N, Gh * Gw, C * P * P)
    x = patches @ params["conv1_w"]
    D = x.shape[-1]
    cls = jnp.broadcast_to(params["class_embedding"], (N, 1, D))
    x = jnp.concatenate([cls, x], axis=1) + params["positional_embedding"][None]
    x = _ln_ref(x, params["ln_pre_g"], params["ln_pre_b"])
    L = x.shape[1]
    Dh = D // num_heads
    for blk in params["blocks"]:
        h = _ln_ref(x, blk["ln1_g"], blk["ln1_b"])
        qkv = h @ blk["in_proj_w"] + blk["in_proj_b"]
        q, k, v = jnp.split(qkv, 3, axis=-1)
        q = q.reshape(N, L, num_heads, Dh).transpose(0, 2, 1, 3)
        k = k.reshape(N, L, num_heads, Dh).transpose(0, 2, 1, 3)
        v = v.reshape(N, L, num_heads, Dh).transpose(0, 2, 1, 3)
        s = jnp.einsum("nhqd,nhkd->nhqk", q, k) * (Dh ** -0.5)
        p = jax.nn.softmax(s, axis=-1)
        o = jnp.einsum("nhqk,nhkd->nhqd", p, v).transpose(0, 2, 1, 3).reshape(N, L, D)
        x = x + o @ blk["out_proj_w"] + blk["out_proj_b"]
        h2 = _ln_ref(x, blk["ln2_g"], blk["ln2_b"])
        h2 = h2 @ blk["fc_w"] + blk["fc_b"]
        h2 = h2 * jax.nn.sigmoid(1.702 * h2)
        x = x + h2 @ blk["proj_w"] + blk["proj_b"]
    return _ln_ref(x, params["ln_post_g"], params["ln_post_b"])


if __name__ == "__main__":
    key = jax.random.PRNGKey(0)
    k_img, k_par = jax.random.split(key)

    # Small synthetic, lane-dense config of the CLIP ViT visual branch.
    N, C, H, W = 2, 3, 32, 32
    patch_size, width, num_heads, num_layers = 16, 256, 2, 2   # head_dim = 128

    image = jax.random.normal(k_img, (N, C, H, W), dtype=jnp.float32)
    params = init_params(
        k_par, in_chans=C, patch_size=patch_size, width=width,
        num_heads=num_heads, num_layers=num_layers, grid_len=H // patch_size)

    fwd = jax.jit(functools.partial(clip_targeter_forward,
                                    patch_size=patch_size, num_heads=num_heads))
    out = jax.block_until_ready(fwd(image, params))

    L = 1 + (H // patch_size) * (W // patch_size)
    assert out.shape == (N, L, width), out.shape
    assert bool(jnp.all(jnp.isfinite(out)))

    # Loose tolerance: kernels use bf16 MXU operands + approx reciprocal; reference is f32.
    ref = clip_forward_ref(image, params, patch_size=patch_size, num_heads=num_heads)
    max_err = float(jnp.max(jnp.abs(out - ref)))
    assert max_err < 0.2, f"max abs err vs f32 reference: {max_err}"

    print("KERNEL_OK")
</pallas_src>

<mosaic_0001>
module attributes {stable_mosaic.version = 11 : i64} {
  func.func @_stem_kernel(%arg0: i32, %arg1: memref<1x4x768xf32, #tpu.memory_space<vmem>>, %arg2: memref<768x256xf32, #tpu.memory_space<vmem>>, %arg3: memref<1x256xf32, #tpu.memory_space<vmem>>, %arg4: memref<5x256xf32, #tpu.memory_space<vmem>>, %arg5: memref<1x256xf32, #tpu.memory_space<vmem>>, %arg6: memref<1x256xf32, #tpu.memory_space<vmem>>, %arg7: memref<1x5x256xf32, #tpu.memory_space<vmem>>) attributes {dimension_semantics = [#tpu.dimension_semantics<parallel>], iteration_bounds = array<i64: 2>, scalar_prefetch = 0 : i64, scratch_operands = 0 : i64, tpu.core_type = #tpu.core_type<tc>, window_params = [{transform_indices = @transform_0, window_bounds = array<i64: 1, 4, 768>}, {pipeline_mode = #tpu.pipeline_mode<synchronous>, transform_indices = @transform_1, window_bounds = array<i64: 768, 256>}, {pipeline_mode = #tpu.pipeline_mode<synchronous>, transform_indices = @transform_2, window_bounds = array<i64: 1, 256>}, {pipeline_mode = #tpu.pipeline_mode<synchronous>, transform_indices = @transform_3, window_bounds = array<i64: 5, 256>}, {pipeline_mode = #tpu.pipeline_mode<synchronous>, transform_indices = @transform_4, window_bounds = array<i64: 1, 256>}, {pipeline_mode = #tpu.pipeline_mode<synchronous>, transform_indices = @transform_5, window_bounds = array<i64: 1, 256>}, {transform_indices = @transform_6, window_bounds = array<i64: 1, 5, 256>}]} {
    %c0 = arith.constant 0 : index
    %c0_0 = arith.constant 0 : index
    %c0_1 = arith.constant 0 : index
    %0 = vector.load %arg1[%c0, %c0_0, %c0_1] : memref<1x4x768xf32, #tpu.memory_space<vmem>>, vector<1x4x768xf32>
    %1 = vector.shape_cast %0 : vector<1x4x768xf32> to vector<4x768xf32>
    %c0_2 = arith.constant 0 : index
    %c0_3 = arith.constant 0 : index
    %2 = vector.load %arg2[%c0_2, %c0_3] : memref<768x256xf32, #tpu.memory_space<vmem>>, vector<768x256xf32>
    %3 = arith.truncf %1 : vector<4x768xf32> to vector<4x768xbf16>
    %4 = arith.truncf %2 : vector<768x256xf32> to vector<768x256xbf16>
    %cst = arith.constant dense<0.000000e+00> : vector<4x256xf32>
    %5 = tpu.matmul %3, %4, %cst {dimension_numbers = #tpu.dot_dimension_numbers<[1], [0], [0], [1], [0, 0, 1, 1], [], []>} : vector<4x768xbf16>, vector<768x256xbf16>, vector<4x256xf32> -> vector<4x256xf32>
    %c0_4 = arith.constant 0 : index
    %c0_5 = arith.constant 0 : index
    %6 = vector.load %arg5[%c0_4, %c0_5] : memref<1x256xf32, #tpu.memory_space<vmem>>, vector<1x256xf32>
    %c0_6 = arith.constant 0 : index
    %c0_7 = arith.constant 0 : index
    %7 = vector.load %arg6[%c0_6, %c0_7] : memref<1x256xf32, #tpu.memory_space<vmem>>, vector<1x256xf32>
    %c0_8 = arith.constant 0 : index
    %c0_9 = arith.constant 0 : index
    %8 = vector.load %arg3[%c0_8, %c0_9] : memref<1x256xf32, #tpu.memory_space<vmem>>, vector<1x256xf32>
    %c0_10 = arith.constant 0 : index
    %c0_11 = arith.constant 0 : index
    %9 = vector.load %arg4[%c0_10, %c0_11] : memref<5x256xf32, #tpu.memory_space<vmem>>, vector<1x256xf32>
    %10 = arith.addf %8, %9 : vector<1x256xf32>
    %c1 = arith.constant 1 : index
    %c0_12 = arith.constant 0 : index
    %11 = vector.load %arg4[%c1, %c0_12] : memref<5x256xf32, #tpu.memory_space<vmem>>, vector<4x256xf32>
    %12 = arith.addf %5, %11 : vector<4x256xf32>
    %cst_13 = arith.constant dense<0.000000e+00> : vector<1xf32>
    %13 = vector.multi_reduction <add>, %10, %cst_13 [1] : vector<1x256xf32> to vector<1xf32>
    %14 = vector.shape_cast %13 : vector<1xf32> to vector<1x1xf32>
    %cst_14 = arith.constant 2.560000e+02 : f32
    %15 = vector.broadcast %cst_14 : f32 to vector<1x1xf32>
    %16 = arith.divf %14, %15 : vector<1x1xf32>
    %17 = vector.broadcast %16 : vector<1x1xf32> to vector<1x256xf32>
    %18 = arith.subf %10, %17 : vector<1x256xf32>
    %19 = arith.mulf %18, %18 : vector<1x256xf32>
    %cst_15 = arith.constant dense<0.000000e+00> : vector<1xf32>
    %20 = vector.multi_reduction <add>, %19, %cst_15 [1] : vector<1x256xf32> to vector<1xf32>
    %21 = vector.shape_cast %20 : vector<1xf32> to vector<1x1xf32>
    %cst_16 = arith.constant 2.560000e+02 : f32
    %22 = vector.broadcast %cst_16 : f32 to vector<1x1xf32>
    %23 = arith.divf %21, %22 : vector<1x1xf32>
    %24 = vector.broadcast %16 : vector<1x1xf32> to vector<1x256xf32>
    %25 = arith.subf %10, %24 : vector<1x256xf32>
    %cst_17 = arith.constant 9.99999974E-6 : f32
    %26 = vector.broadcast %cst_17 : f32 to vector<1x1xf32>
    %27 = arith.addf %23, %26 : vector<1x1xf32>
    %28 = math.rsqrt %27 : vector<1x1xf32>
    %29 = vector.broadcast %28 : vector<1x1xf32> to vector<1x256xf32>
    %30 = arith.mulf %25, %29 : vector<1x256xf32>
    %31 = arith.mulf %30, %6 : vector<1x256xf32>
    %32 = arith.addf %31, %7 : vector<1x256xf32>
    %c0_18 = arith.constant 0 : index
    %c0_19 = arith.constant 0 : index
    %c0_20 = arith.constant 0 : index
    %33 = vector.load %arg7[%c0_18, %c0_19, %c0_20] : memref<1x5x256xf32, #tpu.memory_space<vmem>>, vector<1x1x256xf32>
    %34 = vector.shape_cast %33 : vector<1x1x256xf32> to vector<1x256xf32>
    %35 = vector.shape_cast %32 : vector<1x256xf32> to vector<1x1x256xf32>
    tpu.vector_store %arg7[%c0_18, %c0_19, %c0_20], %35 {strides = array<i32>} : memref<1x5x256xf32, #tpu.memory_space<vmem>>, vector<1x1x256xf32>,
    %cst_21 = arith.constant dense<0.000000e+00> : vector<4xf32>
    %36 = vector.multi_reduction <add>, %12, %cst_21 [1] : vector<4x256xf32> to vector<4xf32>
    %37 = vector.shape_cast %36 : vector<4xf32> to vector<4x1xf32>
    %cst_22 = arith.constant 2.560000e+02 : f32
    %38 = vector.broadcast %cst_22 : f32 to vector<4x1xf32>
    %39 = arith.divf %37, %38 : vector<4x1xf32>
    %40 = vector.broadcast %39 : vector<4x1xf32> to vector<4x256xf32>
    %41 = arith.subf %12, %40 : vector<4x256xf32>
    %42 = arith.mulf %41, %41 : vector<4x256xf32>
    %cst_23 = arith.constant dense<0.000000e+00> : vector<4xf32>
    %43 = vector.multi_reduction <add>, %42, %cst_23 [1] : vector<4x256xf32> to vector<4xf32>
    %44 = vector.shape_cast %43 : vector<4xf32> to vector<4x1xf32>
    %cst_24 = arith.constant 2.560000e+02 : f32
    %45 = vector.broadcast %cst_24 : f32 to vector<4x1xf32>
    %46 = arith.divf %44, %45 : vector<4x1xf32>
    %47 = vector.broadcast %39 : vector<4x1xf32> to vector<4x256xf32>
    %48 = arith.subf %12, %47 : vector<4x256xf32>
    %cst_25 = arith.constant 9.99999974E-6 : f32
    %49 = vector.broadcast %cst_25 : f32 to vector<4x1xf32>
    %50 = arith.addf %46, %49 : vector<4x1xf32>
    %51 = math.rsqrt %50 : vector<4x1xf32>
    %52 = vector.broadcast %51 : vector<4x1xf32> to vector<4x256xf32>
    %53 = arith.mulf %48, %52 : vector<4x256xf32>
    %54 = vector.broadcast %6 : vector<1x256xf32> to vector<4x256xf32>
    %55 = arith.mulf %53, %54 : vector<4x256xf32>
    %56 = vector.broadcast %7 : vector<1x256xf32> to vector<4x256xf32>
    %57 = arith.addf %55, %56 : vector<4x256xf32>
    %c0_26 = arith.constant 0 : index
    %c1_27 = arith.constant 1 : index
    %c0_28 = arith.constant 0 : index
    %58 = vector.load %arg7[%c0_26, %c1_27, %c0_28] : memref<1x5x256xf32, #tpu.memory_space<vmem>>, vector<1x4x256xf32>
    %59 = vector.shape_cast %58 : vector<1x4x256xf32> to vector<4x256xf32>
    %60 = vector.shape_cast %57 : vector<4x256xf32> to vector<1x4x256xf32>
    tpu.vector_store %arg7[%c0_26, %c1_27, %c0_28], %60 {strides = array<i32>} : memref<1x5x256xf32, #tpu.memory_space<vmem>>, vector<1x4x256xf32>,
    return
  }
  func.func @transform_0(%arg0: i32) -> (i32, i32, i32) {
    %c0_i32 = arith.constant 0 : i32
    %c0_i32_0 = arith.constant 0 : i32
    %c0_i32_1 = arith.constant 0 : i32
    return %arg0, %c0_i32, %c0_i32_0 : i32, i32, i32
  }
  func.func @transform_1(%arg0: i32) -> (i32, i32) {
    %c0_i32 = arith.constant 0 : i32
    %c0_i32_0 = arith.constant 0 : i32
    %c0_i32_1 = arith.constant 0 : i32
    return %c0_i32, %c0_i32_0 : i32, i32
  }
  func.func @transform_2(%arg0: i32) -> (i32, i32) {
    %c0_i32 = arith.constant 0 : i32
    %c0_i32_0 = arith.constant 0 : i32
    %c0_i32_1 = arith.constant 0 : i32
    return %c0_i32, %c0_i32_0 : i32, i32
  }
  func.func @transform_3(%arg0: i32) -> (i32, i32) {
    %c0_i32 = arith.constant 0 : i32
    %c0_i32_0 = arith.constant 0 : i32
    %c0_i32_1 = arith.constant 0 : i32
    return %c0_i32, %c0_i32_0 : i32, i32
  }
  func.func @transform_4(%arg0: i32) -> (i32, i32) {
    %c0_i32 = arith.constant 0 : i32
    %c0_i32_0 = arith.constant 0 : i32
    %c0_i32_1 = arith.constant 0 : i32
    return %c0_i32, %c0_i32_0 : i32, i32
  }
  func.func @transform_5(%arg0: i32) -> (i32, i32) {
    %c0_i32 = arith.constant 0 : i32
    %c0_i32_0 = arith.constant 0 : i32
    %c0_i32_1 = arith.constant 0 : i32
    return %c0_i32, %c0_i32_0 : i32, i32
  }
  func.func @transform_6(%arg0: i32) -> (i32, i32, i32) {
    %c0_i32 = arith.constant 0 : i32
    %c0_i32_0 = arith.constant 0 : i32
    %c0_i32_1 = arith.constant 0 : i32
    return %arg0, %c0_i32, %c0_i32_0 : i32, i32, i32
  }
}

module attributes {stable_mosaic.version = 11 : i64} {
  func.func @_mlp_block_kernel(%arg0: i32, %arg1: memref<1x5x256xf32, #tpu.memory_space<vmem>>, %arg2: memref<1x256xf32, #tpu.memory_space<vmem>>, %arg3: memref<1x256xf32, #tpu.memory_space<vmem>>, %arg4: memref<256x1024xf32, #tpu.memory_space<vmem>>, %arg5: memref<1x1024xf32, #tpu.memory_space<vmem>>, %arg6: memref<1024x256xf32, #tpu.memory_space<vmem>>, %arg7: memref<1x256xf32, #tpu.memory_space<vmem>>, %arg8: memref<1x256xf32, #tpu.memory_space<vmem>>, %arg9: memref<1x256xf32, #tpu.memory_space<vmem>>, %arg10: memref<1x5x256xf32, #tpu.memory_space<vmem>>) attributes {dimension_semantics = [#tpu.dimension_semantics<parallel>], iteration_bounds = array<i64: 2>, scalar_prefetch = 0 : i64, scratch_operands = 0 : i64, tpu.core_type = #tpu.core_type<tc>, window_params = [{transform_indices = @transform_0, window_bounds = array<i64: 1, 5, 256>}, {pipeline_mode = #tpu.pipeline_mode<synchronous>, transform_indices = @transform_1, window_bounds = array<i64: 1, 256>}, {pipeline_mode = #tpu.pipeline_mode<synchronous>, transform_indices = @transform_2, window_bounds = array<i64: 1, 256>}, {pipeline_mode = #tpu.pipeline_mode<synchronous>, transform_indices = @transform_3, window_bounds = array<i64: 256, 1024>}, {pipeline_mode = #tpu.pipeline_mode<synchronous>, transform_indices = @transform_4, window_bounds = array<i64: 1, 1024>}, {pipeline_mode = #tpu.pipeline_mode<synchronous>, transform_indices = @transform_5, window_bounds = array<i64: 1024, 256>}, {pipeline_mode = #tpu.pipeline_mode<synchronous>, transform_indices = @transform_6, window_bounds = array<i64: 1, 256>}, {pipeline_mode = #tpu.pipeline_mode<synchronous>, transform_indices = @transform_7, window_bounds = array<i64: 1, 256>}, {pipeline_mode = #tpu.pipeline_mode<synchronous>, transform_indices = @transform_8, window_bounds = array<i64: 1, 256>}, {transform_indices = @transform_9, window_bounds = array<i64: 1, 5, 256>}]} {
    %c0 = arith.constant 0 : index
    %c0_0 = arith.constant 0 : index
    %c0_1 = arith.constant 0 : index
    %0 = vector.load %arg1[%c0, %c0_0, %c0_1] : memref<1x5x256xf32, #tpu.memory_space<vmem>>, vector<1x5x256xf32>
    %1 = vector.shape_cast %0 : vector<1x5x256xf32> to vector<5x256xf32>
    %c0_2 = arith.constant 0 : index
    %c0_3 = arith.constant 0 : index
    %2 = vector.load %arg2[%c0_2, %c0_3] : memref<1x256xf32, #tpu.memory_space<vmem>>, vector<1x256xf32>
    %c0_4 = arith.constant 0 : index
    %c0_5 = arith.constant 0 : index
    %3 = vector.load %arg3[%c0_4, %c0_5] : memref<1x256xf32, #tpu.memory_space<vmem>>, vector<1x256xf32>
    %cst = arith.constant dense<0.000000e+00> : vector<5xf32>
    %4 = vector.multi_reduction <add>, %1, %cst [1] : vector<5x256xf32> to vector<5xf32>
    %5 = vector.shape_cast %4 : vector<5xf32> to vector<5x1xf32>
    %cst_6 = arith.constant 2.560000e+02 : f32
    %6 = vector.broadcast %cst_6 : f32 to vector<5x1xf32>
    %7 = arith.divf %5, %6 : vector<5x1xf32>
    %8 = vector.broadcast %7 : vector<5x1xf32> to vector<5x256xf32>
    %9 = arith.subf %1, %8 : vector<5x256xf32>
    %10 = arith.mulf %9, %9 : vector<5x256xf32>
    %cst_7 = arith.constant dense<0.000000e+00> : vector<5xf32>
    %11 = vector.multi_reduction <add>, %10, %cst_7 [1] : vector<5x256xf32> to vector<5xf32>
    %12 = vector.shape_cast %11 : vector<5xf32> to vector<5x1xf32>
    %cst_8 = arith.constant 2.560000e+02 : f32
    %13 = vector.broadcast %cst_8 : f32 to vector<5x1xf32>
    %14 = arith.divf %12, %13 : vector<5x1xf32>
    %15 = vector.broadcast %7 : vector<5x1xf32> to vector<5x256xf32>
    %16 = arith.subf %1, %15 : vector<5x256xf32>
    %cst_9 = arith.constant 9.99999974E-6 : f32
    %17 = vector.broadcast %cst_9 : f32 to vector<5x1xf32>
    %18 = arith.addf %14, %17 : vector<5x1xf32>
    %19 = math.rsqrt %18 : vector<5x1xf32>
    %20 = vector.broadcast %19 : vector<5x1xf32> to vector<5x256xf32>
    %21 = arith.mulf %16, %20 : vector<5x256xf32>
    %22 = vector.broadcast %2 : vector<1x256xf32> to vector<5x256xf32>
    %23 = arith.mulf %21, %22 : vector<5x256xf32>
    %24 = vector.broadcast %3 : vector<1x256xf32> to vector<5x256xf32>
    %25 = arith.addf %23, %24 : vector<5x256xf32>
    %c0_10 = arith.constant 0 : index
    %c0_11 = arith.constant 0 : index
    %26 = vector.load %arg4[%c0_10, %c0_11] : memref<256x1024xf32, #tpu.memory_space<vmem>>, vector<256x1024xf32>
    %27 = arith.truncf %25 : vector<5x256xf32> to vector<5x256xbf16>
    %28 = arith.truncf %26 : vector<256x1024xf32> to vector<256x1024xbf16>
    %cst_12 = arith.constant dense<0.000000e+00> : vector<5x1024xf32>
    %29 = tpu.matmul %27, %28, %cst_12 {dimension_numbers = #tpu.dot_dimension_numbers<[1], [0], [0], [1], [0, 0, 1, 1], [], []>} : vector<5x256xbf16>, vector<256x1024xbf16>, vector<5x1024xf32> -> vector<5x1024xf32>
    %c0_13 = arith.constant 0 : index
    %c0_14 = arith.constant 0 : index
    %30 = vector.load %arg5[%c0_13, %c0_14] : memref<1x1024xf32, #tpu.memory_space<vmem>>, vector<1x1024xf32>
    %31 = vector.broadcast %30 : vector<1x1024xf32> to vector<5x1024xf32>
    %32 = arith.addf %29, %31 : vector<5x1024xf32>
    %cst_15 = arith.constant 1.702000e+00 : f32
    %33 = vector.broadcast %cst_15 : f32 to vector<5x1024xf32>
    %34 = arith.mulf %33, %32 : vector<5x1024xf32>
    %35 = arith.negf %34 : vector<5x1024xf32>
    %36 = math.exp %35 : vector<5x1024xf32>
    %cst_16 = arith.constant 1.000000e+00 : f32
    %37 = vector.broadcast %cst_16 : f32 to vector<5x1024xf32>
    %38 = arith.addf %37, %36 : vector<5x1024xf32>
    %39 = arith.divf %37, %38 : vector<5x1024xf32>
    %40 = arith.mulf %32, %39 : vector<5x1024xf32>
    %c0_17 = arith.constant 0 : index
    %c0_18 = arith.constant 0 : index
    %41 = vector.load %arg6[%c0_17, %c0_18] : memref<1024x256xf32, #tpu.memory_space<vmem>>, vector<1024x256xf32>
    %42 = arith.truncf %40 : vector<5x1024xf32> to vector<5x1024xbf16>
    %43 = arith.truncf %41 : vector<1024x256xf32> to vector<1024x256xbf16>
    %cst_19 = arith.constant dense<0.000000e+00> : vector<5x256xf32>
    %44 = tpu.matmul %42, %43, %cst_19 {dimension_numbers = #tpu.dot_dimension_numbers<[1], [0], [0], [1], [0, 0, 1, 1], [], []>} : vector<5x1024xbf16>, vector<1024x256xbf16>, vector<5x256xf32> -> vector<5x256xf32>
    %c0_20 = arith.constant 0 : index
    %c0_21 = arith.constant 0 : index
    %45 = vector.load %arg7[%c0_20, %c0_21] : memref<1x256xf32, #tpu.memory_space<vmem>>, vector<1x256xf32>
    %46 = vector.broadcast %45 : vector<1x256xf32> to vector<5x256xf32>
    %47 = arith.addf %44, %46 : vector<5x256xf32>
    %48 = arith.addf %1, %47 : vector<5x256xf32>
    %c0_22 = arith.constant 0 : index
    %c0_23 = arith.constant 0 : index
    %c0_24 = arith.constant 0 : index
    %49 = vector.load %arg10[%c0_22, %c0_23, %c0_24] : memref<1x5x256xf32, #tpu.memory_space<vmem>>, vector<1x5x256xf32>
    %50 = vector.shape_cast %49 : vector<1x5x256xf32> to vector<5x256xf32>
    %51 = vector.shape_cast %48 : vector<5x256xf32> to vector<1x5x256xf32>
    tpu.vector_store %arg10[%c0_22, %c0_23, %c0_24], %51 {strides = array<i32>} : memref<1x5x256xf32, #tpu.memory_space<vmem>>, vector<1x5x256xf32>,
    return
  }
  func.func @transform_0(%arg0: i32) -> (i32, i32, i32) {
    %c0_i32 = arith.constant 0 : i32
    %c0_i32_0 = arith.constant 0 : i32
    %c0_i32_1 = arith.constant 0 : i32
    return %arg0, %c0_i32, %c0_i32_0 : i32, i32, i32
  }
  func.func @transform_1(%arg0: i32) -> (i32, i32) {
    %c0_i32 = arith.constant 0 : i32
    %c0_i32_0 = arith.constant 0 : i32
    %c0_i32_1 = arith.constant 0 : i32
    return %c0_i32, %c0_i32_0 : i32, i32
  }
  func.func @transform_2(%arg0: i32) -> (i32, i32) {
    %c0_i32 = arith.constant 0 : i32
    %c0_i32_0 = arith.constant 0 : i32
    %c0_i32_1 = arith.constant 0 : i32
    return %c0_i32, %c0_i32_0 : i32, i32
  }
  func.func @transform_3(%arg0: i32) -> (i32, i32) {
    %c0_i32 = arith.constant 0 : i32
    %c0_i32_0 = arith.constant 0 : i32
    %c0_i32_1 = arith.constant 0 : i32
    return %c0_i32, %c0_i32_0 : i32, i32
  }
  func.func @transform_4(%arg0: i32) -> (i32, i32) {
    %c0_i32 = arith.constant 0 : i32
    %c0_i32_0 = arith.constant 0 : i32
    %c0_i32_1 = arith.constant 0 : i32
    return %c0_i32, %c0_i32_0 : i32, i32
  }
  func.func @transform_5(%arg0: i32) -> (i32, i32) {
    %c0_i32 = arith.constant 0 : i32
    %c0_i32_0 = arith.constant 0 : i32
    %c0_i32_1 = arith.constant 0 : i32
    return %c0_i32, %c0_i32_0 : i32, i32
  }
  func.func @transform_6(%arg0: i32) -> (i32, i32) {
    %c0_i32 = arith.constant 0 : i32
    %c0_i32_0 = arith.constant 0 : i32
    %c0_i32_1 = arith.constant 0 : i32
    return %c0_i32, %c0_i32_0 : i32, i32
  }
  func.func @transform_7(%arg0: i32) -> (i32, i32) {
    %c0_i32 = arith.constant 0 : i32
    %c0_i32_0 = arith.constant 0 : i32
    %c0_i32_1 = arith.constant 0 : i32
    return %c0_i32, %c0_i32_0 : i32, i32
  }
  func.func @transform_8(%arg0: i32) -> (i32, i32) {
    %c0_i32 = arith.constant 0 : i32
    %c0_i32_0 = arith.constant 0 : i32
    %c0_i32_1 = arith.constant 0 : i32
    return %c0_i32, %c0_i32_0 : i32, i32
  }
  func.func @transform_9(%arg0: i32) -> (i32, i32, i32) {
    %c0_i32 = arith.constant 0 : i32
    %c0_i32_0 = arith.constant 0 : i32
    %c0_i32_1 = arith.constant 0 : i32
    return %arg0, %c0_i32, %c0_i32_0 : i32, i32, i32
  }
}

module attributes {stable_mosaic.version = 11 : i64} {
  func.func @_attn_block_kernel(%arg0: i32, %arg1: memref<1x5x256xf32, #tpu.memory_space<vmem>>, %arg2: memref<1x256xf32, #tpu.memory_space<vmem>>, %arg3: memref<1x256xf32, #tpu.memory_space<vmem>>, %arg4: memref<256x768xf32, #tpu.memory_space<vmem>>, %arg5: memref<1x768xf32, #tpu.memory_space<vmem>>, %arg6: memref<256x256xf32, #tpu.memory_space<vmem>>, %arg7: memref<1x256xf32, #tpu.memory_space<vmem>>, %arg8: memref<1x5x256xf32, #tpu.memory_space<vmem>>, %arg9: memref<5x256xf32, #tpu.memory_space<vmem>>) attributes {dimension_semantics = [#tpu.dimension_semantics<parallel>], iteration_bounds = array<i64: 2>, scalar_prefetch = 0 : i64, scratch_operands = 1 : i64, tpu.core_type = #tpu.core_type<tc>, window_params = [{transform_indices = @transform_0, window_bounds = array<i64: 1, 5, 256>}, {pipeline_mode = #tpu.pipeline_mode<synchronous>, transform_indices = @transform_1, window_bounds = array<i64: 1, 256>}, {pipeline_mode = #tpu.pipeline_mode<synchronous>, transform_indices = @transform_2, window_bounds = array<i64: 1, 256>}, {pipeline_mode = #tpu.pipeline_mode<synchronous>, transform_indices = @transform_3, window_bounds = array<i64: 256, 768>}, {pipeline_mode = #tpu.pipeline_mode<synchronous>, transform_indices = @transform_4, window_bounds = array<i64: 1, 768>}, {pipeline_mode = #tpu.pipeline_mode<synchronous>, transform_indices = @transform_5, window_bounds = array<i64: 256, 256>}, {pipeline_mode = #tpu.pipeline_mode<synchronous>, transform_indices = @transform_6, window_bounds = array<i64: 1, 256>}, {transform_indices = @transform_7, window_bounds = array<i64: 1, 5, 256>}]} {
    %c0 = arith.constant 0 : index
    %c0_0 = arith.constant 0 : index
    %c0_1 = arith.constant 0 : index
    %0 = vector.load %arg1[%c0, %c0_0, %c0_1] : memref<1x5x256xf32, #tpu.memory_space<vmem>>, vector<1x5x256xf32>
    %1 = vector.shape_cast %0 : vector<1x5x256xf32> to vector<5x256xf32>
    %c0_2 = arith.constant 0 : index
    %c0_3 = arith.constant 0 : index
    %2 = vector.load %arg2[%c0_2, %c0_3] : memref<1x256xf32, #tpu.memory_space<vmem>>, vector<1x256xf32>
    %c0_4 = arith.constant 0 : index
    %c0_5 = arith.constant 0 : index
    %3 = vector.load %arg3[%c0_4, %c0_5] : memref<1x256xf32, #tpu.memory_space<vmem>>, vector<1x256xf32>
    %cst = arith.constant dense<0.000000e+00> : vector<5xf32>
    %4 = vector.multi_reduction <add>, %1, %cst [1] : vector<5x256xf32> to vector<5xf32>
    %5 = vector.shape_cast %4 : vector<5xf32> to vector<5x1xf32>
    %cst_6 = arith.constant 2.560000e+02 : f32
    %6 = vector.broadcast %cst_6 : f32 to vector<5x1xf32>
    %7 = arith.divf %5, %6 : vector<5x1xf32>
    %8 = vector.broadcast %7 : vector<5x1xf32> to vector<5x256xf32>
    %9 = arith.subf %1, %8 : vector<5x256xf32>
    %10 = arith.mulf %9, %9 : vector<5x256xf32>
    %cst_7 = arith.constant dense<0.000000e+00> : vector<5xf32>
    %11 = vector.multi_reduction <add>, %10, %cst_7 [1] : vector<5x256xf32> to vector<5xf32>
    %12 = vector.shape_cast %11 : vector<5xf32> to vector<5x1xf32>
    %cst_8 = arith.constant 2.560000e+02 : f32
    %13 = vector.broadcast %cst_8 : f32 to vector<5x1xf32>
    %14 = arith.divf %12, %13 : vector<5x1xf32>
    %15 = vector.broadcast %7 : vector<5x1xf32> to vector<5x256xf32>
    %16 = arith.subf %1, %15 : vector<5x256xf32>
    %cst_9 = arith.constant 9.99999974E-6 : f32
    %17 = vector.broadcast %cst_9 : f32 to vector<5x1xf32>
    %18 = arith.addf %14, %17 : vector<5x1xf32>
    %19 = math.rsqrt %18 : vector<5x1xf32>
    %20 = vector.broadcast %19 : vector<5x1xf32> to vector<5x256xf32>
    %21 = arith.mulf %16, %20 : vector<5x256xf32>
    %22 = vector.broadcast %2 : vector<1x256xf32> to vector<5x256xf32>
    %23 = arith.mulf %21, %22 : vector<5x256xf32>
    %24 = vector.broadcast %3 : vector<1x256xf32> to vector<5x256xf32>
    %25 = arith.addf %23, %24 : vector<5x256xf32>
    %c0_10 = arith.constant 0 : index
    %c0_11 = arith.constant 0 : index
    %26 = vector.load %arg4[%c0_10, %c0_11] : memref<256x768xf32, #tpu.memory_space<vmem>>, vector<256x768xf32>
    %27 = arith.truncf %25 : vector<5x256xf32> to vector<5x256xbf16>
    %28 = arith.truncf %26 : vector<256x768xf32> to vector<256x768xbf16>
    %cst_12 = arith.constant dense<0.000000e+00> : vector<5x768xf32>
    %29 = tpu.matmul %27, %28, %cst_12 {dimension_numbers = #tpu.dot_dimension_numbers<[1], [0], [0], [1], [0, 0, 1, 1], [], []>} : vector<5x256xbf16>, vector<256x768xbf16>, vector<5x768xf32> -> vector<5x768xf32>
    %c0_13 = arith.constant 0 : index
    %c0_14 = arith.constant 0 : index
    %30 = vector.load %arg5[%c0_13, %c0_14] : memref<1x768xf32, #tpu.memory_space<vmem>>, vector<1x768xf32>
    %31 = vector.broadcast %30 : vector<1x768xf32> to vector<5x768xf32>
    %32 = arith.addf %29, %31 : vector<5x768xf32>
    %33 = vector.extract_strided_slice %32 {offsets = [0, 0], sizes = [5, 128], strides = [1, 1]} : vector<5x768xf32> to vector<5x128xf32>
    %34 = vector.extract_strided_slice %32 {offsets = [0, 256], sizes = [5, 128], strides = [1, 1]} : vector<5x768xf32> to vector<5x128xf32>
    %35 = vector.extract_strided_slice %32 {offsets = [0, 512], sizes = [5, 128], strides = [1, 1]} : vector<5x768xf32> to vector<5x128xf32>
    %36 = arith.truncf %33 : vector<5x128xf32> to vector<5x128xbf16>
    %37 = arith.truncf %34 : vector<5x128xf32> to vector<5x128xbf16>
    %cst_15 = arith.constant dense<0.000000e+00> : vector<5x5xf32>
    %38 = tpu.matmul %36, %37, %cst_15 {dimension_numbers = #tpu.dot_dimension_numbers<[1], [1], [0], [0], [0, 0, 1, 0], [], []>} : vector<5x128xbf16>, vector<5x128xbf16>, vector<5x5xf32> -> vector<5x5xf32>
    %cst_16 = arith.constant 0.0883883461 : f32
    %39 = vector.broadcast %cst_16 : f32 to vector<5x5xf32>
    %40 = arith.mulf %38, %39 : vector<5x5xf32>
    %cst_17 = arith.constant dense<0xFF800000> : vector<5xf32>
    %41 = vector.multi_reduction <maximumf>, %40, %cst_17 [1] : vector<5x5xf32> to vector<5xf32>
    %42 = vector.shape_cast %41 : vector<5xf32> to vector<5x1xf32>
    %43 = vector.broadcast %42 : vector<5x1xf32> to vector<5x5xf32>
    %44 = arith.subf %40, %43 : vector<5x5xf32>
    %45 = math.exp %44 : vector<5x5xf32>
    %cst_18 = arith.constant dense<0.000000e+00> : vector<5xf32>
    %46 = vector.multi_reduction <add>, %45, %cst_18 [1] : vector<5x5xf32> to vector<5xf32>
    %47 = vector.shape_cast %46 : vector<5xf32> to vector<5x1xf32>
    %48 = tpu.reciprocal %47 {approx = true} : vector<5x1xf32> -> vector<5x1xf32>
    %49 = vector.broadcast %48 : vector<5x1xf32> to vector<5x5xf32>
    %50 = arith.mulf %45, %49 : vector<5x5xf32>
    %51 = arith.truncf %50 : vector<5x5xf32> to vector<5x5xbf16>
    %52 = arith.truncf %35 : vector<5x128xf32> to vector<5x128xbf16>
    %cst_19 = arith.constant dense<0.000000e+00> : vector<5x128xf32>
    %53 = tpu.matmul %51, %52, %cst_19 {dimension_numbers = #tpu.dot_dimension_numbers<[1], [0], [0], [1], [0, 0, 1, 1], [], []>} : vector<5x5xbf16>, vector<5x128xbf16>, vector<5x128xf32> -> vector<5x128xf32>
    %c0_20 = arith.constant 0 : index
    %c0_21 = arith.constant 0 : index
    %54 = vector.load %arg9[%c0_20, %c0_21] : memref<5x256xf32, #tpu.memory_space<vmem>>, vector<5x128xf32>
    tpu.vector_store %arg9[%c0_20, %c0_21], %53 {strides = array<i32>} : memref<5x256xf32, #tpu.memory_space<vmem>>, vector<5x128xf32>,
    %55 = vector.extract_strided_slice %32 {offsets = [0, 128], sizes = [5, 128], strides = [1, 1]} : vector<5x768xf32> to vector<5x128xf32>
    %56 = vector.extract_strided_slice %32 {offsets = [0, 384], sizes = [5, 128], strides = [1, 1]} : vector<5x768xf32> to vector<5x128xf32>
    %57 = vector.extract_strided_slice %32 {offsets = [0, 640], sizes = [5, 128], strides = [1, 1]} : vector<5x768xf32> to vector<5x128xf32>
    %58 = arith.truncf %55 : vector<5x128xf32> to vector<5x128xbf16>
    %59 = arith.truncf %56 : vector<5x128xf32> to vector<5x128xbf16>
    %cst_22 = arith.constant dense<0.000000e+00> : vector<5x5xf32>
    %60 = tpu.matmul %58, %59, %cst_22 {dimension_numbers = #tpu.dot_dimension_numbers<[1], [1], [0], [0], [0, 0, 1, 0], [], []>} : vector<5x128xbf16>, vector<5x128xbf16>, vector<5x5xf32> -> vector<5x5xf32>
    %cst_23 = arith.constant 0.0883883461 : f32
    %61 = vector.broadcast %cst_23 : f32 to vector<5x5xf32>
    %62 = arith.mulf %60, %61 : vector<5x5xf32>
    %cst_24 = arith.constant dense<0xFF800000> : vector<5xf32>
    %63 = vector.multi_reduction <maximumf>, %62, %cst_24 [1] : vector<5x5xf32> to vector<5xf32>
    %64 = vector.shape_cast %63 : vector<5xf32> to vector<5x1xf32>
    %65 = vector.broadcast %64 : vector<5x1xf32> to vector<5x5xf32>
    %66 = arith.subf %62, %65 : vector<5x5xf32>
    %67 = math.exp %66 : vector<5x5xf32>
    %cst_25 = arith.constant dense<0.000000e+00> : vector<5xf32>
    %68 = vector.multi_reduction <add>, %67, %cst_25 [1] : vector<5x5xf32> to vector<5xf32>
    %69 = vector.shape_cast %68 : vector<5xf32> to vector<5x1xf32>
    %70 = tpu.reciprocal %69 {approx = true} : vector<5x1xf32> -> vector<5x1xf32>
    %71 = vector.broadcast %70 : vector<5x1xf32> to vector<5x5xf32>
    %72 = arith.mulf %67, %71 : vector<5x5xf32>
    %73 = arith.truncf %72 : vector<5x5xf32> to vector<5x5xbf16>
    %74 = arith.truncf %57 : vector<5x128xf32> to vector<5x128xbf16>
    %cst_26 = arith.constant dense<0.000000e+00> : vector<5x128xf32>
    %75 = tpu.matmul %73, %74, %cst_26 {dimension_numbers = #tpu.dot_dimension_numbers<[1], [0], [0], [1], [0, 0, 1, 1], [], []>} : vector<5x5xbf16>, vector<5x128xbf16>, vector<5x128xf32> -> vector<5x128xf32>
    %c0_27 = arith.constant 0 : index
    %c128 = arith.constant 128 : index
    %76 = vector.load %arg9[%c0_27, %c128] : memref<5x256xf32, #tpu.memory_space<vmem>>, vector<5x128xf32>
    tpu.vector_store %arg9[%c0_27, %c128], %75 {strides = array<i32>} : memref<5x256xf32, #tpu.memory_space<vmem>>, vector<5x128xf32>,
    %c0_28 = arith.constant 0 : index
    %c0_29 = arith.constant 0 : index
    %77 = vector.load %arg9[%c0_28, %c0_29] : memref<5x256xf32, #tpu.memory_space<vmem>>, vector<5x256xf32>
    %c0_30 = arith.constant 0 : index
    %c0_31 = arith.constant 0 : index
    %78 = vector.load %arg6[%c0_30, %c0_31] : memref<256x256xf32, #tpu.memory_space<vmem>>, vector<256x256xf32>
    %79 = arith.truncf %77 : vector<5x256xf32> to vector<5x256xbf16>
    %80 = arith.truncf %78 : vector<256x256xf32> to vector<256x256xbf16>
    %cst_32 = arith.constant dense<0.000000e+00> : vector<5x256xf32>
    %81 = tpu.matmul %79, %80, %cst_32 {dimension_numbers = #tpu.dot_dimension_numbers<[1], [0], [0], [1], [0, 0, 1, 1], [], []>} : vector<5x256xbf16>, vector<256x256xbf16>, vector<5x256xf32> -> vector<5x256xf32>
    %c0_33 = arith.constant 0 : index
    %c0_34 = arith.constant 0 : index
    %82 = vector.load %arg7[%c0_33, %c0_34] : memref<1x256xf32, #tpu.memory_space<vmem>>, vector<1x256xf32>
    %83 = vector.broadcast %82 : vector<1x256xf32> to vector<5x256xf32>
    %84 = arith.addf %81, %83 : vector<5x256xf32>
    %85 = arith.addf %1, %84 : vector<5x256xf32>
    %c0_35 = arith.constant 0 : index
    %c0_36 = arith.constant 0 : index
    %c0_37 = arith.constant 0 : index
    %86 = vector.load %arg8[%c0_35, %c0_36, %c0_37] : memref<1x5x256xf32, #tpu.memory_space<vmem>>, vector<1x5x256xf32>
    %87 = vector.shape_cast %86 : vector<1x5x256xf32> to vector<5x256xf32>
    %88 = vector.shape_cast %85 : vector<5x256xf32> to vector<1x5x256xf32>
    tpu.vector_store %arg8[%c0_35, %c0_36, %c0_37], %88 {strides = array<i32>} : memref<1x5x256xf32, #tpu.memory_space<vmem>>, vector<1x5x256xf32>,
    return
  }
  func.func @transform_0(%arg0: i32) -> (i32, i32, i32) {
    %c0_i32 = arith.constant 0 : i32
    %c0_i32_0 = arith.constant 0 : i32
    %c0_i32_1 = arith.constant 0 : i32
    return %arg0, %c0_i32, %c0_i32_0 : i32, i32, i32
  }
  func.func @transform_1(%arg0: i32) -> (i32, i32) {
    %c0_i32 = arith.constant 0 : i32
    %c0_i32_0 = arith.constant 0 : i32
    %c0_i32_1 = arith.constant 0 : i32
    return %c0_i32, %c0_i32_0 : i32, i32
  }
  func.func @transform_2(%arg0: i32) -> (i32, i32) {
    %c0_i32 = arith.constant 0 : i32
    %c0_i32_0 = arith.constant 0 : i32
    %c0_i32_1 = arith.constant 0 : i32
    return %c0_i32, %c0_i32_0 : i32, i32
  }
  func.func @transform_3(%arg0: i32) -> (i32, i32) {
    %c0_i32 = arith.constant 0 : i32
    %c0_i32_0 = arith.constant 0 : i32
    %c0_i32_1 = arith.constant 0 : i32
    return %c0_i32, %c0_i32_0 : i32, i32
  }
  func.func @transform_4(%arg0: i32) -> (i32, i32) {
    %c0_i32 = arith.constant 0 : i32
    %c0_i32_0 = arith.constant 0 : i32
    %c0_i32_1 = arith.constant 0 : i32
    return %c0_i32, %c0_i32_0 : i32, i32
  }
  func.func @transform_5(%arg0: i32) -> (i32, i32) {
    %c0_i32 = arith.constant 0 : i32
    %c0_i32_0 = arith.constant 0 : i32
    %c0_i32_1 = arith.constant 0 : i32
    return %c0_i32, %c0_i32_0 : i32, i32
  }
  func.func @transform_6(%arg0: i32) -> (i32, i32) {
    %c0_i32 = arith.constant 0 : i32
    %c0_i32_0 = arith.constant 0 : i32
    %c0_i32_1 = arith.constant 0 : i32
    return %c0_i32, %c0_i32_0 : i32, i32
  }
  func.func @transform_7(%arg0: i32) -> (i32, i32, i32) {
    %c0_i32 = arith.constant 0 : i32
    %c0_i32_0 = arith.constant 0 : i32
    %c0_i32_1 = arith.constant 0 : i32
    return %arg0, %c0_i32, %c0_i32_0 : i32, i32, i32
  }
}

module attributes {stable_mosaic.version = 11 : i64} {
  func.func @_attn_block_kernel(%arg0: i32, %arg1: memref<1x5x256xf32, #tpu.memory_space<vmem>>, %arg2: memref<1x256xf32, #tpu.memory_space<vmem>>, %arg3: memref<1x256xf32, #tpu.memory_space<vmem>>, %arg4: memref<256x768xf32, #tpu.memory_space<vmem>>, %arg5: memref<1x768xf32, #tpu.memory_space<vmem>>, %arg6: memref<256x256xf32, #tpu.memory_space<vmem>>, %arg7: memref<1x256xf32, #tpu.memory_space<vmem>>, %arg8: memref<1x5x256xf32, #tpu.memory_space<vmem>>, %arg9: memref<5x256xf32, #tpu.memory_space<vmem>>) attributes {dimension_semantics = [#tpu.dimension_semantics<parallel>], iteration_bounds = array<i64: 2>, scalar_prefetch = 0 : i64, scratch_operands = 1 : i64, tpu.core_type = #tpu.core_type<tc>, window_params = [{transform_indices = @transform_0, window_bounds = array<i64: 1, 5, 256>}, {pipeline_mode = #tpu.pipeline_mode<synchronous>, transform_indices = @transform_1, window_bounds = array<i64: 1, 256>}, {pipeline_mode = #tpu.pipeline_mode<synchronous>, transform_indices = @transform_2, window_bounds = array<i64: 1, 256>}, {pipeline_mode = #tpu.pipeline_mode<synchronous>, transform_indices = @transform_3, window_bounds = array<i64: 256, 768>}, {pipeline_mode = #tpu.pipeline_mode<synchronous>, transform_indices = @transform_4, window_bounds = array<i64: 1, 768>}, {pipeline_mode = #tpu.pipeline_mode<synchronous>, transform_indices = @transform_5, window_bounds = array<i64: 256, 256>}, {pipeline_mode = #tpu.pipeline_mode<synchronous>, transform_indices = @transform_6, window_bounds = array<i64: 1, 256>}, {transform_indices = @transform_7, window_bounds = array<i64: 1, 5, 256>}]} {
    %c0 = arith.constant 0 : index
    %c0_0 = arith.constant 0 : index
    %c0_1 = arith.constant 0 : index
    %0 = vector.load %arg1[%c0, %c0_0, %c0_1] : memref<1x5x256xf32, #tpu.memory_space<vmem>>, vector<1x5x256xf32>
    %1 = vector.shape_cast %0 : vector<1x5x256xf32> to vector<5x256xf32>
    %c0_2 = arith.constant 0 : index
    %c0_3 = arith.constant 0 : index
    %2 = vector.load %arg2[%c0_2, %c0_3] : memref<1x256xf32, #tpu.memory_space<vmem>>, vector<1x256xf32>
    %c0_4 = arith.constant 0 : index
    %c0_5 = arith.constant 0 : index
    %3 = vector.load %arg3[%c0_4, %c0_5] : memref<1x256xf32, #tpu.memory_space<vmem>>, vector<1x256xf32>
    %cst = arith.constant dense<0.000000e+00> : vector<5xf32>
    %4 = vector.multi_reduction <add>, %1, %cst [1] : vector<5x256xf32> to vector<5xf32>
    %5 = vector.shape_cast %4 : vector<5xf32> to vector<5x1xf32>
    %cst_6 = arith.constant 2.560000e+02 : f32
    %6 = vector.broadcast %cst_6 : f32 to vector<5x1xf32>
    %7 = arith.divf %5, %6 : vector<5x1xf32>
    %8 = vector.broadcast %7 : vector<5x1xf32> to vector<5x256xf32>
    %9 = arith.subf %1, %8 : vector<5x256xf32>
    %10 = arith.mulf %9, %9 : vector<5x256xf32>
    %cst_7 = arith.constant dense<0.000000e+00> : vector<5xf32>
    %11 = vector.multi_reduction <add>, %10, %cst_7 [1] : vector<5x256xf32> to vector<5xf32>
    %12 = vector.shape_cast %11 : vector<5xf32> to vector<5x1xf32>
    %cst_8 = arith.constant 2.560000e+02 : f32
    %13 = vector.broadcast %cst_8 : f32 to vector<5x1xf32>
    %14 = arith.divf %12, %13 : vector<5x1xf32>
    %15 = vector.broadcast %7 : vector<5x1xf32> to vector<5x256xf32>
    %16 = arith.subf %1, %15 : vector<5x256xf32>
    %cst_9 = arith.constant 9.99999974E-6 : f32
    %17 = vector.broadcast %cst_9 : f32 to vector<5x1xf32>
    %18 = arith.addf %14, %17 : vector<5x1xf32>
    %19 = math.rsqrt %18 : vector<5x1xf32>
    %20 = vector.broadcast %19 : vector<5x1xf32> to vector<5x256xf32>
    %21 = arith.mulf %16, %20 : vector<5x256xf32>
    %22 = vector.broadcast %2 : vector<1x256xf32> to vector<5x256xf32>
    %23 = arith.mulf %21, %22 : vector<5x256xf32>
    %24 = vector.broadcast %3 : vector<1x256xf32> to vector<5x256xf32>
    %25 = arith.addf %23, %24 : vector<5x256xf32>
    %c0_10 = arith.constant 0 : index
    %c0_11 = arith.constant 0 : index
    %26 = vector.load %arg4[%c0_10, %c0_11] : memref<256x768xf32, #tpu.memory_space<vmem>>, vector<256x768xf32>
    %27 = arith.truncf %25 : vector<5x256xf32> to vector<5x256xbf16>
    %28 = arith.truncf %26 : vector<256x768xf32> to vector<256x768xbf16>
    %cst_12 = arith.constant dense<0.000000e+00> : vector<5x768xf32>
    %29 = tpu.matmul %27, %28, %cst_12 {dimension_numbers = #tpu.dot_dimension_numbers<[1], [0], [0], [1], [0, 0, 1, 1], [], []>} : vector<5x256xbf16>, vector<256x768xbf16>, vector<5x768xf32> -> vector<5x768xf32>
    %c0_13 = arith.constant 0 : index
    %c0_14 = arith.constant 0 : index
    %30 = vector.load %arg5[%c0_13, %c0_14] : memref<1x768xf32, #tpu.memory_space<vmem>>, vector<1x768xf32>
    %31 = vector.broadcast %30 : vector<1x768xf32> to vector<5x768xf32>
    %32 = arith.addf %29, %31 : vector<5x768xf32>
    %33 = vector.extract_strided_slice %32 {offsets = [0, 0], sizes = [5, 128], strides = [1, 1]} : vector<5x768xf32> to vector<5x128xf32>
    %34 = vector.extract_strided_slice %32 {offsets = [0, 256], sizes = [5, 128], strides = [1, 1]} : vector<5x768xf32> to vector<5x128xf32>
    %35 = vector.extract_strided_slice %32 {offsets = [0, 512], sizes = [5, 128], strides = [1, 1]} : vector<5x768xf32> to vector<5x128xf32>
    %36 = arith.truncf %33 : vector<5x128xf32> to vector<5x128xbf16>
    %37 = arith.truncf %34 : vector<5x128xf32> to vector<5x128xbf16>
    %cst_15 = arith.constant dense<0.000000e+00> : vector<5x5xf32>
    %38 = tpu.matmul %36, %37, %cst_15 {dimension_numbers = #tpu.dot_dimension_numbers<[1], [1], [0], [0], [0, 0, 1, 0], [], []>} : vector<5x128xbf16>, vector<5x128xbf16>, vector<5x5xf32> -> vector<5x5xf32>
    %cst_16 = arith.constant 0.0883883461 : f32
    %39 = vector.broadcast %cst_16 : f32 to vector<5x5xf32>
    %40 = arith.mulf %38, %39 : vector<5x5xf32>
    %cst_17 = arith.constant dense<0xFF800000> : vector<5xf32>
    %41 = vector.multi_reduction <maximumf>, %40, %cst_17 [1] : vector<5x5xf32> to vector<5xf32>
    %42 = vector.shape_cast %41 : vector<5xf32> to vector<5x1xf32>
    %43 = vector.broadcast %42 : vector<5x1xf32> to vector<5x5xf32>
    %44 = arith.subf %40, %43 : vector<5x5xf32>
    %45 = math.exp %44 : vector<5x5xf32>
    %cst_18 = arith.constant dense<0.000000e+00> : vector<5xf32>
    %46 = vector.multi_reduction <add>, %45, %cst_18 [1] : vector<5x5xf32> to vector<5xf32>
    %47 = vector.shape_cast %46 : vector<5xf32> to vector<5x1xf32>
    %48 = tpu.reciprocal %47 {approx = true} : vector<5x1xf32> -> vector<5x1xf32>
    %49 = vector.broadcast %48 : vector<5x1xf32> to vector<5x5xf32>
    %50 = arith.mulf %45, %49 : vector<5x5xf32>
    %51 = arith.truncf %50 : vector<5x5xf32> to vector<5x5xbf16>
    %52 = arith.truncf %35 : vector<5x128xf32> to vector<5x128xbf16>
    %cst_19 = arith.constant dense<0.000000e+00> : vector<5x128xf32>
    %53 = tpu.matmul %51, %52, %cst_19 {dimension_numbers = #tpu.dot_dimension_numbers<[1], [0], [0], [1], [0, 0, 1, 1], [], []>} : vector<5x5xbf16>, vector<5x128xbf16>, vector<5x128xf32> -> vector<5x128xf32>
    %c0_20 = arith.constant 0 : index
    %c0_21 = arith.constant 0 : index
    %54 = vector.load %arg9[%c0_20, %c0_21] : memref<5x256xf32, #tpu.memory_space<vmem>>, vector<5x128xf32>
    tpu.vector_store %arg9[%c0_20, %c0_21], %53 {strides = array<i32>} : memref<5x256xf32, #tpu.memory_space<vmem>>, vector<5x128xf32>,
    %55 = vector.extract_strided_slice %32 {offsets = [0, 128], sizes = [5, 128], strides = [1, 1]} : vector<5x768xf32> to vector<5x128xf32>
    %56 = vector.extract_strided_slice %32 {offsets = [0, 384], sizes = [5, 128], strides = [1, 1]} : vector<5x768xf32> to vector<5x128xf32>
    %57 = vector.extract_strided_slice %32 {offsets = [0, 640], sizes = [5, 128], strides = [1, 1]} : vector<5x768xf32> to vector<5x128xf32>
    %58 = arith.truncf %55 : vector<5x128xf32> to vector<5x128xbf16>
    %59 = arith.truncf %56 : vector<5x128xf32> to vector<5x128xbf16>
    %cst_22 = arith.constant dense<0.000000e+00> : vector<5x5xf32>
    %60 = tpu.matmul %58, %59, %cst_22 {dimension_numbers = #tpu.dot_dimension_numbers<[1], [1], [0], [0], [0, 0, 1, 0], [], []>} : vector<5x128xbf16>, vector<5x128xbf16>, vector<5x5xf32> -> vector<5x5xf32>
    %cst_23 = arith.constant 0.0883883461 : f32
    %61 = vector.broadcast %cst_23 : f32 to vector<5x5xf32>
    %62 = arith.mulf %60, %61 : vector<5x5xf32>
    %cst_24 = arith.constant dense<0xFF800000> : vector<5xf32>
    %63 = vector.multi_reduction <maximumf>, %62, %cst_24 [1] : vector<5x5xf32> to vector<5xf32>
    %64 = vector.shape_cast %63 : vector<5xf32> to vector<5x1xf32>
    %65 = vector.broadcast %64 : vector<5x1xf32> to vector<5x5xf32>
    %66 = arith.subf %62, %65 : vector<5x5xf32>
    %67 = math.exp %66 : vector<5x5xf32>
    %cst_25 = arith.constant dense<0.000000e+00> : vector<5xf32>
    %68 = vector.multi_reduction <add>, %67, %cst_25 [1] : vector<5x5xf32> to vector<5xf32>
    %69 = vector.shape_cast %68 : vector<5xf32> to vector<5x1xf32>
    %70 = tpu.reciprocal %69 {approx = true} : vector<5x1xf32> -> vector<5x1xf32>
    %71 = vector.broadcast %70 : vector<5x1xf32> to vector<5x5xf32>
    %72 = arith.mulf %67, %71 : vector<5x5xf32>
    %73 = arith.truncf %72 : vector<5x5xf32> to vector<5x5xbf16>
    %74 = arith.truncf %57 : vector<5x128xf32> to vector<5x128xbf16>
    %cst_26 = arith.constant dense<0.000000e+00> : vector<5x128xf32>
    %75 = tpu.matmul %73, %74, %cst_26 {dimension_numbers = #tpu.dot_dimension_numbers<[1], [0], [0], [1], [0, 0, 1, 1], [], []>} : vector<5x5xbf16>, vector<5x128xbf16>, vector<5x128xf32> -> vector<5x128xf32>
    %c0_27 = arith.constant 0 : index
    %c128 = arith.constant 128 : index
    %76 = vector.load %arg9[%c0_27, %c128] : memref<5x256xf32, #tpu.memory_space<vmem>>, vector<5x128xf32>
    tpu.vector_store %arg9[%c0_27, %c128], %75 {strides = array<i32>} : memref<5x256xf32, #tpu.memory_space<vmem>>, vector<5x128xf32>,
    %c0_28 = arith.constant 0 : index
    %c0_29 = arith.constant 0 : index
    %77 = vector.load %arg9[%c0_28, %c0_29] : memref<5x256xf32, #tpu.memory_space<vmem>>, vector<5x256xf32>
    %c0_30 = arith.constant 0 : index
    %c0_31 = arith.constant 0 : index
    %78 = vector.load %arg6[%c0_30, %c0_31] : memref<256x256xf32, #tpu.memory_space<vmem>>, vector<256x256xf32>
    %79 = arith.truncf %77 : vector<5x256xf32> to vector<5x256xbf16>
    %80 = arith.truncf %78 : vector<256x256xf32> to vector<256x256xbf16>
    %cst_32 = arith.constant dense<0.000000e+00> : vector<5x256xf32>
    %81 = tpu.matmul %79, %80, %cst_32 {dimension_numbers = #tpu.dot_dimension_numbers<[1], [0], [0], [1], [0, 0, 1, 1], [], []>} : vector<5x256xbf16>, vector<256x256xbf16>, vector<5x256xf32> -> vector<5x256xf32>
    %c0_33 = arith.constant 0 : index
    %c0_34 = arith.constant 0 : index
    %82 = vector.load %arg7[%c0_33, %c0_34] : memref<1x256xf32, #tpu.memory_space<vmem>>, vector<1x256xf32>
    %83 = vector.broadcast %82 : vector<1x256xf32> to vector<5x256xf32>
    %84 = arith.addf %81, %83 : vector<5x256xf32>
    %85 = arith.addf %1, %84 : vector<5x256xf32>
    %c0_35 = arith.constant 0 : index
    %c0_36 = arith.constant 0 : index
    %c0_37 = arith.constant 0 : index
    %86 = vector.load %arg8[%c0_35, %c0_36, %c0_37] : memref<1x5x256xf32, #tpu.memory_space<vmem>>, vector<1x5x256xf32>
    %87 = vector.shape_cast %86 : vector<1x5x256xf32> to vector<5x256xf32>
    %88 = vector.shape_cast %85 : vector<5x256xf32> to vector<1x5x256xf32>
    tpu.vector_store %arg8[%c0_35, %c0_36, %c0_37], %88 {strides = array<i32>} : memref<1x5x256xf32, #tpu.memory_space<vmem>>, vector<1x5x256xf32>,
    return
  }
  func.func @transform_0(%arg0: i32) -> (i32, i32, i32) {
    %c0_i32 = arith.constant 0 : i32
    %c0_i32_0 = arith.constant 0 : i32
    %c0_i32_1 = arith.constant 0 : i32
    return %arg0, %c0_i32, %c0_i32_0 : i32, i32, i32
  }
  func.func @transform_1(%arg0: i32) -> (i32, i32) {
    %c0_i32 = arith.constant 0 : i32
    %c0_i32_0 = arith.constant 0 : i32
    %c0_i32_1 = arith.constant 0 : i32
    return %c0_i32, %c0_i32_0 : i32, i32
  }
  func.func @transform_2(%arg0: i32) -> (i32, i32) {
    %c0_i32 = arith.constant 0 : i32
    %c0_i32_0 = arith.constant 0 : i32
    %c0_i32_1 = arith.constant 0 : i32
    return %c0_i32, %c0_i32_0 : i32, i32
  }
  func.func @transform_3(%arg0: i32) -> (i32, i32) {
    %c0_i32 = arith.constant 0 : i32
    %c0_i32_0 = arith.constant 0 : i32
    %c0_i32_1 = arith.constant 0 : i32
    return %c0_i32, %c0_i32_0 : i32, i32
  }
  func.func @transform_4(%arg0: i32) -> (i32, i32) {
    %c0_i32 = arith.constant 0 : i32
    %c0_i32_0 = arith.constant 0 : i32
    %c0_i32_1 = arith.constant 0 : i32
    return %c0_i32, %c0_i32_0 : i32, i32
  }
  func.func @transform_5(%arg0: i32) -> (i32, i32) {
    %c0_i32 = arith.constant 0 : i32
    %c0_i32_0 = arith.constant 0 : i32
    %c0_i32_1 = arith.constant 0 : i32
    return %c0_i32, %c0_i32_0 : i32, i32
  }
  func.func @transform_6(%arg0: i32) -> (i32, i32) {
    %c0_i32 = arith.constant 0 : i32
    %c0_i32_0 = arith.constant 0 : i32
    %c0_i32_1 = arith.constant 0 : i32
    return %c0_i32, %c0_i32_0 : i32, i32
  }
  func.func @transform_7(%arg0: i32) -> (i32, i32, i32) {
    %c0_i32 = arith.constant 0 : i32
    %c0_i32_0 = arith.constant 0 : i32
    %c0_i32_1 = arith.constant 0 : i32
    return %arg0, %c0_i32, %c0_i32_0 : i32, i32, i32
  }
}

module attributes {stable_mosaic.version = 11 : i64} {
  func.func @_mlp_block_kernel(%arg0: i32, %arg1: memref<1x5x256xf32, #tpu.memory_space<vmem>>, %arg2: memref<1x256xf32, #tpu.memory_space<vmem>>, %arg3: memref<1x256xf32, #tpu.memory_space<vmem>>, %arg4: memref<256x1024xf32, #tpu.memory_space<vmem>>, %arg5: memref<1x1024xf32, #tpu.memory_space<vmem>>, %arg6: memref<1024x256xf32, #tpu.memory_space<vmem>>, %arg7: memref<1x256xf32, #tpu.memory_space<vmem>>, %arg8: memref<1x256xf32, #tpu.memory_space<vmem>>, %arg9: memref<1x256xf32, #tpu.memory_space<vmem>>, %arg10: memref<1x5x256xf32, #tpu.memory_space<vmem>>) attributes {dimension_semantics = [#tpu.dimension_semantics<parallel>], iteration_bounds = array<i64: 2>, scalar_prefetch = 0 : i64, scratch_operands = 0 : i64, tpu.core_type = #tpu.core_type<tc>, window_params = [{transform_indices = @transform_0, window_bounds = array<i64: 1, 5, 256>}, {pipeline_mode = #tpu.pipeline_mode<synchronous>, transform_indices = @transform_1, window_bounds = array<i64: 1, 256>}, {pipeline_mode = #tpu.pipeline_mode<synchronous>, transform_indices = @transform_2, window_bounds = array<i64: 1, 256>}, {pipeline_mode = #tpu.pipeline_mode<synchronous>, transform_indices = @transform_3, window_bounds = array<i64: 256, 1024>}, {pipeline_mode = #tpu.pipeline_mode<synchronous>, transform_indices = @transform_4, window_bounds = array<i64: 1, 1024>}, {pipeline_mode = #tpu.pipeline_mode<synchronous>, transform_indices = @transform_5, window_bounds = array<i64: 1024, 256>}, {pipeline_mode = #tpu.pipeline_mode<synchronous>, transform_indices = @transform_6, window_bounds = array<i64: 1, 256>}, {pipeline_mode = #tpu.pipeline_mode<synchronous>, transform_indices = @transform_7, window_bounds = array<i64: 1, 256>}, {pipeline_mode = #tpu.pipeline_mode<synchronous>, transform_indices = @transform_8, window_bounds = array<i64: 1, 256>}, {transform_indices = @transform_9, window_bounds = array<i64: 1, 5, 256>}]} {
    %c0 = arith.constant 0 : index
    %c0_0 = arith.constant 0 : index
    %c0_1 = arith.constant 0 : index
    %0 = vector.load %arg1[%c0, %c0_0, %c0_1] : memref<1x5x256xf32, #tpu.memory_space<vmem>>, vector<1x5x256xf32>
    %1 = vector.shape_cast %0 : vector<1x5x256xf32> to vector<5x256xf32>
    %c0_2 = arith.constant 0 : index
    %c0_3 = arith.constant 0 : index
    %2 = vector.load %arg2[%c0_2, %c0_3] : memref<1x256xf32, #tpu.memory_space<vmem>>, vector<1x256xf32>
    %c0_4 = arith.constant 0 : index
    %c0_5 = arith.constant 0 : index
    %3 = vector.load %arg3[%c0_4, %c0_5] : memref<1x256xf32, #tpu.memory_space<vmem>>, vector<1x256xf32>
    %cst = arith.constant dense<0.000000e+00> : vector<5xf32>
    %4 = vector.multi_reduction <add>, %1, %cst [1] : vector<5x256xf32> to vector<5xf32>
    %5 = vector.shape_cast %4 : vector<5xf32> to vector<5x1xf32>
    %cst_6 = arith.constant 2.560000e+02 : f32
    %6 = vector.broadcast %cst_6 : f32 to vector<5x1xf32>
    %7 = arith.divf %5, %6 : vector<5x1xf32>
    %8 = vector.broadcast %7 : vector<5x1xf32> to vector<5x256xf32>
    %9 = arith.subf %1, %8 : vector<5x256xf32>
    %10 = arith.mulf %9, %9 : vector<5x256xf32>
    %cst_7 = arith.constant dense<0.000000e+00> : vector<5xf32>
    %11 = vector.multi_reduction <add>, %10, %cst_7 [1] : vector<5x256xf32> to vector<5xf32>
    %12 = vector.shape_cast %11 : vector<5xf32> to vector<5x1xf32>
    %cst_8 = arith.constant 2.560000e+02 : f32
    %13 = vector.broadcast %cst_8 : f32 to vector<5x1xf32>
    %14 = arith.divf %12, %13 : vector<5x1xf32>
    %15 = vector.broadcast %7 : vector<5x1xf32> to vector<5x256xf32>
    %16 = arith.subf %1, %15 : vector<5x256xf32>
    %cst_9 = arith.constant 9.99999974E-6 : f32
    %17 = vector.broadcast %cst_9 : f32 to vector<5x1xf32>
    %18 = arith.addf %14, %17 : vector<5x1xf32>
    %19 = math.rsqrt %18 : vector<5x1xf32>
    %20 = vector.broadcast %19 : vector<5x1xf32> to vector<5x256xf32>
    %21 = arith.mulf %16, %20 : vector<5x256xf32>
    %22 = vector.broadcast %2 : vector<1x256xf32> to vector<5x256xf32>
    %23 = arith.mulf %21, %22 : vector<5x256xf32>
    %24 = vector.broadcast %3 : vector<1x256xf32> to vector<5x256xf32>
    %25 = arith.addf %23, %24 : vector<5x256xf32>
    %c0_10 = arith.constant 0 : index
    %c0_11 = arith.constant 0 : index
    %26 = vector.load %arg4[%c0_10, %c0_11] : memref<256x1024xf32, #tpu.memory_space<vmem>>, vector<256x1024xf32>
    %27 = arith.truncf %25 : vector<5x256xf32> to vector<5x256xbf16>
    %28 = arith.truncf %26 : vector<256x1024xf32> to vector<256x1024xbf16>
    %cst_12 = arith.constant dense<0.000000e+00> : vector<5x1024xf32>
    %29 = tpu.matmul %27, %28, %cst_12 {dimension_numbers = #tpu.dot_dimension_numbers<[1], [0], [0], [1], [0, 0, 1, 1], [], []>} : vector<5x256xbf16>, vector<256x1024xbf16>, vector<5x1024xf32> -> vector<5x1024xf32>
    %c0_13 = arith.constant 0 : index
    %c0_14 = arith.constant 0 : index
    %30 = vector.load %arg5[%c0_13, %c0_14] : memref<1x1024xf32, #tpu.memory_space<vmem>>, vector<1x1024xf32>
    %31 = vector.broadcast %30 : vector<1x1024xf32> to vector<5x1024xf32>
    %32 = arith.addf %29, %31 : vector<5x1024xf32>
    %cst_15 = arith.constant 1.702000e+00 : f32
    %33 = vector.broadcast %cst_15 : f32 to vector<5x1024xf32>
    %34 = arith.mulf %33, %32 : vector<5x1024xf32>
    %35 = arith.negf %34 : vector<5x1024xf32>
    %36 = math.exp %35 : vector<5x1024xf32>
    %cst_16 = arith.constant 1.000000e+00 : f32
    %37 = vector.broadcast %cst_16 : f32 to vector<5x1024xf32>
    %38 = arith.addf %37, %36 : vector<5x1024xf32>
    %39 = arith.divf %37, %38 : vector<5x1024xf32>
    %40 = arith.mulf %32, %39 : vector<5x1024xf32>
    %c0_17 = arith.constant 0 : index
    %c0_18 = arith.constant 0 : index
    %41 = vector.load %arg6[%c0_17, %c0_18] : memref<1024x256xf32, #tpu.memory_space<vmem>>, vector<1024x256xf32>
    %42 = arith.truncf %40 : vector<5x1024xf32> to vector<5x1024xbf16>
    %43 = arith.truncf %41 : vector<1024x256xf32> to vector<1024x256xbf16>
    %cst_19 = arith.constant dense<0.000000e+00> : vector<5x256xf32>
    %44 = tpu.matmul %42, %43, %cst_19 {dimension_numbers = #tpu.dot_dimension_numbers<[1], [0], [0], [1], [0, 0, 1, 1], [], []>} : vector<5x1024xbf16>, vector<1024x256xbf16>, vector<5x256xf32> -> vector<5x256xf32>
    %c0_20 = arith.constant 0 : index
    %c0_21 = arith.constant 0 : index
    %45 = vector.load %arg7[%c0_20, %c0_21] : memref<1x256xf32, #tpu.memory_space<vmem>>, vector<1x256xf32>
    %46 = vector.broadcast %45 : vector<1x256xf32> to vector<5x256xf32>
    %47 = arith.addf %44, %46 : vector<5x256xf32>
    %48 = arith.addf %1, %47 : vector<5x256xf32>
    %c0_22 = arith.constant 0 : index
    %c0_23 = arith.constant 0 : index
    %49 = vector.load %arg8[%c0_22, %c0_23] : memref<1x256xf32, #tpu.memory_space<vmem>>, vector<1x256xf32>
    %c0_24 = arith.constant 0 : index
    %c0_25 = arith.constant 0 : index
    %50 = vector.load %arg9[%c0_24, %c0_25] : memref<1x256xf32, #tpu.memory_space<vmem>>, vector<1x256xf32>
    %cst_26 = arith.constant dense<0.000000e+00> : vector<5xf32>
    %51 = vector.multi_reduction <add>, %48, %cst_26 [1] : vector<5x256xf32> to vector<5xf32>
    %52 = vector.shape_cast %51 : vector<5xf32> to vector<5x1xf32>
    %cst_27 = arith.constant 2.560000e+02 : f32
    %53 = vector.broadcast %cst_27 : f32 to vector<5x1xf32>
    %54 = arith.divf %52, %53 : vector<5x1xf32>
    %55 = vector.broadcast %54 : vector<5x1xf32> to vector<5x256xf32>
    %56 = arith.subf %48, %55 : vector<5x256xf32>
    %57 = arith.mulf %56, %56 : vector<5x256xf32>
    %cst_28 = arith.constant dense<0.000000e+00> : vector<5xf32>
    %58 = vector.multi_reduction <add>, %57, %cst_28 [1] : vector<5x256xf32> to vector<5xf32>
    %59 = vector.shape_cast %58 : vector<5xf32> to vector<5x1xf32>
    %cst_29 = arith.constant 2.560000e+02 : f32
    %60 = vector.broadcast %cst_29 : f32 to vector<5x1xf32>
    %61 = arith.divf %59, %60 : vector<5x1xf32>
    %62 = vector.broadcast %54 : vector<5x1xf32> to vector<5x256xf32>
    %63 = arith.subf %48, %62 : vector<5x256xf32>
    %cst_30 = arith.constant 9.99999974E-6 : f32
    %64 = vector.broadcast %cst_30 : f32 to vector<5x1xf32>
    %65 = arith.addf %61, %64 : vector<5x1xf32>
    %66 = math.rsqrt %65 : vector<5x1xf32>
    %67 = vector.broadcast %66 : vector<5x1xf32> to vector<5x256xf32>
    %68 = arith.mulf %63, %67 : vector<5x256xf32>
    %69 = vector.broadcast %49 : vector<1x256xf32> to vector<5x256xf32>
    %70 = arith.mulf %68, %69 : vector<5x256xf32>
    %71 = vector.broadcast %50 : vector<1x256xf32> to vector<5x256xf32>
    %72 = arith.addf %70, %71 : vector<5x256xf32>
    %c0_31 = arith.constant 0 : index
    %c0_32 = arith.constant 0 : index
    %c0_33 = arith.constant 0 : index
    %73 = vector.load %arg10[%c0_31, %c0_32, %c0_33] : memref<1x5x256xf32, #tpu.memory_space<vmem>>, vector<1x5x256xf32>
    %74 = vector.shape_cast %73 : vector<1x5x256xf32> to vector<5x256xf32>
    %75 = vector.shape_cast %72 : vector<5x256xf32> to vector<1x5x256xf32>
    tpu.vector_store %arg10[%c0_31, %c0_32, %c0_33], %75 {strides = array<i32>} : memref<1x5x256xf32, #tpu.memory_space<vmem>>, vector<1x5x256xf32>,
    return
  }
  func.func @transform_0(%arg0: i32) -> (i32, i32, i32) {
    %c0_i32 = arith.constant 0 : i32
    %c0_i32_0 = arith.constant 0 : i32
    %c0_i32_1 = arith.constant 0 : i32
    return %arg0, %c0_i32, %c0_i32_0 : i32, i32, i32
  }
  func.func @transform_1(%arg0: i32) -> (i32, i32) {
    %c0_i32 = arith.constant 0 : i32
    %c0_i32_0 = arith.constant 0 : i32
    %c0_i32_1 = arith.constant 0 : i32
    return %c0_i32, %c0_i32_0 : i32, i32
  }
  func.func @transform_2(%arg0: i32) -> (i32, i32) {
    %c0_i32 = arith.constant 0 : i32
    %c0_i32_0 = arith.constant 0 : i32
    %c0_i32_1 = arith.constant 0 : i32
    return %c0_i32, %c0_i32_0 : i32, i32
  }
  func.func @transform_3(%arg0: i32) -> (i32, i32) {
    %c0_i32 = arith.constant 0 : i32
    %c0_i32_0 = arith.constant 0 : i32
    %c0_i32_1 = arith.constant 0 : i32
    return %c0_i32, %c0_i32_0 : i32, i32
  }
  func.func @transform_4(%arg0: i32) -> (i32, i32) {
    %c0_i32 = arith.constant 0 : i32
    %c0_i32_0 = arith.constant 0 : i32
    %c0_i32_1 = arith.constant 0 : i32
    return %c0_i32, %c0_i32_0 : i32, i32
  }
  func.func @transform_5(%arg0: i32) -> (i32, i32) {
    %c0_i32 = arith.constant 0 : i32
    %c0_i32_0 = arith.constant 0 : i32
    %c0_i32_1 = arith.constant 0 : i32
    return %c0_i32, %c0_i32_0 : i32, i32
  }
  func.func @transform_6(%arg0: i32) -> (i32, i32) {
    %c0_i32 = arith.constant 0 : i32
    %c0_i32_0 = arith.constant 0 : i32
    %c0_i32_1 = arith.constant 0 : i32
    return %c0_i32, %c0_i32_0 : i32, i32
  }
  func.func @transform_7(%arg0: i32) -> (i32, i32) {
    %c0_i32 = arith.constant 0 : i32
    %c0_i32_0 = arith.constant 0 : i32
    %c0_i32_1 = arith.constant 0 : i32
    return %c0_i32, %c0_i32_0 : i32, i32
  }
  func.func @transform_8(%arg0: i32) -> (i32, i32) {
    %c0_i32 = arith.constant 0 : i32
    %c0_i32_0 = arith.constant 0 : i32
    %c0_i32_1 = arith.constant 0 : i32
    return %c0_i32, %c0_i32_0 : i32, i32
  }
  func.func @transform_9(%arg0: i32) -> (i32, i32, i32) {
    %c0_i32 = arith.constant 0 : i32
    %c0_i32_0 = arith.constant 0 : i32
    %c0_i32_1 = arith.constant 0 : i32
    return %arg0, %c0_i32, %c0_i32_0 : i32, i32, i32
  }
}

</mosaic_0001>

<llo_original>
// kernel: clip_targeter_forward.5
$region0: #{clip_targeter_forward.5}
  #allocation0 [shape = 'u32[]', space=smem, size = 0x4, offset = 0x4, fixed_abs, tag = 'smem constant byte address 0x4 - core index']
  #allocation1 [shape = 'u32[144,128]{1,0:T(1,128)}', space=vmem, size = 0x12000, scoped, tag = 'internal scratch']
  %s0 = inlined_call_operand.vmem [shape: f32[2,4,768], index: 0, kind: input, shape index: {}]
  %s1 = inlined_call_operand.vmem [shape: f32[768,256], index: 1, kind: input, shape index: {}]
  %s2 = inlined_call_operand.hbm [shape: f32[1,256], index: 2, kind: input, shape index: {}]
  %s3 = inlined_call_operand.hbm [shape: f32[5,256], index: 3, kind: input, shape index: {}]
  %s4 = inlined_call_operand.hbm [shape: f32[1,256], index: 4, kind: input, shape index: {}]
  %s5 = inlined_call_operand.hbm [shape: f32[1,256], index: 5, kind: input, shape index: {}]
  %s6 = inlined_call_operand.vmem [shape: f32[2,5,256], index: 6, kind: output, shape index: {}]
  %s7 = sld [smem:[#allocation0]]
  $region73: #{clip_targeter_forward.5} parent=0
    _
  %s9 = ssub.s32 1, %s7
  %s10 = scalar_select 0, %s9, %s7
  $region1: #{clip_targeter_forward.5} parent=0
    #allocation2 [shape = 'u8[1024]{0}', space=vmem, size = 0x400, scoped, tag = 'input window, operand 2, single buffered']
    #allocation3 [shape = 's32[2]{0}', space=sflag, size = 0x8, scoped, tag = 'scoped memory for clip_targeter_forward.5']
    #allocation4 [shape = 'u8[8192]{0}', space=vmem, size = 0x2000, scoped, tag = 'input window, operand 3, single buffered']
    #allocation5 [shape = 's32[1]{0}', space=sflag, size = 0x4, scoped, tag = 'scoped memory for clip_targeter_forward.5']
    #allocation6 [shape = 'u8[1024]{0}', space=vmem, size = 0x400, scoped, tag = 'input window, operand 4, single buffered']
    #allocation7 [shape = 'u8[1024]{0}', space=vmem, size = 0x400, scoped, tag = 'input window, operand 5, single buffered']
    #allocation8 [shape = 's32[1]{0}', space=sflag, size = 0x4, scoped, tag = 'scoped memory for clip_targeter_forward.5']
    %11 = vsyncpa [#allocation3], 0
    %12 = vsyncpa [#allocation5], 0
    %13 = vsyncpa [#allocation8], 0
    loop: start=0, step=1, limit=4
    $region2: #{clip_targeter_forward.5} parent=1 // loop_pre_header
      _
    $region3: #{clip_targeter_forward.5} parent=1 // loop_header
      %s15 = sphi 0, %s19
      %p16 = scmp.ge.s32.totalorder %s15, 4
      %s25 = sphi 0, %s27
      %s28 = sphi 0, %s25
      %s29 = sphi 0, %s28
      %s45 = sphi 0, %s29
      %s49 = sphi 0, %s49
      %s51 = sphi 0, %s49
      %s52 = sphi 0, %s51
      %s66 = sphi 0, %s52
      %s70 = sphi 0, %s70
      %s72 = sphi 0, %s70
      %s73 = sphi 0, %s72
      %s87 = sphi 0, %s73
      %s91 = sphi 0, %s91
      %s93 = sphi 0, %s91
      %s94 = sphi 0, %s93
      %s108 = sphi 0, %s94
      %s112 = sphi 0, %s112
      %s114 = sphi 0, %s112
      %s115 = sphi 0, %s114
      %s129 = sphi 0, %s115
      %s133 = sphi 0, %s133
      %s135 = sphi 0, %s133
      %s136 = sphi 0, %s135
      %s150 = sphi 0, %s136
      %s156 = sphi 0, %s158
      %s159 = sphi 0, %s156
      %s160 = sphi 0, %s159
      %s176 = sphi 0, %s160
    $region4: #{clip_targeter_forward.5} parent=1 // loop_header_branch
      %18 = sbr.rel (%p16) target = $region8
    $region5: #{clip_targeter_forward.5} parent=1 // loop_body
      %s20 = ssub.s32 %s15, 1
      %s21 = ssub.s32 %s15, 2
      %s22 = sadd.s32 %s15, 1
      %s23 = ssub.s32 %s15, %s22
      %p24 = scmp.eq.s32.totalorder %s23, 0
      %s26 = sadd.s32 %s25, 1
      %s27 = scalar_select %p24, %s25, %s26
      %p30 = pneg %p24
      %p31 = scmp.eq.s32.totalorder %s15, 1
      %p32 = por %p30, %p31
      %p33 = scmp.ne.s32.totalorder %s25, %s28
      %p34 = scmp.eq.s32.totalorder %s15, 0
      %p35 = por %p33, %p34
      %p36 = scmp.ne.s32.totalorder %s25, %s28
      %p37 = scmp.eq.s32.totalorder %s20, 1
      %p38 = por %p36, %p37
      %p39 = scmp.ne.s32.totalorder %s28, %s29
      %p40 = scmp.eq.s32.totalorder %s20, 0
      %p41 = por %p39, %p40
      %p42 = scmp.ne.s32.totalorder %s28, %s29
      %p43 = scmp.eq.s32.totalorder %s21, 1
      %p44 = por %p42, %p43
      %p46 = scmp.ne.s32.totalorder %s29, %s45
      %p47 = scmp.eq.s32.totalorder %s21, 0
      %p48 = por %p46, %p47
      %s50 = sadd.s32 %s49, 1
      %p53 = scmp.eq.s32.totalorder %s15, 1
      %p54 = scmp.ne.s32.totalorder %s49, %s51
      %p55 = scmp.eq.s32.totalorder %s15, 0
      %p56 = por %p54, %p55
      %p57 = scmp.ne.s32.totalorder %s49, %s51
      %p58 = scmp.eq.s32.totalorder %s20, 1
      %p59 = por %p57, %p58
      %p60 = scmp.ne.s32.totalorder %s51, %s52
      %p61 = scmp.eq.s32.totalorder %s20, 0
      %p62 = por %p60, %p61
      %p63 = scmp.ne.s32.totalorder %s51, %s52
      %p64 = scmp.eq.s32.totalorder %s21, 1
      %p65 = por %p63, %p64
      %p67 = scmp.ne.s32.totalorder %s52, %s66
      %p68 = scmp.eq.s32.totalorder %s21, 0
      %p69 = por %p67, %p68
      %s71 = sadd.s32 %s70, 1
      %p74 = scmp.eq.s32.totalorder %s15, 1
      %p75 = scmp.ne.s32.totalorder %s70, %s72
      %p76 = scmp.eq.s32.totalorder %s15, 0
      %p77 = por %p75, %p76
      %p78 = scmp.ne.s32.totalorder %s70, %s72
      %p79 = scmp.eq.s32.totalorder %s20, 1
      %p80 = por %p78, %p79
      %p81 = scmp.ne.s32.totalorder %s72, %s73
      %p82 = scmp.eq.s32.totalorder %s20, 0
      %p83 = por %p81, %p82
      %p84 = scmp.ne.s32.totalorder %s72, %s73
      %p85 = scmp.eq.s32.totalorder %s21, 1
      %p86 = por %p84, %p85
      %p88 = scmp.ne.s32.totalorder %s73, %s87
      %p89 = scmp.eq.s32.totalorder %s21, 0
      %p90 = por %p88, %p89
      %s92 = sadd.s32 %s91, 1
      %p95 = scmp.eq.s32.totalorder %s15, 1
      %p96 = scmp.ne.s32.totalorder %s91, %s93
      %p97 = scmp.eq.s32.totalorder %s15, 0
      %p98 = por %p96, %p97
      %p99 = scmp.ne.s32.totalorder %s91, %s93
      %p100 = scmp.eq.s32.totalorder %s20, 1
      %p101 = por %p99, %p100
      %p102 = scmp.ne.s32.totalorder %s93, %s94
      %p103 = scmp.eq.s32.totalorder %s20, 0
      %p104 = por %p102, %p103
      %p105 = scmp.ne.s32.totalorder %s93, %s94
      %p106 = scmp.eq.s32.totalorder %s21, 1
      %p107 = por %p105, %p106
      %p109 = scmp.ne.s32.totalorder %s94, %s108
      %p110 = scmp.eq.s32.totalorder %s21, 0
      %p111 = por %p109, %p110
      %s113 = sadd.s32 %s112, 1
      %p116 = scmp.eq.s32.totalorder %s15, 1
      %p117 = scmp.ne.s32.totalorder %s112, %s114
      %p118 = scmp.eq.s32.totalorder %s15, 0
      %p119 = por %p117, %p118
      %p120 = scmp.ne.s32.totalorder %s112, %s114
      %p121 = scmp.eq.s32.totalorder %s20, 1
      %p122 = por %p120, %p121
      %p123 = scmp.ne.s32.totalorder %s114, %s115
      %p124 = scmp.eq.s32.totalorder %s20, 0
      %p125 = por %p123, %p124
      %p126 = scmp.ne.s32.totalorder %s114, %s115
      %p127 = scmp.eq.s32.totalorder %s21, 1
      %p128 = por %p126, %p127
      %p130 = scmp.ne.s32.totalorder %s115, %s129
      %p131 = scmp.eq.s32.totalorder %s21, 0
      %p132 = por %p130, %p131
      %s134 = sadd.s32 %s133, 1
      %p137 = scmp.eq.s32.totalorder %s15, 1
      %p138 = scmp.ne.s32.totalorder %s133, %s135
      %p139 = scmp.eq.s32.totalorder %s15, 0
      %p140 = por %p138, %p139
      %p141 = scmp.ne.s32.totalorder %s133, %s135
      %p142 = scmp.eq.s32.totalorder %s20, 1
      %p143 = por %p141, %p142
      %p144 = scmp.ne.s32.totalorder %s135, %s136
      %p145 = scmp.eq.s32.totalorder %s20, 0
      %p146 = por %p144, %p145
      %p147 = scmp.ne.s32.totalorder %s135, %s136
      %p148 = scmp.eq.s32.totalorder %s21, 1
      %p149 = por %p147, %p148
      %p151 = scmp.ne.s32.totalorder %s136, %s150
      %p152 = scmp.eq.s32.totalorder %s21, 0
      %p153 = por %p151, %p152
      %s154 = ssub.s32 %s15, %s22
      %p155 = scmp.eq.s32.totalorder %s154, 0
      %s157 = sadd.s32 %s156, 1
      %s158 = scalar_select %p155, %s156, %s157
      %p161 = pneg %p155
      %p162 = scmp.eq.s32.totalorder %s15, 1
      %p163 = por %p161, %p162
      %p164 = scmp.ne.s32.totalorder %s156, %s159
      %p165 = scmp.eq.s32.totalorder %s15, 0
      %p166 = por %p164, %p165
      %p167 = scmp.ne.s32.totalorder %s156, %s159
      %p168 = scmp.eq.s32.totalorder %s20, 1
      %p169 = por %p167, %p168
      %p170 = scmp.ne.s32.totalorder %s159, %s160
      %p171 = scmp.eq.s32.totalorder %s20, 0
      %p172 = por %p170, %p171
      %p173 = scmp.ne.s32.totalorder %s159, %s160
      %p174 = scmp.eq.s32.totalorder %s21, 1
      %p175 = por %p173, %p174
      %p177 = scmp.ne.s32.totalorder %s160, %s176
      %p178 = scmp.eq.s32.totalorder %s21, 0
      %p179 = por %p177, %p178
      %p180 = scmp.le.s32.totalorder 1, %s15
      %p181 = scmp.lt.s32.totalorder %s15, 3
      %p182 = pnand %p180, %p181
      %p183 = pneg %p182
      // Predicated region
      $region9: #{clip_targeter_forward.5} parent=5 // pred_check
        _
      $region10: #{clip_targeter_forward.5} parent=5 // pred_check_branch
        %185 = sbr.rel (%p182) target = $region12
      $region11: #{clip_targeter_forward.5} parent=5 // pred_region
        %s186 = ssub.s32 %s15, 1
        // Predicated region
        $region13: #{clip_targeter_forward.5} parent=11 // pred_check
          %p187 = pneg %p62
        $region14: #{clip_targeter_forward.5} parent=11 // pred_check_branch
          %189 = sbr.rel (%p187) target = $region16
        $region15: #{clip_targeter_forward.5} parent=11 // pred_region
          _
        $region16: #{clip_targeter_forward.5} parent=11 // pred_fallthru
          _
        // Predicated region
        $region17: #{clip_targeter_forward.5} parent=11 // pred_check
          %p190 = pneg %p83
        $region18: #{clip_targeter_forward.5} parent=11 // pred_check_branch
          %192 = sbr.rel (%p190) target = $region20
        $region19: #{clip_targeter_forward.5} parent=11 // pred_region
          %s194 = ssub.s32 32, 32
          %195 = vsyncadd [#allocation3], %s194
          %s197 = sshll.u32 [#allocation2], 4
          %s198 = int_to_ptr.vmem [resolvable:$true] %s197
          %200 = dma.hbm_to_vmem [thread:$0]  %s2, 32, %s198, [#allocation3]
        $region20: #{clip_targeter_forward.5} parent=11 // pred_fallthru
          _
        // Predicated region
        $region21: #{clip_targeter_forward.5} parent=11 // pred_check
          %p201 = pneg %p104
        $region22: #{clip_targeter_forward.5} parent=11 // pred_check_branch
          %203 = sbr.rel (%p201) target = $region24
        $region23: #{clip_targeter_forward.5} parent=11 // pred_region
          %s205 = ssub.s32 256, 256
          %206 = vsyncadd [#allocation5], %s205
          %s208 = sshll.u32 [#allocation4], 4
          %s209 = int_to_ptr.vmem [resolvable:$true] %s208
          %211 = dma.hbm_to_vmem [thread:$0]  %s3, 256, %s209, [#allocation5]
        $region24: #{clip_targeter_forward.5} parent=11 // pred_fallthru
          _
        // Predicated region
        $region25: #{clip_targeter_forward.5} parent=11 // pred_check
          %p212 = pneg %p125
        $region26: #{clip_targeter_forward.5} parent=11 // pred_check_branch
          %214 = sbr.rel (%p212) target = $region28
        $region27: #{clip_targeter_forward.5} parent=11 // pred_region
          %s216 = ssub.s32 32, 32
          %217 = vsyncadd [#allocation5], %s216
          %s219 = sshll.u32 [#allocation6], 4
          %s220 = int_to_ptr.vmem [resolvable:$true] %s219
          %222 = dma.hbm_to_vmem [thread:$0]  %s4, 32, %s220, [#allocation5]
        $region28: #{clip_targeter_forward.5} parent=11 // pred_fallthru
          _
        // Predicated region
        $region29: #{clip_targeter_forward.5} parent=11 // pred_check
          %p223 = pneg %p146
        $region30: #{clip_targeter_forward.5} parent=11 // pred_check_branch
          %225 = sbr.rel (%p223) target = $region32
        $region31: #{clip_targeter_forward.5} parent=11 // pred_region
          %s227 = ssub.s32 32, 32
          %228 = vsyncadd [#allocation8], %s227
          %s230 = sshll.u32 [#allocation7], 4
          %s231 = int_to_ptr.vmem [resolvable:$true] %s230
          %233 = dma.hbm_to_vmem [thread:$0]  %s5, 32, %s231, [#allocation8]
        $region32: #{clip_targeter_forward.5} parent=11 // pred_fallthru
          _
      $region12: #{clip_targeter_forward.5} parent=5 // pred_fallthru
        _
      %p234 = scmp.lt.s32.totalorder %s15, 2
      // Predicated region
      $region33: #{clip_targeter_forward.5} parent=5 // pred_check
        %p235 = pneg %p234
      $region34: #{clip_targeter_forward.5} parent=5 // pred_check_branch
        %237 = sbr.rel (%p235) target = $region36
      $region35: #{clip_targeter_forward.5} parent=5 // pred_region
        // Predicated region
        $region37: #{clip_targeter_forward.5} parent=35 // pred_check
          %p238 = pneg %p35
        $region38: #{clip_targeter_forward.5} parent=35 // pred_check_branch
          %240 = sbr.rel (%p238) target = $region40
        $region39: #{clip_targeter_forward.5} parent=35 // pred_region
          %p241 = scmp.lt.s32.totalorder %s15, 1
          %s242 = scalar_select %p241, %s15, 1
          %s243 = smul.addr %s242, 6
          %s244 = smul.addr %s243, 4
          %s245 = scalar_lea.vmem %s0, %s244
        $region40: #{clip_targeter_forward.5} parent=35 // pred_fallthru
          _
      $region36: #{clip_targeter_forward.5} parent=5 // pred_fallthru
        _
      %p246 = scmp.le.s32.totalorder 1, %s15
      %p247 = scmp.lt.s32.totalorder %s15, 3
      %p248 = pnand %p246, %p247
      %p249 = pneg %p248
      // Predicated region
      $region41: #{clip_targeter_forward.5} parent=5 // pred_check
        _
      $region42: #{clip_targeter_forward.5} parent=5 // pred_check_branch
        %251 = sbr.rel (%p248) target = $region44
      $region43: #{clip_targeter_forward.5} parent=5 // pred_region
        %s252 = ssub.s32 %s15, 1
        // Predicated region
        $region45: #{clip_targeter_forward.5} parent=43 // pred_check
          %p253 = pneg %p83
        $region46: #{clip_targeter_forward.5} parent=43 // pred_check_branch
          %255 = sbr.rel (%p253) target = $region48
        $region47: #{clip_targeter_forward.5} parent=43 // pred_region
          %256 = dma.done [#allocation3], 32
        $region48: #{clip_targeter_forward.5} parent=43 // pred_fallthru
          _
        // Predicated region
        $region49: #{clip_targeter_forward.5} parent=43 // pred_check
          %p257 = pneg %p104
        $region50: #{clip_targeter_forward.5} parent=43 // pred_check_branch
          %259 = sbr.rel (%p257) target = $region52
        $region51: #{clip_targeter_forward.5} parent=43 // pred_region
          %260 = dma.done [#allocation5], 256
        $region52: #{clip_targeter_forward.5} parent=43 // pred_fallthru
          _
        // Predicated region
        $region53: #{clip_targeter_forward.5} parent=43 // pred_check
          %p261 = pneg %p125
        $region54: #{clip_targeter_forward.5} parent=43 // pred_check_branch
          %263 = sbr.rel (%p261) target = $region56
        $region55: #{clip_targeter_forward.5} parent=43 // pred_region
          %264 = dma.done [#allocation5], 32
        $region56: #{clip_targeter_forward.5} parent=43 // pred_fallthru
          _
        // Predicated region
        $region57: #{clip_targeter_forward.5} parent=43 // pred_check
          %p265 = pneg %p146
        $region58: #{clip_targeter_forward.5} parent=43 // pred_check_branch
          %267 = sbr.rel (%p265) target = $region60
        $region59: #{clip_targeter_forward.5} parent=43 // pred_region
          %268 = dma.done [#allocation8], 32
        $region60: #{clip_targeter_forward.5} parent=43 // pred_fallthru
          _
        %p269 = scmp.lt.s32.totalorder %s20, 1
        %s270 = scalar_select %p269, %s20, 1
        %s271 = smul.addr %s270, 6
        %s272 = smul.addr %s271, 4
        %s273 = scalar_lea.vmem %s0, %s272
        %p274 = pneg %p41
        %p275 = pneg %p38
        %p276 = pneg %p62
        %p277 = pneg %p59
        %p278 = pneg %p83
        %p279 = pneg %p80
        %p280 = pneg %p104
        %p281 = pneg %p101
        %p282 = pneg %p125
        %p283 = pneg %p122
        %p284 = pneg %p146
        %p285 = pneg %p143
        %p286 = pneg %p172
        %p287 = pneg %p169
        %p288 = scmp.lt.s32.totalorder %s20, 1
        %s289 = scalar_select %p288, %s20, 1
        %s290 = smul.addr %s289, 2
        %s291 = smul.addr %s290, 8
        %s292 = scalar_lea.vmem %s6, %s291
        %p293 = scmp.lt.s32.totalorder %s20, 1
        %s294 = scalar_select %p293, %s20, 1
        %s295 = smul.addr %s294, 6
        %s296 = smul.addr %s295, 4
        %s297 = scalar_lea.vmem %s0, %s296
        %p298 = scmp.lt.s32.totalorder %s20, 1
        %s299 = scalar_select %p298, %s20, 1
        %s300 = smul.addr %s299, 2
        %s301 = smul.addr %s300, 8
        %s302 = scalar_lea.vmem %s6, %s301
        %v303 = vld [vmem:[%s297] sm:$0xff]
        %v304 = vld [vmem:[%s297 + $0x8] sm:$0xff]
        %v305 = vld [vmem:[%s297 + $0x10] sm:$0xff]
        %v306 = vld [vmem:[%s1] sm:$0xff]
        %v307 = vld [vmem:[%s1 + $0x8] sm:$0xff]
        %v308 = vld [vmem:[%s1 + $0x10] sm:$0xff]
        %v309 = vld [vmem:[%s1 + $0x18] sm:$0xff]
        %v310 = vld [vmem:[%s1 + $0x20] sm:$0xff]
        %v311 = vld [vmem:[%s1 + $0x28] sm:$0xff]
        %v312 = vld [vmem:[%s1 + $0x30] sm:$0xff]
        %v313 = vld [vmem:[%s1 + $0x38] sm:$0xff]
        %v314 = vld [vmem:[%s1 + $0x40] sm:$0xff]
        %v315 = vld [vmem:[%s1 + $0x48] sm:$0xff]
        %v316 = vld [vmem:[%s1 + $0x50] sm:$0xff]
        %v317 = vld [vmem:[%s1 + $0x58] sm:$0xff]
        %v318 = vld [vmem:[%s1 + $0x60] sm:$0xff]
        %v319 = vld [vmem:[%s1 + $0x68] sm:$0xff]
        %v320 = vld [vmem:[%s1 + $0x70] sm:$0xff]
        %v321 = vld [vmem:[%s1 + $0x78] sm:$0xff]
        %v322 = vld [vmem:[%s1 + $0x80] sm:$0xff]
        %v323 = vld [vmem:[%s1 + $0x88] sm:$0xff]
        %v324 = vld [vmem:[%s1 + $0x90] sm:$0xff]
        %v325 = vld [vmem:[%s1 + $0x98] sm:$0xff]
        %v326 = vld [vmem:[%s1 + $0xa0] sm:$0xff]
        %v327 = vld [vmem:[%s1 + $0xa8] sm:$0xff]
        %v328 = vld [vmem:[%s1 + $0xb0] sm:$0xff]
        %v329 = vld [vmem:[%s1 + $0xb8] sm:$0xff]
        %v330 = vld [vmem:[%s1 + $0xc0] sm:$0xff]
        %v331 = vld [vmem:[%s1 + $0xc8] sm:$0xff]
        %v332 = vld [vmem:[%s1 + $0xd0] sm:$0xff]
        %v333 = vld [vmem:[%s1 + $0xd8] sm:$0xff]
        %v334 = vld [vmem:[%s1 + $0xe0] sm:$0xff]
        %v335 = vld [vmem:[%s1 + $0xe8] sm:$0xff]
        %v336 = vld [vmem:[%s1 + $0xf0] sm:$0xff]
        %v337 = vld [vmem:[%s1 + $0xf8] sm:$0xff]
        %v338 = vld [vmem:[%s1 + $0x100] sm:$0xff]
        %v339 = vld [vmem:[%s1 + $0x108] sm:$0xff]
        %v340 = vld [vmem:[%s1 + $0x110] sm:$0xff]
        %v341 = vld [vmem:[%s1 + $0x118] sm:$0xff]
        %v342 = vld [vmem:[%s1 + $0x120] sm:$0xff]
        %v343 = vld [vmem:[%s1 + $0x128] sm:$0xff]
        %v344 = vld [vmem:[%s1 + $0x130] sm:$0xff]
        %v345 = vld [vmem:[%s1 + $0x138] sm:$0xff]
        %v346 = vld [vmem:[%s1 + $0x140] sm:$0xff]
        %v347 = vld [vmem:[%s1 + $0x148] sm:$0xff]
        %v348 = vld [vmem:[%s1 + $0x150] sm:$0xff]
        %v349 = vld [vmem:[%s1 + $0x158] sm:$0xff]
        %v350 = vld [vmem:[%s1 + $0x160] sm:$0xff]
        %v351 = vld [vmem:[%s1 + $0x168] sm:$0xff]
        %v352 = vld [vmem:[%s1 + $0x170] sm:$0xff]
        %v353 = vld [vmem:[%s1 + $0x178] sm:$0xff]
        %v354 = vld [vmem:[%s1 + $0x180] sm:$0xff]
        %v355 = vld [vmem:[%s1 + $0x188] sm:$0xff]
        %v356 = vld [vmem:[%s1 + $0x190] sm:$0xff]
        %v357 = vld [vmem:[%s1 + $0x198] sm:$0xff]
        %v358 = vld [vmem:[%s1 + $0x1a0] sm:$0xff]
        %v359 = vld [vmem:[%s1 + $0x1a8] sm:$0xff]
        %v360 = vld [vmem:[%s1 + $0x1b0] sm:$0xff]
        %v361 = vld [vmem:[%s1 + $0x1b8] sm:$0xff]
        %v362 = vld [vmem:[%s1 + $0x1c0] sm:$0xff]
        %v363 = vld [vmem:[%s1 + $0x1c8] sm:$0xff]
        %v364 = vld [vmem:[%s1 + $0x1d0] sm:$0xff]
        %v365 = vld [vmem:[%s1 + $0x1d8] sm:$0xff]
        %v366 = vld [vmem:[%s1 + $0x1e0] sm:$0xff]
        %v367 = vld [vmem:[%s1 + $0x1e8] sm:$0xff]
        %v368 = vld [vmem:[%s1 + $0x1f0] sm:$0xff]
        %v369 = vld [vmem:[%s1 + $0x1f8] sm:$0xff]
        %v370 = vld [vmem:[%s1 + $0x200] sm:$0xff]
        %v371 = vld [vmem:[%s1 + $0x208] sm:$0xff]
        %v372 = vld [vmem:[%s1 + $0x210] sm:$0xff]
        %v373 = vld [vmem:[%s1 + $0x218] sm:$0xff]
        %v374 = vld [vmem:[%s1 + $0x220] sm:$0xff]
        %v375 = vld [vmem:[%s1 + $0x228] sm:$0xff]
        %v376 = vld [vmem:[%s1 + $0x230] sm:$0xff]
        %v377 = vld [vmem:[%s1 + $0x238] sm:$0xff]
        %v378 = vld [vmem:[%s1 + $0x240] sm:$0xff]
        %v379 = vld [vmem:[%s1 + $0x248] sm:$0xff]
        %v380 = vld [vmem:[%s1 + $0x250] sm:$0xff]
        %v381 = vld [vmem:[%s1 + $0x258] sm:$0xff]
        %v382 = vld [vmem:[%s1 + $0x260] sm:$0xff]
        %v383 = vld [vmem:[%s1 + $0x268] sm:$0xff]
        %v384 = vld [vmem:[%s1 + $0x270] sm:$0xff]
        %v385 = vld [vmem:[%s1 + $0x278] sm:$0xff]
        %v386 = vld [vmem:[%s1 + $0x280] sm:$0xff]
        %v387 = vld [vmem:[%s1 + $0x288] sm:$0xff]
        %v388 = vld [vmem:[%s1 + $0x290] sm:$0xff]
        %v389 = vld [vmem:[%s1 + $0x298] sm:$0xff]
        %v390 = vld [vmem:[%s1 + $0x2a0] sm:$0xff]
        %v391 = vld [vmem:[%s1 + $0x2a8] sm:$0xff]
        %v392 = vld [vmem:[%s1 + $0x2b0] sm:$0xff]
        %v393 = vld [vmem:[%s1 + $0x2b8] sm:$0xff]
        %v394 = vld [vmem:[%s1 + $0x2c0] sm:$0xff]
        %v395 = vld [vmem:[%s1 + $0x2c8] sm:$0xff]
        %v396 = vld [vmem:[%s1 + $0x2d0] sm:$0xff]
        %v397 = vld [vmem:[%s1 + $0x2d8] sm:$0xff]
        %v398 = vld [vmem:[%s1 + $0x2e0] sm:$0xff]
        %v399 = vld [vmem:[%s1 + $0x2e8] sm:$0xff]
        %v400 = vld [vmem:[%s1 + $0x2f0] sm:$0xff]
        %v401 = vld [vmem:[%s1 + $0x2f8] sm:$0xff]
        %v402 = vld [vmem:[%s1 + $0x300] sm:$0xff]
        %v403 = vld [vmem:[%s1 + $0x308] sm:$0xff]
        %v404 = vld [vmem:[%s1 + $0x310] sm:$0xff]
        %v405 = vld [vmem:[%s1 + $0x318] sm:$0xff]
        %v406 = vld [vmem:[%s1 + $0x320] sm:$0xff]
        %v407 = vld [vmem:[%s1 + $0x328] sm:$0xff]
        %v408 = vld [vmem:[%s1 + $0x330] sm:$0xff]
        %v409 = vld [vmem:[%s1 + $0x338] sm:$0xff]
        %v410 = vld [vmem:[%s1 + $0x340] sm:$0xff]
        %v411 = vld [vmem:[%s1 + $0x348] sm:$0xff]
        %v412 = vld [vmem:[%s1 + $0x350] sm:$0xff]
        %v413 = vld [vmem:[%s1 + $0x358] sm:$0xff]
        %v414 = vld [vmem:[%s1 + $0x360] sm:$0xff]
        %v415 = vld [vmem:[%s1 + $0x368] sm:$0xff]
        %v416 = vld [vmem:[%s1 + $0x370] sm:$0xff]
        %v417 = vld [vmem:[%s1 + $0x378] sm:$0xff]
        %v418 = vld [vmem:[%s1 + $0x380] sm:$0xff]
        %v419 = vld [vmem:[%s1 + $0x388] sm:$0xff]
        %v420 = vld [vmem:[%s1 + $0x390] sm:$0xff]
        %v421 = vld [vmem:[%s1 + $0x398] sm:$0xff]
        %v422 = vld [vmem:[%s1 + $0x3a0] sm:$0xff]
        %v423 = vld [vmem:[%s1 + $0x3a8] sm:$0xff]
        %v424 = vld [vmem:[%s1 + $0x3b0] sm:$0xff]
        %v425 = vld [vmem:[%s1 + $0x3b8] sm:$0xff]
        %v426 = vld [vmem:[%s1 + $0x3c0] sm:$0xff]
        %v427 = vld [vmem:[%s1 + $0x3c8] sm:$0xff]
        %v428 = vld [vmem:[%s1 + $0x3d0] sm:$0xff]
        %v429 = vld [vmem:[%s1 + $0x3d8] sm:$0xff]
        %v430 = vld [vmem:[%s1 + $0x3e0] sm:$0xff]
        %v431 = vld [vmem:[%s1 + $0x3e8] sm:$0xff]
        %v432 = vld [vmem:[%s1 + $0x3f0] sm:$0xff]
        %v433 = vld [vmem:[%s1 + $0x3f8] sm:$0xff]
        %v434 = vld [vmem:[%s1 + $0x400] sm:$0xff]
        %v435 = vld [vmem:[%s1 + $0x408] sm:$0xff]
        %v436 = vld [vmem:[%s1 + $0x410] sm:$0xff]
        %v437 = vld [vmem:[%s1 + $0x418] sm:$0xff]
        %v438 = vld [vmem:[%s1 + $0x420] sm:$0xff]
        %v439 = vld [vmem:[%s1 + $0x428] sm:$0xff]
        %v440 = vld [vmem:[%s1 + $0x430] sm:$0xff]
        %v441 = vld [vmem:[%s1 + $0x438] sm:$0xff]
        %v442 = vld [vmem:[%s1 + $0x440] sm:$0xff]
        %v443 = vld [vmem:[%s1 + $0x448] sm:$0xff]
        %v444 = vld [vmem:[%s1 + $0x450] sm:$0xff]
        %v445 = vld [vmem:[%s1 + $0x458] sm:$0xff]
        %v446 = vld [vmem:[%s1 + $0x460] sm:$0xff]
        %v447 = vld [vmem:[%s1 + $0x468] sm:$0xff]
        %v448 = vld [vmem:[%s1 + $0x470] sm:$0xff]
        %v449 = vld [vmem:[%s1 + $0x478] sm:$0xff]
        %v450 = vld [vmem:[%s1 + $0x480] sm:$0xff]
        %v451 = vld [vmem:[%s1 + $0x488] sm:$0xff]
        %v452 = vld [vmem:[%s1 + $0x490] sm:$0xff]
        %v453 = vld [vmem:[%s1 + $0x498] sm:$0xff]
        %v454 = vld [vmem:[%s1 + $0x4a0] sm:$0xff]
        %v455 = vld [vmem:[%s1 + $0x4a8] sm:$0xff]
        %v456 = vld [vmem:[%s1 + $0x4b0] sm:$0xff]
        %v457 = vld [vmem:[%s1 + $0x4b8] sm:$0xff]
        %v458 = vld [vmem:[%s1 + $0x4c0] sm:$0xff]
        %v459 = vld [vmem:[%s1 + $0x4c8] sm:$0xff]
        %v460 = vld [vmem:[%s1 + $0x4d0] sm:$0xff]
        %v461 = vld [vmem:[%s1 + $0x4d8] sm:$0xff]
        %v462 = vld [vmem:[%s1 + $0x4e0] sm:$0xff]
        %v463 = vld [vmem:[%s1 + $0x4e8] sm:$0xff]
        %v464 = vld [vmem:[%s1 + $0x4f0] sm:$0xff]
        %v465 = vld [vmem:[%s1 + $0x4f8] sm:$0xff]
        %v466 = vld [vmem:[%s1 + $0x500] sm:$0xff]
        %v467 = vld [vmem:[%s1 + $0x508] sm:$0xff]
        %v468 = vld [vmem:[%s1 + $0x510] sm:$0xff]
        %v469 = vld [vmem:[%s1 + $0x518] sm:$0xff]
        %v470 = vld [vmem:[%s1 + $0x520] sm:$0xff]
        %v471 = vld [vmem:[%s1 + $0x528] sm:$0xff]
        %v472 = vld [vmem:[%s1 + $0x530] sm:$0xff]
        %v473 = vld [vmem:[%s1 + $0x538] sm:$0xff]
        %v474 = vld [vmem:[%s1 + $0x540] sm:$0xff]
        %v475 = vld [vmem:[%s1 + $0x548] sm:$0xff]
        %v476 = vld [vmem:[%s1 + $0x550] sm:$0xff]
        %v477 = vld [vmem:[%s1 + $0x558] sm:$0xff]
        %v478 = vld [vmem:[%s1 + $0x560] sm:$0xff]
        %v479 = vld [vmem:[%s1 + $0x568] sm:$0xff]
        %v480 = vld [vmem:[%s1 + $0x570] sm:$0xff]
        %v481 = vld [vmem:[%s1 + $0x578] sm:$0xff]
        %v482 = vld [vmem:[%s1 + $0x580] sm:$0xff]
        %v483 = vld [vmem:[%s1 + $0x588] sm:$0xff]
        %v484 = vld [vmem:[%s1 + $0x590] sm:$0xff]
        %v485 = vld [vmem:[%s1 + $0x598] sm:$0xff]
        %v486 = vld [vmem:[%s1 + $0x5a0] sm:$0xff]
        %v487 = vld [vmem:[%s1 + $0x5a8] sm:$0xff]
        %v488 = vld [vmem:[%s1 + $0x5b0] sm:$0xff]
        %v489 = vld [vmem:[%s1 + $0x5b8] sm:$0xff]
        %v490 = vld [vmem:[%s1 + $0x5c0] sm:$0xff]
        %v491 = vld [vmem:[%s1 + $0x5c8] sm:$0xff]
        %v492 = vld [vmem:[%s1 + $0x5d0] sm:$0xff]
        %v493 = vld [vmem:[%s1 + $0x5d8] sm:$0xff]
        %v494 = vld [vmem:[%s1 + $0x5e0] sm:$0xff]
        %v495 = vld [vmem:[%s1 + $0x5e8] sm:$0xff]
        %v496 = vld [vmem:[%s1 + $0x5f0] sm:$0xff]
        %v497 = vld [vmem:[%s1 + $0x5f8] sm:$0xff]
        %v501 = vcombine.high %v303, %v303
        %v502 = vcombine.high %v304, %v304
        %v503 = vcombine.high %v305, %v305
        %v507 = vpack.c.bf16 %v303, %v303
        %v508 = vpack.c.bf16 %v501, %v501
        %v509 = vpack.c.bf16 %v304, %v304
        %v510 = vpack.c.bf16 %v502, %v502
        %v511 = vpack.c.bf16 %v305, %v305
        %v512 = vpack.c.bf16 %v503, %v503
        %v513 = vpack.c.bf16 %v308, %v306
        %v514 = vpack.c.bf16 %v309, %v307
        %v515 = vpack.c.bf16 %v312, %v310
        %v516 = vpack.c.bf16 %v313, %v311
        %v517 = vpack.c.bf16 %v316, %v314
        %v518 = vpack.c.bf16 %v317, %v315
        %v519 = vpack.c.bf16 %v320, %v318
        %v520 = vpack.c.bf16 %v321, %v319
        %v521 = vpack.c.bf16 %v324, %v322
        %v522 = vpack.c.bf16 %v325, %v323
        %v523 = vpack.c.bf16 %v328, %v326
        %v524 = vpack.c.bf16 %v329, %v327
        %v525 = vpack.c.bf16 %v332, %v330
        %v526 = vpack.c.bf16 %v333, %v331
        %v527 = vpack.c.bf16 %v336, %v334
        %v528 = vpack.c.bf16 %v337, %v335
        %v529 = vpack.c.bf16 %v340, %v338
        %v530 = vpack.c.bf16 %v341, %v339
        %v531 = vpack.c.bf16 %v344, %v342
        %v532 = vpack.c.bf16 %v345, %v343
        %v533 = vpack.c.bf16 %v348, %v346
        %v534 = vpack.c.bf16 %v349, %v347
        %v535 = vpack.c.bf16 %v352, %v350
        %v536 = vpack.c.bf16 %v353, %v351
        %v537 = vpack.c.bf16 %v356, %v354
        %v538 = vpack.c.bf16 %v357, %v355
        %v539 = vpack.c.bf16 %v360, %v358
        %v540 = vpack.c.bf16 %v361, %v359
        %v541 = vpack.c.bf16 %v364, %v362
        %v542 = vpack.c.bf16 %v365, %v363
        %v543 = vpack.c.bf16 %v368, %v366
        %v544 = vpack.c.bf16 %v369, %v367
        %v545 = vpack.c.bf16 %v372, %v370
        %v546 = vpack.c.bf16 %v373, %v371
        %v547 = vpack.c.bf16 %v376, %v374
        %v548 = vpack.c.bf16 %v377, %v375
        %v549 = vpack.c.bf16 %v380, %v378
        %v550 = vpack.c.bf16 %v381, %v379
        %v551 = vpack.c.bf16 %v384, %v382
        %v552 = vpack.c.bf16 %v385, %v383
        %v553 = vpack.c.bf16 %v388, %v386
        %v554 = vpack.c.bf16 %v389, %v387
        %v555 = vpack.c.bf16 %v392, %v390
        %v556 = vpack.c.bf16 %v393, %v391
        %v557 = vpack.c.bf16 %v396, %v394
        %v558 = vpack.c.bf16 %v397, %v395
        %v559 = vpack.c.bf16 %v400, %v398
        %v560 = vpack.c.bf16 %v401, %v399
        %v561 = vpack.c.bf16 %v404, %v402
        %v562 = vpack.c.bf16 %v405, %v403
        %v563 = vpack.c.bf16 %v408, %v406
        %v564 = vpack.c.bf16 %v409, %v407
        %v565 = vpack.c.bf16 %v412, %v410
        %v566 = vpack.c.bf16 %v413, %v411
        %v567 = vpack.c.bf16 %v416, %v414
        %v568 = vpack.c.bf16 %v417, %v415
        %v569 = vpack.c.bf16 %v420, %v418
        %v570 = vpack.c.bf16 %v421, %v419
        %v571 = vpack.c.bf16 %v424, %v422
        %v572 = vpack.c.bf16 %v425, %v423
        %v573 = vpack.c.bf16 %v428, %v426
        %v574 = vpack.c.bf16 %v429, %v427
        %v575 = vpack.c.bf16 %v432, %v430
        %v576 = vpack.c.bf16 %v433, %v431
        %v577 = vpack.c.bf16 %v436, %v434
        %v578 = vpack.c.bf16 %v437, %v435
        %v579 = vpack.c.bf16 %v440, %v438
        %v580 = vpack.c.bf16 %v441, %v439
        %v581 = vpack.c.bf16 %v444, %v442
        %v582 = vpack.c.bf16 %v445, %v443
        %v583 = vpack.c.bf16 %v448, %v446
        %v584 = vpack.c.bf16 %v449, %v447
        %v585 = vpack.c.bf16 %v452, %v450
        %v586 = vpack.c.bf16 %v453, %v451
        %v587 = vpack.c.bf16 %v456, %v454
        %v588 = vpack.c.bf16 %v457, %v455
        %v589 = vpack.c.bf16 %v460, %v458
        %v590 = vpack.c.bf16 %v461, %v459
        %v591 = vpack.c.bf16 %v464, %v462
        %v592 = vpack.c.bf16 %v465, %v463
        %v593 = vpack.c.bf16 %v468, %v466
        %v594 = vpack.c.bf16 %v469, %v467
        %v595 = vpack.c.bf16 %v472, %v470
        %v596 = vpack.c.bf16 %v473, %v471
        %v597 = vpack.c.bf16 %v476, %v474
        %v598 = vpack.c.bf16 %v477, %v475
        %v599 = vpack.c.bf16 %v480, %v478
        %v600 = vpack.c.bf16 %v481, %v479
        %v601 = vpack.c.bf16 %v484, %v482
        %v602 = vpack.c.bf16 %v485, %v483
        %v603 = vpack.c.bf16 %v488, %v486
        %v604 = vpack.c.bf16 %v489, %v487
        %v605 = vpack.c.bf16 %v492, %v490
        %v606 = vpack.c.bf16 %v493, %v491
        %v607 = vpack.c.bf16 %v496, %v494
        %v608 = vpack.c.bf16 %v497, %v495
        %v609 = vld [vmem:[#allocation6] sm:$0x3]
        %v610 = vld [vmem:[#allocation7] sm:$0x3]
        %v611 = vld [vmem:[#allocation2] sm:$0x3]
        %v612 = vld [vmem:[#allocation4] ss:$8 sm:$0x3]
        %v613 = vadd.f32 %v611, %v612
        %v614 = vld [vmem:[#allocation4] sm:$0x1e]
        %v615 = vld [vmem:[#allocation4 + $0x8] sm:$0x1e]
        %v618 = vrot.slane %v614, 1
        %v619 = vrot.slane %v615, 1
        %622 = vmatprep.subr.bf16.mxu0 %v514
        %623 = vmatpush1.bf16.msra.mxu0 %v513
        %624 = vmatprep.subr.bf16.mxu0 %v516
        %625 = vmatpush1.bf16.msra.mxu0 %v515
        %626 = vmatprep.subr.bf16.mxu0 %v518
        %627 = vmatpush1.bf16.msra.mxu0 %v517
        %628 = vmatprep.subr.bf16.mxu0 %v520
        %629 = vmatpush1.bf16.msra.mxu0 %v519
        %630 = vmatprep.subr.bf16.mxu0 %v522
        %631 = vmatpush1.bf16.msra.mxu0 %v521
        %632 = vmatprep.subr.bf16.mxu0 %v524
        %633 = vmatpush1.bf16.msra.mxu0 %v523
        %634 = vmatprep.subr.bf16.mxu0 %v526
        %635 = vmatpush1.bf16.msra.mxu0 %v525
        %636 = vmatprep.subr.bf16.mxu0 %v528
        %637 = vmatpush1.bf16.msra.mxu0 %v527
        %638 = vmatprep.subr.bf16.mxu0 %v530
        %639 = vmatpush1.bf16.msra.mxu0 %v529
        %640 = vmatprep.subr.bf16.mxu0 %v532
        %641 = vmatpush1.bf16.msra.mxu0 %v531
        %642 = vmatprep.subr.bf16.mxu0 %v534
        %643 = vmatpush1.bf16.msra.mxu0 %v533
        %644 = vmatprep.subr.bf16.mxu0 %v536
        %645 = vmatpush1.bf16.msra.mxu0 %v535
        %646 = vmatprep.subr.bf16.mxu0 %v538
        %647 = vmatpush1.bf16.msra.mxu0 %v537
        %648 = vmatprep.subr.bf16.mxu0 %v540
        %649 = vmatpush1.bf16.msra.mxu0 %v539
        %650 = vmatprep.subr.bf16.mxu0 %v542
        %651 = vmatpush1.bf16.msra.mxu0 %v541
        %652 = vmatprep.subr.bf16.mxu0 %v544
        %653 = vmatpush1.bf16.msra.mxu0 %v543
        %654 = vmatprep.mubr.bf16.mxu0 %v508
        %655 = vmatmul.mubr.bf16.gmra.mrb[0].mxu0 %v507
        %v656 = vpop.f32.mrb[0].mxu0
        %v657 = vadd.f32 %v618, %v656
        %v658 = vpop.f32.mrb[0].mxu0
        %v659 = vadd.f32 %v619, %v658
        %v660 = vpop.f32.mrb[0].mxu0
        %v661 = vpop.f32.mrb[0].mxu0
        %662 = vdwg.mxu0
        %663 = vmatprep.subr.bf16.mxu0 %v546
        %664 = vmatpush1.bf16.msra.mxu0 %v545
        %665 = vmatprep.subr.bf16.mxu0 %v548
        %666 = vmatpush1.bf16.msra.mxu0 %v547
        %667 = vmatprep.subr.bf16.mxu0 %v550
        %668 = vmatpush1.bf16.msra.mxu0 %v549
        %669 = vmatprep.subr.bf16.mxu0 %v552
        %670 = vmatpush1.bf16.msra.mxu0 %v551
        %671 = vmatprep.subr.bf16.mxu0 %v554
        %672 = vmatpush1.bf16.msra.mxu0 %v553
        %673 = vmatprep.subr.bf16.mxu0 %v556
        %674 = vmatpush1.bf16.msra.mxu0 %v555
        %675 = vmatprep.subr.bf16.mxu0 %v558
        %676 = vmatpush1.bf16.msra.mxu0 %v557
        %677 = vmatprep.subr.bf16.mxu0 %v560
        %678 = vmatpush1.bf16.msra.mxu0 %v559
        %679 = vmatprep.subr.bf16.mxu0 %v562
        %680 = vmatpush1.bf16.msra.mxu0 %v561
        %681 = vmatprep.subr.bf16.mxu0 %v564
        %682 = vmatpush1.bf16.msra.mxu0 %v563
        %683 = vmatprep.subr.bf16.mxu0 %v566
        %684 = vmatpush1.bf16.msra.mxu0 %v565
        %685 = vmatprep.subr.bf16.mxu0 %v568
        %686 = vmatpush1.bf16.msra.mxu0 %v567
        %687 = vmatprep.subr.bf16.mxu0 %v570
        %688 = vmatpush1.bf16.msra.mxu0 %v569
        %689 = vmatprep.subr.bf16.mxu0 %v572
        %690 = vmatpush1.bf16.msra.mxu0 %v571
        %691 = vmatprep.subr.bf16.mxu0 %v574
        %692 = vmatpush1.bf16.msra.mxu0 %v573
        %693 = vmatprep.subr.bf16.mxu0 %v576
        %694 = vmatpush1.bf16.msra.mxu0 %v575
        %695 = vmatprep.mubr.bf16.mxu0 %v510
        %696 = vmatmul.mubr.bf16.gmra.mrb[0].mxu0 %v509
        %v697 = vpop.f32.mrb[0].mxu0
        %v698 = vadd.f32 %v657, %v697
        %v699 = vpop.f32.mrb[0].mxu0
        %v700 = vadd.f32 %v659, %v699
        %v701 = vpop.f32.mrb[0].mxu0
        %v702 = vpop.f32.mrb[0].mxu0
        %703 = vdwg.mxu0
        %704 = vmatprep.subr.bf16.mxu0 %v578
        %705 = vmatpush1.bf16.msra.mxu0 %v577
        %706 = vmatprep.subr.bf16.mxu0 %v580
        %707 = vmatpush1.bf16.msra.mxu0 %v579
        %708 = vmatprep.subr.bf16.mxu0 %v582
        %709 = vmatpush1.bf16.msra.mxu0 %v581
        %710 = vmatprep.subr.bf16.mxu0 %v584
        %711 = vmatpush1.bf16.msra.mxu0 %v583
        %712 = vmatprep.subr.bf16.mxu0 %v586
        %713 = vmatpush1.bf16.msra.mxu0 %v585
        %714 = vmatprep.subr.bf16.mxu0 %v588
        %715 = vmatpush1.bf16.msra.mxu0 %v587
        %716 = vmatprep.subr.bf16.mxu0 %v590
        %717 = vmatpush1.bf16.msra.mxu0 %v589
        %718 = vmatprep.subr.bf16.mxu0 %v592
        %719 = vmatpush1.bf16.msra.mxu0 %v591
        %720 = vmatprep.subr.bf16.mxu0 %v594
        %721 = vmatpush1.bf16.msra.mxu0 %v593
        %722 = vmatprep.subr.bf16.mxu0 %v596
        %723 = vmatpush1.bf16.msra.mxu0 %v595
        %724 = vmatprep.subr.bf16.mxu0 %v598
        %725 = vmatpush1.bf16.msra.mxu0 %v597
        %726 = vmatprep.subr.bf16.mxu0 %v600
        %727 = vmatpush1.bf16.msra.mxu0 %v599
        %728 = vmatprep.subr.bf16.mxu0 %v602
        %729 = vmatpush1.bf16.msra.mxu0 %v601
        %730 = vmatprep.subr.bf16.mxu0 %v604
        %731 = vmatpush1.bf16.msra.mxu0 %v603
        %732 = vmatprep.subr.bf16.mxu0 %v606
        %733 = vmatpush1.bf16.msra.mxu0 %v605
        %734 = vmatprep.subr.bf16.mxu0 %v608
        %735 = vmatpush1.bf16.msra.mxu0 %v607
        %736 = vmatprep.mubr.bf16.mxu0 %v512
        %737 = vmatmul.mubr.bf16.gmra.mrb[0].mxu0 %v511
        %v738 = vpop.f32.mrb[0].mxu0
        %v739 = vadd.f32 %v698, %v738
        %v740 = vpop.f32.mrb[0].mxu0
        %v741 = vadd.f32 %v700, %v740
        %v742 = vpop.f32.mrb[0].mxu0
        %v743 = vpop.f32.mrb[0].mxu0
        %744 = vdwg.mxu0
        %v746 = vlaneseq
        %v747 = vshrl.u32 %v746, 7
        %v748 = vsub.s32 0, %v747
        %v749 = vrot.slane %v613, %v748
        %v750 = vlaneseq
        %v751 = vshrl.u32 %v750, 7
        %v752 = vsub.s32 1, %v751
        %v753 = vrot.slane %v613, %v752
        %vm756 = vcmask 1040384
        %v757 = vsel %vm756, %v749, 0.0
        %v758 = vsel %vm756, %v753, 0.0
        %v759 = vadd.f32 %v757, %v758
        %760 = vadd.xlane.f32.xlu0 %v759
        %v761 = vpop.xlane.xlu0 %760
        %v762 = vrcp.pop 256.0
        %v763 = vmul.f32 %v761, %v762
        %v765 = vlaneseq
        %v766 = vshrl.u32 %v765, 7
        %v767 = vsub.s32 0, %v766
        %v768 = vrot.slane %v763, %v767
        %v770 = vsub.f32 %v613, %v768
        %v771 = vmul.f32 %v770, %v770
        %v773 = vlaneseq
        %v774 = vshrl.u32 %v773, 7
        %v775 = vsub.s32 0, %v774
        %v776 = vrot.slane %v771, %v775
        %v777 = vlaneseq
        %v778 = vshrl.u32 %v777, 7
        %v779 = vsub.s32 1, %v778
        %v780 = vrot.slane %v771, %v779
        %v783 = vsel %vm756, %v776, 0.0
        %v784 = vsel %vm756, %v780, 0.0
        %v785 = vadd.f32 %v783, %v784
        %786 = vadd.xlane.f32.xlu0 %v785
        %v787 = vpop.xlane.xlu0 %786
        %v788 = vmul.f32 %v787, %v762
        %v789 = vadd.f32 %v788, 1e-05
        %v790 = vrsqrt.pop %v789
        %v792 = vlaneseq
        %v793 = vshrl.u32 %v792, 7
        %v794 = vsub.s32 0, %v793
        %v795 = vrot.slane %v790, %v794
        %v797 = vmul.f32 %v770, %v795
        %v798 = vmul.f32 %v797, %v609
        %v799 = vadd.f32 %v798, %v610
        %v800 = vlaneseq
        %vm801 = vcmp.ge.s32.totalorder %v800, 0
        %vm802 = vcmp.lt.s32.totalorder %v800, 256
        %vm803 = vmand %vm801, %vm802
        %804 = vst.msk [vmem:[%s302] ss:$8 sm:$0x3] %vm803, %v799
        %805 = vst.msk [vmem:[%s302] ss:$8 sm:$0x0] %vm803, %v799
        %vm806 = vcmask 1043456
        %v807 = vsel %vm806, %v739, 0.0
        %v808 = vsel %vm806, %v741, 0.0
        %v809 = vadd.f32 %v807, %v808
        %810 = vadd.xlane.f32.xlu0 %v809
        %v811 = vpop.xlane.xlu0 %810
        %v812 = vmul.f32 %v811, %v762
        %v813 = vsub.f32 %v739, %v812
        %v814 = vsub.f32 %v741, %v812
        %v815 = vmul.f32 %v813, %v813
        %v816 = vmul.f32 %v814, %v814
        %v817 = vsel %vm806, %v815, 0.0
        %v818 = vsel %vm806, %v816, 0.0
        %v819 = vadd.f32 %v817, %v818
        %820 = vadd.xlane.f32.xlu0 %v819
        %v821 = vpop.xlane.xlu0 %820
        %v822 = vmul.f32 %v821, %v762
        %v823 = vadd.f32 %v822, 1e-05
        %v824 = vrsqrt.pop %v823
        %v825 = vmul.f32 %v813, %v824
        %v826 = vmul.f32 %v814, %v824
        %v828 = vlaneseq
        %v829 = vshrl.u32 %v828, 7
        %v830 = vsub.s32 0, %v829
        %v831 = vrot.slane %v609, %v830
        %v832 = vlaneseq
        %v833 = vshrl.u32 %v832, 7
        %v834 = vsub.s32 1, %v833
        %v835 = vrot.slane %v609, %v834
        %v838 = vmul.f32 %v825, %v831
        %v839 = vmul.f32 %v826, %v835
        %v841 = vlaneseq
        %v842 = vshrl.u32 %v841, 7
        %v843 = vsub.s32 0, %v842
        %v844 = vrot.slane %v610, %v843
        %v845 = vlaneseq
        %v846 = vshrl.u32 %v845, 7
        %v847 = vsub.s32 1, %v846
        %v848 = vrot.slane %v610, %v847
        %v851 = vadd.f32 %v838, %v844
        %v852 = vadd.f32 %v839, %v848
        %v855 = vrot.slane %v851, 7
        %v856 = vrot.slane %v852, 7
        %859 = vst [vmem:[%s302] sm:$0x1e] %v855
        %860 = vst [vmem:[%s302 + $0x8] sm:$0x1e] %v856
        %p861 = scmp.lt.s32.totalorder %s20, 1
        %s862 = scalar_select %p861, %s20, 1
        %s863 = smul.addr %s862, 2
        %s864 = smul.addr %s863, 8
        %s865 = scalar_lea.vmem %s6, %s864
        // Predicated region
        $region61: #{clip_targeter_forward.5} parent=43 // pred_check
          %p866 = pneg %p169
        $region62: #{clip_targeter_forward.5} parent=43 // pred_check_branch
          %868 = sbr.rel (%p866) target = $region64
        $region63: #{clip_targeter_forward.5} parent=43 // pred_region
          _
        $region64: #{clip_targeter_forward.5} parent=43 // pred_fallthru
          _
      $region44: #{clip_targeter_forward.5} parent=5 // pred_fallthru
        _
      %p869 = scmp.le.s32.totalorder 2, %s15
      // Predicated region
      $region65: #{clip_targeter_forward.5} parent=5 // pred_check
        %p870 = pneg %p869
      $region66: #{clip_targeter_forward.5} parent=5 // pred_check_branch
        %872 = sbr.rel (%p870) target = $region68
      $region67: #{clip_targeter_forward.5} parent=5 // pred_region
        %s873 = ssub.s32 %s15, 2
        // Predicated region
        $region69: #{clip_targeter_forward.5} parent=67 // pred_check
          %p874 = pneg %p175
        $region70: #{clip_targeter_forward.5} parent=67 // pred_check_branch
          %876 = sbr.rel (%p874) target = $region72
        $region71: #{clip_targeter_forward.5} parent=67 // pred_region
          %p877 = scmp.lt.s32.totalorder %s21, 1
          %s878 = scalar_select %p877, %s21, 1
          %s879 = smul.addr %s878, 2
          %s880 = smul.addr %s879, 8
          %s881 = scalar_lea.vmem %s6, %s880
        $region72: #{clip_targeter_forward.5} parent=67 // pred_fallthru
          _
      $region68: #{clip_targeter_forward.5} parent=5 // pred_fallthru
        _
    $region6: #{clip_targeter_forward.5} parent=1 // loop_footer
      %s19 = sadd.s32 1, %s15
    $region7: #{clip_targeter_forward.5} parent=1 // loop_footer_branch
      %14 = sbr.rel target = $region3
    $region8: #{clip_targeter_forward.5} parent=1 // loop_exit
      _
    %882 = vsyncpa [#allocation3], 1
    %s883 = scalar_lea.sflag [#allocation3], 1
    %884 = vsyncpa %s883, 1
    %885 = vsyncpa [#allocation5], 1
    %886 = vsyncpa [#allocation8], 1

// kernel: clip_targeter_forward.7
$region0: #{clip_targeter_forward.7}
  #allocation0 [shape = 'u32[]', space=smem, size = 0x4, offset = 0x4, fixed_abs, tag = 'smem constant byte address 0x4 - core index']
  #allocation1 [shape = 'u32[144,128]{1,0:T(1,128)}', space=vmem, size = 0x12000, scoped, tag = 'internal scratch']
  %s0 = inlined_call_operand.vmem [shape: f32[2,5,256], index: 0, kind: input, shape index: {}]
  %s1 = inlined_call_operand.hbm [shape: f32[1,256], index: 1, kind: input, shape index: {}]
  %s2 = inlined_call_operand.hbm [shape: f32[1,256], index: 2, kind: input, shape index: {}]
  %s3 = inlined_call_operand.vmem [shape: f32[256,1024], index: 3, kind: input, shape index: {}]
  %s4 = inlined_call_operand.hbm [shape: f32[1,1024], index: 4, kind: input, shape index: {}]
  %s5 = inlined_call_operand.vmem [shape: f32[1024,256], index: 5, kind: input, shape index: {}]
  %s6 = inlined_call_operand.hbm [shape: f32[1,256], index: 6, kind: input, shape index: {}]
  %s7 = inlined_call_operand.vmem [shape: f32[1,256], index: 7, kind: input, shape index: {}]
  %s8 = inlined_call_operand.vmem [shape: f32[1,256], index: 8, kind: input, shape index: {}]
  %s9 = inlined_call_operand.vmem [shape: f32[2,5,256], index: 9, kind: output, shape index: {}]
  %s10 = sld [smem:[#allocation0]]
  $region85: #{clip_targeter_forward.7} parent=0
    _
  %s12 = ssub.s32 1, %s10
  %s13 = scalar_select 0, %s12, %s10
  $region1: #{clip_targeter_forward.7} parent=0
    #allocation2 [shape = 'u8[1024]{0}', space=vmem, size = 0x400, scoped, tag = 'input window, operand 1, single buffered']
    #allocation3 [shape = 's32[2]{0}', space=sflag, size = 0x8, scoped, tag = 'scoped memory for clip_targeter_forward.7']
    #allocation4 [shape = 'u8[1024]{0}', space=vmem, size = 0x400, scoped, tag = 'input window, operand 2, single buffered']
    #allocation5 [shape = 's32[1]{0}', space=sflag, size = 0x4, scoped, tag = 'scoped memory for clip_targeter_forward.7']
    #allocation6 [shape = 'u8[4096]{0}', space=vmem, size = 0x1000, scoped, tag = 'input window, operand 4, single buffered']
    #allocation7 [shape = 'u8[1024]{0}', space=vmem, size = 0x400, scoped, tag = 'input window, operand 6, single buffered']
    #allocation8 [shape = 's32[1]{0}', space=sflag, size = 0x4, scoped, tag = 'scoped memory for clip_targeter_forward.7']
    %14 = vsyncpa [#allocation3], 0
    %15 = vsyncpa [#allocation5], 0
    %16 = vsyncpa [#allocation8], 0
    loop: start=0, step=1, limit=4
    $region2: #{clip_targeter_forward.7} parent=1 // loop_pre_header
      _
    $region3: #{clip_targeter_forward.7} parent=1 // loop_header
      %s18 = sphi 0, %s22
      %p19 = scmp.ge.s32.totalorder %s18, 4
      %s28 = sphi 0, %s30
      %s31 = sphi 0, %s28
      %s32 = sphi 0, %s31
      %s48 = sphi 0, %s32
      %s52 = sphi 0, %s52
      %s54 = sphi 0, %s52
      %s55 = sphi 0, %s54
      %s69 = sphi 0, %s55
      %s73 = sphi 0, %s73
      %s75 = sphi 0, %s73
      %s76 = sphi 0, %s75
      %s90 = sphi 0, %s76
      %s94 = sphi 0, %s94
      %s96 = sphi 0, %s94
      %s97 = sphi 0, %s96
      %s111 = sphi 0, %s97
      %s115 = sphi 0, %s115
      %s117 = sphi 0, %s115
      %s118 = sphi 0, %s117
      %s132 = sphi 0, %s118
      %s136 = sphi 0, %s136
      %s138 = sphi 0, %s136
      %s139 = sphi 0, %s138
      %s153 = sphi 0, %s139
      %s157 = sphi 0, %s157
      %s159 = sphi 0, %s157
      %s160 = sphi 0, %s159
      %s174 = sphi 0, %s160
      %s178 = sphi 0, %s178
      %s180 = sphi 0, %s178
      %s181 = sphi 0, %s180
      %s195 = sphi 0, %s181
      %s199 = sphi 0, %s199
      %s201 = sphi 0, %s199
      %s202 = sphi 0, %s201
      %s216 = sphi 0, %s202
      %s222 = sphi 0, %s224
      %s225 = sphi 0, %s222
      %s226 = sphi 0, %s225
      %s242 = sphi 0, %s226
    $region4: #{clip_targeter_forward.7} parent=1 // loop_header_branch
      %21 = sbr.rel (%p19) target = $region8
    $region5: #{clip_targeter_forward.7} parent=1 // loop_body
      %s23 = ssub.s32 %s18, 1
      %s24 = ssub.s32 %s18, 2
      %s25 = sadd.s32 %s18, 1
      %s26 = ssub.s32 %s18, %s25
      %p27 = scmp.eq.s32.totalorder %s26, 0
      %s29 = sadd.s32 %s28, 1
      %s30 = scalar_select %p27, %s28, %s29
      %p33 = pneg %p27
      %p34 = scmp.eq.s32.totalorder %s18, 1
      %p35 = por %p33, %p34
      %p36 = scmp.ne.s32.totalorder %s28, %s31
      %p37 = scmp.eq.s32.totalorder %s18, 0
      %p38 = por %p36, %p37
      %p39 = scmp.ne.s32.totalorder %s28, %s31
      %p40 = scmp.eq.s32.totalorder %s23, 1
      %p41 = por %p39, %p40
      %p42 = scmp.ne.s32.totalorder %s31, %s32
      %p43 = scmp.eq.s32.totalorder %s23, 0
      %p44 = por %p42, %p43
      %p45 = scmp.ne.s32.totalorder %s31, %s32
      %p46 = scmp.eq.s32.totalorder %s24, 1
      %p47 = por %p45, %p46
      %p49 = scmp.ne.s32.totalorder %s32, %s48
      %p50 = scmp.eq.s32.totalorder %s24, 0
      %p51 = por %p49, %p50
      %s53 = sadd.s32 %s52, 1
      %p56 = scmp.eq.s32.totalorder %s18, 1
      %p57 = scmp.ne.s32.totalorder %s52, %s54
      %p58 = scmp.eq.s32.totalorder %s18, 0
      %p59 = por %p57, %p58
      %p60 = scmp.ne.s32.totalorder %s52, %s54
      %p61 = scmp.eq.s32.totalorder %s23, 1
      %p62 = por %p60, %p61
      %p63 = scmp.ne.s32.totalorder %s54, %s55
      %p64 = scmp.eq.s32.totalorder %s23, 0
      %p65 = por %p63, %p64
      %p66 = scmp.ne.s32.totalorder %s54, %s55
      %p67 = scmp.eq.s32.totalorder %s24, 1
      %p68 = por %p66, %p67
      %p70 = scmp.ne.s32.totalorder %s55, %s69
      %p71 = scmp.eq.s32.totalorder %s24, 0
      %p72 = por %p70, %p71
      %s74 = sadd.s32 %s73, 1
      %p77 = scmp.eq.s32.totalorder %s18, 1
      %p78 = scmp.ne.s32.totalorder %s73, %s75
      %p79 = scmp.eq.s32.totalorder %s18, 0
      %p80 = por %p78, %p79
      %p81 = scmp.ne.s32.totalorder %s73, %s75
      %p82 = scmp.eq.s32.totalorder %s23, 1
      %p83 = por %p81, %p82
      %p84 = scmp.ne.s32.totalorder %s75, %s76
      %p85 = scmp.eq.s32.totalorder %s23, 0
      %p86 = por %p84, %p85
      %p87 = scmp.ne.s32.totalorder %s75, %s76
      %p88 = scmp.eq.s32.totalorder %s24, 1
      %p89 = por %p87, %p88
      %p91 = scmp.ne.s32.totalorder %s76, %s90
      %p92 = scmp.eq.s32.totalorder %s24, 0
      %p93 = por %p91, %p92
      %s95 = sadd.s32 %s94, 1
      %p98 = scmp.eq.s32.totalorder %s18, 1
      %p99 = scmp.ne.s32.totalorder %s94, %s96
      %p100 = scmp.eq.s32.totalorder %s18, 0
      %p101 = por %p99, %p100
      %p102 = scmp.ne.s32.totalorder %s94, %s96
      %p103 = scmp.eq.s32.totalorder %s23, 1
      %p104 = por %p102, %p103
      %p105 = scmp.ne.s32.totalorder %s96, %s97
      %p106 = scmp.eq.s32.totalorder %s23, 0
      %p107 = por %p105, %p106
      %p108 = scmp.ne.s32.totalorder %s96, %s97
      %p109 = scmp.eq.s32.totalorder %s24, 1
      %p110 = por %p108, %p109
      %p112 = scmp.ne.s32.totalorder %s97, %s111
      %p113 = scmp.eq.s32.totalorder %s24, 0
      %p114 = por %p112, %p113
      %s116 = sadd.s32 %s115, 1
      %p119 = scmp.eq.s32.totalorder %s18, 1
      %p120 = scmp.ne.s32.totalorder %s115, %s117
      %p121 = scmp.eq.s32.totalorder %s18, 0
      %p122 = por %p120, %p121
      %p123 = scmp.ne.s32.totalorder %s115, %s117
      %p124 = scmp.eq.s32.totalorder %s23, 1
      %p125 = por %p123, %p124
      %p126 = scmp.ne.s32.totalorder %s117, %s118
      %p127 = scmp.eq.s32.totalorder %s23, 0
      %p128 = por %p126, %p127
      %p129 = scmp.ne.s32.totalorder %s117, %s118
      %p130 = scmp.eq.s32.totalorder %s24, 1
      %p131 = por %p129, %p130
      %p133 = scmp.ne.s32.totalorder %s118, %s132
      %p134 = scmp.eq.s32.totalorder %s24, 0
      %p135 = por %p133, %p134
      %s137 = sadd.s32 %s136, 1
      %p140 = scmp.eq.s32.totalorder %s18, 1
      %p141 = scmp.ne.s32.totalorder %s136, %s138
      %p142 = scmp.eq.s32.totalorder %s18, 0
      %p143 = por %p141, %p142
      %p144 = scmp.ne.s32.totalorder %s136, %s138
      %p145 = scmp.eq.s32.totalorder %s23, 1
      %p146 = por %p144, %p145
      %p147 = scmp.ne.s32.totalorder %s138, %s139
      %p148 = scmp.eq.s32.totalorder %s23, 0
      %p149 = por %p147, %p148
      %p150 = scmp.ne.s32.totalorder %s138, %s139
      %p151 = scmp.eq.s32.totalorder %s24, 1
      %p152 = por %p150, %p151
      %p154 = scmp.ne.s32.totalorder %s139, %s153
      %p155 = scmp.eq.s32.totalorder %s24, 0
      %p156 = por %p154, %p155
      %s158 = sadd.s32 %s157, 1
      %p161 = scmp.eq.s32.totalorder %s18, 1
      %p162 = scmp.ne.s32.totalorder %s157, %s159
      %p163 = scmp.eq.s32.totalorder %s18, 0
      %p164 = por %p162, %p163
      %p165 = scmp.ne.s32.totalorder %s157, %s159
      %p166 = scmp.eq.s32.totalorder %s23, 1
      %p167 = por %p165, %p166
      %p168 = scmp.ne.s32.totalorder %s159, %s160
      %p169 = scmp.eq.s32.totalorder %s23, 0
      %p170 = por %p168, %p169
      %p171 = scmp.ne.s32.totalorder %s159, %s160
      %p172 = scmp.eq.s32.totalorder %s24, 1
      %p173 = por %p171, %p172
      %p175 = scmp.ne.s32.totalorder %s160, %s174
      %p176 = scmp.eq.s32.totalorder %s24, 0
      %p177 = por %p175, %p176
      %s179 = sadd.s32 %s178, 1
      %p182 = scmp.eq.s32.totalorder %s18, 1
      %p183 = scmp.ne.s32.totalorder %s178, %s180
      %p184 = scmp.eq.s32.totalorder %s18, 0
      %p185 = por %p183, %p184
      %p186 = scmp.ne.s32.totalorder %s178, %s180
      %p187 = scmp.eq.s32.totalorder %s23, 1
      %p188 = por %p186, %p187
      %p189 = scmp.ne.s32.totalorder %s180, %s181
      %p190 = scmp.eq.s32.totalorder %s23, 0
      %p191 = por %p189, %p190
      %p192 = scmp.ne.s32.totalorder %s180, %s181
      %p193 = scmp.eq.s32.totalorder %s24, 1
      %p194 = por %p192, %p193
      %p196 = scmp.ne.s32.totalorder %s181, %s195
      %p197 = scmp.eq.s32.totalorder %s24, 0
      %p198 = por %p196, %p197
      %s200 = sadd.s32 %s199, 1
      %p203 = scmp.eq.s32.totalorder %s18, 1
      %p204 = scmp.ne.s32.totalorder %s199, %s201
      %p205 = scmp.eq.s32.totalorder %s18, 0
      %p206 = por %p204, %p205
      %p207 = scmp.ne.s32.totalorder %s199, %s201
      %p208 = scmp.eq.s32.totalorder %s23, 1
      %p209 = por %p207, %p208
      %p210 = scmp.ne.s32.totalorder %s201, %s202
      %p211 = scmp.eq.s32.totalorder %s23, 0
      %p212 = por %p210, %p211
      %p213 = scmp.ne.s32.totalorder %s201, %s202
      %p214 = scmp.eq.s32.totalorder %s24, 1
      %p215 = por %p213, %p214
      %p217 = scmp.ne.s32.totalorder %s202, %s216
      %p218 = scmp.eq.s32.totalorder %s24, 0
      %p219 = por %p217, %p218
      %s220 = ssub.s32 %s18, %s25
      %p221 = scmp.eq.s32.totalorder %s220, 0
      %s223 = sadd.s32 %s222, 1
      %s224 = scalar_select %p221, %s222, %s223
      %p227 = pneg %p221
      %p228 = scmp.eq.s32.totalorder %s18, 1
      %p229 = por %p227, %p228
      %p230 = scmp.ne.s32.totalorder %s222, %s225
      %p231 = scmp.eq.s32.totalorder %s18, 0
      %p232 = por %p230, %p231
      %p233 = scmp.ne.s32.totalorder %s222, %s225
      %p234 = scmp.eq.s32.totalorder %s23, 1
      %p235 = por %p233, %p234
      %p236 = scmp.ne.s32.totalorder %s225, %s226
      %p237 = scmp.eq.s32.totalorder %s23, 0
      %p238 = por %p236, %p237
      %p239 = scmp.ne.s32.totalorder %s225, %s226
      %p240 = scmp.eq.s32.totalorder %s24, 1
      %p241 = por %p239, %p240
      %p243 = scmp.ne.s32.totalorder %s226, %s242
      %p244 = scmp.eq.s32.totalorder %s24, 0
      %p245 = por %p243, %p244
      %p246 = scmp.le.s32.totalorder 1, %s18
      %p247 = scmp.lt.s32.totalorder %s18, 3
      %p248 = pnand %p246, %p247
      %p249 = pneg %p248
      // Predicated region
      $region9: #{clip_targeter_forward.7} parent=5 // pred_check
        _
      $region10: #{clip_targeter_forward.7} parent=5 // pred_check_branch
        %251 = sbr.rel (%p248) target = $region12
      $region11: #{clip_targeter_forward.7} parent=5 // pred_region
        %s252 = ssub.s32 %s18, 1
        // Predicated region
        $region13: #{clip_targeter_forward.7} parent=11 // pred_check
          %p253 = pneg %p65
        $region14: #{clip_targeter_forward.7} parent=11 // pred_check_branch
          %255 = sbr.rel (%p253) target = $region16
        $region15: #{clip_targeter_forward.7} parent=11 // pred_region
          %s257 = ssub.s32 32, 32
          %258 = vsyncadd [#allocation3], %s257
          %s260 = sshll.u32 [#allocation2], 4
          %s261 = int_to_ptr.vmem [resolvable:$true] %s260
          %263 = dma.hbm_to_vmem [thread:$0]  %s1, 32, %s261, [#allocation3]
        $region16: #{clip_targeter_forward.7} parent=11 // pred_fallthru
          _
        // Predicated region
        $region17: #{clip_targeter_forward.7} parent=11 // pred_check
          %p264 = pneg %p86
        $region18: #{clip_targeter_forward.7} parent=11 // pred_check_branch
          %266 = sbr.rel (%p264) target = $region20
        $region19: #{clip_targeter_forward.7} parent=11 // pred_region
          %s268 = ssub.s32 32, 32
          %269 = vsyncadd [#allocation5], %s268
          %s271 = sshll.u32 [#allocation4], 4
          %s272 = int_to_ptr.vmem [resolvable:$true] %s271
          %274 = dma.hbm_to_vmem [thread:$0]  %s2, 32, %s272, [#allocation5]
        $region20: #{clip_targeter_forward.7} parent=11 // pred_fallthru
          _
        // Predicated region
        $region21: #{clip_targeter_forward.7} parent=11 // pred_check
          %p275 = pneg %p107
        $region22: #{clip_targeter_forward.7} parent=11 // pred_check_branch
          %277 = sbr.rel (%p275) target = $region24
        $region23: #{clip_targeter_forward.7} parent=11 // pred_region
          _
        $region24: #{clip_targeter_forward.7} parent=11 // pred_fallthru
          _
        // Predicated region
        $region25: #{clip_targeter_forward.7} parent=11 // pred_check
          %p278 = pneg %p128
        $region26: #{clip_targeter_forward.7} parent=11 // pred_check_branch
          %280 = sbr.rel (%p278) target = $region28
        $region27: #{clip_targeter_forward.7} parent=11 // pred_region
          %s282 = ssub.s32 128, 128
          %283 = vsyncadd [#allocation5], %s282
          %s285 = sshll.u32 [#allocation6], 4
          %s286 = int_to_ptr.vmem [resolvable:$true] %s285
          %288 = dma.hbm_to_vmem [thread:$0]  %s4, 128, %s286, [#allocation5]
        $region28: #{clip_targeter_forward.7} parent=11 // pred_fallthru
          _
        // Predicated region
        $region29: #{clip_targeter_forward.7} parent=11 // pred_check
          %p289 = pneg %p149
        $region30: #{clip_targeter_forward.7} parent=11 // pred_check_branch
          %291 = sbr.rel (%p289) target = $region32
        $region31: #{clip_targeter_forward.7} parent=11 // pred_region
          _
        $region32: #{clip_targeter_forward.7} parent=11 // pred_fallthru
          _
        // Predicated region
        $region33: #{clip_targeter_forward.7} parent=11 // pred_check
          %p292 = pneg %p170
        $region34: #{clip_targeter_forward.7} parent=11 // pred_check_branch
          %294 = sbr.rel (%p292) target = $region36
        $region35: #{clip_targeter_forward.7} parent=11 // pred_region
          %s296 = ssub.s32 32, 32
          %297 = vsyncadd [#allocation8], %s296
          %s299 = sshll.u32 [#allocation7], 4
          %s300 = int_to_ptr.vmem [resolvable:$true] %s299
          %302 = dma.hbm_to_vmem [thread:$0]  %s6, 32, %s300, [#allocation8]
        $region36: #{clip_targeter_forward.7} parent=11 // pred_fallthru
          _
        // Predicated region
        $region37: #{clip_targeter_forward.7} parent=11 // pred_check
          %p303 = pneg %p191
        $region38: #{clip_targeter_forward.7} parent=11 // pred_check_branch
          %305 = sbr.rel (%p303) target = $region40
        $region39: #{clip_targeter_forward.7} parent=11 // pred_region
          _
        $region40: #{clip_targeter_forward.7} parent=11 // pred_fallthru
          _
        // Predicated region
        $region41: #{clip_targeter_forward.7} parent=11 // pred_check
          %p306 = pneg %p212
        $region42: #{clip_targeter_forward.7} parent=11 // pred_check_branch
          %308 = sbr.rel (%p306) target = $region44
        $region43: #{clip_targeter_forward.7} parent=11 // pred_region
          _
        $region44: #{clip_targeter_forward.7} parent=11 // pred_fallthru
          _
      $region12: #{clip_targeter_forward.7} parent=5 // pred_fallthru
        _
      %p309 = scmp.lt.s32.totalorder %s18, 2
      // Predicated region
      $region45: #{clip_targeter_forward.7} parent=5 // pred_check
        %p310 = pneg %p309
      $region46: #{clip_targeter_forward.7} parent=5 // pred_check_branch
        %312 = sbr.rel (%p310) target = $region48
      $region47: #{clip_targeter_forward.7} parent=5 // pred_region
        // Predicated region
        $region49: #{clip_targeter_forward.7} parent=47 // pred_check
          %p313 = pneg %p38
        $region50: #{clip_targeter_forward.7} parent=47 // pred_check_branch
          %315 = sbr.rel (%p313) target = $region52
        $region51: #{clip_targeter_forward.7} parent=47 // pred_region
          %p316 = scmp.lt.s32.totalorder %s18, 1
          %s317 = scalar_select %p316, %s18, 1
          %s318 = smul.addr %s317, 2
          %s319 = smul.addr %s318, 8
          %s320 = scalar_lea.vmem %s0, %s319
        $region52: #{clip_targeter_forward.7} parent=47 // pred_fallthru
          _
      $region48: #{clip_targeter_forward.7} parent=5 // pred_fallthru
        _
      %p321 = scmp.le.s32.totalorder 1, %s18
      %p322 = scmp.lt.s32.totalorder %s18, 3
      %p323 = pnand %p321, %p322
      %p324 = pneg %p323
      // Predicated region
      $region53: #{clip_targeter_forward.7} parent=5 // pred_check
        _
      $region54: #{clip_targeter_forward.7} parent=5 // pred_check_branch
        %326 = sbr.rel (%p323) target = $region56
      $region55: #{clip_targeter_forward.7} parent=5 // pred_region
        %s327 = ssub.s32 %s18, 1
        // Predicated region
        $region57: #{clip_targeter_forward.7} parent=55 // pred_check
          %p328 = pneg %p65
        $region58: #{clip_targeter_forward.7} parent=55 // pred_check_branch
          %330 = sbr.rel (%p328) target = $region60
        $region59: #{clip_targeter_forward.7} parent=55 // pred_region
          %331 = dma.done [#allocation3], 32
        $region60: #{clip_targeter_forward.7} parent=55 // pred_fallthru
          _
        // Predicated region
        $region61: #{clip_targeter_forward.7} parent=55 // pred_check
          %p332 = pneg %p86
        $region62: #{clip_targeter_forward.7} parent=55 // pred_check_branch
          %334 = sbr.rel (%p332) target = $region64
        $region63: #{clip_targeter_forward.7} parent=55 // pred_region
          %335 = dma.done [#allocation5], 32
        $region64: #{clip_targeter_forward.7} parent=55 // pred_fallthru
          _
        // Predicated region
        $region65: #{clip_targeter_forward.7} parent=55 // pred_check
          %p336 = pneg %p128
        $region66: #{clip_targeter_forward.7} parent=55 // pred_check_branch
          %338 = sbr.rel (%p336) target = $region68
        $region67: #{clip_targeter_forward.7} parent=55 // pred_region
          %339 = dma.done [#allocation5], 128
        $region68: #{clip_targeter_forward.7} parent=55 // pred_fallthru
          _
        // Predicated region
        $region69: #{clip_targeter_forward.7} parent=55 // pred_check
          %p340 = pneg %p170
        $region70: #{clip_targeter_forward.7} parent=55 // pred_check_branch
          %342 = sbr.rel (%p340) target = $region72
        $region71: #{clip_targeter_forward.7} parent=55 // pred_region
          %343 = dma.done [#allocation8], 32
        $region72: #{clip_targeter_forward.7} parent=55 // pred_fallthru
          _
        %p344 = scmp.lt.s32.totalorder %s23, 1
        %s345 = scalar_select %p344, %s23, 1
        %s346 = smul.addr %s345, 2
        %s347 = smul.addr %s346, 8
        %s348 = scalar_lea.vmem %s0, %s347
        %p349 = pneg %p44
        %p350 = pneg %p41
        %p351 = pneg %p65
        %p352 = pneg %p62
        %p353 = pneg %p86
        %p354 = pneg %p83
        %p355 = pneg %p107
        %p356 = pneg %p104
        %p357 = pneg %p128
        %p358 = pneg %p125
        %p359 = pneg %p149
        %p360 = pneg %p146
        %p361 = pneg %p170
        %p362 = pneg %p167
        %p363 = pneg %p191
        %p364 = pneg %p188
        %p365 = pneg %p212
        %p366 = pneg %p209
        %p367 = pneg %p238
        %p368 = pneg %p235
        %p369 = scmp.lt.s32.totalorder %s23, 1
        %s370 = scalar_select %p369, %s23, 1
        %s371 = smul.addr %s370, 2
        %s372 = smul.addr %s371, 8
        %s373 = scalar_lea.vmem %s9, %s372
        %p374 = scmp.lt.s32.totalorder %s23, 1
        %s375 = scalar_select %p374, %s23, 1
        %s376 = smul.addr %s375, 2
        %s377 = smul.addr %s376, 8
        %s378 = scalar_lea.vmem %s0, %s377
        %p379 = scmp.lt.s32.totalorder %s23, 1
        %s380 = scalar_select %p379, %s23, 1
        %s381 = smul.addr %s380, 2
        %s382 = smul.addr %s381, 8
        %s383 = scalar_lea.vmem %s9, %s382
        %v384 = vld [vmem:[%s378] sm:$0x1f]
        %v385 = vld [vmem:[%s378 + $0x8] sm:$0x1f]
        %v386 = vld [vmem:[#allocation2] sm:$0x3]
        %v387 = vld [vmem:[#allocation4] sm:$0x3]
        %vm388 = vcmask 1044480
        %v389 = vsel %vm388, %v384, 0.0
        %v390 = vsel %vm388, %v385, 0.0
        %v391 = vadd.f32 %v389, %v390
        %392 = vadd.xlane.f32.xlu0 %v391
        %v393 = vpop.xlane.xlu0 %392
        %v394 = vrcp.pop 256.0
        %v395 = vmul.f32 %v393, %v394
        %v396 = vsub.f32 %v384, %v395
        %v397 = vsub.f32 %v385, %v395
        %v398 = vmul.f32 %v396, %v396
        %v399 = vmul.f32 %v397, %v397
        %v400 = vsel %vm388, %v398, 0.0
        %v401 = vsel %vm388, %v399, 0.0
        %v402 = vadd.f32 %v400, %v401
        %403 = vadd.xlane.f32.xlu0 %v402
        %v404 = vpop.xlane.xlu0 %403
        %v405 = vmul.f32 %v404, %v394
        %v406 = vadd.f32 %v405, 1e-05
        %v407 = vrsqrt.pop %v406
        %v408 = vmul.f32 %v396, %v407
        %v409 = vmul.f32 %v397, %v407
        %v411 = vlaneseq
        %v412 = vshrl.u32 %v411, 7
        %v413 = vsub.s32 0, %v412
        %v414 = vrot.slane %v386, %v413
        %v415 = vlaneseq
        %v416 = vshrl.u32 %v415, 7
        %v417 = vsub.s32 1, %v416
        %v418 = vrot.slane %v386, %v417
        %v421 = vmul.f32 %v408, %v414
        %v422 = vmul.f32 %v409, %v418
        %v424 = vlaneseq
        %v425 = vshrl.u32 %v424, 7
        %v426 = vsub.s32 0, %v425
        %v427 = vrot.slane %v387, %v426
        %v428 = vlaneseq
        %v429 = vshrl.u32 %v428, 7
        %v430 = vsub.s32 1, %v429
        %v431 = vrot.slane %v387, %v430
        %v434 = vadd.f32 %v421, %v427
        %v435 = vadd.f32 %v422, %v431
        %v436 = vld [vmem:[%s3] sm:$0xff]
        %v437 = vld [vmem:[%s3 + $0x8] sm:$0xff]
        %v438 = vld [vmem:[%s3 + $0x10] sm:$0xff]
        %v439 = vld [vmem:[%s3 + $0x18] sm:$0xff]
        %v440 = vld [vmem:[%s3 + $0x20] sm:$0xff]
        %v441 = vld [vmem:[%s3 + $0x28] sm:$0xff]
        %v442 = vld [vmem:[%s3 + $0x30] sm:$0xff]
        %v443 = vld [vmem:[%s3 + $0x38] sm:$0xff]
        %v444 = vld [vmem:[%s3 + $0x40] sm:$0xff]
        %v445 = vld [vmem:[%s3 + $0x48] sm:$0xff]
        %v446 = vld [vmem:[%s3 + $0x50] sm:$0xff]
        %v447 = vld [vmem:[%s3 + $0x58] sm:$0xff]
        %v448 = vld [vmem:[%s3 + $0x60] sm:$0xff]
        %v449 = vld [vmem:[%s3 + $0x68] sm:$0xff]
        %v450 = vld [vmem:[%s3 + $0x70] sm:$0xff]
        %v451 = vld [vmem:[%s3 + $0x78] sm:$0xff]
        %v452 = vld [vmem:[%s3 + $0x80] sm:$0xff]
        %v453 = vld [vmem:[%s3 + $0x88] sm:$0xff]
        %v454 = vld [vmem:[%s3 + $0x90] sm:$0xff]
        %v455 = vld [vmem:[%s3 + $0x98] sm:$0xff]
        %v456 = vld [vmem:[%s3 + $0xa0] sm:$0xff]
        %v457 = vld [vmem:[%s3 + $0xa8] sm:$0xff]
        %v458 = vld [vmem:[%s3 + $0xb0] sm:$0xff]
        %v459 = vld [vmem:[%s3 + $0xb8] sm:$0xff]
        %v460 = vld [vmem:[%s3 + $0xc0] sm:$0xff]
        %v461 = vld [vmem:[%s3 + $0xc8] sm:$0xff]
        %v462 = vld [vmem:[%s3 + $0xd0] sm:$0xff]
        %v463 = vld [vmem:[%s3 + $0xd8] sm:$0xff]
        %v464 = vld [vmem:[%s3 + $0xe0] sm:$0xff]
        %v465 = vld [vmem:[%s3 + $0xe8] sm:$0xff]
        %v466 = vld [vmem:[%s3 + $0xf0] sm:$0xff]
        %v467 = vld [vmem:[%s3 + $0xf8] sm:$0xff]
        %v468 = vld [vmem:[%s3 + $0x100] sm:$0xff]
        %v469 = vld [vmem:[%s3 + $0x108] sm:$0xff]
        %v470 = vld [vmem:[%s3 + $0x110] sm:$0xff]
        %v471 = vld [vmem:[%s3 + $0x118] sm:$0xff]
        %v472 = vld [vmem:[%s3 + $0x120] sm:$0xff]
        %v473 = vld [vmem:[%s3 + $0x128] sm:$0xff]
        %v474 = vld [vmem:[%s3 + $0x130] sm:$0xff]
        %v475 = vld [vmem:[%s3 + $0x138] sm:$0xff]
        %v476 = vld [vmem:[%s3 + $0x140] sm:$0xff]
        %v477 = vld [vmem:[%s3 + $0x148] sm:$0xff]
        %v478 = vld [vmem:[%s3 + $0x150] sm:$0xff]
        %v479 = vld [vmem:[%s3 + $0x158] sm:$0xff]
        %v480 = vld [vmem:[%s3 + $0x160] sm:$0xff]
        %v481 = vld [vmem:[%s3 + $0x168] sm:$0xff]
        %v482 = vld [vmem:[%s3 + $0x170] sm:$0xff]
        %v483 = vld [vmem:[%s3 + $0x178] sm:$0xff]
        %v484 = vld [vmem:[%s3 + $0x180] sm:$0xff]
        %v485 = vld [vmem:[%s3 + $0x188] sm:$0xff]
        %v486 = vld [vmem:[%s3 + $0x190] sm:$0xff]
        %v487 = vld [vmem:[%s3 + $0x198] sm:$0xff]
        %v488 = vld [vmem:[%s3 + $0x1a0] sm:$0xff]
        %v489 = vld [vmem:[%s3 + $0x1a8] sm:$0xff]
        %v490 = vld [vmem:[%s3 + $0x1b0] sm:$0xff]
        %v491 = vld [vmem:[%s3 + $0x1b8] sm:$0xff]
        %v492 = vld [vmem:[%s3 + $0x1c0] sm:$0xff]
        %v493 = vld [vmem:[%s3 + $0x1c8] sm:$0xff]
        %v494 = vld [vmem:[%s3 + $0x1d0] sm:$0xff]
        %v495 = vld [vmem:[%s3 + $0x1d8] sm:$0xff]
        %v496 = vld [vmem:[%s3 + $0x1e0] sm:$0xff]
        %v497 = vld [vmem:[%s3 + $0x1e8] sm:$0xff]
        %v498 = vld [vmem:[%s3 + $0x1f0] sm:$0xff]
        %v499 = vld [vmem:[%s3 + $0x1f8] sm:$0xff]
        %v500 = vld [vmem:[%s3 + $0x200] sm:$0xff]
        %v501 = vld [vmem:[%s3 + $0x208] sm:$0xff]
        %v502 = vld [vmem:[%s3 + $0x210] sm:$0xff]
        %v503 = vld [vmem:[%s3 + $0x218] sm:$0xff]
        %v504 = vld [vmem:[%s3 + $0x220] sm:$0xff]
        %v505 = vld [vmem:[%s3 + $0x228] sm:$0xff]
        %v506 = vld [vmem:[%s3 + $0x230] sm:$0xff]
        %v507 = vld [vmem:[%s3 + $0x238] sm:$0xff]
        %v508 = vld [vmem:[%s3 + $0x240] sm:$0xff]
        %v509 = vld [vmem:[%s3 + $0x248] sm:$0xff]
        %v510 = vld [vmem:[%s3 + $0x250] sm:$0xff]
        %v511 = vld [vmem:[%s3 + $0x258] sm:$0xff]
        %v512 = vld [vmem:[%s3 + $0x260] sm:$0xff]
        %v513 = vld [vmem:[%s3 + $0x268] sm:$0xff]
        %v514 = vld [vmem:[%s3 + $0x270] sm:$0xff]
        %v515 = vld [vmem:[%s3 + $0x278] sm:$0xff]
        %v516 = vld [vmem:[%s3 + $0x280] sm:$0xff]
        %v517 = vld [vmem:[%s3 + $0x288] sm:$0xff]
        %v518 = vld [vmem:[%s3 + $0x290] sm:$0xff]
        %v519 = vld [vmem:[%s3 + $0x298] sm:$0xff]
        %v520 = vld [vmem:[%s3 + $0x2a0] sm:$0xff]
        %v521 = vld [vmem:[%s3 + $0x2a8] sm:$0xff]
        %v522 = vld [vmem:[%s3 + $0x2b0] sm:$0xff]
        %v523 = vld [vmem:[%s3 + $0x2b8] sm:$0xff]
        %v524 = vld [vmem:[%s3 + $0x2c0] sm:$0xff]
        %v525 = vld [vmem:[%s3 + $0x2c8] sm:$0xff]
        %v526 = vld [vmem:[%s3 + $0x2d0] sm:$0xff]
        %v527 = vld [vmem:[%s3 + $0x2d8] sm:$0xff]
        %v528 = vld [vmem:[%s3 + $0x2e0] sm:$0xff]
        %v529 = vld [vmem:[%s3 + $0x2e8] sm:$0xff]
        %v530 = vld [vmem:[%s3 + $0x2f0] sm:$0xff]
        %v531 = vld [vmem:[%s3 + $0x2f8] sm:$0xff]
        %v532 = vld [vmem:[%s3 + $0x300] sm:$0xff]
        %v533 = vld [vmem:[%s3 + $0x308] sm:$0xff]
        %v534 = vld [vmem:[%s3 + $0x310] sm:$0xff]
        %v535 = vld [vmem:[%s3 + $0x318] sm:$0xff]
        %v536 = vld [vmem:[%s3 + $0x320] sm:$0xff]
        %v537 = vld [vmem:[%s3 + $0x328] sm:$0xff]
        %v538 = vld [vmem:[%s3 + $0x330] sm:$0xff]
        %v539 = vld [vmem:[%s3 + $0x338] sm:$0xff]
        %v540 = vld [vmem:[%s3 + $0x340] sm:$0xff]
        %v541 = vld [vmem:[%s3 + $0x348] sm:$0xff]
        %v542 = vld [vmem:[%s3 + $0x350] sm:$0xff]
        %v543 = vld [vmem:[%s3 + $0x358] sm:$0xff]
        %v544 = vld [vmem:[%s3 + $0x360] sm:$0xff]
        %v545 = vld [vmem:[%s3 + $0x368] sm:$0xff]
        %v546 = vld [vmem:[%s3 + $0x370] sm:$0xff]
        %v547 = vld [vmem:[%s3 + $0x378] sm:$0xff]
        %v548 = vld [vmem:[%s3 + $0x380] sm:$0xff]
        %v549 = vld [vmem:[%s3 + $0x388] sm:$0xff]
        %v550 = vld [vmem:[%s3 + $0x390] sm:$0xff]
        %v551 = vld [vmem:[%s3 + $0x398] sm:$0xff]
        %v552 = vld [vmem:[%s3 + $0x3a0] sm:$0xff]
        %v553 = vld [vmem:[%s3 + $0x3a8] sm:$0xff]
        %v554 = vld [vmem:[%s3 + $0x3b0] sm:$0xff]
        %v555 = vld [vmem:[%s3 + $0x3b8] sm:$0xff]
        %v556 = vld [vmem:[%s3 + $0x3c0] sm:$0xff]
        %v557 = vld [vmem:[%s3 + $0x3c8] sm:$0xff]
        %v558 = vld [vmem:[%s3 + $0x3d0] sm:$0xff]
        %v559 = vld [vmem:[%s3 + $0x3d8] sm:$0xff]
        %v560 = vld [vmem:[%s3 + $0x3e0] sm:$0xff]
        %v561 = vld [vmem:[%s3 + $0x3e8] sm:$0xff]
        %v562 = vld [vmem:[%s3 + $0x3f0] sm:$0xff]
        %v563 = vld [vmem:[%s3 + $0x3f8] sm:$0xff]
        %v564 = vld [vmem:[%s3 + $0x400] sm:$0xff]
        %v565 = vld [vmem:[%s3 + $0x408] sm:$0xff]
        %v566 = vld [vmem:[%s3 + $0x410] sm:$0xff]
        %v567 = vld [vmem:[%s3 + $0x418] sm:$0xff]
        %v568 = vld [vmem:[%s3 + $0x420] sm:$0xff]
        %v569 = vld [vmem:[%s3 + $0x428] sm:$0xff]
        %v570 = vld [vmem:[%s3 + $0x430] sm:$0xff]
        %v571 = vld [vmem:[%s3 + $0x438] sm:$0xff]
        %v572 = vld [vmem:[%s3 + $0x440] sm:$0xff]
        %v573 = vld [vmem:[%s3 + $0x448] sm:$0xff]
        %v574 = vld [vmem:[%s3 + $0x450] sm:$0xff]
        %v575 = vld [vmem:[%s3 + $0x458] sm:$0xff]
        %v576 = vld [vmem:[%s3 + $0x460] sm:$0xff]
        %v577 = vld [vmem:[%s3 + $0x468] sm:$0xff]
        %v578 = vld [vmem:[%s3 + $0x470] sm:$0xff]
        %v579 = vld [vmem:[%s3 + $0x478] sm:$0xff]
        %v580 = vld [vmem:[%s3 + $0x480] sm:$0xff]
        %v581 = vld [vmem:[%s3 + $0x488] sm:$0xff]
        %v582 = vld [vmem:[%s3 + $0x490] sm:$0xff]
        %v583 = vld [vmem:[%s3 + $0x498] sm:$0xff]
        %v584 = vld [vmem:[%s3 + $0x4a0] sm:$0xff]
        %v585 = vld [vmem:[%s3 + $0x4a8] sm:$0xff]
        %v586 = vld [vmem:[%s3 + $0x4b0] sm:$0xff]
        %v587 = vld [vmem:[%s3 + $0x4b8] sm:$0xff]
        %v588 = vld [vmem:[%s3 + $0x4c0] sm:$0xff]
        %v589 = vld [vmem:[%s3 + $0x4c8] sm:$0xff]
        %v590 = vld [vmem:[%s3 + $0x4d0] sm:$0xff]
        %v591 = vld [vmem:[%s3 + $0x4d8] sm:$0xff]
        %v592 = vld [vmem:[%s3 + $0x4e0] sm:$0xff]
        %v593 = vld [vmem:[%s3 + $0x4e8] sm:$0xff]
        %v594 = vld [vmem:[%s3 + $0x4f0] sm:$0xff]
        %v595 = vld [vmem:[%s3 + $0x4f8] sm:$0xff]
        %v596 = vld [vmem:[%s3 + $0x500] sm:$0xff]
        %v597 = vld [vmem:[%s3 + $0x508] sm:$0xff]
        %v598 = vld [vmem:[%s3 + $0x510] sm:$0xff]
        %v599 = vld [vmem:[%s3 + $0x518] sm:$0xff]
        %v600 = vld [vmem:[%s3 + $0x520] sm:$0xff]
        %v601 = vld [vmem:[%s3 + $0x528] sm:$0xff]
        %v602 = vld [vmem:[%s3 + $0x530] sm:$0xff]
        %v603 = vld [vmem:[%s3 + $0x538] sm:$0xff]
        %v604 = vld [vmem:[%s3 + $0x540] sm:$0xff]
        %v605 = vld [vmem:[%s3 + $0x548] sm:$0xff]
        %v606 = vld [vmem:[%s3 + $0x550] sm:$0xff]
        %v607 = vld [vmem:[%s3 + $0x558] sm:$0xff]
        %v608 = vld [vmem:[%s3 + $0x560] sm:$0xff]
        %v609 = vld [vmem:[%s3 + $0x568] sm:$0xff]
        %v610 = vld [vmem:[%s3 + $0x570] sm:$0xff]
        %v611 = vld [vmem:[%s3 + $0x578] sm:$0xff]
        %v612 = vld [vmem:[%s3 + $0x580] sm:$0xff]
        %v613 = vld [vmem:[%s3 + $0x588] sm:$0xff]
        %v614 = vld [vmem:[%s3 + $0x590] sm:$0xff]
        %v615 = vld [vmem:[%s3 + $0x598] sm:$0xff]
        %v616 = vld [vmem:[%s3 + $0x5a0] sm:$0xff]
        %v617 = vld [vmem:[%s3 + $0x5a8] sm:$0xff]
        %v618 = vld [vmem:[%s3 + $0x5b0] sm:$0xff]
        %v619 = vld [vmem:[%s3 + $0x5b8] sm:$0xff]
        %v620 = vld [vmem:[%s3 + $0x5c0] sm:$0xff]
        %v621 = vld [vmem:[%s3 + $0x5c8] sm:$0xff]
        %v622 = vld [vmem:[%s3 + $0x5d0] sm:$0xff]
        %v623 = vld [vmem:[%s3 + $0x5d8] sm:$0xff]
        %v624 = vld [vmem:[%s3 + $0x5e0] sm:$0xff]
        %v625 = vld [vmem:[%s3 + $0x5e8] sm:$0xff]
        %v626 = vld [vmem:[%s3 + $0x5f0] sm:$0xff]
        %v627 = vld [vmem:[%s3 + $0x5f8] sm:$0xff]
        %v628 = vld [vmem:[%s3 + $0x600] sm:$0xff]
        %v629 = vld [vmem:[%s3 + $0x608] sm:$0xff]
        %v630 = vld [vmem:[%s3 + $0x610] sm:$0xff]
        %v631 = vld [vmem:[%s3 + $0x618] sm:$0xff]
        %v632 = vld [vmem:[%s3 + $0x620] sm:$0xff]
        %v633 = vld [vmem:[%s3 + $0x628] sm:$0xff]
        %v634 = vld [vmem:[%s3 + $0x630] sm:$0xff]
        %v635 = vld [vmem:[%s3 + $0x638] sm:$0xff]
        %v636 = vld [vmem:[%s3 + $0x640] sm:$0xff]
        %v637 = vld [vmem:[%s3 + $0x648] sm:$0xff]
        %v638 = vld [vmem:[%s3 + $0x650] sm:$0xff]
        %v639 = vld [vmem:[%s3 + $0x658] sm:$0xff]
        %v640 = vld [vmem:[%s3 + $0x660] sm:$0xff]
        %v641 = vld [vmem:[%s3 + $0x668] sm:$0xff]
        %v642 = vld [vmem:[%s3 + $0x670] sm:$0xff]
        %v643 = vld [vmem:[%s3 + $0x678] sm:$0xff]
        %v644 = vld [vmem:[%s3 + $0x680] sm:$0xff]
        %v645 = vld [vmem:[%s3 + $0x688] sm:$0xff]
        %v646 = vld [vmem:[%s3 + $0x690] sm:$0xff]
        %v647 = vld [vmem:[%s3 + $0x698] sm:$0xff]
        %v648 = vld [vmem:[%s3 + $0x6a0] sm:$0xff]
        %v649 = vld [vmem:[%s3 + $0x6a8] sm:$0xff]
        %v650 = vld [vmem:[%s3 + $0x6b0] sm:$0xff]
        %v651 = vld [vmem:[%s3 + $0x6b8] sm:$0xff]
        %v652 = vld [vmem:[%s3 + $0x6c0] sm:$0xff]
        %v653 = vld [vmem:[%s3 + $0x6c8] sm:$0xff]
        %v654 = vld [vmem:[%s3 + $0x6d0] sm:$0xff]
        %v655 = vld [vmem:[%s3 + $0x6d8] sm:$0xff]
        %v656 = vld [vmem:[%s3 + $0x6e0] sm:$0xff]
        %v657 = vld [vmem:[%s3 + $0x6e8] sm:$0xff]
        %v658 = vld [vmem:[%s3 + $0x6f0] sm:$0xff]
        %v659 = vld [vmem:[%s3 + $0x6f8] sm:$0xff]
        %v660 = vld [vmem:[%s3 + $0x700] sm:$0xff]
        %v661 = vld [vmem:[%s3 + $0x708] sm:$0xff]
        %v662 = vld [vmem:[%s3 + $0x710] sm:$0xff]
        %v663 = vld [vmem:[%s3 + $0x718] sm:$0xff]
        %v664 = vld [vmem:[%s3 + $0x720] sm:$0xff]
        %v665 = vld [vmem:[%s3 + $0x728] sm:$0xff]
        %v666 = vld [vmem:[%s3 + $0x730] sm:$0xff]
        %v667 = vld [vmem:[%s3 + $0x738] sm:$0xff]
        %v668 = vld [vmem:[%s3 + $0x740] sm:$0xff]
        %v669 = vld [vmem:[%s3 + $0x748] sm:$0xff]
        %v670 = vld [vmem:[%s3 + $0x750] sm:$0xff]
        %v671 = vld [vmem:[%s3 + $0x758] sm:$0xff]
        %v672 = vld [vmem:[%s3 + $0x760] sm:$0xff]
        %v673 = vld [vmem:[%s3 + $0x768] sm:$0xff]
        %v674 = vld [vmem:[%s3 + $0x770] sm:$0xff]
        %v675 = vld [vmem:[%s3 + $0x778] sm:$0xff]
        %v676 = vld [vmem:[%s3 + $0x780] sm:$0xff]
        %v677 = vld [vmem:[%s3 + $0x788] sm:$0xff]
        %v678 = vld [vmem:[%s3 + $0x790] sm:$0xff]
        %v679 = vld [vmem:[%s3 + $0x798] sm:$0xff]
        %v680 = vld [vmem:[%s3 + $0x7a0] sm:$0xff]
        %v681 = vld [vmem:[%s3 + $0x7a8] sm:$0xff]
        %v682 = vld [vmem:[%s3 + $0x7b0] sm:$0xff]
        %v683 = vld [vmem:[%s3 + $0x7b8] sm:$0xff]
        %v684 = vld [vmem:[%s3 + $0x7c0] sm:$0xff]
        %v685 = vld [vmem:[%s3 + $0x7c8] sm:$0xff]
        %v686 = vld [vmem:[%s3 + $0x7d0] sm:$0xff]
        %v687 = vld [vmem:[%s3 + $0x7d8] sm:$0xff]
        %v688 = vld [vmem:[%s3 + $0x7e0] sm:$0xff]
        %v689 = vld [vmem:[%s3 + $0x7e8] sm:$0xff]
        %v690 = vld [vmem:[%s3 + $0x7f0] sm:$0xff]
        %v691 = vld [vmem:[%s3 + $0x7f8] sm:$0xff]
        %v692 = vpack.c.bf16 %v434, %v434
        %v693 = vpack.c.bf16 %v435, %v435
        %v694 = vpack.c.bf16 %v444, %v436
        %v695 = vpack.c.bf16 %v445, %v437
        %v696 = vpack.c.bf16 %v446, %v438
        %v697 = vpack.c.bf16 %v447, %v439
        %v698 = vpack.c.bf16 %v448, %v440
        %v699 = vpack.c.bf16 %v449, %v441
        %v700 = vpack.c.bf16 %v450, %v442
        %v701 = vpack.c.bf16 %v451, %v443
        %v702 = vpack.c.bf16 %v460, %v452
        %v703 = vpack.c.bf16 %v461, %v453
        %v704 = vpack.c.bf16 %v462, %v454
        %v705 = vpack.c.bf16 %v463, %v455
        %v706 = vpack.c.bf16 %v464, %v456
        %v707 = vpack.c.bf16 %v465, %v457
        %v708 = vpack.c.bf16 %v466, %v458
        %v709 = vpack.c.bf16 %v467, %v459
        %v710 = vpack.c.bf16 %v476, %v468
        %v711 = vpack.c.bf16 %v477, %v469
        %v712 = vpack.c.bf16 %v478, %v470
        %v713 = vpack.c.bf16 %v479, %v471
        %v714 = vpack.c.bf16 %v480, %v472
        %v715 = vpack.c.bf16 %v481, %v473
        %v716 = vpack.c.bf16 %v482, %v474
        %v717 = vpack.c.bf16 %v483, %v475
        %v718 = vpack.c.bf16 %v492, %v484
        %v719 = vpack.c.bf16 %v493, %v485
        %v720 = vpack.c.bf16 %v494, %v486
        %v721 = vpack.c.bf16 %v495, %v487
        %v722 = vpack.c.bf16 %v496, %v488
        %v723 = vpack.c.bf16 %v497, %v489
        %v724 = vpack.c.bf16 %v498, %v490
        %v725 = vpack.c.bf16 %v499, %v491
        %v726 = vpack.c.bf16 %v508, %v500
        %v727 = vpack.c.bf16 %v509, %v501
        %v728 = vpack.c.bf16 %v510, %v502
        %v729 = vpack.c.bf16 %v511, %v503
        %v730 = vpack.c.bf16 %v512, %v504
        %v731 = vpack.c.bf16 %v513, %v505
        %v732 = vpack.c.bf16 %v514, %v506
        %v733 = vpack.c.bf16 %v515, %v507
        %v734 = vpack.c.bf16 %v524, %v516
        %v735 = vpack.c.bf16 %v525, %v517
        %v736 = vpack.c.bf16 %v526, %v518
        %v737 = vpack.c.bf16 %v527, %v519
        %v738 = vpack.c.bf16 %v528, %v520
        %v739 = vpack.c.bf16 %v529, %v521
        %v740 = vpack.c.bf16 %v530, %v522
        %v741 = vpack.c.bf16 %v531, %v523
        %v742 = vpack.c.bf16 %v540, %v532
        %v743 = vpack.c.bf16 %v541, %v533
        %v744 = vpack.c.bf16 %v542, %v534
        %v745 = vpack.c.bf16 %v543, %v535
        %v746 = vpack.c.bf16 %v544, %v536
        %v747 = vpack.c.bf16 %v545, %v537
        %v748 = vpack.c.bf16 %v546, %v538
        %v749 = vpack.c.bf16 %v547, %v539
        %v750 = vpack.c.bf16 %v556, %v548
        %v751 = vpack.c.bf16 %v557, %v549
        %v752 = vpack.c.bf16 %v558, %v550
        %v753 = vpack.c.bf16 %v559, %v551
        %v754 = vpack.c.bf16 %v560, %v552
        %v755 = vpack.c.bf16 %v561, %v553
        %v756 = vpack.c.bf16 %v562, %v554
        %v757 = vpack.c.bf16 %v563, %v555
        %v758 = vpack.c.bf16 %v572, %v564
        %v759 = vpack.c.bf16 %v573, %v565
        %v760 = vpack.c.bf16 %v574, %v566
        %v761 = vpack.c.bf16 %v575, %v567
        %v762 = vpack.c.bf16 %v576, %v568
        %v763 = vpack.c.bf16 %v577, %v569
        %v764 = vpack.c.bf16 %v578, %v570
        %v765 = vpack.c.bf16 %v579, %v571
        %v766 = vpack.c.bf16 %v588, %v580
        %v767 = vpack.c.bf16 %v589, %v581
        %v768 = vpack.c.bf16 %v590, %v582
        %v769 = vpack.c.bf16 %v591, %v583
        %v770 = vpack.c.bf16 %v592, %v584
        %v771 = vpack.c.bf16 %v593, %v585
        %v772 = vpack.c.bf16 %v594, %v586
        %v773 = vpack.c.bf16 %v595, %v587
        %v774 = vpack.c.bf16 %v604, %v596
        %v775 = vpack.c.bf16 %v605, %v597
        %v776 = vpack.c.bf16 %v606, %v598
        %v777 = vpack.c.bf16 %v607, %v599
        %v778 = vpack.c.bf16 %v608, %v600
        %v779 = vpack.c.bf16 %v609, %v601
        %v780 = vpack.c.bf16 %v610, %v602
        %v781 = vpack.c.bf16 %v611, %v603
        %v782 = vpack.c.bf16 %v620, %v612
        %v783 = vpack.c.bf16 %v621, %v613
        %v784 = vpack.c.bf16 %v622, %v614
        %v785 = vpack.c.bf16 %v623, %v615
        %v786 = vpack.c.bf16 %v624, %v616
        %v787 = vpack.c.bf16 %v625, %v617
        %v788 = vpack.c.bf16 %v626, %v618
        %v789 = vpack.c.bf16 %v627, %v619
        %v790 = vpack.c.bf16 %v636, %v628
        %v791 = vpack.c.bf16 %v637, %v629
        %v792 = vpack.c.bf16 %v638, %v630
        %v793 = vpack.c.bf16 %v639, %v631
        %v794 = vpack.c.bf16 %v640, %v632
        %v795 = vpack.c.bf16 %v641, %v633
        %v796 = vpack.c.bf16 %v642, %v634
        %v797 = vpack.c.bf16 %v643, %v635
        %v798 = vpack.c.bf16 %v652, %v644
        %v799 = vpack.c.bf16 %v653, %v645
        %v800 = vpack.c.bf16 %v654, %v646
        %v801 = vpack.c.bf16 %v655, %v647
        %v802 = vpack.c.bf16 %v656, %v648
        %v803 = vpack.c.bf16 %v657, %v649
        %v804 = vpack.c.bf16 %v658, %v650
        %v805 = vpack.c.bf16 %v659, %v651
        %v806 = vpack.c.bf16 %v668, %v660
        %v807 = vpack.c.bf16 %v669, %v661
        %v808 = vpack.c.bf16 %v670, %v662
        %v809 = vpack.c.bf16 %v671, %v663
        %v810 = vpack.c.bf16 %v672, %v664
        %v811 = vpack.c.bf16 %v673, %v665
        %v812 = vpack.c.bf16 %v674, %v666
        %v813 = vpack.c.bf16 %v675, %v667
        %v814 = vpack.c.bf16 %v684, %v676
        %v815 = vpack.c.bf16 %v685, %v677
        %v816 = vpack.c.bf16 %v686, %v678
        %v817 = vpack.c.bf16 %v687, %v679
        %v818 = vpack.c.bf16 %v688, %v680
        %v819 = vpack.c.bf16 %v689, %v681
        %v820 = vpack.c.bf16 %v690, %v682
        %v821 = vpack.c.bf16 %v691, %v683
        %v822 = vld [vmem:[#allocation6] sm:$0xff]
        %v824 = vlaneseq
        %v825 = vshrl.u32 %v824, 7
        %v826 = vsub.s32 0, %v825
        %v827 = vrot.slane %v822, %v826
        %v828 = vlaneseq
        %v829 = vshrl.u32 %v828, 7
        %v830 = vsub.s32 1, %v829
        %v831 = vrot.slane %v822, %v830
        %v832 = vlaneseq
        %v833 = vshrl.u32 %v832, 7
        %v834 = vsub.s32 2, %v833
        %v835 = vrot.slane %v822, %v834
        %v836 = vlaneseq
        %v837 = vshrl.u32 %v836, 7
        %v838 = vsub.s32 3, %v837
        %v839 = vrot.slane %v822, %v838
        %v840 = vlaneseq
        %v841 = vshrl.u32 %v840, 7
        %v842 = vsub.s32 4, %v841
        %v843 = vrot.slane %v822, %v842
        %v844 = vlaneseq
        %v845 = vshrl.u32 %v844, 7
        %v846 = vsub.s32 5, %v845
        %v847 = vrot.slane %v822, %v846
        %v848 = vlaneseq
        %v849 = vshrl.u32 %v848, 7
        %v850 = vsub.s32 6, %v849
        %v851 = vrot.slane %v822, %v850
        %v852 = vlaneseq
        %v853 = vshrl.u32 %v852, 7
        %v854 = vsub.s32 7, %v853
        %v855 = vrot.slane %v822, %v854
        %864 = vmatprep.subr.bf16.mxu0 %v695
        %865 = vmatpush1.bf16.msra.mxu0 %v694
        %866 = vmatprep.subr.bf16.mxu0 %v703
        %867 = vmatpush1.bf16.msra.mxu0 %v702
        %868 = vmatprep.subr.bf16.mxu0 %v711
        %869 = vmatpush1.bf16.msra.mxu0 %v710
        %870 = vmatprep.subr.bf16.mxu0 %v719
        %871 = vmatpush1.bf16.msra.mxu0 %v718
        %872 = vmatprep.subr.bf16.mxu0 %v727
        %873 = vmatpush1.bf16.msra.mxu0 %v726
        %874 = vmatprep.subr.bf16.mxu0 %v735
        %875 = vmatpush1.bf16.msra.mxu0 %v734
        %876 = vmatprep.subr.bf16.mxu0 %v743
        %877 = vmatpush1.bf16.msra.mxu0 %v742
        %878 = vmatprep.subr.bf16.mxu0 %v751
        %879 = vmatpush1.bf16.msra.mxu0 %v750
        %880 = vmatprep.subr.bf16.mxu0 %v759
        %881 = vmatpush1.bf16.msra.mxu0 %v758
        %882 = vmatprep.subr.bf16.mxu0 %v767
        %883 = vmatpush1.bf16.msra.mxu0 %v766
        %884 = vmatprep.subr.bf16.mxu0 %v775
        %885 = vmatpush1.bf16.msra.mxu0 %v774
        %886 = vmatprep.subr.bf16.mxu0 %v783
        %887 = vmatpush1.bf16.msra.mxu0 %v782
        %888 = vmatprep.subr.bf16.mxu0 %v791
        %889 = vmatpush1.bf16.msra.mxu0 %v790
        %890 = vmatprep.subr.bf16.mxu0 %v799
        %891 = vmatpush1.bf16.msra.mxu0 %v798
        %892 = vmatprep.subr.bf16.mxu0 %v807
        %893 = vmatpush1.bf16.msra.mxu0 %v806
        %894 = vmatprep.subr.bf16.mxu0 %v815
        %895 = vmatpush1.bf16.msra.mxu0 %v814
        %896 = vmatprep.mubr.bf16.mxu0 %v693
        %897 = vmatmul.mubr.bf16.gmra.mrb[0].mxu0 %v692
        %v898 = vpop.f32.mrb[0].mxu0
        %v899 = vadd.f32 %v827, %v898
        %v900 = vpop.f32.mrb[0].mxu0
        %v901 = vadd.f32 %v831, %v900
        %v902 = vpop.f32.mrb[0].mxu0
        %v903 = vpop.f32.mrb[0].mxu0
        %904 = vdwg.mxu0
        %905 = vmatprep.subr.bf16.mxu0 %v697
        %906 = vmatpush1.bf16.msra.mxu0 %v696
        %907 = vmatprep.subr.bf16.mxu0 %v705
        %908 = vmatpush1.bf16.msra.mxu0 %v704
        %909 = vmatprep.subr.bf16.mxu0 %v713
        %910 = vmatpush1.bf16.msra.mxu0 %v712
        %911 = vmatprep.subr.bf16.mxu0 %v721
        %912 = vmatpush1.bf16.msra.mxu0 %v720
        %913 = vmatprep.subr.bf16.mxu0 %v729
        %914 = vmatpush1.bf16.msra.mxu0 %v728
        %915 = vmatprep.subr.bf16.mxu0 %v737
        %916 = vmatpush1.bf16.msra.mxu0 %v736
        %917 = vmatprep.subr.bf16.mxu0 %v745
        %918 = vmatpush1.bf16.msra.mxu0 %v744
        %919 = vmatprep.subr.bf16.mxu0 %v753
        %920 = vmatpush1.bf16.msra.mxu0 %v752
        %921 = vmatprep.subr.bf16.mxu0 %v761
        %922 = vmatpush1.bf16.msra.mxu0 %v760
        %923 = vmatprep.subr.bf16.mxu0 %v769
        %924 = vmatpush1.bf16.msra.mxu0 %v768
        %925 = vmatprep.subr.bf16.mxu0 %v777
        %926 = vmatpush1.bf16.msra.mxu0 %v776
        %927 = vmatprep.subr.bf16.mxu0 %v785
        %928 = vmatpush1.bf16.msra.mxu0 %v784
        %929 = vmatprep.subr.bf16.mxu0 %v793
        %930 = vmatpush1.bf16.msra.mxu0 %v792
        %931 = vmatprep.subr.bf16.mxu0 %v801
        %932 = vmatpush1.bf16.msra.mxu0 %v800
        %933 = vmatprep.subr.bf16.mxu0 %v809
        %934 = vmatpush1.bf16.msra.mxu0 %v808
        %935 = vmatprep.subr.bf16.mxu0 %v817
        %936 = vmatpush1.bf16.msra.mxu0 %v816
        %937 = vmatprep.mubr.bf16.mxu0 %v693
        %938 = vmatmul.mubr.bf16.gmra.mrb[0].mxu0 %v692
        %v939 = vpop.f32.mrb[0].mxu0
        %v940 = vadd.f32 %v835, %v939
        %v941 = vpop.f32.mrb[0].mxu0
        %v942 = vadd.f32 %v839, %v941
        %v943 = vpop.f32.mrb[0].mxu0
        %v944 = vpop.f32.mrb[0].mxu0
        %945 = vdwg.mxu0
        %946 = vmatprep.subr.bf16.mxu0 %v699
        %947 = vmatpush1.bf16.msra.mxu0 %v698
        %948 = vmatprep.subr.bf16.mxu0 %v707
        %949 = vmatpush1.bf16.msra.mxu0 %v706
        %950 = vmatprep.subr.bf16.mxu0 %v715
        %951 = vmatpush1.bf16.msra.mxu0 %v714
        %952 = vmatprep.subr.bf16.mxu0 %v723
        %953 = vmatpush1.bf16.msra.mxu0 %v722
        %954 = vmatprep.subr.bf16.mxu0 %v731
        %955 = vmatpush1.bf16.msra.mxu0 %v730
        %956 = vmatprep.subr.bf16.mxu0 %v739
        %957 = vmatpush1.bf16.msra.mxu0 %v738
        %958 = vmatprep.subr.bf16.mxu0 %v747
        %959 = vmatpush1.bf16.msra.mxu0 %v746
        %960 = vmatprep.subr.bf16.mxu0 %v755
        %961 = vmatpush1.bf16.msra.mxu0 %v754
        %962 = vmatprep.subr.bf16.mxu0 %v763
        %963 = vmatpush1.bf16.msra.mxu0 %v762
        %964 = vmatprep.subr.bf16.mxu0 %v771
        %965 = vmatpush1.bf16.msra.mxu0 %v770
        %966 = vmatprep.subr.bf16.mxu0 %v779
        %967 = vmatpush1.bf16.msra.mxu0 %v778
        %968 = vmatprep.subr.bf16.mxu0 %v787
        %969 = vmatpush1.bf16.msra.mxu0 %v786
        %970 = vmatprep.subr.bf16.mxu0 %v795
        %971 = vmatpush1.bf16.msra.mxu0 %v794
        %972 = vmatprep.subr.bf16.mxu0 %v803
        %973 = vmatpush1.bf16.msra.mxu0 %v802
        %974 = vmatprep.subr.bf16.mxu0 %v811
        %975 = vmatpush1.bf16.msra.mxu0 %v810
        %976 = vmatprep.subr.bf16.mxu0 %v819
        %977 = vmatpush1.bf16.msra.mxu0 %v818
        %978 = vmatprep.mubr.bf16.mxu0 %v693
        %979 = vmatmul.mubr.bf16.gmra.mrb[0].mxu0 %v692
        %v980 = vpop.f32.mrb[0].mxu0
        %v981 = vadd.f32 %v843, %v980
        %v982 = vpop.f32.mrb[0].mxu0
        %v983 = vadd.f32 %v847, %v982
        %v984 = vpop.f32.mrb[0].mxu0
        %v985 = vpop.f32.mrb[0].mxu0
        %986 = vdwg.mxu0
        %987 = vmatprep.subr.bf16.mxu0 %v701
        %988 = vmatpush1.bf16.msra.mxu0 %v700
        %989 = vmatprep.subr.bf16.mxu0 %v709
        %990 = vmatpush1.bf16.msra.mxu0 %v708
        %991 = vmatprep.subr.bf16.mxu0 %v717
        %992 = vmatpush1.bf16.msra.mxu0 %v716
        %993 = vmatprep.subr.bf16.mxu0 %v725
        %994 = vmatpush1.bf16.msra.mxu0 %v724
        %995 = vmatprep.subr.bf16.mxu0 %v733
        %996 = vmatpush1.bf16.msra.mxu0 %v732
        %997 = vmatprep.subr.bf16.mxu0 %v741
        %998 = vmatpush1.bf16.msra.mxu0 %v740
        %999 = vmatprep.subr.bf16.mxu0 %v749
        %1000 = vmatpush1.bf16.msra.mxu0 %v748
        %1001 = vmatprep.subr.bf16.mxu0 %v757
        %1002 = vmatpush1.bf16.msra.mxu0 %v756
        %1003 = vmatprep.subr.bf16.mxu0 %v765
        %1004 = vmatpush1.bf16.msra.mxu0 %v764
        %1005 = vmatprep.subr.bf16.mxu0 %v773
        %1006 = vmatpush1.bf16.msra.mxu0 %v772
        %1007 = vmatprep.subr.bf16.mxu0 %v781
        %1008 = vmatpush1.bf16.msra.mxu0 %v780
        %1009 = vmatprep.subr.bf16.mxu0 %v789
        %1010 = vmatpush1.bf16.msra.mxu0 %v788
        %1011 = vmatprep.subr.bf16.mxu0 %v797
        %1012 = vmatpush1.bf16.msra.mxu0 %v796
        %1013 = vmatprep.subr.bf16.mxu0 %v805
        %1014 = vmatpush1.bf16.msra.mxu0 %v804
        %1015 = vmatprep.subr.bf16.mxu0 %v813
        %1016 = vmatpush1.bf16.msra.mxu0 %v812
        %1017 = vmatprep.subr.bf16.mxu0 %v821
        %1018 = vmatpush1.bf16.msra.mxu0 %v820
        %1019 = vmatprep.mubr.bf16.mxu0 %v693
        %1020 = vmatmul.mubr.bf16.gmra.mrb[0].mxu0 %v692
        %v1021 = vpop.f32.mrb[0].mxu0
        %v1022 = vadd.f32 %v851, %v1021
        %v1023 = vpop.f32.mrb[0].mxu0
        %v1024 = vadd.f32 %v855, %v1023
        %v1025 = vpop.f32.mrb[0].mxu0
        %v1026 = vpop.f32.mrb[0].mxu0
        %1027 = vdwg.mxu0
        %v1028 = vmul.f32 %v899, 1.702
        %v1029 = vmul.f32 %v901, 1.702
        %v1030 = vmul.f32 %v940, 1.702
        %v1031 = vmul.f32 %v942, 1.702
        %v1032 = vmul.f32 %v981, 1.702
        %v1033 = vmul.f32 %v983, 1.702
        %v1034 = vmul.f32 %v1022, 1.702
        %v1035 = vmul.f32 %v1024, 1.702
        %v1036 = vxor.u32 %v1028, 2147483648
        %v1037 = vxor.u32 %v1029, 2147483648
        %v1038 = vxor.u32 %v1030, 2147483648
        %v1039 = vxor.u32 %v1031, 2147483648
        %v1040 = vxor.u32 %v1032, 2147483648
        %v1041 = vxor.u32 %v1033, 2147483648
        %v1042 = vxor.u32 %v1034, 2147483648
        %v1043 = vxor.u32 %v1035, 2147483648
        %v1044 = vmul.f32 %v1036, 1.442695
        %v1045 = vpow.pop %v1044
        %v1046 = vmul.f32 %v1037, 1.442695
        %v1047 = vpow.pop %v1046
        %v1048 = vmul.f32 %v1038, 1.442695
        %v1049 = vpow.pop %v1048
        %v1050 = vmul.f32 %v1039, 1.442695
        %v1051 = vpow.pop %v1050
        %v1052 = vmul.f32 %v1040, 1.442695
        %v1053 = vpow.pop %v1052
        %v1054 = vmul.f32 %v1041, 1.442695
        %v1055 = vpow.pop %v1054
        %v1056 = vmul.f32 %v1042, 1.442695
        %v1057 = vpow.pop %v1056
        %v1058 = vmul.f32 %v1043, 1.442695
        %v1059 = vpow.pop %v1058
        %v1060 = vadd.f32 %v1045, 1.0
        %v1061 = vadd.f32 %v1047, 1.0
        %v1062 = vadd.f32 %v1049, 1.0
        %v1063 = vadd.f32 %v1051, 1.0
        %v1064 = vadd.f32 %v1053, 1.0
        %v1065 = vadd.f32 %v1055, 1.0
        %v1066 = vadd.f32 %v1057, 1.0
        %v1067 = vadd.f32 %v1059, 1.0
        %v1068 = vrcp.pop %v1060
        %v1069 = vmul.f32 1.0, %v1068
        %v1070 = vrcp.pop %v1061
        %v1071 = vmul.f32 1.0, %v1070
        %v1072 = vrcp.pop %v1062
        %v1073 = vmul.f32 1.0, %v1072
        %v1074 = vrcp.pop %v1063
        %v1075 = vmul.f32 1.0, %v1074
        %v1076 = vrcp.pop %v1064
        %v1077 = vmul.f32 1.0, %v1076
        %v1078 = vrcp.pop %v1065
        %v1079 = vmul.f32 1.0, %v1078
        %v1080 = vrcp.pop %v1066
        %v1081 = vmul.f32 1.0, %v1080
        %v1082 = vrcp.pop %v1067
        %v1083 = vmul.f32 1.0, %v1082
        %v1084 = vmul.f32 %v899, %v1069
        %v1085 = vmul.f32 %v901, %v1071
        %v1086 = vmul.f32 %v940, %v1073
        %v1087 = vmul.f32 %v942, %v1075
        %v1088 = vmul.f32 %v981, %v1077
        %v1089 = vmul.f32 %v983, %v1079
        %v1090 = vmul.f32 %v1022, %v1081
        %v1091 = vmul.f32 %v1024, %v1083
        %v1092 = vld [vmem:[%s5] sm:$0xff]
        %v1093 = vld [vmem:[%s5 + $0x8] sm:$0xff]
        %v1094 = vld [vmem:[%s5 + $0x10] sm:$0xff]
        %v1095 = vld [vmem:[%s5 + $0x18] sm:$0xff]
        %v1096 = vld [vmem:[%s5 + $0x20] sm:$0xff]
        %v1097 = vld [vmem:[%s5 + $0x28] sm:$0xff]
        %v1098 = vld [vmem:[%s5 + $0x30] sm:$0xff]
        %v1099 = vld [vmem:[%s5 + $0x38] sm:$0xff]
        %v1100 = vld [vmem:[%s5 + $0x40] sm:$0xff]
        %v1101 = vld [vmem:[%s5 + $0x48] sm:$0xff]
        %v1102 = vld [vmem:[%s5 + $0x50] sm:$0xff]
        %v1103 = vld [vmem:[%s5 + $0x58] sm:$0xff]
        %v1104 = vld [vmem:[%s5 + $0x60] sm:$0xff]
        %v1105 = vld [vmem:[%s5 + $0x68] sm:$0xff]
        %v1106 = vld [vmem:[%s5 + $0x70] sm:$0xff]
        %v1107 = vld [vmem:[%s5 + $0x78] sm:$0xff]
        %v1108 = vld [vmem:[%s5 + $0x80] sm:$0xff]
        %v1109 = vld [vmem:[%s5 + $0x88] sm:$0xff]
        %v1110 = vld [vmem:[%s5 + $0x90] sm:$0xff]
        %v1111 = vld [vmem:[%s5 + $0x98] sm:$0xff]
        %v1112 = vld [vmem:[%s5 + $0xa0] sm:$0xff]
        %v1113 = vld [vmem:[%s5 + $0xa8] sm:$0xff]
        %v1114 = vld [vmem:[%s5 + $0xb0] sm:$0xff]
        %v1115 = vld [vmem:[%s5 + $0xb8] sm:$0xff]
        %v1116 = vld [vmem:[%s5 + $0xc0] sm:$0xff]
        %v1117 = vld [vmem:[%s5 + $0xc8] sm:$0xff]
        %v1118 = vld [vmem:[%s5 + $0xd0] sm:$0xff]
        %v1119 = vld [vmem:[%s5 + $0xd8] sm:$0xff]
        %v1120 = vld [vmem:[%s5 + $0xe0] sm:$0xff]
        %v1121 = vld [vmem:[%s5 + $0xe8] sm:$0xff]
        %v1122 = vld [vmem:[%s5 + $0xf0] sm:$0xff]
        %v1123 = vld [vmem:[%s5 + $0xf8] sm:$0xff]
        %v1124 = vld [vmem:[%s5 + $0x100] sm:$0xff]
        %v1125 = vld [vmem:[%s5 + $0x108] sm:$0xff]
        %v1126 = vld [vmem:[%s5 + $0x110] sm:$0xff]
        %v1127 = vld [vmem:[%s5 + $0x118] sm:$0xff]
        %v1128 = vld [vmem:[%s5 + $0x120] sm:$0xff]
        %v1129 = vld [vmem:[%s5 + $0x128] sm:$0xff]
        %v1130 = vld [vmem:[%s5 + $0x130] sm:$0xff]
        %v1131 = vld [vmem:[%s5 + $0x138] sm:$0xff]
        %v1132 = vld [vmem:[%s5 + $0x140] sm:$0xff]
        %v1133 = vld [vmem:[%s5 + $0x148] sm:$0xff]
        %v1134 = vld [vmem:[%s5 + $0x150] sm:$0xff]
        %v1135 = vld [vmem:[%s5 + $0x158] sm:$0xff]
        %v1136 = vld [vmem:[%s5 + $0x160] sm:$0xff]
        %v1137 = vld [vmem:[%s5 + $0x168] sm:$0xff]
        %v1138 = vld [vmem:[%s5 + $0x170] sm:$0xff]
        %v1139 = vld [vmem:[%s5 + $0x178] sm:$0xff]
        %v1140 = vld [vmem:[%s5 + $0x180] sm:$0xff]
        %v1141 = vld [vmem:[%s5 + $0x188] sm:$0xff]
        %v1142 = vld [vmem:[%s5 + $0x190] sm:$0xff]
        %v1143 = vld [vmem:[%s5 + $0x198] sm:$0xff]
        %v1144 = vld [vmem:[%s5 + $0x1a0] sm:$0xff]
        %v1145 = vld [vmem:[%s5 + $0x1a8] sm:$0xff]
        %v1146 = vld [vmem:[%s5 + $0x1b0] sm:$0xff]
        %v1147 = vld [vmem:[%s5 + $0x1b8] sm:$0xff]
        %v1148 = vld [vmem:[%s5 + $0x1c0] sm:$0xff]
        %v1149 = vld [vmem:[%s5 + $0x1c8] sm:$0xff]
        %v1150 = vld [vmem:[%s5 + $0x1d0] sm:$0xff]
        %v1151 = vld [vmem:[%s5 + $0x1d8] sm:$0xff]
        %v1152 = vld [vmem:[%s5 + $0x1e0] sm:$0xff]
        %v1153 = vld [vmem:[%s5 + $0x1e8] sm:$0xff]
        %v1154 = vld [vmem:[%s5 + $0x1f0] sm:$0xff]
        %v1155 = vld [vmem:[%s5 + $0x1f8] sm:$0xff]
        %v1156 = vld [vmem:[%s5 + $0x200] sm:$0xff]
        %v1157 = vld [vmem:[%s5 + $0x208] sm:$0xff]
        %v1158 = vld [vmem:[%s5 + $0x210] sm:$0xff]
        %v1159 = vld [vmem:[%s5 + $0x218] sm:$0xff]
        %v1160 = vld [vmem:[%s5 + $0x220] sm:$0xff]
        %v1161 = vld [vmem:[%s5 + $0x228] sm:$0xff]
        %v1162 = vld [vmem:[%s5 + $0x230] sm:$0xff]
        %v1163 = vld [vmem:[%s5 + $0x238] sm:$0xff]
        %v1164 = vld [vmem:[%s5 + $0x240] sm:$0xff]
        %v1165 = vld [vmem:[%s5 + $0x248] sm:$0xff]
        %v1166 = vld [vmem:[%s5 + $0x250] sm:$0xff]
        %v1167 = vld [vmem:[%s5 + $0x258] sm:$0xff]
        %v1168 = vld [vmem:[%s5 + $0x260] sm:$0xff]
        %v1169 = vld [vmem:[%s5 + $0x268] sm:$0xff]
        %v1170 = vld [vmem:[%s5 + $0x270] sm:$0xff]
        %v1171 = vld [vmem:[%s5 + $0x278] sm:$0xff]
        %v1172 = vld [vmem:[%s5 + $0x280] sm:$0xff]
        %v1173 = vld [vmem:[%s5 + $0x288] sm:$0xff]
        %v1174 = vld [vmem:[%s5 + $0x290] sm:$0xff]
        %v1175 = vld [vmem:[%s5 + $0x298] sm:$0xff]
        %v1176 = vld [vmem:[%s5 + $0x2a0] sm:$0xff]
        %v1177 = vld [vmem:[%s5 + $0x2a8] sm:$0xff]
        %v1178 = vld [vmem:[%s5 + $0x2b0] sm:$0xff]
        %v1179 = vld [vmem:[%s5 + $0x2b8] sm:$0xff]
        %v1180 = vld [vmem:[%s5 + $0x2c0] sm:$0xff]
        %v1181 = vld [vmem:[%s5 + $0x2c8] sm:$0xff]
        %v1182 = vld [vmem:[%s5 + $0x2d0] sm:$0xff]
        %v1183 = vld [vmem:[%s5 + $0x2d8] sm:$0xff]
        %v1184 = vld [vmem:[%s5 + $0x2e0] sm:$0xff]
        %v1185 = vld [vmem:[%s5 + $0x2e8] sm:$0xff]
        %v1186 = vld [vmem:[%s5 + $0x2f0] sm:$0xff]
        %v1187 = vld [vmem:[%s5 + $0x2f8] sm:$0xff]
        %v1188 = vld [vmem:[%s5 + $0x300] sm:$0xff]
        %v1189 = vld [vmem:[%s5 + $0x308] sm:$0xff]
        %v1190 = vld [vmem:[%s5 + $0x310] sm:$0xff]
        %v1191 = vld [vmem:[%s5 + $0x318] sm:$0xff]
        %v1192 = vld [vmem:[%s5 + $0x320] sm:$0xff]
        %v1193 = vld [vmem:[%s5 + $0x328] sm:$0xff]
        %v1194 = vld [vmem:[%s5 + $0x330] sm:$0xff]
        %v1195 = vld [vmem:[%s5 + $0x338] sm:$0xff]
        %v1196 = vld [vmem:[%s5 + $0x340] sm:$0xff]
        %v1197 = vld [vmem:[%s5 + $0x348] sm:$0xff]
        %v1198 = vld [vmem:[%s5 + $0x350] sm:$0xff]
        %v1199 = vld [vmem:[%s5 + $0x358] sm:$0xff]
        %v1200 = vld [vmem:[%s5 + $0x360] sm:$0xff]
        %v1201 = vld [vmem:[%s5 + $0x368] sm:$0xff]
        %v1202 = vld [vmem:[%s5 + $0x370] sm:$0xff]
        %v1203 = vld [vmem:[%s5 + $0x378] sm:$0xff]
        %v1204 = vld [vmem:[%s5 + $0x380] sm:$0xff]
        %v1205 = vld [vmem:[%s5 + $0x388] sm:$0xff]
        %v1206 = vld [vmem:[%s5 + $0x390] sm:$0xff]
        %v1207 = vld [vmem:[%s5 + $0x398] sm:$0xff]
        %v1208 = vld [vmem:[%s5 + $0x3a0] sm:$0xff]
        %v1209 = vld [vmem:[%s5 + $0x3a8] sm:$0xff]
        %v1210 = vld [vmem:[%s5 + $0x3b0] sm:$0xff]
        %v1211 = vld [vmem:[%s5 + $0x3b8] sm:$0xff]
        %v1212 = vld [vmem:[%s5 + $0x3c0] sm:$0xff]
        %v1213 = vld [vmem:[%s5 + $0x3c8] sm:$0xff]
        %v1214 = vld [vmem:[%s5 + $0x3d0] sm:$0xff]
        %v1215 = vld [vmem:[%s5 + $0x3d8] sm:$0xff]
        %v1216 = vld [vmem:[%s5 + $0x3e0] sm:$0xff]
        %v1217 = vld [vmem:[%s5 + $0x3e8] sm:$0xff]
        %v1218 = vld [vmem:[%s5 + $0x3f0] sm:$0xff]
        %v1219 = vld [vmem:[%s5 + $0x3f8] sm:$0xff]
        %v1220 = vld [vmem:[%s5 + $0x400] sm:$0xff]
        %v1221 = vld [vmem:[%s5 + $0x408] sm:$0xff]
        %v1222 = vld [vmem:[%s5 + $0x410] sm:$0xff]
        %v1223 = vld [vmem:[%s5 + $0x418] sm:$0xff]
        %v1224 = vld [vmem:[%s5 + $0x420] sm:$0xff]
        %v1225 = vld [vmem:[%s5 + $0x428] sm:$0xff]
        %v1226 = vld [vmem:[%s5 + $0x430] sm:$0xff]
        %v1227 = vld [vmem:[%s5 + $0x438] sm:$0xff]
        %v1228 = vld [vmem:[%s5 + $0x440] sm:$0xff]
        %v1229 = vld [vmem:[%s5 + $0x448] sm:$0xff]
        %v1230 = vld [vmem:[%s5 + $0x450] sm:$0xff]
        %v1231 = vld [vmem:[%s5 + $0x458] sm:$0xff]
        %v1232 = vld [vmem:[%s5 + $0x460] sm:$0xff]
        %v1233 = vld [vmem:[%s5 + $0x468] sm:$0xff]
        %v1234 = vld [vmem:[%s5 + $0x470] sm:$0xff]
        %v1235 = vld [vmem:[%s5 + $0x478] sm:$0xff]
        %v1236 = vld [vmem:[%s5 + $0x480] sm:$0xff]
        %v1237 = vld [vmem:[%s5 + $0x488] sm:$0xff]
        %v1238 = vld [vmem:[%s5 + $0x490] sm:$0xff]
        %v1239 = vld [vmem:[%s5 + $0x498] sm:$0xff]
        %v1240 = vld [vmem:[%s5 + $0x4a0] sm:$0xff]
        %v1241 = vld [vmem:[%s5 + $0x4a8] sm:$0xff]
        %v1242 = vld [vmem:[%s5 + $0x4b0] sm:$0xff]
        %v1243 = vld [vmem:[%s5 + $0x4b8] sm:$0xff]
        %v1244 = vld [vmem:[%s5 + $0x4c0] sm:$0xff]
        %v1245 = vld [vmem:[%s5 + $0x4c8] sm:$0xff]
        %v1246 = vld [vmem:[%s5 + $0x4d0] sm:$0xff]
        %v1247 = vld [vmem:[%s5 + $0x4d8] sm:$0xff]
        %v1248 = vld [vmem:[%s5 + $0x4e0] sm:$0xff]
        %v1249 = vld [vmem:[%s5 + $0x4e8] sm:$0xff]
        %v1250 = vld [vmem:[%s5 + $0x4f0] sm:$0xff]
        %v1251 = vld [vmem:[%s5 + $0x4f8] sm:$0xff]
        %v1252 = vld [vmem:[%s5 + $0x500] sm:$0xff]
        %v1253 = vld [vmem:[%s5 + $0x508] sm:$0xff]
        %v1254 = vld [vmem:[%s5 + $0x510] sm:$0xff]
        %v1255 = vld [vmem:[%s5 + $0x518] sm:$0xff]
        %v1256 = vld [vmem:[%s5 + $0x520] sm:$0xff]
        %v1257 = vld [vmem:[%s5 + $0x528] sm:$0xff]
        %v1258 = vld [vmem:[%s5 + $0x530] sm:$0xff]
        %v1259 = vld [vmem:[%s5 + $0x538] sm:$0xff]
        %v1260 = vld [vmem:[%s5 + $0x540] sm:$0xff]
        %v1261 = vld [vmem:[%s5 + $0x548] sm:$0xff]
        %v1262 = vld [vmem:[%s5 + $0x550] sm:$0xff]
        %v1263 = vld [vmem:[%s5 + $0x558] sm:$0xff]
        %v1264 = vld [vmem:[%s5 + $0x560] sm:$0xff]
        %v1265 = vld [vmem:[%s5 + $0x568] sm:$0xff]
        %v1266 = vld [vmem:[%s5 + $0x570] sm:$0xff]
        %v1267 = vld [vmem:[%s5 + $0x578] sm:$0xff]
        %v1268 = vld [vmem:[%s5 + $0x580] sm:$0xff]
        %v1269 = vld [vmem:[%s5 + $0x588] sm:$0xff]
        %v1270 = vld [vmem:[%s5 + $0x590] sm:$0xff]
        %v1271 = vld [vmem:[%s5 + $0x598] sm:$0xff]
        %v1272 = vld [vmem:[%s5 + $0x5a0] sm:$0xff]
        %v1273 = vld [vmem:[%s5 + $0x5a8] sm:$0xff]
        %v1274 = vld [vmem:[%s5 + $0x5b0] sm:$0xff]
        %v1275 = vld [vmem:[%s5 + $0x5b8] sm:$0xff]
        %v1276 = vld [vmem:[%s5 + $0x5c0] sm:$0xff]
        %v1277 = vld [vmem:[%s5 + $0x5c8] sm:$0xff]
        %v1278 = vld [vmem:[%s5 + $0x5d0] sm:$0xff]
        %v1279 = vld [vmem:[%s5 + $0x5d8] sm:$0xff]
        %v1280 = vld [vmem:[%s5 + $0x5e0] sm:$0xff]
        %v1281 = vld [vmem:[%s5 + $0x5e8] sm:$0xff]
        %v1282 = vld [vmem:[%s5 + $0x5f0] sm:$0xff]
        %v1283 = vld [vmem:[%s5 + $0x5f8] sm:$0xff]
        %v1284 = vld [vmem:[%s5 + $0x600] sm:$0xff]
        %v1285 = vld [vmem:[%s5 + $0x608] sm:$0xff]
        %v1286 = vld [vmem:[%s5 + $0x610] sm:$0xff]
        %v1287 = vld [vmem:[%s5 + $0x618] sm:$0xff]
        %v1288 = vld [vmem:[%s5 + $0x620] sm:$0xff]
        %v1289 = vld [vmem:[%s5 + $0x628] sm:$0xff]
        %v1290 = vld [vmem:[%s5 + $0x630] sm:$0xff]
        %v1291 = vld [vmem:[%s5 + $0x638] sm:$0xff]
        %v1292 = vld [vmem:[%s5 + $0x640] sm:$0xff]
        %v1293 = vld [vmem:[%s5 + $0x648] sm:$0xff]
        %v1294 = vld [vmem:[%s5 + $0x650] sm:$0xff]
        %v1295 = vld [vmem:[%s5 + $0x658] sm:$0xff]
        %v1296 = vld [vmem:[%s5 + $0x660] sm:$0xff]
        %v1297 = vld [vmem:[%s5 + $0x668] sm:$0xff]
        %v1298 = vld [vmem:[%s5 + $0x670] sm:$0xff]
        %v1299 = vld [vmem:[%s5 + $0x678] sm:$0xff]
        %v1300 = vld [vmem:[%s5 + $0x680] sm:$0xff]
        %v1301 = vld [vmem:[%s5 + $0x688] sm:$0xff]
        %v1302 = vld [vmem:[%s5 + $0x690] sm:$0xff]
        %v1303 = vld [vmem:[%s5 + $0x698] sm:$0xff]
        %v1304 = vld [vmem:[%s5 + $0x6a0] sm:$0xff]
        %v1305 = vld [vmem:[%s5 + $0x6a8] sm:$0xff]
        %v1306 = vld [vmem:[%s5 + $0x6b0] sm:$0xff]
        %v1307 = vld [vmem:[%s5 + $0x6b8] sm:$0xff]
        %v1308 = vld [vmem:[%s5 + $0x6c0] sm:$0xff]
        %v1309 = vld [vmem:[%s5 + $0x6c8] sm:$0xff]
        %v1310 = vld [vmem:[%s5 + $0x6d0] sm:$0xff]
        %v1311 = vld [vmem:[%s5 + $0x6d8] sm:$0xff]
        %v1312 = vld [vmem:[%s5 + $0x6e0] sm:$0xff]
        %v1313 = vld [vmem:[%s5 + $0x6e8] sm:$0xff]
        %v1314 = vld [vmem:[%s5 + $0x6f0] sm:$0xff]
        %v1315 = vld [vmem:[%s5 + $0x6f8] sm:$0xff]
        %v1316 = vld [vmem:[%s5 + $0x700] sm:$0xff]
        %v1317 = vld [vmem:[%s5 + $0x708] sm:$0xff]
        %v1318 = vld [vmem:[%s5 + $0x710] sm:$0xff]
        %v1319 = vld [vmem:[%s5 + $0x718] sm:$0xff]
        %v1320 = vld [vmem:[%s5 + $0x720] sm:$0xff]
        %v1321 = vld [vmem:[%s5 + $0x728] sm:$0xff]
        %v1322 = vld [vmem:[%s5 + $0x730] sm:$0xff]
        %v1323 = vld [vmem:[%s5 + $0x738] sm:$0xff]
        %v1324 = vld [vmem:[%s5 + $0x740] sm:$0xff]
        %v1325 = vld [vmem:[%s5 + $0x748] sm:$0xff]
        %v1326 = vld [vmem:[%s5 + $0x750] sm:$0xff]
        %v1327 = vld [vmem:[%s5 + $0x758] sm:$0xff]
        %v1328 = vld [vmem:[%s5 + $0x760] sm:$0xff]
        %v1329 = vld [vmem:[%s5 + $0x768] sm:$0xff]
        %v1330 = vld [vmem:[%s5 + $0x770] sm:$0xff]
        %v1331 = vld [vmem:[%s5 + $0x778] sm:$0xff]
        %v1332 = vld [vmem:[%s5 + $0x780] sm:$0xff]
        %v1333 = vld [vmem:[%s5 + $0x788] sm:$0xff]
        %v1334 = vld [vmem:[%s5 + $0x790] sm:$0xff]
        %v1335 = vld [vmem:[%s5 + $0x798] sm:$0xff]
        %v1336 = vld [vmem:[%s5 + $0x7a0] sm:$0xff]
        %v1337 = vld [vmem:[%s5 + $0x7a8] sm:$0xff]
        %v1338 = vld [vmem:[%s5 + $0x7b0] sm:$0xff]
        %v1339 = vld [vmem:[%s5 + $0x7b8] sm:$0xff]
        %v1340 = vld [vmem:[%s5 + $0x7c0] sm:$0xff]
        %v1341 = vld [vmem:[%s5 + $0x7c8] sm:$0xff]
        %v1342 = vld [vmem:[%s5 + $0x7d0] sm:$0xff]
        %v1343 = vld [vmem:[%s5 + $0x7d8] sm:$0xff]
        %v1344 = vld [vmem:[%s5 + $0x7e0] sm:$0xff]
        %v1345 = vld [vmem:[%s5 + $0x7e8] sm:$0xff]
        %v1346 = vld [vmem:[%s5 + $0x7f0] sm:$0xff]
        %v1347 = vld [vmem:[%s5 + $0x7f8] sm:$0xff]
        %v1348 = vpack.c.bf16 %v1084, %v1084
        %v1349 = vpack.c.bf16 %v1085, %v1085
        %v1350 = vpack.c.bf16 %v1086, %v1086
        %v1351 = vpack.c.bf16 %v1087, %v1087
        %v1352 = vpack.c.bf16 %v1088, %v1088
        %v1353 = vpack.c.bf16 %v1089, %v1089
        %v1354 = vpack.c.bf16 %v1090, %v1090
        %v1355 = vpack.c.bf16 %v1091, %v1091
        %v1356 = vpack.c.bf16 %v1094, %v1092
        %v1357 = vpack.c.bf16 %v1095, %v1093
        %v1358 = vpack.c.bf16 %v1098, %v1096
        %v1359 = vpack.c.bf16 %v1099, %v1097
        %v1360 = vpack.c.bf16 %v1102, %v1100
        %v1361 = vpack.c.bf16 %v1103, %v1101
        %v1362 = vpack.c.bf16 %v1106, %v1104
        %v1363 = vpack.c.bf16 %v1107, %v1105
        %v1364 = vpack.c.bf16 %v1110, %v1108
        %v1365 = vpack.c.bf16 %v1111, %v1109
        %v1366 = vpack.c.bf16 %v1114, %v1112
        %v1367 = vpack.c.bf16 %v1115, %v1113
        %v1368 = vpack.c.bf16 %v1118, %v1116
        %v1369 = vpack.c.bf16 %v1119, %v1117
        %v1370 = vpack.c.bf16 %v1122, %v1120
        %v1371 = vpack.c.bf16 %v1123, %v1121
        %v1372 = vpack.c.bf16 %v1126, %v1124
        %v1373 = vpack.c.bf16 %v1127, %v1125
        %v1374 = vpack.c.bf16 %v1130, %v1128
        %v1375 = vpack.c.bf16 %v1131, %v1129
        %v1376 = vpack.c.bf16 %v1134, %v1132
        %v1377 = vpack.c.bf16 %v1135, %v1133
        %v1378 = vpack.c.bf16 %v1138, %v1136
        %v1379 = vpack.c.bf16 %v1139, %v1137
        %v1380 = vpack.c.bf16 %v1142, %v1140
        %v1381 = vpack.c.bf16 %v1143, %v1141
        %v1382 = vpack.c.bf16 %v1146, %v1144
        %v1383 = vpack.c.bf16 %v1147, %v1145
        %v1384 = vpack.c.bf16 %v1150, %v1148
        %v1385 = vpack.c.bf16 %v1151, %v1149
        %v1386 = vpack.c.bf16 %v1154, %v1152
        %v1387 = vpack.c.bf16 %v1155, %v1153
        %v1388 = vpack.c.bf16 %v1158, %v1156
        %v1389 = vpack.c.bf16 %v1159, %v1157
        %v1390 = vpack.c.bf16 %v1162, %v1160
        %v1391 = vpack.c.bf16 %v1163, %v1161
        %v1392 = vpack.c.bf16 %v1166, %v1164
        %v1393 = vpack.c.bf16 %v1167, %v1165
        %v1394 = vpack.c.bf16 %v1170, %v1168
        %v1395 = vpack.c.bf16 %v1171, %v1169
        %v1396 = vpack.c.bf16 %v1174, %v1172
        %v1397 = vpack.c.bf16 %v1175, %v1173
        %v1398 = vpack.c.bf16 %v1178, %v1176
        %v1399 = vpack.c.bf16 %v1179, %v1177
        %v1400 = vpack.c.bf16 %v1182, %v1180
        %v1401 = vpack.c.bf16 %v1183, %v1181
        %v1402 = vpack.c.bf16 %v1186, %v1184
        %v1403 = vpack.c.bf16 %v1187, %v1185
        %v1404 = vpack.c.bf16 %v1190, %v1188
        %v1405 = vpack.c.bf16 %v1191, %v1189
        %v1406 = vpack.c.bf16 %v1194, %v1192
        %v1407 = vpack.c.bf16 %v1195, %v1193
        %v1408 = vpack.c.bf16 %v1198, %v1196
        %v1409 = vpack.c.bf16 %v1199, %v1197
        %v1410 = vpack.c.bf16 %v1202, %v1200
        %v1411 = vpack.c.bf16 %v1203, %v1201
        %v1412 = vpack.c.bf16 %v1206, %v1204
        %v1413 = vpack.c.bf16 %v1207, %v1205
        %v1414 = vpack.c.bf16 %v1210, %v1208
        %v1415 = vpack.c.bf16 %v1211, %v1209
        %v1416 = vpack.c.bf16 %v1214, %v1212
        %v1417 = vpack.c.bf16 %v1215, %v1213
        %v1418 = vpack.c.bf16 %v1218, %v1216
        %v1419 = vpack.c.bf16 %v1219, %v1217
        %v1420 = vpack.c.bf16 %v1222, %v1220
        %v1421 = vpack.c.bf16 %v1223, %v1221
        %v1422 = vpack.c.bf16 %v1226, %v1224
        %v1423 = vpack.c.bf16 %v1227, %v1225
        %v1424 = vpack.c.bf16 %v1230, %v1228
        %v1425 = vpack.c.bf16 %v1231, %v1229
        %v1426 = vpack.c.bf16 %v1234, %v1232
        %v1427 = vpack.c.bf16 %v1235, %v1233
        %v1428 = vpack.c.bf16 %v1238, %v1236
        %v1429 = vpack.c.bf16 %v1239, %v1237
        %v1430 = vpack.c.bf16 %v1242, %v1240
        %v1431 = vpack.c.bf16 %v1243, %v1241
        %v1432 = vpack.c.bf16 %v1246, %v1244
        %v1433 = vpack.c.bf16 %v1247, %v1245
        %v1434 = vpack.c.bf16 %v1250, %v1248
        %v1435 = vpack.c.bf16 %v1251, %v1249
        %v1436 = vpack.c.bf16 %v1254, %v1252
        %v1437 = vpack.c.bf16 %v1255, %v1253
        %v1438 = vpack.c.bf16 %v1258, %v1256
        %v1439 = vpack.c.bf16 %v1259, %v1257
        %v1440 = vpack.c.bf16 %v1262, %v1260
        %v1441 = vpack.c.bf16 %v1263, %v1261
        %v1442 = vpack.c.bf16 %v1266, %v1264
        %v1443 = vpack.c.bf16 %v1267, %v1265
        %v1444 = vpack.c.bf16 %v1270, %v1268
        %v1445 = vpack.c.bf16 %v1271, %v1269
        %v1446 = vpack.c.bf16 %v1274, %v1272
        %v1447 = vpack.c.bf16 %v1275, %v1273
        %v1448 = vpack.c.bf16 %v1278, %v1276
        %v1449 = vpack.c.bf16 %v1279, %v1277
        %v1450 = vpack.c.bf16 %v1282, %v1280
        %v1451 = vpack.c.bf16 %v1283, %v1281
        %v1452 = vpack.c.bf16 %v1286, %v1284
        %v1453 = vpack.c.bf16 %v1287, %v1285
        %v1454 = vpack.c.bf16 %v1290, %v1288
        %v1455 = vpack.c.bf16 %v1291, %v1289
        %v1456 = vpack.c.bf16 %v1294, %v1292
        %v1457 = vpack.c.bf16 %v1295, %v1293
        %v1458 = vpack.c.bf16 %v1298, %v1296
        %v1459 = vpack.c.bf16 %v1299, %v1297
        %v1460 = vpack.c.bf16 %v1302, %v1300
        %v1461 = vpack.c.bf16 %v1303, %v1301
        %v1462 = vpack.c.bf16 %v1306, %v1304
        %v1463 = vpack.c.bf16 %v1307, %v1305
        %v1464 = vpack.c.bf16 %v1310, %v1308
        %v1465 = vpack.c.bf16 %v1311, %v1309
        %v1466 = vpack.c.bf16 %v1314, %v1312
        %v1467 = vpack.c.bf16 %v1315, %v1313
        %v1468 = vpack.c.bf16 %v1318, %v1316
        %v1469 = vpack.c.bf16 %v1319, %v1317
        %v1470 = vpack.c.bf16 %v1322, %v1320
        %v1471 = vpack.c.bf16 %v1323, %v1321
        %v1472 = vpack.c.bf16 %v1326, %v1324
        %v1473 = vpack.c.bf16 %v1327, %v1325
        %v1474 = vpack.c.bf16 %v1330, %v1328
        %v1475 = vpack.c.bf16 %v1331, %v1329
        %v1476 = vpack.c.bf16 %v1334, %v1332
        %v1477 = vpack.c.bf16 %v1335, %v1333
        %v1478 = vpack.c.bf16 %v1338, %v1336
        %v1479 = vpack.c.bf16 %v1339, %v1337
        %v1480 = vpack.c.bf16 %v1342, %v1340
        %v1481 = vpack.c.bf16 %v1343, %v1341
        %v1482 = vpack.c.bf16 %v1346, %v1344
        %v1483 = vpack.c.bf16 %v1347, %v1345
        %v1484 = vld [vmem:[#allocation7] sm:$0x3]
        %v1486 = vlaneseq
        %v1487 = vshrl.u32 %v1486, 7
        %v1488 = vsub.s32 0, %v1487
        %v1489 = vrot.slane %v1484, %v1488
        %v1490 = vlaneseq
        %v1491 = vshrl.u32 %v1490, 7
        %v1492 = vsub.s32 1, %v1491
        %v1493 = vrot.slane %v1484, %v1492
        %1496 = vmatprep.subr.bf16.mxu0 %v1357
        %1497 = vmatpush1.bf16.msra.mxu0 %v1356
        %1498 = vmatprep.subr.bf16.mxu0 %v1359
        %1499 = vmatpush1.bf16.msra.mxu0 %v1358
        %1500 = vmatprep.subr.bf16.mxu0 %v1361
        %1501 = vmatpush1.bf16.msra.mxu0 %v1360
        %1502 = vmatprep.subr.bf16.mxu0 %v1363
        %1503 = vmatpush1.bf16.msra.mxu0 %v1362
        %1504 = vmatprep.subr.bf16.mxu0 %v1365
        %1505 = vmatpush1.bf16.msra.mxu0 %v1364
        %1506 = vmatprep.subr.bf16.mxu0 %v1367
        %1507 = vmatpush1.bf16.msra.mxu0 %v1366
        %1508 = vmatprep.subr.bf16.mxu0 %v1369
        %1509 = vmatpush1.bf16.msra.mxu0 %v1368
        %1510 = vmatprep.subr.bf16.mxu0 %v1371
        %1511 = vmatpush1.bf16.msra.mxu0 %v1370
        %1512 = vmatprep.subr.bf16.mxu0 %v1373
        %1513 = vmatpush1.bf16.msra.mxu0 %v1372
        %1514 = vmatprep.subr.bf16.mxu0 %v1375
        %1515 = vmatpush1.bf16.msra.mxu0 %v1374
        %1516 = vmatprep.subr.bf16.mxu0 %v1377
        %1517 = vmatpush1.bf16.msra.mxu0 %v1376
        %1518 = vmatprep.subr.bf16.mxu0 %v1379
        %1519 = vmatpush1.bf16.msra.mxu0 %v1378
        %1520 = vmatprep.subr.bf16.mxu0 %v1381
        %1521 = vmatpush1.bf16.msra.mxu0 %v1380
        %1522 = vmatprep.subr.bf16.mxu0 %v1383
        %1523 = vmatpush1.bf16.msra.mxu0 %v1382
        %1524 = vmatprep.subr.bf16.mxu0 %v1385
        %1525 = vmatpush1.bf16.msra.mxu0 %v1384
        %1526 = vmatprep.subr.bf16.mxu0 %v1387
        %1527 = vmatpush1.bf16.msra.mxu0 %v1386
        %1528 = vmatprep.mubr.bf16.mxu0 %v1349
        %1529 = vmatmul.mubr.bf16.gmra.mrb[0].mxu0 %v1348
        %v1530 = vpop.f32.mrb[0].mxu0
        %v1531 = vadd.f32 %v1489, %v1530
        %v1532 = vpop.f32.mrb[0].mxu0
        %v1533 = vadd.f32 %v1493, %v1532
        %v1534 = vpop.f32.mrb[0].mxu0
        %v1535 = vpop.f32.mrb[0].mxu0
        %1536 = vdwg.mxu0
        %1537 = vmatprep.subr.bf16.mxu0 %v1389
        %1538 = vmatpush1.bf16.msra.mxu0 %v1388
        %1539 = vmatprep.subr.bf16.mxu0 %v1391
        %1540 = vmatpush1.bf16.msra.mxu0 %v1390
        %1541 = vmatprep.subr.bf16.mxu0 %v1393
        %1542 = vmatpush1.bf16.msra.mxu0 %v1392
        %1543 = vmatprep.subr.bf16.mxu0 %v1395
        %1544 = vmatpush1.bf16.msra.mxu0 %v1394
        %1545 = vmatprep.subr.bf16.mxu0 %v1397
        %1546 = vmatpush1.bf16.msra.mxu0 %v1396
        %1547 = vmatprep.subr.bf16.mxu0 %v1399
        %1548 = vmatpush1.bf16.msra.mxu0 %v1398
        %1549 = vmatprep.subr.bf16.mxu0 %v1401
        %1550 = vmatpush1.bf16.msra.mxu0 %v1400
        %1551 = vmatprep.subr.bf16.mxu0 %v1403
        %1552 = vmatpush1.bf16.msra.mxu0 %v1402
        %1553 = vmatprep.subr.bf16.mxu0 %v1405
        %1554 = vmatpush1.bf16.msra.mxu0 %v1404
        %1555 = vmatprep.subr.bf16.mxu0 %v1407
        %1556 = vmatpush1.bf16.msra.mxu0 %v1406
        %1557 = vmatprep.subr.bf16.mxu0 %v1409
        %1558 = vmatpush1.bf16.msra.mxu0 %v1408
        %1559 = vmatprep.subr.bf16.mxu0 %v1411
        %1560 = vmatpush1.bf16.msra.mxu0 %v1410
        %1561 = vmatprep.subr.bf16.mxu0 %v1413
        %1562 = vmatpush1.bf16.msra.mxu0 %v1412
        %1563 = vmatprep.subr.bf16.mxu0 %v1415
        %1564 = vmatpush1.bf16.msra.mxu0 %v1414
        %1565 = vmatprep.subr.bf16.mxu0 %v1417
        %1566 = vmatpush1.bf16.msra.mxu0 %v1416
        %1567 = vmatprep.subr.bf16.mxu0 %v1419
        %1568 = vmatpush1.bf16.msra.mxu0 %v1418
        %1569 = vmatprep.mubr.bf16.mxu0 %v1351
        %1570 = vmatmul.mubr.bf16.gmra.mrb[0].mxu0 %v1350
        %v1571 = vpop.f32.mrb[0].mxu0
        %v1572 = vadd.f32 %v1531, %v1571
        %v1573 = vpop.f32.mrb[0].mxu0
        %v1574 = vadd.f32 %v1533, %v1573
        %v1575 = vpop.f32.mrb[0].mxu0
        %v1576 = vpop.f32.mrb[0].mxu0
        %1577 = vdwg.mxu0
        %1578 = vmatprep.subr.bf16.mxu0 %v1421
        %1579 = vmatpush1.bf16.msra.mxu0 %v1420
        %1580 = vmatprep.subr.bf16.mxu0 %v1423
        %1581 = vmatpush1.bf16.msra.mxu0 %v1422
        %1582 = vmatprep.subr.bf16.mxu0 %v1425
        %1583 = vmatpush1.bf16.msra.mxu0 %v1424
        %1584 = vmatprep.subr.bf16.mxu0 %v1427
        %1585 = vmatpush1.bf16.msra.mxu0 %v1426
        %1586 = vmatprep.subr.bf16.mxu0 %v1429
        %1587 = vmatpush1.bf16.msra.mxu0 %v1428
        %1588 = vmatprep.subr.bf16.mxu0 %v1431
        %1589 = vmatpush1.bf16.msra.mxu0 %v1430
        %1590 = vmatprep.subr.bf16.mxu0 %v1433
        %1591 = vmatpush1.bf16.msra.mxu0 %v1432
        %1592 = vmatprep.subr.bf16.mxu0 %v1435
        %1593 = vmatpush1.bf16.msra.mxu0 %v1434
        %1594 = vmatprep.subr.bf16.mxu0 %v1437
        %1595 = vmatpush1.bf16.msra.mxu0 %v1436
        %1596 = vmatprep.subr.bf16.mxu0 %v1439
        %1597 = vmatpush1.bf16.msra.mxu0 %v1438
        %1598 = vmatprep.subr.bf16.mxu0 %v1441
        %1599 = vmatpush1.bf16.msra.mxu0 %v1440
        %1600 = vmatprep.subr.bf16.mxu0 %v1443
        %1601 = vmatpush1.bf16.msra.mxu0 %v1442
        %1602 = vmatprep.subr.bf16.mxu0 %v1445
        %1603 = vmatpush1.bf16.msra.mxu0 %v1444
        %1604 = vmatprep.subr.bf16.mxu0 %v1447
        %1605 = vmatpush1.bf16.msra.mxu0 %v1446
        %1606 = vmatprep.subr.bf16.mxu0 %v1449
        %1607 = vmatpush1.bf16.msra.mxu0 %v1448
        %1608 = vmatprep.subr.bf16.mxu0 %v1451
        %1609 = vmatpush1.bf16.msra.mxu0 %v1450
        %1610 = vmatprep.mubr.bf16.mxu0 %v1353
        %1611 = vmatmul.mubr.bf16.gmra.mrb[0].mxu0 %v1352
        %v1612 = vpop.f32.mrb[0].mxu0
        %v1613 = vadd.f32 %v1572, %v1612
        %v1614 = vpop.f32.mrb[0].mxu0
        %v1615 = vadd.f32 %v1574, %v1614
        %v1616 = vpop.f32.mrb[0].mxu0
        %v1617 = vpop.f32.mrb[0].mxu0
        %1618 = vdwg.mxu0
        %1619 = vmatprep.subr.bf16.mxu0 %v1453
        %1620 = vmatpush1.bf16.msra.mxu0 %v1452
        %1621 = vmatprep.subr.bf16.mxu0 %v1455
        %1622 = vmatpush1.bf16.msra.mxu0 %v1454
        %1623 = vmatprep.subr.bf16.mxu0 %v1457
        %1624 = vmatpush1.bf16.msra.mxu0 %v1456
        %1625 = vmatprep.subr.bf16.mxu0 %v1459
        %1626 = vmatpush1.bf16.msra.mxu0 %v1458
        %1627 = vmatprep.subr.bf16.mxu0 %v1461
        %1628 = vmatpush1.bf16.msra.mxu0 %v1460
        %1629 = vmatprep.subr.bf16.mxu0 %v1463
        %1630 = vmatpush1.bf16.msra.mxu0 %v1462
        %1631 = vmatprep.subr.bf16.mxu0 %v1465
        %1632 = vmatpush1.bf16.msra.mxu0 %v1464
        %1633 = vmatprep.subr.bf16.mxu0 %v1467
        %1634 = vmatpush1.bf16.msra.mxu0 %v1466
        %1635 = vmatprep.subr.bf16.mxu0 %v1469
        %1636 = vmatpush1.bf16.msra.mxu0 %v1468
        %1637 = vmatprep.subr.bf16.mxu0 %v1471
        %1638 = vmatpush1.bf16.msra.mxu0 %v1470
        %1639 = vmatprep.subr.bf16.mxu0 %v1473
        %1640 = vmatpush1.bf16.msra.mxu0 %v1472
        %1641 = vmatprep.subr.bf16.mxu0 %v1475
        %1642 = vmatpush1.bf16.msra.mxu0 %v1474
        %1643 = vmatprep.subr.bf16.mxu0 %v1477
        %1644 = vmatpush1.bf16.msra.mxu0 %v1476
        %1645 = vmatprep.subr.bf16.mxu0 %v1479
        %1646 = vmatpush1.bf16.msra.mxu0 %v1478
        %1647 = vmatprep.subr.bf16.mxu0 %v1481
        %1648 = vmatpush1.bf16.msra.mxu0 %v1480
        %1649 = vmatprep.subr.bf16.mxu0 %v1483
        %1650 = vmatpush1.bf16.msra.mxu0 %v1482
        %1651 = vmatprep.mubr.bf16.mxu0 %v1355
        %1652 = vmatmul.mubr.bf16.gmra.mrb[0].mxu0 %v1354
        %v1653 = vpop.f32.mrb[0].mxu0
        %v1654 = vadd.f32 %v1613, %v1653
        %v1655 = vpop.f32.mrb[0].mxu0
        %v1656 = vadd.f32 %v1615, %v1655
        %v1657 = vpop.f32.mrb[0].mxu0
        %v1658 = vpop.f32.mrb[0].mxu0
        %1659 = vdwg.mxu0
        %v1660 = vadd.f32 %v384, %v1654
        %v1661 = vadd.f32 %v385, %v1656
        %1662 = vst [vmem:[%s383] sm:$0x1f] %v1660
        %1663 = vst [vmem:[%s383 + $0x8] sm:$0x1f] %v1661
        %p1664 = scmp.lt.s32.totalorder %s23, 1
        %s1665 = scalar_select %p1664, %s23, 1
        %s1666 = smul.addr %s1665, 2
        %s1667 = smul.addr %s1666, 8
        %s1668 = scalar_lea.vmem %s9, %s1667
        // Predicated region
        $region73: #{clip_targeter_forward.7} parent=55 // pred_check
          %p1669 = pneg %p235
        $region74: #{clip_targeter_forward.7} parent=55 // pred_check_branch
          %1671 = sbr.rel (%p1669) target = $region76
        $region75: #{clip_targeter_forward.7} parent=55 // pred_region
          _
        $region76: #{clip_targeter_forward.7} parent=55 // pred_fallthru
          _
      $region56: #{clip_targeter_forward.7} parent=5 // pred_fallthru
        _
      %p1672 = scmp.le.s32.totalorder 2, %s18
      // Predicated region
      $region77: #{clip_targeter_forward.7} parent=5 // pred_check
        %p1673 = pneg %p1672
      $region78: #{clip_targeter_forward.7} parent=5 // pred_check_branch
        %1675 = sbr.rel (%p1673) target = $region80
      $region79: #{clip_targeter_forward.7} parent=5 // pred_region
        %s1676 = ssub.s32 %s18, 2
        // Predicated region
        $region81: #{clip_targeter_forward.7} parent=79 // pred_check
          %p1677 = pneg %p241
        $region82: #{clip_targeter_forward.7} parent=79 // pred_check_branch
          %1679 = sbr.rel (%p1677) target = $region84
        $region83: #{clip_targeter_forward.7} parent=79 // pred_region
          %p1680 = scmp.lt.s32.totalorder %s24, 1
          %s1681 = scalar_select %p1680, %s24, 1
          %s1682 = smul.addr %s1681, 2
          %s1683 = smul.addr %s1682, 8
          %s1684 = scalar_lea.vmem %s9, %s1683
        $region84: #{clip_targeter_forward.7} parent=79 // pred_fallthru
          _
      $region80: #{clip_targeter_forward.7} parent=5 // pred_fallthru
        _
    $region6: #{clip_targeter_forward.7} parent=1 // loop_footer
      %s22 = sadd.s32 1, %s18
    $region7: #{clip_targeter_forward.7} parent=1 // loop_footer_branch
      %17 = sbr.rel target = $region3
    $region8: #{clip_targeter_forward.7} parent=1 // loop_exit
      _
    %1685 = vsyncpa [#allocation3], 1
    %s1686 = scalar_lea.sflag [#allocation3], 1
    %1687 = vsyncpa %s1686, 1
    %1688 = vsyncpa [#allocation5], 1
    %1689 = vsyncpa [#allocation8], 1

// kernel: clip_targeter_forward.8
$region0: #{clip_targeter_forward.8}
  #allocation0 [shape = 'u32[]', space=smem, size = 0x4, offset = 0x4, fixed_abs, tag = 'smem constant byte address 0x4 - core index']
  #allocation1 [shape = 'u32[144,128]{1,0:T(1,128)}', space=vmem, size = 0x12000, scoped, tag = 'internal scratch']
  #allocation2 [shape = 'f32[5,256]{1,0:T(8,128)}', space=vmem, size = 0x2000, scoped, tag = 'scratch operand']
  %s0 = inlined_call_operand.vmem [shape: f32[2,5,256], index: 0, kind: input, shape index: {}]
  %s1 = inlined_call_operand.vmem [shape: f32[1,256], index: 1, kind: input, shape index: {}]
  %s2 = inlined_call_operand.vmem [shape: f32[1,256], index: 2, kind: input, shape index: {}]
  %s3 = inlined_call_operand.vmem [shape: f32[256,768], index: 3, kind: input, shape index: {}]
  %s4 = inlined_call_operand.vmem [shape: f32[1,768], index: 4, kind: input, shape index: {}]
  %s5 = inlined_call_operand.vmem [shape: f32[256,256], index: 5, kind: input, shape index: {}]
  %s6 = inlined_call_operand.vmem [shape: f32[1,256], index: 6, kind: input, shape index: {}]
  %s7 = inlined_call_operand.vmem [shape: f32[2,5,256], index: 7, kind: output, shape index: {}]
  %s8 = sld [smem:[#allocation0]]
  $region61: #{clip_targeter_forward.8} parent=0
    _
  %s10 = ssub.s32 1, %s8
  %s11 = scalar_select 0, %s10, %s8
  loop: start=0, step=1, limit=4
  $region2: #{clip_targeter_forward.8} parent=0 // loop_pre_header
    _
  $region3: #{clip_targeter_forward.8} parent=0 // loop_header
    %s13 = sphi 0, %s17
    %p14 = scmp.ge.s32.totalorder %s13, 4
    %s23 = sphi 0, %s25
    %s26 = sphi 0, %s23
    %s27 = sphi 0, %s26
    %s43 = sphi 0, %s27
    %s47 = sphi 0, %s47
    %s49 = sphi 0, %s47
    %s50 = sphi 0, %s49
    %s64 = sphi 0, %s50
    %s68 = sphi 0, %s68
    %s70 = sphi 0, %s68
    %s71 = sphi 0, %s70
    %s85 = sphi 0, %s71
    %s89 = sphi 0, %s89
    %s91 = sphi 0, %s89
    %s92 = sphi 0, %s91
    %s106 = sphi 0, %s92
    %s110 = sphi 0, %s110
    %s112 = sphi 0, %s110
    %s113 = sphi 0, %s112
    %s127 = sphi 0, %s113
    %s131 = sphi 0, %s131
    %s133 = sphi 0, %s131
    %s134 = sphi 0, %s133
    %s148 = sphi 0, %s134
    %s152 = sphi 0, %s152
    %s154 = sphi 0, %s152
    %s155 = sphi 0, %s154
    %s169 = sphi 0, %s155
    %s175 = sphi 0, %s177
    %s178 = sphi 0, %s175
    %s179 = sphi 0, %s178
    %s195 = sphi 0, %s179
  $region4: #{clip_targeter_forward.8} parent=0 // loop_header_branch
    %16 = sbr.rel (%p14) target = $region8
  $region5: #{clip_targeter_forward.8} parent=0 // loop_body
    %s18 = ssub.s32 %s13, 1
    %s19 = ssub.s32 %s13, 2
    %s20 = sadd.s32 %s13, 1
    %s21 = ssub.s32 %s13, %s20
    %p22 = scmp.eq.s32.totalorder %s21, 0
    %s24 = sadd.s32 %s23, 1
    %s25 = scalar_select %p22, %s23, %s24
    %p28 = pneg %p22
    %p29 = scmp.eq.s32.totalorder %s13, 1
    %p30 = por %p28, %p29
    %p31 = scmp.ne.s32.totalorder %s23, %s26
    %p32 = scmp.eq.s32.totalorder %s13, 0
    %p33 = por %p31, %p32
    %p34 = scmp.ne.s32.totalorder %s23, %s26
    %p35 = scmp.eq.s32.totalorder %s18, 1
    %p36 = por %p34, %p35
    %p37 = scmp.ne.s32.totalorder %s26, %s27
    %p38 = scmp.eq.s32.totalorder %s18, 0
    %p39 = por %p37, %p38
    %p40 = scmp.ne.s32.totalorder %s26, %s27
    %p41 = scmp.eq.s32.totalorder %s19, 1
    %p42 = por %p40, %p41
    %p44 = scmp.ne.s32.totalorder %s27, %s43
    %p45 = scmp.eq.s32.totalorder %s19, 0
    %p46 = por %p44, %p45
    %s48 = sadd.s32 %s47, 1
    %p51 = scmp.eq.s32.totalorder %s13, 1
    %p52 = scmp.ne.s32.totalorder %s47, %s49
    %p53 = scmp.eq.s32.totalorder %s13, 0
    %p54 = por %p52, %p53
    %p55 = scmp.ne.s32.totalorder %s47, %s49
    %p56 = scmp.eq.s32.totalorder %s18, 1
    %p57 = por %p55, %p56
    %p58 = scmp.ne.s32.totalorder %s49, %s50
    %p59 = scmp.eq.s32.totalorder %s18, 0
    %p60 = por %p58, %p59
    %p61 = scmp.ne.s32.totalorder %s49, %s50
    %p62 = scmp.eq.s32.totalorder %s19, 1
    %p63 = por %p61, %p62
    %p65 = scmp.ne.s32.totalorder %s50, %s64
    %p66 = scmp.eq.s32.totalorder %s19, 0
    %p67 = por %p65, %p66
    %s69 = sadd.s32 %s68, 1
    %p72 = scmp.eq.s32.totalorder %s13, 1
    %p73 = scmp.ne.s32.totalorder %s68, %s70
    %p74 = scmp.eq.s32.totalorder %s13, 0
    %p75 = por %p73, %p74
    %p76 = scmp.ne.s32.totalorder %s68, %s70
    %p77 = scmp.eq.s32.totalorder %s18, 1
    %p78 = por %p76, %p77
    %p79 = scmp.ne.s32.totalorder %s70, %s71
    %p80 = scmp.eq.s32.totalorder %s18, 0
    %p81 = por %p79, %p80
    %p82 = scmp.ne.s32.totalorder %s70, %s71
    %p83 = scmp.eq.s32.totalorder %s19, 1
    %p84 = por %p82, %p83
    %p86 = scmp.ne.s32.totalorder %s71, %s85
    %p87 = scmp.eq.s32.totalorder %s19, 0
    %p88 = por %p86, %p87
    %s90 = sadd.s32 %s89, 1
    %p93 = scmp.eq.s32.totalorder %s13, 1
    %p94 = scmp.ne.s32.totalorder %s89, %s91
    %p95 = scmp.eq.s32.totalorder %s13, 0
    %p96 = por %p94, %p95
    %p97 = scmp.ne.s32.totalorder %s89, %s91
    %p98 = scmp.eq.s32.totalorder %s18, 1
    %p99 = por %p97, %p98
    %p100 = scmp.ne.s32.totalorder %s91, %s92
    %p101 = scmp.eq.s32.totalorder %s18, 0
    %p102 = por %p100, %p101
    %p103 = scmp.ne.s32.totalorder %s91, %s92
    %p104 = scmp.eq.s32.totalorder %s19, 1
    %p105 = por %p103, %p104
    %p107 = scmp.ne.s32.totalorder %s92, %s106
    %p108 = scmp.eq.s32.totalorder %s19, 0
    %p109 = por %p107, %p108
    %s111 = sadd.s32 %s110, 1
    %p114 = scmp.eq.s32.totalorder %s13, 1
    %p115 = scmp.ne.s32.totalorder %s110, %s112
    %p116 = scmp.eq.s32.totalorder %s13, 0
    %p117 = por %p115, %p116
    %p118 = scmp.ne.s32.totalorder %s110, %s112
    %p119 = scmp.eq.s32.totalorder %s18, 1
    %p120 = por %p118, %p119
    %p121 = scmp.ne.s32.totalorder %s112, %s113
    %p122 = scmp.eq.s32.totalorder %s18, 0
    %p123 = por %p121, %p122
    %p124 = scmp.ne.s32.totalorder %s112, %s113
    %p125 = scmp.eq.s32.totalorder %s19, 1
    %p126 = por %p124, %p125
    %p128 = scmp.ne.s32.totalorder %s113, %s127
    %p129 = scmp.eq.s32.totalorder %s19, 0
    %p130 = por %p128, %p129
    %s132 = sadd.s32 %s131, 1
    %p135 = scmp.eq.s32.totalorder %s13, 1
    %p136 = scmp.ne.s32.totalorder %s131, %s133
    %p137 = scmp.eq.s32.totalorder %s13, 0
    %p138 = por %p136, %p137
    %p139 = scmp.ne.s32.totalorder %s131, %s133
    %p140 = scmp.eq.s32.totalorder %s18, 1
    %p141 = por %p139, %p140
    %p142 = scmp.ne.s32.totalorder %s133, %s134
    %p143 = scmp.eq.s32.totalorder %s18, 0
    %p144 = por %p142, %p143
    %p145 = scmp.ne.s32.totalorder %s133, %s134
    %p146 = scmp.eq.s32.totalorder %s19, 1
    %p147 = por %p145, %p146
    %p149 = scmp.ne.s32.totalorder %s134, %s148
    %p150 = scmp.eq.s32.totalorder %s19, 0
    %p151 = por %p149, %p150
    %s153 = sadd.s32 %s152, 1
    %p156 = scmp.eq.s32.totalorder %s13, 1
    %p157 = scmp.ne.s32.totalorder %s152, %s154
    %p158 = scmp.eq.s32.totalorder %s13, 0
    %p159 = por %p157, %p158
    %p160 = scmp.ne.s32.totalorder %s152, %s154
    %p161 = scmp.eq.s32.totalorder %s18, 1
    %p162 = por %p160, %p161
    %p163 = scmp.ne.s32.totalorder %s154, %s155
    %p164 = scmp.eq.s32.totalorder %s18, 0
    %p165 = por %p163, %p164
    %p166 = scmp.ne.s32.totalorder %s154, %s155
    %p167 = scmp.eq.s32.totalorder %s19, 1
    %p168 = por %p166, %p167
    %p170 = scmp.ne.s32.totalorder %s155, %s169
    %p171 = scmp.eq.s32.totalorder %s19, 0
    %p172 = por %p170, %p171
    %s173 = ssub.s32 %s13, %s20
    %p174 = scmp.eq.s32.totalorder %s173, 0
    %s176 = sadd.s32 %s175, 1
    %s177 = scalar_select %p174, %s175, %s176
    %p180 = pneg %p174
    %p181 = scmp.eq.s32.totalorder %s13, 1
    %p182 = por %p180, %p181
    %p183 = scmp.ne.s32.totalorder %s175, %s178
    %p184 = scmp.eq.s32.totalorder %s13, 0
    %p185 = por %p183, %p184
    %p186 = scmp.ne.s32.totalorder %s175, %s178
    %p187 = scmp.eq.s32.totalorder %s18, 1
    %p188 = por %p186, %p187
    %p189 = scmp.ne.s32.totalorder %s178, %s179
    %p190 = scmp.eq.s32.totalorder %s18, 0
    %p191 = por %p189, %p190
    %p192 = scmp.ne.s32.totalorder %s178, %s179
    %p193 = scmp.eq.s32.totalorder %s19, 1
    %p194 = por %p192, %p193
    %p196 = scmp.ne.s32.totalorder %s179, %s195
    %p197 = scmp.eq.s32.totalorder %s19, 0
    %p198 = por %p196, %p197
    %p199 = scmp.le.s32.totalorder 1, %s13
    %p200 = scmp.lt.s32.totalorder %s13, 3
    %p201 = pnand %p199, %p200
    %p202 = pneg %p201
    // Predicated region
    $region9: #{clip_targeter_forward.8} parent=5 // pred_check
      _
    $region10: #{clip_targeter_forward.8} parent=5 // pred_check_branch
      %204 = sbr.rel (%p201) target = $region12
    $region11: #{clip_targeter_forward.8} parent=5 // pred_region
      %s205 = ssub.s32 %s13, 1
      // Predicated region
      $region13: #{clip_targeter_forward.8} parent=11 // pred_check
        %p206 = pneg %p60
      $region14: #{clip_targeter_forward.8} parent=11 // pred_check_branch
        %208 = sbr.rel (%p206) target = $region16
      $region15: #{clip_targeter_forward.8} parent=11 // pred_region
        _
      $region16: #{clip_targeter_forward.8} parent=11 // pred_fallthru
        _
      // Predicated region
      $region17: #{clip_targeter_forward.8} parent=11 // pred_check
        %p209 = pneg %p81
      $region18: #{clip_targeter_forward.8} parent=11 // pred_check_branch
        %211 = sbr.rel (%p209) target = $region20
      $region19: #{clip_targeter_forward.8} parent=11 // pred_region
        _
      $region20: #{clip_targeter_forward.8} parent=11 // pred_fallthru
        _
      // Predicated region
      $region21: #{clip_targeter_forward.8} parent=11 // pred_check
        %p212 = pneg %p102
      $region22: #{clip_targeter_forward.8} parent=11 // pred_check_branch
        %214 = sbr.rel (%p212) target = $region24
      $region23: #{clip_targeter_forward.8} parent=11 // pred_region
        _
      $region24: #{clip_targeter_forward.8} parent=11 // pred_fallthru
        _
      // Predicated region
      $region25: #{clip_targeter_forward.8} parent=11 // pred_check
        %p215 = pneg %p123
      $region26: #{clip_targeter_forward.8} parent=11 // pred_check_branch
        %217 = sbr.rel (%p215) target = $region28
      $region27: #{clip_targeter_forward.8} parent=11 // pred_region
        _
      $region28: #{clip_targeter_forward.8} parent=11 // pred_fallthru
        _
      // Predicated region
      $region29: #{clip_targeter_forward.8} parent=11 // pred_check
        %p218 = pneg %p144
      $region30: #{clip_targeter_forward.8} parent=11 // pred_check_branch
        %220 = sbr.rel (%p218) target = $region32
      $region31: #{clip_targeter_forward.8} parent=11 // pred_region
        _
      $region32: #{clip_targeter_forward.8} parent=11 // pred_fallthru
        _
      // Predicated region
      $region33: #{clip_targeter_forward.8} parent=11 // pred_check
        %p221 = pneg %p165
      $region34: #{clip_targeter_forward.8} parent=11 // pred_check_branch
        %223 = sbr.rel (%p221) target = $region36
      $region35: #{clip_targeter_forward.8} parent=11 // pred_region
        _
      $region36: #{clip_targeter_forward.8} parent=11 // pred_fallthru
        _
    $region12: #{clip_targeter_forward.8} parent=5 // pred_fallthru
      _
    %p224 = scmp.lt.s32.totalorder %s13, 2
    // Predicated region
    $region37: #{clip_targeter_forward.8} parent=5 // pred_check
      %p225 = pneg %p224
    $region38: #{clip_targeter_forward.8} parent=5 // pred_check_branch
      %227 = sbr.rel (%p225) target = $region40
    $region39: #{clip_targeter_forward.8} parent=5 // pred_region
      // Predicated region
      $region41: #{clip_targeter_forward.8} parent=39 // pred_check
        %p228 = pneg %p33
      $region42: #{clip_targeter_forward.8} parent=39 // pred_check_branch
        %230 = sbr.rel (%p228) target = $region44
      $region43: #{clip_targeter_forward.8} parent=39 // pred_region
        %p231 = scmp.lt.s32.totalorder %s13, 1
        %s232 = scalar_select %p231, %s13, 1
        %s233 = smul.addr %s232, 2
        %s234 = smul.addr %s233, 8
        %s235 = scalar_lea.vmem %s0, %s234
      $region44: #{clip_targeter_forward.8} parent=39 // pred_fallthru
        _
    $region40: #{clip_targeter_forward.8} parent=5 // pred_fallthru
      _
    %p236 = scmp.le.s32.totalorder 1, %s13
    %p237 = scmp.lt.s32.totalorder %s13, 3
    %p238 = pnand %p236, %p237
    %p239 = pneg %p238
    // Predicated region
    $region45: #{clip_targeter_forward.8} parent=5 // pred_check
      _
    $region46: #{clip_targeter_forward.8} parent=5 // pred_check_branch
      %241 = sbr.rel (%p238) target = $region48
    $region47: #{clip_targeter_forward.8} parent=5 // pred_region
      %s242 = ssub.s32 %s13, 1
      %p243 = scmp.lt.s32.totalorder %s18, 1
      %s244 = scalar_select %p243, %s18, 1
      %s245 = smul.addr %s244, 2
      %s246 = smul.addr %s245, 8
      %s247 = scalar_lea.vmem %s0, %s246
      %p248 = pneg %p39
      %p249 = pneg %p36
      %p250 = pneg %p60
      %p251 = pneg %p57
      %p252 = pneg %p81
      %p253 = pneg %p78
      %p254 = pneg %p102
      %p255 = pneg %p99
      %p256 = pneg %p123
      %p257 = pneg %p120
      %p258 = pneg %p144
      %p259 = pneg %p141
      %p260 = pneg %p165
      %p261 = pneg %p162
      %p262 = pneg %p191
      %p263 = pneg %p188
      %p264 = scmp.lt.s32.totalorder %s18, 1
      %s265 = scalar_select %p264, %s18, 1
      %s266 = smul.addr %s265, 2
      %s267 = smul.addr %s266, 8
      %s268 = scalar_lea.vmem %s7, %s267
      %p269 = scmp.lt.s32.totalorder %s18, 1
      %s270 = scalar_select %p269, %s18, 1
      %s271 = smul.addr %s270, 2
      %s272 = smul.addr %s271, 8
      %s273 = scalar_lea.vmem %s0, %s272
      %p274 = scmp.lt.s32.totalorder %s18, 1
      %s275 = scalar_select %p274, %s18, 1
      %s276 = smul.addr %s275, 2
      %s277 = smul.addr %s276, 8
      %s278 = scalar_lea.vmem %s7, %s277
      %v280 = vld [vmem:[%s273] sm:$0x1f]
      %v281 = vld [vmem:[%s273 + $0x8] sm:$0x1f]
      %v282 = vld [vmem:[%s1] sm:$0x3]
      %v283 = vld [vmem:[%s2] sm:$0x3]
      %vm284 = vcmask 1044480
      %v285 = vsel %vm284, %v280, 0.0
      %v286 = vsel %vm284, %v281, 0.0
      %v287 = vadd.f32 %v285, %v286
      %288 = vadd.xlane.f32.xlu0 %v287
      %v289 = vpop.xlane.xlu0 %288
      %v290 = vrcp.pop 256.0
      %v291 = vmul.f32 %v289, %v290
      %v292 = vsub.f32 %v280, %v291
      %v293 = vsub.f32 %v281, %v291
      %v294 = vmul.f32 %v292, %v292
      %v295 = vmul.f32 %v293, %v293
      %v296 = vsel %vm284, %v294, 0.0
      %v297 = vsel %vm284, %v295, 0.0
      %v298 = vadd.f32 %v296, %v297
      %299 = vadd.xlane.f32.xlu0 %v298
      %v300 = vpop.xlane.xlu0 %299
      %v301 = vmul.f32 %v300, %v290
      %v302 = vadd.f32 %v301, 1e-05
      %v303 = vrsqrt.pop %v302
      %v304 = vmul.f32 %v292, %v303
      %v305 = vmul.f32 %v293, %v303
      %v307 = vlaneseq
      %v308 = vshrl.u32 %v307, 7
      %v309 = vsub.s32 0, %v308
      %v310 = vrot.slane %v282, %v309
      %v311 = vlaneseq
      %v312 = vshrl.u32 %v311, 7
      %v313 = vsub.s32 1, %v312
      %v314 = vrot.slane %v282, %v313
      %v317 = vmul.f32 %v304, %v310
      %v318 = vmul.f32 %v305, %v314
      %v320 = vlaneseq
      %v321 = vshrl.u32 %v320, 7
      %v322 = vsub.s32 0, %v321
      %v323 = vrot.slane %v283, %v322
      %v324 = vlaneseq
      %v325 = vshrl.u32 %v324, 7
      %v326 = vsub.s32 1, %v325
      %v327 = vrot.slane %v283, %v326
      %v330 = vadd.f32 %v317, %v323
      %v331 = vadd.f32 %v318, %v327
      %v332 = vld [vmem:[%s3] sm:$0xff]
      %v333 = vld [vmem:[%s3 + $0x8] sm:$0xff]
      %v334 = vld [vmem:[%s3 + $0x10] sm:$0xff]
      %v335 = vld [vmem:[%s3 + $0x18] sm:$0xff]
      %v336 = vld [vmem:[%s3 + $0x20] sm:$0xff]
      %v337 = vld [vmem:[%s3 + $0x28] sm:$0xff]
      %v338 = vld [vmem:[%s3 + $0x30] sm:$0xff]
      %v339 = vld [vmem:[%s3 + $0x38] sm:$0xff]
      %v340 = vld [vmem:[%s3 + $0x40] sm:$0xff]
      %v341 = vld [vmem:[%s3 + $0x48] sm:$0xff]
      %v342 = vld [vmem:[%s3 + $0x50] sm:$0xff]
      %v343 = vld [vmem:[%s3 + $0x58] sm:$0xff]
      %v344 = vld [vmem:[%s3 + $0x60] sm:$0xff]
      %v345 = vld [vmem:[%s3 + $0x68] sm:$0xff]
      %v346 = vld [vmem:[%s3 + $0x70] sm:$0xff]
      %v347 = vld [vmem:[%s3 + $0x78] sm:$0xff]
      %v348 = vld [vmem:[%s3 + $0x80] sm:$0xff]
      %v349 = vld [vmem:[%s3 + $0x88] sm:$0xff]
      %v350 = vld [vmem:[%s3 + $0x90] sm:$0xff]
      %v351 = vld [vmem:[%s3 + $0x98] sm:$0xff]
      %v352 = vld [vmem:[%s3 + $0xa0] sm:$0xff]
      %v353 = vld [vmem:[%s3 + $0xa8] sm:$0xff]
      %v354 = vld [vmem:[%s3 + $0xb0] sm:$0xff]
      %v355 = vld [vmem:[%s3 + $0xb8] sm:$0xff]
      %v356 = vld [vmem:[%s3 + $0xc0] sm:$0xff]
      %v357 = vld [vmem:[%s3 + $0xc8] sm:$0xff]
      %v358 = vld [vmem:[%s3 + $0xd0] sm:$0xff]
      %v359 = vld [vmem:[%s3 + $0xd8] sm:$0xff]
      %v360 = vld [vmem:[%s3 + $0xe0] sm:$0xff]
      %v361 = vld [vmem:[%s3 + $0xe8] sm:$0xff]
      %v362 = vld [vmem:[%s3 + $0xf0] sm:$0xff]
      %v363 = vld [vmem:[%s3 + $0xf8] sm:$0xff]
      %v364 = vld [vmem:[%s3 + $0x100] sm:$0xff]
      %v365 = vld [vmem:[%s3 + $0x108] sm:$0xff]
      %v366 = vld [vmem:[%s3 + $0x110] sm:$0xff]
      %v367 = vld [vmem:[%s3 + $0x118] sm:$0xff]
      %v368 = vld [vmem:[%s3 + $0x120] sm:$0xff]
      %v369 = vld [vmem:[%s3 + $0x128] sm:$0xff]
      %v370 = vld [vmem:[%s3 + $0x130] sm:$0xff]
      %v371 = vld [vmem:[%s3 + $0x138] sm:$0xff]
      %v372 = vld [vmem:[%s3 + $0x140] sm:$0xff]
      %v373 = vld [vmem:[%s3 + $0x148] sm:$0xff]
      %v374 = vld [vmem:[%s3 + $0x150] sm:$0xff]
      %v375 = vld [vmem:[%s3 + $0x158] sm:$0xff]
      %v376 = vld [vmem:[%s3 + $0x160] sm:$0xff]
      %v377 = vld [vmem:[%s3 + $0x168] sm:$0xff]
      %v378 = vld [vmem:[%s3 + $0x170] sm:$0xff]
      %v379 = vld [vmem:[%s3 + $0x178] sm:$0xff]
      %v380 = vld [vmem:[%s3 + $0x180] sm:$0xff]
      %v381 = vld [vmem:[%s3 + $0x188] sm:$0xff]
      %v382 = vld [vmem:[%s3 + $0x190] sm:$0xff]
      %v383 = vld [vmem:[%s3 + $0x198] sm:$0xff]
      %v384 = vld [vmem:[%s3 + $0x1a0] sm:$0xff]
      %v385 = vld [vmem:[%s3 + $0x1a8] sm:$0xff]
      %v386 = vld [vmem:[%s3 + $0x1b0] sm:$0xff]
      %v387 = vld [vmem:[%s3 + $0x1b8] sm:$0xff]
      %v388 = vld [vmem:[%s3 + $0x1c0] sm:$0xff]
      %v389 = vld [vmem:[%s3 + $0x1c8] sm:$0xff]
      %v390 = vld [vmem:[%s3 + $0x1d0] sm:$0xff]
      %v391 = vld [vmem:[%s3 + $0x1d8] sm:$0xff]
      %v392 = vld [vmem:[%s3 + $0x1e0] sm:$0xff]
      %v393 = vld [vmem:[%s3 + $0x1e8] sm:$0xff]
      %v394 = vld [vmem:[%s3 + $0x1f0] sm:$0xff]
      %v395 = vld [vmem:[%s3 + $0x1f8] sm:$0xff]
      %v396 = vld [vmem:[%s3 + $0x200] sm:$0xff]
      %v397 = vld [vmem:[%s3 + $0x208] sm:$0xff]
      %v398 = vld [vmem:[%s3 + $0x210] sm:$0xff]
      %v399 = vld [vmem:[%s3 + $0x218] sm:$0xff]
      %v400 = vld [vmem:[%s3 + $0x220] sm:$0xff]
      %v401 = vld [vmem:[%s3 + $0x228] sm:$0xff]
      %v402 = vld [vmem:[%s3 + $0x230] sm:$0xff]
      %v403 = vld [vmem:[%s3 + $0x238] sm:$0xff]
      %v404 = vld [vmem:[%s3 + $0x240] sm:$0xff]
      %v405 = vld [vmem:[%s3 + $0x248] sm:$0xff]
      %v406 = vld [vmem:[%s3 + $0x250] sm:$0xff]
      %v407 = vld [vmem:[%s3 + $0x258] sm:$0xff]
      %v408 = vld [vmem:[%s3 + $0x260] sm:$0xff]
      %v409 = vld [vmem:[%s3 + $0x268] sm:$0xff]
      %v410 = vld [vmem:[%s3 + $0x270] sm:$0xff]
      %v411 = vld [vmem:[%s3 + $0x278] sm:$0xff]
      %v412 = vld [vmem:[%s3 + $0x280] sm:$0xff]
      %v413 = vld [vmem:[%s3 + $0x288] sm:$0xff]
      %v414 = vld [vmem:[%s3 + $0x290] sm:$0xff]
      %v415 = vld [vmem:[%s3 + $0x298] sm:$0xff]
      %v416 = vld [vmem:[%s3 + $0x2a0] sm:$0xff]
      %v417 = vld [vmem:[%s3 + $0x2a8] sm:$0xff]
      %v418 = vld [vmem:[%s3 + $0x2b0] sm:$0xff]
      %v419 = vld [vmem:[%s3 + $0x2b8] sm:$0xff]
      %v420 = vld [vmem:[%s3 + $0x2c0] sm:$0xff]
      %v421 = vld [vmem:[%s3 + $0x2c8] sm:$0xff]
      %v422 = vld [vmem:[%s3 + $0x2d0] sm:$0xff]
      %v423 = vld [vmem:[%s3 + $0x2d8] sm:$0xff]
      %v424 = vld [vmem:[%s3 + $0x2e0] sm:$0xff]
      %v425 = vld [vmem:[%s3 + $0x2e8] sm:$0xff]
      %v426 = vld [vmem:[%s3 + $0x2f0] sm:$0xff]
      %v427 = vld [vmem:[%s3 + $0x2f8] sm:$0xff]
      %v428 = vld [vmem:[%s3 + $0x300] sm:$0xff]
      %v429 = vld [vmem:[%s3 + $0x308] sm:$0xff]
      %v430 = vld [vmem:[%s3 + $0x310] sm:$0xff]
      %v431 = vld [vmem:[%s3 + $0x318] sm:$0xff]
      %v432 = vld [vmem:[%s3 + $0x320] sm:$0xff]
      %v433 = vld [vmem:[%s3 + $0x328] sm:$0xff]
      %v434 = vld [vmem:[%s3 + $0x330] sm:$0xff]
      %v435 = vld [vmem:[%s3 + $0x338] sm:$0xff]
      %v436 = vld [vmem:[%s3 + $0x340] sm:$0xff]
      %v437 = vld [vmem:[%s3 + $0x348] sm:$0xff]
      %v438 = vld [vmem:[%s3 + $0x350] sm:$0xff]
      %v439 = vld [vmem:[%s3 + $0x358] sm:$0xff]
      %v440 = vld [vmem:[%s3 + $0x360] sm:$0xff]
      %v441 = vld [vmem:[%s3 + $0x368] sm:$0xff]
      %v442 = vld [vmem:[%s3 + $0x370] sm:$0xff]
      %v443 = vld [vmem:[%s3 + $0x378] sm:$0xff]
      %v444 = vld [vmem:[%s3 + $0x380] sm:$0xff]
      %v445 = vld [vmem:[%s3 + $0x388] sm:$0xff]
      %v446 = vld [vmem:[%s3 + $0x390] sm:$0xff]
      %v447 = vld [vmem:[%s3 + $0x398] sm:$0xff]
      %v448 = vld [vmem:[%s3 + $0x3a0] sm:$0xff]
      %v449 = vld [vmem:[%s3 + $0x3a8] sm:$0xff]
      %v450 = vld [vmem:[%s3 + $0x3b0] sm:$0xff]
      %v451 = vld [vmem:[%s3 + $0x3b8] sm:$0xff]
      %v452 = vld [vmem:[%s3 + $0x3c0] sm:$0xff]
      %v453 = vld [vmem:[%s3 + $0x3c8] sm:$0xff]
      %v454 = vld [vmem:[%s3 + $0x3d0] sm:$0xff]
      %v455 = vld [vmem:[%s3 + $0x3d8] sm:$0xff]
      %v456 = vld [vmem:[%s3 + $0x3e0] sm:$0xff]
      %v457 = vld [vmem:[%s3 + $0x3e8] sm:$0xff]
      %v458 = vld [vmem:[%s3 + $0x3f0] sm:$0xff]
      %v459 = vld [vmem:[%s3 + $0x3f8] sm:$0xff]
      %v460 = vld [vmem:[%s3 + $0x400] sm:$0xff]
      %v461 = vld [vmem:[%s3 + $0x408] sm:$0xff]
      %v462 = vld [vmem:[%s3 + $0x410] sm:$0xff]
      %v463 = vld [vmem:[%s3 + $0x418] sm:$0xff]
      %v464 = vld [vmem:[%s3 + $0x420] sm:$0xff]
      %v465 = vld [vmem:[%s3 + $0x428] sm:$0xff]
      %v466 = vld [vmem:[%s3 + $0x430] sm:$0xff]
      %v467 = vld [vmem:[%s3 + $0x438] sm:$0xff]
      %v468 = vld [vmem:[%s3 + $0x440] sm:$0xff]
      %v469 = vld [vmem:[%s3 + $0x448] sm:$0xff]
      %v470 = vld [vmem:[%s3 + $0x450] sm:$0xff]
      %v471 = vld [vmem:[%s3 + $0x458] sm:$0xff]
      %v472 = vld [vmem:[%s3 + $0x460] sm:$0xff]
      %v473 = vld [vmem:[%s3 + $0x468] sm:$0xff]
      %v474 = vld [vmem:[%s3 + $0x470] sm:$0xff]
      %v475 = vld [vmem:[%s3 + $0x478] sm:$0xff]
      %v476 = vld [vmem:[%s3 + $0x480] sm:$0xff]
      %v477 = vld [vmem:[%s3 + $0x488] sm:$0xff]
      %v478 = vld [vmem:[%s3 + $0x490] sm:$0xff]
      %v479 = vld [vmem:[%s3 + $0x498] sm:$0xff]
      %v480 = vld [vmem:[%s3 + $0x4a0] sm:$0xff]
      %v481 = vld [vmem:[%s3 + $0x4a8] sm:$0xff]
      %v482 = vld [vmem:[%s3 + $0x4b0] sm:$0xff]
      %v483 = vld [vmem:[%s3 + $0x4b8] sm:$0xff]
      %v484 = vld [vmem:[%s3 + $0x4c0] sm:$0xff]
      %v485 = vld [vmem:[%s3 + $0x4c8] sm:$0xff]
      %v486 = vld [vmem:[%s3 + $0x4d0] sm:$0xff]
      %v487 = vld [vmem:[%s3 + $0x4d8] sm:$0xff]
      %v488 = vld [vmem:[%s3 + $0x4e0] sm:$0xff]
      %v489 = vld [vmem:[%s3 + $0x4e8] sm:$0xff]
      %v490 = vld [vmem:[%s3 + $0x4f0] sm:$0xff]
      %v491 = vld [vmem:[%s3 + $0x4f8] sm:$0xff]
      %v492 = vld [vmem:[%s3 + $0x500] sm:$0xff]
      %v493 = vld [vmem:[%s3 + $0x508] sm:$0xff]
      %v494 = vld [vmem:[%s3 + $0x510] sm:$0xff]
      %v495 = vld [vmem:[%s3 + $0x518] sm:$0xff]
      %v496 = vld [vmem:[%s3 + $0x520] sm:$0xff]
      %v497 = vld [vmem:[%s3 + $0x528] sm:$0xff]
      %v498 = vld [vmem:[%s3 + $0x530] sm:$0xff]
      %v499 = vld [vmem:[%s3 + $0x538] sm:$0xff]
      %v500 = vld [vmem:[%s3 + $0x540] sm:$0xff]
      %v501 = vld [vmem:[%s3 + $0x548] sm:$0xff]
      %v502 = vld [vmem:[%s3 + $0x550] sm:$0xff]
      %v503 = vld [vmem:[%s3 + $0x558] sm:$0xff]
      %v504 = vld [vmem:[%s3 + $0x560] sm:$0xff]
      %v505 = vld [vmem:[%s3 + $0x568] sm:$0xff]
      %v506 = vld [vmem:[%s3 + $0x570] sm:$0xff]
      %v507 = vld [vmem:[%s3 + $0x578] sm:$0xff]
      %v508 = vld [vmem:[%s3 + $0x580] sm:$0xff]
      %v509 = vld [vmem:[%s3 + $0x588] sm:$0xff]
      %v510 = vld [vmem:[%s3 + $0x590] sm:$0xff]
      %v511 = vld [vmem:[%s3 + $0x598] sm:$0xff]
      %v512 = vld [vmem:[%s3 + $0x5a0] sm:$0xff]
      %v513 = vld [vmem:[%s3 + $0x5a8] sm:$0xff]
      %v514 = vld [vmem:[%s3 + $0x5b0] sm:$0xff]
      %v515 = vld [vmem:[%s3 + $0x5b8] sm:$0xff]
      %v516 = vld [vmem:[%s3 + $0x5c0] sm:$0xff]
      %v517 = vld [vmem:[%s3 + $0x5c8] sm:$0xff]
      %v518 = vld [vmem:[%s3 + $0x5d0] sm:$0xff]
      %v519 = vld [vmem:[%s3 + $0x5d8] sm:$0xff]
      %v520 = vld [vmem:[%s3 + $0x5e0] sm:$0xff]
      %v521 = vld [vmem:[%s3 + $0x5e8] sm:$0xff]
      %v522 = vld [vmem:[%s3 + $0x5f0] sm:$0xff]
      %v523 = vld [vmem:[%s3 + $0x5f8] sm:$0xff]
      %v524 = vpack.c.bf16 %v330, %v330
      %v525 = vpack.c.bf16 %v331, %v331
      %v526 = vpack.c.bf16 %v338, %v332
      %v527 = vpack.c.bf16 %v339, %v333
      %v528 = vpack.c.bf16 %v340, %v334
      %v529 = vpack.c.bf16 %v341, %v335
      %v530 = vpack.c.bf16 %v342, %v336
      %v531 = vpack.c.bf16 %v343, %v337
      %v532 = vpack.c.bf16 %v350, %v344
      %v533 = vpack.c.bf16 %v351, %v345
      %v534 = vpack.c.bf16 %v352, %v346
      %v535 = vpack.c.bf16 %v353, %v347
      %v536 = vpack.c.bf16 %v354, %v348
      %v537 = vpack.c.bf16 %v355, %v349
      %v538 = vpack.c.bf16 %v362, %v356
      %v539 = vpack.c.bf16 %v363, %v357
      %v540 = vpack.c.bf16 %v364, %v358
      %v541 = vpack.c.bf16 %v365, %v359
      %v542 = vpack.c.bf16 %v366, %v360
      %v543 = vpack.c.bf16 %v367, %v361
      %v544 = vpack.c.bf16 %v374, %v368
      %v545 = vpack.c.bf16 %v375, %v369
      %v546 = vpack.c.bf16 %v376, %v370
      %v547 = vpack.c.bf16 %v377, %v371
      %v548 = vpack.c.bf16 %v378, %v372
      %v549 = vpack.c.bf16 %v379, %v373
      %v550 = vpack.c.bf16 %v386, %v380
      %v551 = vpack.c.bf16 %v387, %v381
      %v552 = vpack.c.bf16 %v388, %v382
      %v553 = vpack.c.bf16 %v389, %v383
      %v554 = vpack.c.bf16 %v390, %v384
      %v555 = vpack.c.bf16 %v391, %v385
      %v556 = vpack.c.bf16 %v398, %v392
      %v557 = vpack.c.bf16 %v399, %v393
      %v558 = vpack.c.bf16 %v400, %v394
      %v559 = vpack.c.bf16 %v401, %v395
      %v560 = vpack.c.bf16 %v402, %v396
      %v561 = vpack.c.bf16 %v403, %v397
      %v562 = vpack.c.bf16 %v410, %v404
      %v563 = vpack.c.bf16 %v411, %v405
      %v564 = vpack.c.bf16 %v412, %v406
      %v565 = vpack.c.bf16 %v413, %v407
      %v566 = vpack.c.bf16 %v414, %v408
      %v567 = vpack.c.bf16 %v415, %v409
      %v568 = vpack.c.bf16 %v422, %v416
      %v569 = vpack.c.bf16 %v423, %v417
      %v570 = vpack.c.bf16 %v424, %v418
      %v571 = vpack.c.bf16 %v425, %v419
      %v572 = vpack.c.bf16 %v426, %v420
      %v573 = vpack.c.bf16 %v427, %v421
      %v574 = vpack.c.bf16 %v434, %v428
      %v575 = vpack.c.bf16 %v435, %v429
      %v576 = vpack.c.bf16 %v436, %v430
      %v577 = vpack.c.bf16 %v437, %v431
      %v578 = vpack.c.bf16 %v438, %v432
      %v579 = vpack.c.bf16 %v439, %v433
      %v580 = vpack.c.bf16 %v446, %v440
      %v581 = vpack.c.bf16 %v447, %v441
      %v582 = vpack.c.bf16 %v448, %v442
      %v583 = vpack.c.bf16 %v449, %v443
      %v584 = vpack.c.bf16 %v450, %v444
      %v585 = vpack.c.bf16 %v451, %v445
      %v586 = vpack.c.bf16 %v458, %v452
      %v587 = vpack.c.bf16 %v459, %v453
      %v588 = vpack.c.bf16 %v460, %v454
      %v589 = vpack.c.bf16 %v461, %v455
      %v590 = vpack.c.bf16 %v462, %v456
      %v591 = vpack.c.bf16 %v463, %v457
      %v592 = vpack.c.bf16 %v470, %v464
      %v593 = vpack.c.bf16 %v471, %v465
      %v594 = vpack.c.bf16 %v472, %v466
      %v595 = vpack.c.bf16 %v473, %v467
      %v596 = vpack.c.bf16 %v474, %v468
      %v597 = vpack.c.bf16 %v475, %v469
      %v598 = vpack.c.bf16 %v482, %v476
      %v599 = vpack.c.bf16 %v483, %v477
      %v600 = vpack.c.bf16 %v484, %v478
      %v601 = vpack.c.bf16 %v485, %v479
      %v602 = vpack.c.bf16 %v486, %v480
      %v603 = vpack.c.bf16 %v487, %v481
      %v604 = vpack.c.bf16 %v494, %v488
      %v605 = vpack.c.bf16 %v495, %v489
      %v606 = vpack.c.bf16 %v496, %v490
      %v607 = vpack.c.bf16 %v497, %v491
      %v608 = vpack.c.bf16 %v498, %v492
      %v609 = vpack.c.bf16 %v499, %v493
      %v610 = vpack.c.bf16 %v506, %v500
      %v611 = vpack.c.bf16 %v507, %v501
      %v612 = vpack.c.bf16 %v508, %v502
      %v613 = vpack.c.bf16 %v509, %v503
      %v614 = vpack.c.bf16 %v510, %v504
      %v615 = vpack.c.bf16 %v511, %v505
      %v616 = vpack.c.bf16 %v518, %v512
      %v617 = vpack.c.bf16 %v519, %v513
      %v618 = vpack.c.bf16 %v520, %v514
      %v619 = vpack.c.bf16 %v521, %v515
      %v620 = vpack.c.bf16 %v522, %v516
      %v621 = vpack.c.bf16 %v523, %v517
      %v622 = vld [vmem:[%s4] sm:$0x3f]
      %v624 = vlaneseq
      %v625 = vshrl.u32 %v624, 7
      %v626 = vsub.s32 0, %v625
      %v627 = vrot.slane %v622, %v626
      %v628 = vlaneseq
      %v629 = vshrl.u32 %v628, 7
      %v630 = vsub.s32 1, %v629
      %v631 = vrot.slane %v622, %v630
      %v632 = vlaneseq
      %v633 = vshrl.u32 %v632, 7
      %v634 = vsub.s32 2, %v633
      %v635 = vrot.slane %v622, %v634
      %v636 = vlaneseq
      %v637 = vshrl.u32 %v636, 7
      %v638 = vsub.s32 3, %v637
      %v639 = vrot.slane %v622, %v638
      %v640 = vlaneseq
      %v641 = vshrl.u32 %v640, 7
      %v642 = vsub.s32 4, %v641
      %v643 = vrot.slane %v622, %v642
      %v644 = vlaneseq
      %v645 = vshrl.u32 %v644, 7
      %v646 = vsub.s32 5, %v645
      %v647 = vrot.slane %v622, %v646
      %654 = vmatprep.subr.bf16.mxu0 %v527
      %655 = vmatpush1.bf16.msra.mxu0 %v526
      %656 = vmatprep.subr.bf16.mxu0 %v533
      %657 = vmatpush1.bf16.msra.mxu0 %v532
      %658 = vmatprep.subr.bf16.mxu0 %v539
      %659 = vmatpush1.bf16.msra.mxu0 %v538
      %660 = vmatprep.subr.bf16.mxu0 %v545
      %661 = vmatpush1.bf16.msra.mxu0 %v544
      %662 = vmatprep.subr.bf16.mxu0 %v551
      %663 = vmatpush1.bf16.msra.mxu0 %v550
      %664 = vmatprep.subr.bf16.mxu0 %v557
      %665 = vmatpush1.bf16.msra.mxu0 %v556
      %666 = vmatprep.subr.bf16.mxu0 %v563
      %667 = vmatpush1.bf16.msra.mxu0 %v562
      %668 = vmatprep.subr.bf16.mxu0 %v569
      %669 = vmatpush1.bf16.msra.mxu0 %v568
      %670 = vmatprep.subr.bf16.mxu0 %v575
      %671 = vmatpush1.bf16.msra.mxu0 %v574
      %672 = vmatprep.subr.bf16.mxu0 %v581
      %673 = vmatpush1.bf16.msra.mxu0 %v580
      %674 = vmatprep.subr.bf16.mxu0 %v587
      %675 = vmatpush1.bf16.msra.mxu0 %v586
      %676 = vmatprep.subr.bf16.mxu0 %v593
      %677 = vmatpush1.bf16.msra.mxu0 %v592
      %678 = vmatprep.subr.bf16.mxu0 %v599
      %679 = vmatpush1.bf16.msra.mxu0 %v598
      %680 = vmatprep.subr.bf16.mxu0 %v605
      %681 = vmatpush1.bf16.msra.mxu0 %v604
      %682 = vmatprep.subr.bf16.mxu0 %v611
      %683 = vmatpush1.bf16.msra.mxu0 %v610
      %684 = vmatprep.subr.bf16.mxu0 %v617
      %685 = vmatpush1.bf16.msra.mxu0 %v616
      %686 = vmatprep.mubr.bf16.mxu0 %v525
      %687 = vmatmul.mubr.bf16.gmra.mrb[0].mxu0 %v524
      %v688 = vpop.f32.mrb[0].mxu0
      %v689 = vadd.f32 %v627, %v688
      %v690 = vpop.f32.mrb[0].mxu0
      %v691 = vadd.f32 %v631, %v690
      %v692 = vpop.f32.mrb[0].mxu0
      %v693 = vpop.f32.mrb[0].mxu0
      %694 = vdwg.mxu0
      %695 = vmatprep.subr.bf16.mxu0 %v529
      %696 = vmatpush1.bf16.msra.mxu0 %v528
      %697 = vmatprep.subr.bf16.mxu0 %v535
      %698 = vmatpush1.bf16.msra.mxu0 %v534
      %699 = vmatprep.subr.bf16.mxu0 %v541
      %700 = vmatpush1.bf16.msra.mxu0 %v540
      %701 = vmatprep.subr.bf16.mxu0 %v547
      %702 = vmatpush1.bf16.msra.mxu0 %v546
      %703 = vmatprep.subr.bf16.mxu0 %v553
      %704 = vmatpush1.bf16.msra.mxu0 %v552
      %705 = vmatprep.subr.bf16.mxu0 %v559
      %706 = vmatpush1.bf16.msra.mxu0 %v558
      %707 = vmatprep.subr.bf16.mxu0 %v565
      %708 = vmatpush1.bf16.msra.mxu0 %v564
      %709 = vmatprep.subr.bf16.mxu0 %v571
      %710 = vmatpush1.bf16.msra.mxu0 %v570
      %711 = vmatprep.subr.bf16.mxu0 %v577
      %712 = vmatpush1.bf16.msra.mxu0 %v576
      %713 = vmatprep.subr.bf16.mxu0 %v583
      %714 = vmatpush1.bf16.msra.mxu0 %v582
      %715 = vmatprep.subr.bf16.mxu0 %v589
      %716 = vmatpush1.bf16.msra.mxu0 %v588
      %717 = vmatprep.subr.bf16.mxu0 %v595
      %718 = vmatpush1.bf16.msra.mxu0 %v594
      %719 = vmatprep.subr.bf16.mxu0 %v601
      %720 = vmatpush1.bf16.msra.mxu0 %v600
      %721 = vmatprep.subr.bf16.mxu0 %v607
      %722 = vmatpush1.bf16.msra.mxu0 %v606
      %723 = vmatprep.subr.bf16.mxu0 %v613
      %724 = vmatpush1.bf16.msra.mxu0 %v612
      %725 = vmatprep.subr.bf16.mxu0 %v619
      %726 = vmatpush1.bf16.msra.mxu0 %v618
      %727 = vmatprep.mubr.bf16.mxu0 %v525
      %728 = vmatmul.mubr.bf16.gmra.mrb[0].mxu0 %v524
      %v729 = vpop.f32.mrb[0].mxu0
      %v730 = vadd.f32 %v635, %v729
      %v731 = vpop.f32.mrb[0].mxu0
      %v732 = vadd.f32 %v639, %v731
      %v733 = vpop.f32.mrb[0].mxu0
      %v734 = vpop.f32.mrb[0].mxu0
      %735 = vdwg.mxu0
      %736 = vmatprep.subr.bf16.mxu0 %v531
      %737 = vmatpush1.bf16.msra.mxu0 %v530
      %738 = vmatprep.subr.bf16.mxu0 %v537
      %739 = vmatpush1.bf16.msra.mxu0 %v536
      %740 = vmatprep.subr.bf16.mxu0 %v543
      %741 = vmatpush1.bf16.msra.mxu0 %v542
      %742 = vmatprep.subr.bf16.mxu0 %v549
      %743 = vmatpush1.bf16.msra.mxu0 %v548
      %744 = vmatprep.subr.bf16.mxu0 %v555
      %745 = vmatpush1.bf16.msra.mxu0 %v554
      %746 = vmatprep.subr.bf16.mxu0 %v561
      %747 = vmatpush1.bf16.msra.mxu0 %v560
      %748 = vmatprep.subr.bf16.mxu0 %v567
      %749 = vmatpush1.bf16.msra.mxu0 %v566
      %750 = vmatprep.subr.bf16.mxu0 %v573
      %751 = vmatpush1.bf16.msra.mxu0 %v572
      %752 = vmatprep.subr.bf16.mxu0 %v579
      %753 = vmatpush1.bf16.msra.mxu0 %v578
      %754 = vmatprep.subr.bf16.mxu0 %v585
      %755 = vmatpush1.bf16.msra.mxu0 %v584
      %756 = vmatprep.subr.bf16.mxu0 %v591
      %757 = vmatpush1.bf16.msra.mxu0 %v590
      %758 = vmatprep.subr.bf16.mxu0 %v597
      %759 = vmatpush1.bf16.msra.mxu0 %v596
      %760 = vmatprep.subr.bf16.mxu0 %v603
      %761 = vmatpush1.bf16.msra.mxu0 %v602
      %762 = vmatprep.subr.bf16.mxu0 %v609
      %763 = vmatpush1.bf16.msra.mxu0 %v608
      %764 = vmatprep.subr.bf16.mxu0 %v615
      %765 = vmatpush1.bf16.msra.mxu0 %v614
      %766 = vmatprep.subr.bf16.mxu0 %v621
      %767 = vmatpush1.bf16.msra.mxu0 %v620
      %768 = vmatprep.mubr.bf16.mxu0 %v525
      %769 = vmatmul.mubr.bf16.gmra.mrb[0].mxu0 %v524
      %v770 = vpop.f32.mrb[0].mxu0
      %v771 = vadd.f32 %v643, %v770
      %v772 = vpop.f32.mrb[0].mxu0
      %v773 = vadd.f32 %v647, %v772
      %v774 = vpop.f32.mrb[0].mxu0
      %v775 = vpop.f32.mrb[0].mxu0
      %776 = vdwg.mxu0
      %v777 = vpack.c.bf16 %v689, %v689
      %v778 = vpack.c.bf16 %v730, %v730
      %779 = vmatprep.subr.bf16.mxu0 0
      %780 = vmatpush1.bf16.xpose.msra.mxu0 %v778
      %781 = vmatprep.subr.bf16.mxu0 0
      %782 = vmatpush1.bf16.xpose.msra.mxu0 0
      %783 = vmatprep.subr.bf16.mxu0 0
      %784 = vmatpush1.bf16.xpose.msra.mxu0 0
      %785 = vmatprep.subr.bf16.mxu0 0
      %786 = vmatpush1.bf16.xpose.msra.mxu0 0
      %787 = vmatprep.subr.bf16.mxu0 0
      %788 = vmatpush1.bf16.xpose.msra.mxu0 0
      %789 = vmatprep.subr.bf16.mxu0 0
      %790 = vmatpush1.bf16.xpose.msra.mxu0 0
      %791 = vmatprep.subr.bf16.mxu0 0
      %792 = vmatpush1.bf16.xpose.msra.mxu0 0
      %793 = vmatprep.subr.bf16.mxu0 0
      %794 = vmatpush1.bf16.xpose.msra.mxu0 0
      %795 = vmatprep.subr.bf16.mxu0 0
      %796 = vmatpush1.bf16.xpose.msra.mxu0 0
      %797 = vmatprep.subr.bf16.mxu0 0
      %798 = vmatpush1.bf16.xpose.msra.mxu0 0
      %799 = vmatprep.subr.bf16.mxu0 0
      %800 = vmatpush1.bf16.xpose.msra.mxu0 0
      %801 = vmatprep.subr.bf16.mxu0 0
      %802 = vmatpush1.bf16.xpose.msra.mxu0 0
      %803 = vmatprep.subr.bf16.mxu0 0
      %804 = vmatpush1.bf16.xpose.msra.mxu0 0
      %805 = vmatprep.subr.bf16.mxu0 0
      %806 = vmatpush1.bf16.xpose.msra.mxu0 0
      %807 = vmatprep.subr.bf16.mxu0 0
      %808 = vmatpush1.bf16.xpose.msra.mxu0 0
      %809 = vmatprep.subr.bf16.mxu0 0
      %810 = vmatpush1.bf16.xpose.msra.mxu0 0
      %811 = vmatprep.mubr.bf16.mxu0 0
      %812 = vmatmul.mubr.bf16.gmra.mrb[0].mxu0 %v777
      %v813 = vpop.f32.mrb[0].mxu0
      %v814 = vadd.f32 0.0, %v813
      %v815 = vpop.f32.mrb[0].mxu0
      %v816 = vpop.f32.mrb[0].mxu0
      %v817 = vpop.f32.mrb[0].mxu0
      %818 = vdwg.mxu0
      %v819 = vmul.f32 %v814, 0.088388346
      %vm820 = vcmask 36864
      %v821 = vsel %vm820, %v819, -inf
      %822 = vmax.xlane.f32.xlu0 %v821
      %v823 = vpop.xlane.xlu0 %822
      %v824 = vsub.f32 %v819, %v823
      %v825 = vmul.f32 %v824, 1.442695
      %v826 = vpow.pop %v825
      %v827 = vsel %vm820, %v826, 0.0
      %828 = vadd.xlane.f32.xlu0 %v827
      %v829 = vpop.xlane.xlu0 %828
      %v830 = vrcp.pop %v829
      %v831 = vmul.f32 %v826, %v830
      %v832 = vpack.c.bf16 %v831, %v831
      %v833 = vpack.c.bf16 %v771, %v771
      %vm834 = vcmask 39936
      %v836 = vsel %vm834, %v832, 0
      %vm838 = vcmask 1041408
      %vm839 = vcmask 1042432
      %v840 = vsel %vm838, 4294967295, 65535
      %v841 = vsel %vm839, %v840, 0
      %v843 = vand.u32 %v833, %v841
      %845 = vmatprep.subr.bf16.mxu0 0
      %846 = vmatpush1.bf16.msra.mxu0 %v843
      %847 = vmatprep.subr.bf16.mxu0 0
      %848 = vmatpush1.bf16.msra.mxu0 0
      %849 = vmatprep.subr.bf16.mxu0 0
      %850 = vmatpush1.bf16.msra.mxu0 0
      %851 = vmatprep.subr.bf16.mxu0 0
      %852 = vmatpush1.bf16.msra.mxu0 0
      %853 = vmatprep.subr.bf16.mxu0 0
      %854 = vmatpush1.bf16.msra.mxu0 0
      %855 = vmatprep.subr.bf16.mxu0 0
      %856 = vmatpush1.bf16.msra.mxu0 0
      %857 = vmatprep.subr.bf16.mxu0 0
      %858 = vmatpush1.bf16.msra.mxu0 0
      %859 = vmatprep.subr.bf16.mxu0 0
      %860 = vmatpush1.bf16.msra.mxu0 0
      %861 = vmatprep.subr.bf16.mxu0 0
      %862 = vmatpush1.bf16.msra.mxu0 0
      %863 = vmatprep.subr.bf16.mxu0 0
      %864 = vmatpush1.bf16.msra.mxu0 0
      %865 = vmatprep.subr.bf16.mxu0 0
      %866 = vmatpush1.bf16.msra.mxu0 0
      %867 = vmatprep.subr.bf16.mxu0 0
      %868 = vmatpush1.bf16.msra.mxu0 0
      %869 = vmatprep.subr.bf16.mxu0 0
      %870 = vmatpush1.bf16.msra.mxu0 0
      %871 = vmatprep.subr.bf16.mxu0 0
      %872 = vmatpush1.bf16.msra.mxu0 0
      %873 = vmatprep.subr.bf16.mxu0 0
      %874 = vmatpush1.bf16.msra.mxu0 0
      %875 = vmatprep.subr.bf16.mxu0 0
      %876 = vmatpush1.bf16.msra.mxu0 0
      %877 = vmatprep.mubr.bf16.mxu0 0
      %878 = vmatmul.mubr.bf16.gmra.mrb[0].mxu0 %v836
      %v879 = vpop.f32.mrb[0].mxu0
      %v880 = vadd.f32 0.0, %v879
      %v881 = vpop.f32.mrb[0].mxu0
      %v882 = vpop.f32.mrb[0].mxu0
      %v883 = vpop.f32.mrb[0].mxu0
      %884 = vdwg.mxu0
      %885 = vst [vmem:[#allocation2] sm:$0x1f] %v880
      %v886 = vpack.c.bf16 %v691, %v691
      %v887 = vpack.c.bf16 %v732, %v732
      %888 = vmatprep.subr.bf16.mxu0 0
      %889 = vmatpush1.bf16.xpose.msra.mxu0 %v887
      %890 = vmatprep.subr.bf16.mxu0 0
      %891 = vmatpush1.bf16.xpose.msra.mxu0 0
      %892 = vmatprep.subr.bf16.mxu0 0
      %893 = vmatpush1.bf16.xpose.msra.mxu0 0
      %894 = vmatprep.subr.bf16.mxu0 0
      %895 = vmatpush1.bf16.xpose.msra.mxu0 0
      %896 = vmatprep.subr.bf16.mxu0 0
      %897 = vmatpush1.bf16.xpose.msra.mxu0 0
      %898 = vmatprep.subr.bf16.mxu0 0
      %899 = vmatpush1.bf16.xpose.msra.mxu0 0
      %900 = vmatprep.subr.bf16.mxu0 0
      %901 = vmatpush1.bf16.xpose.msra.mxu0 0
      %902 = vmatprep.subr.bf16.mxu0 0
      %903 = vmatpush1.bf16.xpose.msra.mxu0 0
      %904 = vmatprep.subr.bf16.mxu0 0
      %905 = vmatpush1.bf16.xpose.msra.mxu0 0
      %906 = vmatprep.subr.bf16.mxu0 0
      %907 = vmatpush1.bf16.xpose.msra.mxu0 0
      %908 = vmatprep.subr.bf16.mxu0 0
      %909 = vmatpush1.bf16.xpose.msra.mxu0 0
      %910 = vmatprep.subr.bf16.mxu0 0
      %911 = vmatpush1.bf16.xpose.msra.mxu0 0
      %912 = vmatprep.subr.bf16.mxu0 0
      %913 = vmatpush1.bf16.xpose.msra.mxu0 0
      %914 = vmatprep.subr.bf16.mxu0 0
      %915 = vmatpush1.bf16.xpose.msra.mxu0 0
      %916 = vmatprep.subr.bf16.mxu0 0
      %917 = vmatpush1.bf16.xpose.msra.mxu0 0
      %918 = vmatprep.subr.bf16.mxu0 0
      %919 = vmatpush1.bf16.xpose.msra.mxu0 0
      %920 = vmatprep.mubr.bf16.mxu0 0
      %921 = vmatmul.mubr.bf16.gmra.mrb[0].mxu0 %v886
      %v922 = vpop.f32.mrb[0].mxu0
      %v923 = vadd.f32 0.0, %v922
      %v924 = vpop.f32.mrb[0].mxu0
      %v925 = vpop.f32.mrb[0].mxu0
      %v926 = vpop.f32.mrb[0].mxu0
      %927 = vdwg.mxu0
      %v928 = vmul.f32 %v923, 0.088388346
      %v929 = vsel %vm820, %v928, -inf
      %930 = vmax.xlane.f32.xlu0 %v929
      %v931 = vpop.xlane.xlu0 %930
      %v932 = vsub.f32 %v928, %v931
      %v933 = vmul.f32 %v932, 1.442695
      %v934 = vpow.pop %v933
      %v935 = vsel %vm820, %v934, 0.0
      %936 = vadd.xlane.f32.xlu0 %v935
      %v937 = vpop.xlane.xlu0 %936
      %v938 = vrcp.pop %v937
      %v939 = vmul.f32 %v934, %v938
      %v940 = vpack.c.bf16 %v939, %v939
      %v941 = vpack.c.bf16 %v773, %v773
      %v943 = vsel %vm834, %v940, 0
      %v946 = vand.u32 %v941, %v841
      %948 = vmatprep.subr.bf16.mxu0 0
      %949 = vmatpush1.bf16.msra.mxu0 %v946
      %950 = vmatprep.subr.bf16.mxu0 0
      %951 = vmatpush1.bf16.msra.mxu0 0
      %952 = vmatprep.subr.bf16.mxu0 0
      %953 = vmatpush1.bf16.msra.mxu0 0
      %954 = vmatprep.subr.bf16.mxu0 0
      %955 = vmatpush1.bf16.msra.mxu0 0
      %956 = vmatprep.subr.bf16.mxu0 0
      %957 = vmatpush1.bf16.msra.mxu0 0
      %958 = vmatprep.subr.bf16.mxu0 0
      %959 = vmatpush1.bf16.msra.mxu0 0
      %960 = vmatprep.subr.bf16.mxu0 0
      %961 = vmatpush1.bf16.msra.mxu0 0
      %962 = vmatprep.subr.bf16.mxu0 0
      %963 = vmatpush1.bf16.msra.mxu0 0
      %964 = vmatprep.subr.bf16.mxu0 0
      %965 = vmatpush1.bf16.msra.mxu0 0
      %966 = vmatprep.subr.bf16.mxu0 0
      %967 = vmatpush1.bf16.msra.mxu0 0
      %968 = vmatprep.subr.bf16.mxu0 0
      %969 = vmatpush1.bf16.msra.mxu0 0
      %970 = vmatprep.subr.bf16.mxu0 0
      %971 = vmatpush1.bf16.msra.mxu0 0
      %972 = vmatprep.subr.bf16.mxu0 0
      %973 = vmatpush1.bf16.msra.mxu0 0
      %974 = vmatprep.subr.bf16.mxu0 0
      %975 = vmatpush1.bf16.msra.mxu0 0
      %976 = vmatprep.subr.bf16.mxu0 0
      %977 = vmatpush1.bf16.msra.mxu0 0
      %978 = vmatprep.subr.bf16.mxu0 0
      %979 = vmatpush1.bf16.msra.mxu0 0
      %980 = vmatprep.mubr.bf16.mxu0 0
      %981 = vmatmul.mubr.bf16.gmra.mrb[0].mxu0 %v943
      %v982 = vpop.f32.mrb[0].mxu0
      %v983 = vadd.f32 0.0, %v982
      %v984 = vpop.f32.mrb[0].mxu0
      %v985 = vpop.f32.mrb[0].mxu0
      %v986 = vpop.f32.mrb[0].mxu0
      %987 = vdwg.mxu0
      %988 = vst [vmem:[#allocation2 + $0x8] sm:$0x1f] %v983
      %v989 = vld [vmem:[#allocation2] sm:$0x1f]
      %v990 = vld [vmem:[#allocation2 + $0x8] sm:$0x1f]
      %v991 = vld [vmem:[%s5] sm:$0xff]
      %v992 = vld [vmem:[%s5 + $0x8] sm:$0xff]
      %v993 = vld [vmem:[%s5 + $0x10] sm:$0xff]
      %v994 = vld [vmem:[%s5 + $0x18] sm:$0xff]
      %v995 = vld [vmem:[%s5 + $0x20] sm:$0xff]
      %v996 = vld [vmem:[%s5 + $0x28] sm:$0xff]
      %v997 = vld [vmem:[%s5 + $0x30] sm:$0xff]
      %v998 = vld [vmem:[%s5 + $0x38] sm:$0xff]
      %v999 = vld [vmem:[%s5 + $0x40] sm:$0xff]
      %v1000 = vld [vmem:[%s5 + $0x48] sm:$0xff]
      %v1001 = vld [vmem:[%s5 + $0x50] sm:$0xff]
      %v1002 = vld [vmem:[%s5 + $0x58] sm:$0xff]
      %v1003 = vld [vmem:[%s5 + $0x60] sm:$0xff]
      %v1004 = vld [vmem:[%s5 + $0x68] sm:$0xff]
      %v1005 = vld [vmem:[%s5 + $0x70] sm:$0xff]
      %v1006 = vld [vmem:[%s5 + $0x78] sm:$0xff]
      %v1007 = vld [vmem:[%s5 + $0x80] sm:$0xff]
      %v1008 = vld [vmem:[%s5 + $0x88] sm:$0xff]
      %v1009 = vld [vmem:[%s5 + $0x90] sm:$0xff]
      %v1010 = vld [vmem:[%s5 + $0x98] sm:$0xff]
      %v1011 = vld [vmem:[%s5 + $0xa0] sm:$0xff]
      %v1012 = vld [vmem:[%s5 + $0xa8] sm:$0xff]
      %v1013 = vld [vmem:[%s5 + $0xb0] sm:$0xff]
      %v1014 = vld [vmem:[%s5 + $0xb8] sm:$0xff]
      %v1015 = vld [vmem:[%s5 + $0xc0] sm:$0xff]
      %v1016 = vld [vmem:[%s5 + $0xc8] sm:$0xff]
      %v1017 = vld [vmem:[%s5 + $0xd0] sm:$0xff]
      %v1018 = vld [vmem:[%s5 + $0xd8] sm:$0xff]
      %v1019 = vld [vmem:[%s5 + $0xe0] sm:$0xff]
      %v1020 = vld [vmem:[%s5 + $0xe8] sm:$0xff]
      %v1021 = vld [vmem:[%s5 + $0xf0] sm:$0xff]
      %v1022 = vld [vmem:[%s5 + $0xf8] sm:$0xff]
      %v1023 = vld [vmem:[%s5 + $0x100] sm:$0xff]
      %v1024 = vld [vmem:[%s5 + $0x108] sm:$0xff]
      %v1025 = vld [vmem:[%s5 + $0x110] sm:$0xff]
      %v1026 = vld [vmem:[%s5 + $0x118] sm:$0xff]
      %v1027 = vld [vmem:[%s5 + $0x120] sm:$0xff]
      %v1028 = vld [vmem:[%s5 + $0x128] sm:$0xff]
      %v1029 = vld [vmem:[%s5 + $0x130] sm:$0xff]
      %v1030 = vld [vmem:[%s5 + $0x138] sm:$0xff]
      %v1031 = vld [vmem:[%s5 + $0x140] sm:$0xff]
      %v1032 = vld [vmem:[%s5 + $0x148] sm:$0xff]
      %v1033 = vld [vmem:[%s5 + $0x150] sm:$0xff]
      %v1034 = vld [vmem:[%s5 + $0x158] sm:$0xff]
      %v1035 = vld [vmem:[%s5 + $0x160] sm:$0xff]
      %v1036 = vld [vmem:[%s5 + $0x168] sm:$0xff]
      %v1037 = vld [vmem:[%s5 + $0x170] sm:$0xff]
      %v1038 = vld [vmem:[%s5 + $0x178] sm:$0xff]
      %v1039 = vld [vmem:[%s5 + $0x180] sm:$0xff]
      %v1040 = vld [vmem:[%s5 + $0x188] sm:$0xff]
      %v1041 = vld [vmem:[%s5 + $0x190] sm:$0xff]
      %v1042 = vld [vmem:[%s5 + $0x198] sm:$0xff]
      %v1043 = vld [vmem:[%s5 + $0x1a0] sm:$0xff]
      %v1044 = vld [vmem:[%s5 + $0x1a8] sm:$0xff]
      %v1045 = vld [vmem:[%s5 + $0x1b0] sm:$0xff]
      %v1046 = vld [vmem:[%s5 + $0x1b8] sm:$0xff]
      %v1047 = vld [vmem:[%s5 + $0x1c0] sm:$0xff]
      %v1048 = vld [vmem:[%s5 + $0x1c8] sm:$0xff]
      %v1049 = vld [vmem:[%s5 + $0x1d0] sm:$0xff]
      %v1050 = vld [vmem:[%s5 + $0x1d8] sm:$0xff]
      %v1051 = vld [vmem:[%s5 + $0x1e0] sm:$0xff]
      %v1052 = vld [vmem:[%s5 + $0x1e8] sm:$0xff]
      %v1053 = vld [vmem:[%s5 + $0x1f0] sm:$0xff]
      %v1054 = vld [vmem:[%s5 + $0x1f8] sm:$0xff]
      %v1055 = vpack.c.bf16 %v989, %v989
      %v1056 = vpack.c.bf16 %v990, %v990
      %v1057 = vpack.c.bf16 %v993, %v991
      %v1058 = vpack.c.bf16 %v994, %v992
      %v1059 = vpack.c.bf16 %v997, %v995
      %v1060 = vpack.c.bf16 %v998, %v996
      %v1061 = vpack.c.bf16 %v1001, %v999
      %v1062 = vpack.c.bf16 %v1002, %v1000
      %v1063 = vpack.c.bf16 %v1005, %v1003
      %v1064 = vpack.c.bf16 %v1006, %v1004
      %v1065 = vpack.c.bf16 %v1009, %v1007
      %v1066 = vpack.c.bf16 %v1010, %v1008
      %v1067 = vpack.c.bf16 %v1013, %v1011
      %v1068 = vpack.c.bf16 %v1014, %v1012
      %v1069 = vpack.c.bf16 %v1017, %v1015
      %v1070 = vpack.c.bf16 %v1018, %v1016
      %v1071 = vpack.c.bf16 %v1021, %v1019
      %v1072 = vpack.c.bf16 %v1022, %v1020
      %v1073 = vpack.c.bf16 %v1025, %v1023
      %v1074 = vpack.c.bf16 %v1026, %v1024
      %v1075 = vpack.c.bf16 %v1029, %v1027
      %v1076 = vpack.c.bf16 %v1030, %v1028
      %v1077 = vpack.c.bf16 %v1033, %v1031
      %v1078 = vpack.c.bf16 %v1034, %v1032
      %v1079 = vpack.c.bf16 %v1037, %v1035
      %v1080 = vpack.c.bf16 %v1038, %v1036
      %v1081 = vpack.c.bf16 %v1041, %v1039
      %v1082 = vpack.c.bf16 %v1042, %v1040
      %v1083 = vpack.c.bf16 %v1045, %v1043
      %v1084 = vpack.c.bf16 %v1046, %v1044
      %v1085 = vpack.c.bf16 %v1049, %v1047
      %v1086 = vpack.c.bf16 %v1050, %v1048
      %v1087 = vpack.c.bf16 %v1053, %v1051
      %v1088 = vpack.c.bf16 %v1054, %v1052
      %v1089 = vld [vmem:[%s6] sm:$0x3]
      %v1091 = vlaneseq
      %v1092 = vshrl.u32 %v1091, 7
      %v1093 = vsub.s32 0, %v1092
      %v1094 = vrot.slane %v1089, %v1093
      %v1095 = vlaneseq
      %v1096 = vshrl.u32 %v1095, 7
      %v1097 = vsub.s32 1, %v1096
      %v1098 = vrot.slane %v1089, %v1097
      %1101 = vmatprep.subr.bf16.mxu0 %v1058
      %1102 = vmatpush1.bf16.msra.mxu0 %v1057
      %1103 = vmatprep.subr.bf16.mxu0 %v1060
      %1104 = vmatpush1.bf16.msra.mxu0 %v1059
      %1105 = vmatprep.subr.bf16.mxu0 %v1062
      %1106 = vmatpush1.bf16.msra.mxu0 %v1061
      %1107 = vmatprep.subr.bf16.mxu0 %v1064
      %1108 = vmatpush1.bf16.msra.mxu0 %v1063
      %1109 = vmatprep.subr.bf16.mxu0 %v1066
      %1110 = vmatpush1.bf16.msra.mxu0 %v1065
      %1111 = vmatprep.subr.bf16.mxu0 %v1068
      %1112 = vmatpush1.bf16.msra.mxu0 %v1067
      %1113 = vmatprep.subr.bf16.mxu0 %v1070
      %1114 = vmatpush1.bf16.msra.mxu0 %v1069
      %1115 = vmatprep.subr.bf16.mxu0 %v1072
      %1116 = vmatpush1.bf16.msra.mxu0 %v1071
      %1117 = vmatprep.subr.bf16.mxu0 %v1074
      %1118 = vmatpush1.bf16.msra.mxu0 %v1073
      %1119 = vmatprep.subr.bf16.mxu0 %v1076
      %1120 = vmatpush1.bf16.msra.mxu0 %v1075
      %1121 = vmatprep.subr.bf16.mxu0 %v1078
      %1122 = vmatpush1.bf16.msra.mxu0 %v1077
      %1123 = vmatprep.subr.bf16.mxu0 %v1080
      %1124 = vmatpush1.bf16.msra.mxu0 %v1079
      %1125 = vmatprep.subr.bf16.mxu0 %v1082
      %1126 = vmatpush1.bf16.msra.mxu0 %v1081
      %1127 = vmatprep.subr.bf16.mxu0 %v1084
      %1128 = vmatpush1.bf16.msra.mxu0 %v1083
      %1129 = vmatprep.subr.bf16.mxu0 %v1086
      %1130 = vmatpush1.bf16.msra.mxu0 %v1085
      %1131 = vmatprep.subr.bf16.mxu0 %v1088
      %1132 = vmatpush1.bf16.msra.mxu0 %v1087
      %1133 = vmatprep.mubr.bf16.mxu0 %v1056
      %1134 = vmatmul.mubr.bf16.gmra.mrb[0].mxu0 %v1055
      %v1135 = vpop.f32.mrb[0].mxu0
      %v1136 = vadd.f32 %v1094, %v1135
      %v1137 = vpop.f32.mrb[0].mxu0
      %v1138 = vadd.f32 %v1098, %v1137
      %v1139 = vpop.f32.mrb[0].mxu0
      %v1140 = vpop.f32.mrb[0].mxu0
      %1141 = vdwg.mxu0
      %v1142 = vadd.f32 %v280, %v1136
      %v1143 = vadd.f32 %v281, %v1138
      %1144 = vst [vmem:[%s278] sm:$0x1f] %v1142
      %1145 = vst [vmem:[%s278 + $0x8] sm:$0x1f] %v1143
      %p1146 = scmp.lt.s32.totalorder %s18, 1
      %s1147 = scalar_select %p1146, %s18, 1
      %s1148 = smul.addr %s1147, 2
      %s1149 = smul.addr %s1148, 8
      %s1150 = scalar_lea.vmem %s7, %s1149
      // Predicated region
      $region49: #{clip_targeter_forward.8} parent=47 // pred_check
        %p1151 = pneg %p188
      $region50: #{clip_targeter_forward.8} parent=47 // pred_check_branch
        %1153 = sbr.rel (%p1151) target = $region52
      $region51: #{clip_targeter_forward.8} parent=47 // pred_region
        _
      $region52: #{clip_targeter_forward.8} parent=47 // pred_fallthru
        _
    $region48: #{clip_targeter_forward.8} parent=5 // pred_fallthru
      _
    %p1154 = scmp.le.s32.totalorder 2, %s13
    // Predicated region
    $region53: #{clip_targeter_forward.8} parent=5 // pred_check
      %p1155 = pneg %p1154
    $region54: #{clip_targeter_forward.8} parent=5 // pred_check_branch
      %1157 = sbr.rel (%p1155) target = $region56
    $region55: #{clip_targeter_forward.8} parent=5 // pred_region
      %s1158 = ssub.s32 %s13, 2
      // Predicated region
      $region57: #{clip_targeter_forward.8} parent=55 // pred_check
        %p1159 = pneg %p194
      $region58: #{clip_targeter_forward.8} parent=55 // pred_check_branch
        %1161 = sbr.rel (%p1159) target = $region60
      $region59: #{clip_targeter_forward.8} parent=55 // pred_region
        %p1162 = scmp.lt.s32.totalorder %s19, 1
        %s1163 = scalar_select %p1162, %s19, 1
        %s1164 = smul.addr %s1163, 2
        %s1165 = smul.addr %s1164, 8
        %s1166 = scalar_lea.vmem %s7, %s1165
      $region60: #{clip_targeter_forward.8} parent=55 // pred_fallthru
        _
    $region56: #{clip_targeter_forward.8} parent=5 // pred_fallthru
      _
  $region6: #{clip_targeter_forward.8} parent=0 // loop_footer
    %s17 = sadd.s32 1, %s13
  $region7: #{clip_targeter_forward.8} parent=0 // loop_footer_branch
    %12 = sbr.rel target = $region3
  $region8: #{clip_targeter_forward.8} parent=0 // loop_exit
    _

// kernel: clip_targeter_forward.6
$region0: #{clip_targeter_forward.6}
  #allocation0 [shape = 'u32[]', space=smem, size = 0x4, offset = 0x4, fixed_abs, tag = 'smem constant byte address 0x4 - core index']
  #allocation1 [shape = 'u32[144,128]{1,0:T(1,128)}', space=vmem, size = 0x12000, scoped, tag = 'internal scratch']
  #allocation2 [shape = 'f32[5,256]{1,0:T(8,128)}', space=vmem, size = 0x2000, scoped, tag = 'scratch operand']
  %s0 = inlined_call_operand.vmem [shape: f32[2,5,256], index: 0, kind: input, shape index: {}]
  %s1 = inlined_call_operand.hbm [shape: f32[1,256], index: 1, kind: input, shape index: {}]
  %s2 = inlined_call_operand.hbm [shape: f32[1,256], index: 2, kind: input, shape index: {}]
  %s3 = inlined_call_operand.hbm [shape: f32[256,768], index: 3, kind: input, shape index: {}]
  %s4 = inlined_call_operand.hbm [shape: f32[1,768], index: 4, kind: input, shape index: {}]
  %s5 = inlined_call_operand.hbm [shape: f32[256,256], index: 5, kind: input, shape index: {}]
  %s6 = inlined_call_operand.hbm [shape: f32[1,256], index: 6, kind: input, shape index: {}]
  %s7 = inlined_call_operand.vmem [shape: f32[2,5,256], index: 7, kind: output, shape index: {}]
  %s8 = sld [smem:[#allocation0]]
  $region85: #{clip_targeter_forward.6} parent=0
    _
  %s10 = ssub.s32 1, %s8
  %s11 = scalar_select 0, %s10, %s8
  $region1: #{clip_targeter_forward.6} parent=0
    #allocation3 [shape = 'u8[1024]{0}', space=vmem, size = 0x400, scoped, tag = 'input window, operand 1, single buffered']
    #allocation4 [shape = 's32[2]{0}', space=sflag, size = 0x8, scoped, tag = 'scoped memory for clip_targeter_forward.6']
    #allocation5 [shape = 'u8[1024]{0}', space=vmem, size = 0x400, scoped, tag = 'input window, operand 2, single buffered']
    #allocation6 [shape = 's32[1]{0}', space=sflag, size = 0x4, scoped, tag = 'scoped memory for clip_targeter_forward.6']
    #allocation7 [shape = 'u8[786432]{0}', space=vmem, size = 0xc0000, scoped, tag = 'input window, operand 3, single buffered']
    #allocation8 [shape = 'u8[3072]{0}', space=vmem, size = 0xc00, scoped, tag = 'input window, operand 4, single buffered']
    #allocation9 [shape = 's32[1]{0}', space=sflag, size = 0x4, scoped, tag = 'scoped memory for clip_targeter_forward.6']
    #allocation10 [shape = 'u8[262144]{0}', space=vmem, size = 0x40000, scoped, tag = 'input window, operand 5, single buffered']
    #allocation11 [shape = 'u8[1024]{0}', space=vmem, size = 0x400, scoped, tag = 'input window, operand 6, single buffered']
    #allocation12 [shape = 's32[1]{0}', space=sflag, size = 0x4, scoped, tag = 'scoped memory for clip_targeter_forward.6']
    %12 = vsyncpa [#allocation4], 0
    %13 = vsyncpa [#allocation6], 0
    %14 = vsyncpa [#allocation9], 0
    %15 = vsyncpa [#allocation12], 0
    loop: start=0, step=1, limit=4
    $region2: #{clip_targeter_forward.6} parent=1 // loop_pre_header
      _
    $region3: #{clip_targeter_forward.6} parent=1 // loop_header
      %s17 = sphi 0, %s21
      %p18 = scmp.ge.s32.totalorder %s17, 4
      %s27 = sphi 0, %s29
      %s30 = sphi 0, %s27
      %s31 = sphi 0, %s30
      %s47 = sphi 0, %s31
      %s51 = sphi 0, %s51
      %s53 = sphi 0, %s51
      %s54 = sphi 0, %s53
      %s68 = sphi 0, %s54
      %s72 = sphi 0, %s72
      %s74 = sphi 0, %s72
      %s75 = sphi 0, %s74
      %s89 = sphi 0, %s75
      %s93 = sphi 0, %s93
      %s95 = sphi 0, %s93
      %s96 = sphi 0, %s95
      %s110 = sphi 0, %s96
      %s114 = sphi 0, %s114
      %s116 = sphi 0, %s114
      %s117 = sphi 0, %s116
      %s131 = sphi 0, %s117
      %s135 = sphi 0, %s135
      %s137 = sphi 0, %s135
      %s138 = sphi 0, %s137
      %s152 = sphi 0, %s138
      %s156 = sphi 0, %s156
      %s158 = sphi 0, %s156
      %s159 = sphi 0, %s158
      %s173 = sphi 0, %s159
      %s179 = sphi 0, %s181
      %s182 = sphi 0, %s179
      %s183 = sphi 0, %s182
      %s199 = sphi 0, %s183
    $region4: #{clip_targeter_forward.6} parent=1 // loop_header_branch
      %20 = sbr.rel (%p18) target = $region8
    $region5: #{clip_targeter_forward.6} parent=1 // loop_body
      %s22 = ssub.s32 %s17, 1
      %s23 = ssub.s32 %s17, 2
      %s24 = sadd.s32 %s17, 1
      %s25 = ssub.s32 %s17, %s24
      %p26 = scmp.eq.s32.totalorder %s25, 0
      %s28 = sadd.s32 %s27, 1
      %s29 = scalar_select %p26, %s27, %s28
      %p32 = pneg %p26
      %p33 = scmp.eq.s32.totalorder %s17, 1
      %p34 = por %p32, %p33
      %p35 = scmp.ne.s32.totalorder %s27, %s30
      %p36 = scmp.eq.s32.totalorder %s17, 0
      %p37 = por %p35, %p36
      %p38 = scmp.ne.s32.totalorder %s27, %s30
      %p39 = scmp.eq.s32.totalorder %s22, 1
      %p40 = por %p38, %p39
      %p41 = scmp.ne.s32.totalorder %s30, %s31
      %p42 = scmp.eq.s32.totalorder %s22, 0
      %p43 = por %p41, %p42
      %p44 = scmp.ne.s32.totalorder %s30, %s31
      %p45 = scmp.eq.s32.totalorder %s23, 1
      %p46 = por %p44, %p45
      %p48 = scmp.ne.s32.totalorder %s31, %s47
      %p49 = scmp.eq.s32.totalorder %s23, 0
      %p50 = por %p48, %p49
      %s52 = sadd.s32 %s51, 1
      %p55 = scmp.eq.s32.totalorder %s17, 1
      %p56 = scmp.ne.s32.totalorder %s51, %s53
      %p57 = scmp.eq.s32.totalorder %s17, 0
      %p58 = por %p56, %p57
      %p59 = scmp.ne.s32.totalorder %s51, %s53
      %p60 = scmp.eq.s32.totalorder %s22, 1
      %p61 = por %p59, %p60
      %p62 = scmp.ne.s32.totalorder %s53, %s54
      %p63 = scmp.eq.s32.totalorder %s22, 0
      %p64 = por %p62, %p63
      %p65 = scmp.ne.s32.totalorder %s53, %s54
      %p66 = scmp.eq.s32.totalorder %s23, 1
      %p67 = por %p65, %p66
      %p69 = scmp.ne.s32.totalorder %s54, %s68
      %p70 = scmp.eq.s32.totalorder %s23, 0
      %p71 = por %p69, %p70
      %s73 = sadd.s32 %s72, 1
      %p76 = scmp.eq.s32.totalorder %s17, 1
      %p77 = scmp.ne.s32.totalorder %s72, %s74
      %p78 = scmp.eq.s32.totalorder %s17, 0
      %p79 = por %p77, %p78
      %p80 = scmp.ne.s32.totalorder %s72, %s74
      %p81 = scmp.eq.s32.totalorder %s22, 1
      %p82 = por %p80, %p81
      %p83 = scmp.ne.s32.totalorder %s74, %s75
      %p84 = scmp.eq.s32.totalorder %s22, 0
      %p85 = por %p83, %p84
      %p86 = scmp.ne.s32.totalorder %s74, %s75
      %p87 = scmp.eq.s32.totalorder %s23, 1
      %p88 = por %p86, %p87
      %p90 = scmp.ne.s32.totalorder %s75, %s89
      %p91 = scmp.eq.s32.totalorder %s23, 0
      %p92 = por %p90, %p91
      %s94 = sadd.s32 %s93, 1
      %p97 = scmp.eq.s32.totalorder %s17, 1
      %p98 = scmp.ne.s32.totalorder %s93, %s95
      %p99 = scmp.eq.s32.totalorder %s17, 0
      %p100 = por %p98, %p99
      %p101 = scmp.ne.s32.totalorder %s93, %s95
      %p102 = scmp.eq.s32.totalorder %s22, 1
      %p103 = por %p101, %p102
      %p104 = scmp.ne.s32.totalorder %s95, %s96
      %p105 = scmp.eq.s32.totalorder %s22, 0
      %p106 = por %p104, %p105
      %p107 = scmp.ne.s32.totalorder %s95, %s96
      %p108 = scmp.eq.s32.totalorder %s23, 1
      %p109 = por %p107, %p108
      %p111 = scmp.ne.s32.totalorder %s96, %s110
      %p112 = scmp.eq.s32.totalorder %s23, 0
      %p113 = por %p111, %p112
      %s115 = sadd.s32 %s114, 1
      %p118 = scmp.eq.s32.totalorder %s17, 1
      %p119 = scmp.ne.s32.totalorder %s114, %s116
      %p120 = scmp.eq.s32.totalorder %s17, 0
      %p121 = por %p119, %p120
      %p122 = scmp.ne.s32.totalorder %s114, %s116
      %p123 = scmp.eq.s32.totalorder %s22, 1
      %p124 = por %p122, %p123
      %p125 = scmp.ne.s32.totalorder %s116, %s117
      %p126 = scmp.eq.s32.totalorder %s22, 0
      %p127 = por %p125, %p126
      %p128 = scmp.ne.s32.totalorder %s116, %s117
      %p129 = scmp.eq.s32.totalorder %s23, 1
      %p130 = por %p128, %p129
      %p132 = scmp.ne.s32.totalorder %s117, %s131
      %p133 = scmp.eq.s32.totalorder %s23, 0
      %p134 = por %p132, %p133
      %s136 = sadd.s32 %s135, 1
      %p139 = scmp.eq.s32.totalorder %s17, 1
      %p140 = scmp.ne.s32.totalorder %s135, %s137
      %p141 = scmp.eq.s32.totalorder %s17, 0
      %p142 = por %p140, %p141
      %p143 = scmp.ne.s32.totalorder %s135, %s137
      %p144 = scmp.eq.s32.totalorder %s22, 1
      %p145 = por %p143, %p144
      %p146 = scmp.ne.s32.totalorder %s137, %s138
      %p147 = scmp.eq.s32.totalorder %s22, 0
      %p148 = por %p146, %p147
      %p149 = scmp.ne.s32.totalorder %s137, %s138
      %p150 = scmp.eq.s32.totalorder %s23, 1
      %p151 = por %p149, %p150
      %p153 = scmp.ne.s32.totalorder %s138, %s152
      %p154 = scmp.eq.s32.totalorder %s23, 0
      %p155 = por %p153, %p154
      %s157 = sadd.s32 %s156, 1
      %p160 = scmp.eq.s32.totalorder %s17, 1
      %p161 = scmp.ne.s32.totalorder %s156, %s158
      %p162 = scmp.eq.s32.totalorder %s17, 0
      %p163 = por %p161, %p162
      %p164 = scmp.ne.s32.totalorder %s156, %s158
      %p165 = scmp.eq.s32.totalorder %s22, 1
      %p166 = por %p164, %p165
      %p167 = scmp.ne.s32.totalorder %s158, %s159
      %p168 = scmp.eq.s32.totalorder %s22, 0
      %p169 = por %p167, %p168
      %p170 = scmp.ne.s32.totalorder %s158, %s159
      %p171 = scmp.eq.s32.totalorder %s23, 1
      %p172 = por %p170, %p171
      %p174 = scmp.ne.s32.totalorder %s159, %s173
      %p175 = scmp.eq.s32.totalorder %s23, 0
      %p176 = por %p174, %p175
      %s177 = ssub.s32 %s17, %s24
      %p178 = scmp.eq.s32.totalorder %s177, 0
      %s180 = sadd.s32 %s179, 1
      %s181 = scalar_select %p178, %s179, %s180
      %p184 = pneg %p178
      %p185 = scmp.eq.s32.totalorder %s17, 1
      %p186 = por %p184, %p185
      %p187 = scmp.ne.s32.totalorder %s179, %s182
      %p188 = scmp.eq.s32.totalorder %s17, 0
      %p189 = por %p187, %p188
      %p190 = scmp.ne.s32.totalorder %s179, %s182
      %p191 = scmp.eq.s32.totalorder %s22, 1
      %p192 = por %p190, %p191
      %p193 = scmp.ne.s32.totalorder %s182, %s183
      %p194 = scmp.eq.s32.totalorder %s22, 0
      %p195 = por %p193, %p194
      %p196 = scmp.ne.s32.totalorder %s182, %s183
      %p197 = scmp.eq.s32.totalorder %s23, 1
      %p198 = por %p196, %p197
      %p200 = scmp.ne.s32.totalorder %s183, %s199
      %p201 = scmp.eq.s32.totalorder %s23, 0
      %p202 = por %p200, %p201
      %p203 = scmp.le.s32.totalorder 1, %s17
      %p204 = scmp.lt.s32.totalorder %s17, 3
      %p205 = pnand %p203, %p204
      %p206 = pneg %p205
      // Predicated region
      $region9: #{clip_targeter_forward.6} parent=5 // pred_check
        _
      $region10: #{clip_targeter_forward.6} parent=5 // pred_check_branch
        %208 = sbr.rel (%p205) target = $region12
      $region11: #{clip_targeter_forward.6} parent=5 // pred_region
        %s209 = ssub.s32 %s17, 1
        // Predicated region
        $region13: #{clip_targeter_forward.6} parent=11 // pred_check
          %p210 = pneg %p64
        $region14: #{clip_targeter_forward.6} parent=11 // pred_check_branch
          %212 = sbr.rel (%p210) target = $region16
        $region15: #{clip_targeter_forward.6} parent=11 // pred_region
          %s214 = ssub.s32 32, 32
          %215 = vsyncadd [#allocation4], %s214
          %s217 = sshll.u32 [#allocation3], 4
          %s218 = int_to_ptr.vmem [resolvable:$true] %s217
          %220 = dma.hbm_to_vmem [thread:$0]  %s1, 32, %s218, [#allocation4]
        $region16: #{clip_targeter_forward.6} parent=11 // pred_fallthru
          _
        // Predicated region
        $region17: #{clip_targeter_forward.6} parent=11 // pred_check
          %p221 = pneg %p85
        $region18: #{clip_targeter_forward.6} parent=11 // pred_check_branch
          %223 = sbr.rel (%p221) target = $region20
        $region19: #{clip_targeter_forward.6} parent=11 // pred_region
          %s225 = ssub.s32 32, 32
          %226 = vsyncadd [#allocation6], %s225
          %s228 = sshll.u32 [#allocation5], 4
          %s229 = int_to_ptr.vmem [resolvable:$true] %s228
          %231 = dma.hbm_to_vmem [thread:$0]  %s2, 32, %s229, [#allocation6]
        $region20: #{clip_targeter_forward.6} parent=11 // pred_fallthru
          _
        // Predicated region
        $region21: #{clip_targeter_forward.6} parent=11 // pred_check
          %p232 = pneg %p106
        $region22: #{clip_targeter_forward.6} parent=11 // pred_check_branch
          %234 = sbr.rel (%p232) target = $region24
        $region23: #{clip_targeter_forward.6} parent=11 // pred_region
          %s236 = ssub.s32 24576, 24576
          %237 = vsyncadd [#allocation6], %s236
          %s238 = sshll.u32 [#allocation7], 4
          %s239 = int_to_ptr.vmem [resolvable:$true] %s238
          %244 = dma.hbm_to_vmem [thread:$0]  %s3, 24576, %s239, [#allocation6], 768, 768, 48
        $region24: #{clip_targeter_forward.6} parent=11 // pred_fallthru
          _
        // Predicated region
        $region25: #{clip_targeter_forward.6} parent=11 // pred_check
          %p245 = pneg %p127
        $region26: #{clip_targeter_forward.6} parent=11 // pred_check_branch
          %247 = sbr.rel (%p245) target = $region28
        $region27: #{clip_targeter_forward.6} parent=11 // pred_region
          %s249 = ssub.s32 96, 96
          %250 = vsyncadd [#allocation9], %s249
          %s252 = sshll.u32 [#allocation8], 4
          %s253 = int_to_ptr.vmem [resolvable:$true] %s252
          %255 = dma.hbm_to_vmem [thread:$0]  %s4, 96, %s253, [#allocation9]
        $region28: #{clip_targeter_forward.6} parent=11 // pred_fallthru
          _
        // Predicated region
        $region29: #{clip_targeter_forward.6} parent=11 // pred_check
          %p256 = pneg %p148
        $region30: #{clip_targeter_forward.6} parent=11 // pred_check_branch
          %258 = sbr.rel (%p256) target = $region32
        $region31: #{clip_targeter_forward.6} parent=11 // pred_region
          %s260 = ssub.s32 8192, 8192
          %261 = vsyncadd [#allocation9], %s260
          %s262 = sshll.u32 [#allocation10], 4
          %s263 = int_to_ptr.vmem [resolvable:$true] %s262
          %268 = dma.hbm_to_vmem [thread:$0]  %s5, 8192, %s263, [#allocation9], 256, 256, 16
        $region32: #{clip_targeter_forward.6} parent=11 // pred_fallthru
          _
        // Predicated region
        $region33: #{clip_targeter_forward.6} parent=11 // pred_check
          %p269 = pneg %p169
        $region34: #{clip_targeter_forward.6} parent=11 // pred_check_branch
          %271 = sbr.rel (%p269) target = $region36
        $region35: #{clip_targeter_forward.6} parent=11 // pred_region
          %s273 = ssub.s32 32, 32
          %274 = vsyncadd [#allocation12], %s273
          %s276 = sshll.u32 [#allocation11], 4
          %s277 = int_to_ptr.vmem [resolvable:$true] %s276
          %279 = dma.hbm_to_vmem [thread:$0]  %s6, 32, %s277, [#allocation12]
        $region36: #{clip_targeter_forward.6} parent=11 // pred_fallthru
          _
      $region12: #{clip_targeter_forward.6} parent=5 // pred_fallthru
        _
      %p280 = scmp.lt.s32.totalorder %s17, 2
      // Predicated region
      $region37: #{clip_targeter_forward.6} parent=5 // pred_check
        %p281 = pneg %p280
      $region38: #{clip_targeter_forward.6} parent=5 // pred_check_branch
        %283 = sbr.rel (%p281) target = $region40
      $region39: #{clip_targeter_forward.6} parent=5 // pred_region
        // Predicated region
        $region41: #{clip_targeter_forward.6} parent=39 // pred_check
          %p284 = pneg %p37
        $region42: #{clip_targeter_forward.6} parent=39 // pred_check_branch
          %286 = sbr.rel (%p284) target = $region44
        $region43: #{clip_targeter_forward.6} parent=39 // pred_region
          %p287 = scmp.lt.s32.totalorder %s17, 1
          %s288 = scalar_select %p287, %s17, 1
          %s289 = smul.addr %s288, 2
          %s290 = smul.addr %s289, 8
          %s291 = scalar_lea.vmem %s0, %s290
        $region44: #{clip_targeter_forward.6} parent=39 // pred_fallthru
          _
      $region40: #{clip_targeter_forward.6} parent=5 // pred_fallthru
        _
      %p292 = scmp.le.s32.totalorder 1, %s17
      %p293 = scmp.lt.s32.totalorder %s17, 3
      %p294 = pnand %p292, %p293
      %p295 = pneg %p294
      // Predicated region
      $region45: #{clip_targeter_forward.6} parent=5 // pred_check
        _
      $region46: #{clip_targeter_forward.6} parent=5 // pred_check_branch
        %297 = sbr.rel (%p294) target = $region48
      $region47: #{clip_targeter_forward.6} parent=5 // pred_region
        %s298 = ssub.s32 %s17, 1
        // Predicated region
        $region49: #{clip_targeter_forward.6} parent=47 // pred_check
          %p299 = pneg %p64
        $region50: #{clip_targeter_forward.6} parent=47 // pred_check_branch
          %301 = sbr.rel (%p299) target = $region52
        $region51: #{clip_targeter_forward.6} parent=47 // pred_region
          %302 = dma.done [#allocation4], 32
        $region52: #{clip_targeter_forward.6} parent=47 // pred_fallthru
          _
        // Predicated region
        $region53: #{clip_targeter_forward.6} parent=47 // pred_check
          %p303 = pneg %p85
        $region54: #{clip_targeter_forward.6} parent=47 // pred_check_branch
          %305 = sbr.rel (%p303) target = $region56
        $region55: #{clip_targeter_forward.6} parent=47 // pred_region
          %306 = dma.done [#allocation6], 32
        $region56: #{clip_targeter_forward.6} parent=47 // pred_fallthru
          _
        // Predicated region
        $region57: #{clip_targeter_forward.6} parent=47 // pred_check
          %p307 = pneg %p106
        $region58: #{clip_targeter_forward.6} parent=47 // pred_check_branch
          %309 = sbr.rel (%p307) target = $region60
        $region59: #{clip_targeter_forward.6} parent=47 // pred_region
          %310 = dma.done [#allocation6], 24576
        $region60: #{clip_targeter_forward.6} parent=47 // pred_fallthru
          _
        // Predicated region
        $region61: #{clip_targeter_forward.6} parent=47 // pred_check
          %p311 = pneg %p127
        $region62: #{clip_targeter_forward.6} parent=47 // pred_check_branch
          %313 = sbr.rel (%p311) target = $region64
        $region63: #{clip_targeter_forward.6} parent=47 // pred_region
          %314 = dma.done [#allocation9], 96
        $region64: #{clip_targeter_forward.6} parent=47 // pred_fallthru
          _
        // Predicated region
        $region65: #{clip_targeter_forward.6} parent=47 // pred_check
          %p315 = pneg %p148
        $region66: #{clip_targeter_forward.6} parent=47 // pred_check_branch
          %317 = sbr.rel (%p315) target = $region68
        $region67: #{clip_targeter_forward.6} parent=47 // pred_region
          %318 = dma.done [#allocation9], 8192
        $region68: #{clip_targeter_forward.6} parent=47 // pred_fallthru
          _
        // Predicated region
        $region69: #{clip_targeter_forward.6} parent=47 // pred_check
          %p319 = pneg %p169
        $region70: #{clip_targeter_forward.6} parent=47 // pred_check_branch
          %321 = sbr.rel (%p319) target = $region72
        $region71: #{clip_targeter_forward.6} parent=47 // pred_region
          %322 = dma.done [#allocation12], 32
        $region72: #{clip_targeter_forward.6} parent=47 // pred_fallthru
          _
        %p323 = scmp.lt.s32.totalorder %s22, 1
        %s324 = scalar_select %p323, %s22, 1
        %s325 = smul.addr %s324, 2
        %s326 = smul.addr %s325, 8
        %s327 = scalar_lea.vmem %s0, %s326
        %p328 = pneg %p43
        %p329 = pneg %p40
        %p330 = pneg %p64
        %p331 = pneg %p61
        %p332 = pneg %p85
        %p333 = pneg %p82
        %p334 = pneg %p106
        %p335 = pneg %p103
        %p336 = pneg %p127
        %p337 = pneg %p124
        %p338 = pneg %p148
        %p339 = pneg %p145
        %p340 = pneg %p169
        %p341 = pneg %p166
        %p342 = pneg %p195
        %p343 = pneg %p192
        %p344 = scmp.lt.s32.totalorder %s22, 1
        %s345 = scalar_select %p344, %s22, 1
        %s346 = smul.addr %s345, 2
        %s347 = smul.addr %s346, 8
        %s348 = scalar_lea.vmem %s7, %s347
        %p349 = scmp.lt.s32.totalorder %s22, 1
        %s350 = scalar_select %p349, %s22, 1
        %s351 = smul.addr %s350, 2
        %s352 = smul.addr %s351, 8
        %s353 = scalar_lea.vmem %s0, %s352
        %p354 = scmp.lt.s32.totalorder %s22, 1
        %s355 = scalar_select %p354, %s22, 1
        %s356 = smul.addr %s355, 2
        %s357 = smul.addr %s356, 8
        %s358 = scalar_lea.vmem %s7, %s357
        %v360 = vld [vmem:[%s353] sm:$0x1f]
        %v361 = vld [vmem:[%s353 + $0x8] sm:$0x1f]
        %v362 = vld [vmem:[#allocation3] sm:$0x3]
        %v363 = vld [vmem:[#allocation5] sm:$0x3]
        %vm364 = vcmask 1044480
        %v365 = vsel %vm364, %v360, 0.0
        %v366 = vsel %vm364, %v361, 0.0
        %v367 = vadd.f32 %v365, %v366
        %368 = vadd.xlane.f32.xlu0 %v367
        %v369 = vpop.xlane.xlu0 %368
        %v370 = vrcp.pop 256.0
        %v371 = vmul.f32 %v369, %v370
        %v372 = vsub.f32 %v360, %v371
        %v373 = vsub.f32 %v361, %v371
        %v374 = vmul.f32 %v372, %v372
        %v375 = vmul.f32 %v373, %v373
        %v376 = vsel %vm364, %v374, 0.0
        %v377 = vsel %vm364, %v375, 0.0
        %v378 = vadd.f32 %v376, %v377
        %379 = vadd.xlane.f32.xlu0 %v378
        %v380 = vpop.xlane.xlu0 %379
        %v381 = vmul.f32 %v380, %v370
        %v382 = vadd.f32 %v381, 1e-05
        %v383 = vrsqrt.pop %v382
        %v384 = vmul.f32 %v372, %v383
        %v385 = vmul.f32 %v373, %v383
        %v387 = vlaneseq
        %v388 = vshrl.u32 %v387, 7
        %v389 = vsub.s32 0, %v388
        %v390 = vrot.slane %v362, %v389
        %v391 = vlaneseq
        %v392 = vshrl.u32 %v391, 7
        %v393 = vsub.s32 1, %v392
        %v394 = vrot.slane %v362, %v393
        %v397 = vmul.f32 %v384, %v390
        %v398 = vmul.f32 %v385, %v394
        %v400 = vlaneseq
        %v401 = vshrl.u32 %v400, 7
        %v402 = vsub.s32 0, %v401
        %v403 = vrot.slane %v363, %v402
        %v404 = vlaneseq
        %v405 = vshrl.u32 %v404, 7
        %v406 = vsub.s32 1, %v405
        %v407 = vrot.slane %v363, %v406
        %v410 = vadd.f32 %v397, %v403
        %v411 = vadd.f32 %v398, %v407
        %v412 = vld [vmem:[#allocation7] sm:$0xff]
        %v413 = vld [vmem:[#allocation7 + $0x8] sm:$0xff]
        %v414 = vld [vmem:[#allocation7 + $0x10] sm:$0xff]
        %v415 = vld [vmem:[#allocation7 + $0x18] sm:$0xff]
        %v416 = vld [vmem:[#allocation7 + $0x20] sm:$0xff]
        %v417 = vld [vmem:[#allocation7 + $0x28] sm:$0xff]
        %v418 = vld [vmem:[#allocation7 + $0x30] sm:$0xff]
        %v419 = vld [vmem:[#allocation7 + $0x38] sm:$0xff]
        %v420 = vld [vmem:[#allocation7 + $0x40] sm:$0xff]
        %v421 = vld [vmem:[#allocation7 + $0x48] sm:$0xff]
        %v422 = vld [vmem:[#allocation7 + $0x50] sm:$0xff]
        %v423 = vld [vmem:[#allocation7 + $0x58] sm:$0xff]
        %v424 = vld [vmem:[#allocation7 + $0x60] sm:$0xff]
        %v425 = vld [vmem:[#allocation7 + $0x68] sm:$0xff]
        %v426 = vld [vmem:[#allocation7 + $0x70] sm:$0xff]
        %v427 = vld [vmem:[#allocation7 + $0x78] sm:$0xff]
        %v428 = vld [vmem:[#allocation7 + $0x80] sm:$0xff]
        %v429 = vld [vmem:[#allocation7 + $0x88] sm:$0xff]
        %v430 = vld [vmem:[#allocation7 + $0x90] sm:$0xff]
        %v431 = vld [vmem:[#allocation7 + $0x98] sm:$0xff]
        %v432 = vld [vmem:[#allocation7 + $0xa0] sm:$0xff]
        %v433 = vld [vmem:[#allocation7 + $0xa8] sm:$0xff]
        %v434 = vld [vmem:[#allocation7 + $0xb0] sm:$0xff]
        %v435 = vld [vmem:[#allocation7 + $0xb8] sm:$0xff]
        %v436 = vld [vmem:[#allocation7 + $0xc0] sm:$0xff]
        %v437 = vld [vmem:[#allocation7 + $0xc8] sm:$0xff]
        %v438 = vld [vmem:[#allocation7 + $0xd0] sm:$0xff]
        %v439 = vld [vmem:[#allocation7 + $0xd8] sm:$0xff]
        %v440 = vld [vmem:[#allocation7 + $0xe0] sm:$0xff]
        %v441 = vld [vmem:[#allocation7 + $0xe8] sm:$0xff]
        %v442 = vld [vmem:[#allocation7 + $0xf0] sm:$0xff]
        %v443 = vld [vmem:[#allocation7 + $0xf8] sm:$0xff]
        %v444 = vld [vmem:[#allocation7 + $0x100] sm:$0xff]
        %v445 = vld [vmem:[#allocation7 + $0x108] sm:$0xff]
        %v446 = vld [vmem:[#allocation7 + $0x110] sm:$0xff]
        %v447 = vld [vmem:[#allocation7 + $0x118] sm:$0xff]
        %v448 = vld [vmem:[#allocation7 + $0x120] sm:$0xff]
        %v449 = vld [vmem:[#allocation7 + $0x128] sm:$0xff]
        %v450 = vld [vmem:[#allocation7 + $0x130] sm:$0xff]
        %v451 = vld [vmem:[#allocation7 + $0x138] sm:$0xff]
        %v452 = vld [vmem:[#allocation7 + $0x140] sm:$0xff]
        %v453 = vld [vmem:[#allocation7 + $0x148] sm:$0xff]
        %v454 = vld [vmem:[#allocation7 + $0x150] sm:$0xff]
        %v455 = vld [vmem:[#allocation7 + $0x158] sm:$0xff]
        %v456 = vld [vmem:[#allocation7 + $0x160] sm:$0xff]
        %v457 = vld [vmem:[#allocation7 + $0x168] sm:$0xff]
        %v458 = vld [vmem:[#allocation7 + $0x170] sm:$0xff]
        %v459 = vld [vmem:[#allocation7 + $0x178] sm:$0xff]
        %v460 = vld [vmem:[#allocation7 + $0x180] sm:$0xff]
        %v461 = vld [vmem:[#allocation7 + $0x188] sm:$0xff]
        %v462 = vld [vmem:[#allocation7 + $0x190] sm:$0xff]
        %v463 = vld [vmem:[#allocation7 + $0x198] sm:$0xff]
        %v464 = vld [vmem:[#allocation7 + $0x1a0] sm:$0xff]
        %v465 = vld [vmem:[#allocation7 + $0x1a8] sm:$0xff]
        %v466 = vld [vmem:[#allocation7 + $0x1b0] sm:$0xff]
        %v467 = vld [vmem:[#allocation7 + $0x1b8] sm:$0xff]
        %v468 = vld [vmem:[#allocation7 + $0x1c0] sm:$0xff]
        %v469 = vld [vmem:[#allocation7 + $0x1c8] sm:$0xff]
        %v470 = vld [vmem:[#allocation7 + $0x1d0] sm:$0xff]
        %v471 = vld [vmem:[#allocation7 + $0x1d8] sm:$0xff]
        %v472 = vld [vmem:[#allocation7 + $0x1e0] sm:$0xff]
        %v473 = vld [vmem:[#allocation7 + $0x1e8] sm:$0xff]
        %v474 = vld [vmem:[#allocation7 + $0x1f0] sm:$0xff]
        %v475 = vld [vmem:[#allocation7 + $0x1f8] sm:$0xff]
        %v476 = vld [vmem:[#allocation7 + $0x200] sm:$0xff]
        %v477 = vld [vmem:[#allocation7 + $0x208] sm:$0xff]
        %v478 = vld [vmem:[#allocation7 + $0x210] sm:$0xff]
        %v479 = vld [vmem:[#allocation7 + $0x218] sm:$0xff]
        %v480 = vld [vmem:[#allocation7 + $0x220] sm:$0xff]
        %v481 = vld [vmem:[#allocation7 + $0x228] sm:$0xff]
        %v482 = vld [vmem:[#allocation7 + $0x230] sm:$0xff]
        %v483 = vld [vmem:[#allocation7 + $0x238] sm:$0xff]
        %v484 = vld [vmem:[#allocation7 + $0x240] sm:$0xff]
        %v485 = vld [vmem:[#allocation7 + $0x248] sm:$0xff]
        %v486 = vld [vmem:[#allocation7 + $0x250] sm:$0xff]
        %v487 = vld [vmem:[#allocation7 + $0x258] sm:$0xff]
        %v488 = vld [vmem:[#allocation7 + $0x260] sm:$0xff]
        %v489 = vld [vmem:[#allocation7 + $0x268] sm:$0xff]
        %v490 = vld [vmem:[#allocation7 + $0x270] sm:$0xff]
        %v491 = vld [vmem:[#allocation7 + $0x278] sm:$0xff]
        %v492 = vld [vmem:[#allocation7 + $0x280] sm:$0xff]
        %v493 = vld [vmem:[#allocation7 + $0x288] sm:$0xff]
        %v494 = vld [vmem:[#allocation7 + $0x290] sm:$0xff]
        %v495 = vld [vmem:[#allocation7 + $0x298] sm:$0xff]
        %v496 = vld [vmem:[#allocation7 + $0x2a0] sm:$0xff]
        %v497 = vld [vmem:[#allocation7 + $0x2a8] sm:$0xff]
        %v498 = vld [vmem:[#allocation7 + $0x2b0] sm:$0xff]
        %v499 = vld [vmem:[#allocation7 + $0x2b8] sm:$0xff]
        %v500 = vld [vmem:[#allocation7 + $0x2c0] sm:$0xff]
        %v501 = vld [vmem:[#allocation7 + $0x2c8] sm:$0xff]
        %v502 = vld [vmem:[#allocation7 + $0x2d0] sm:$0xff]
        %v503 = vld [vmem:[#allocation7 + $0x2d8] sm:$0xff]
        %v504 = vld [vmem:[#allocation7 + $0x2e0] sm:$0xff]
        %v505 = vld [vmem:[#allocation7 + $0x2e8] sm:$0xff]
        %v506 = vld [vmem:[#allocation7 + $0x2f0] sm:$0xff]
        %v507 = vld [vmem:[#allocation7 + $0x2f8] sm:$0xff]
        %v508 = vld [vmem:[#allocation7 + $0x300] sm:$0xff]
        %v509 = vld [vmem:[#allocation7 + $0x308] sm:$0xff]
        %v510 = vld [vmem:[#allocation7 + $0x310] sm:$0xff]
        %v511 = vld [vmem:[#allocation7 + $0x318] sm:$0xff]
        %v512 = vld [vmem:[#allocation7 + $0x320] sm:$0xff]
        %v513 = vld [vmem:[#allocation7 + $0x328] sm:$0xff]
        %v514 = vld [vmem:[#allocation7 + $0x330] sm:$0xff]
        %v515 = vld [vmem:[#allocation7 + $0x338] sm:$0xff]
        %v516 = vld [vmem:[#allocation7 + $0x340] sm:$0xff]
        %v517 = vld [vmem:[#allocation7 + $0x348] sm:$0xff]
        %v518 = vld [vmem:[#allocation7 + $0x350] sm:$0xff]
        %v519 = vld [vmem:[#allocation7 + $0x358] sm:$0xff]
        %v520 = vld [vmem:[#allocation7 + $0x360] sm:$0xff]
        %v521 = vld [vmem:[#allocation7 + $0x368] sm:$0xff]
        %v522 = vld [vmem:[#allocation7 + $0x370] sm:$0xff]
        %v523 = vld [vmem:[#allocation7 + $0x378] sm:$0xff]
        %v524 = vld [vmem:[#allocation7 + $0x380] sm:$0xff]
        %v525 = vld [vmem:[#allocation7 + $0x388] sm:$0xff]
        %v526 = vld [vmem:[#allocation7 + $0x390] sm:$0xff]
        %v527 = vld [vmem:[#allocation7 + $0x398] sm:$0xff]
        %v528 = vld [vmem:[#allocation7 + $0x3a0] sm:$0xff]
        %v529 = vld [vmem:[#allocation7 + $0x3a8] sm:$0xff]
        %v530 = vld [vmem:[#allocation7 + $0x3b0] sm:$0xff]
        %v531 = vld [vmem:[#allocation7 + $0x3b8] sm:$0xff]
        %v532 = vld [vmem:[#allocation7 + $0x3c0] sm:$0xff]
        %v533 = vld [vmem:[#allocation7 + $0x3c8] sm:$0xff]
        %v534 = vld [vmem:[#allocation7 + $0x3d0] sm:$0xff]
        %v535 = vld [vmem:[#allocation7 + $0x3d8] sm:$0xff]
        %v536 = vld [vmem:[#allocation7 + $0x3e0] sm:$0xff]
        %v537 = vld [vmem:[#allocation7 + $0x3e8] sm:$0xff]
        %v538 = vld [vmem:[#allocation7 + $0x3f0] sm:$0xff]
        %v539 = vld [vmem:[#allocation7 + $0x3f8] sm:$0xff]
        %v540 = vld [vmem:[#allocation7 + $0x400] sm:$0xff]
        %v541 = vld [vmem:[#allocation7 + $0x408] sm:$0xff]
        %v542 = vld [vmem:[#allocation7 + $0x410] sm:$0xff]
        %v543 = vld [vmem:[#allocation7 + $0x418] sm:$0xff]
        %v544 = vld [vmem:[#allocation7 + $0x420] sm:$0xff]
        %v545 = vld [vmem:[#allocation7 + $0x428] sm:$0xff]
        %v546 = vld [vmem:[#allocation7 + $0x430] sm:$0xff]
        %v547 = vld [vmem:[#allocation7 + $0x438] sm:$0xff]
        %v548 = vld [vmem:[#allocation7 + $0x440] sm:$0xff]
        %v549 = vld [vmem:[#allocation7 + $0x448] sm:$0xff]
        %v550 = vld [vmem:[#allocation7 + $0x450] sm:$0xff]
        %v551 = vld [vmem:[#allocation7 + $0x458] sm:$0xff]
        %v552 = vld [vmem:[#allocation7 + $0x460] sm:$0xff]
        %v553 = vld [vmem:[#allocation7 + $0x468] sm:$0xff]
        %v554 = vld [vmem:[#allocation7 + $0x470] sm:$0xff]
        %v555 = vld [vmem:[#allocation7 + $0x478] sm:$0xff]
        %v556 = vld [vmem:[#allocation7 + $0x480] sm:$0xff]
        %v557 = vld [vmem:[#allocation7 + $0x488] sm:$0xff]
        %v558 = vld [vmem:[#allocation7 + $0x490] sm:$0xff]
        %v559 = vld [vmem:[#allocation7 + $0x498] sm:$0xff]
        %v560 = vld [vmem:[#allocation7 + $0x4a0] sm:$0xff]
        %v561 = vld [vmem:[#allocation7 + $0x4a8] sm:$0xff]
        %v562 = vld [vmem:[#allocation7 + $0x4b0] sm:$0xff]
        %v563 = vld [vmem:[#allocation7 + $0x4b8] sm:$0xff]
        %v564 = vld [vmem:[#allocation7 + $0x4c0] sm:$0xff]
        %v565 = vld [vmem:[#allocation7 + $0x4c8] sm:$0xff]
        %v566 = vld [vmem:[#allocation7 + $0x4d0] sm:$0xff]
        %v567 = vld [vmem:[#allocation7 + $0x4d8] sm:$0xff]
        %v568 = vld [vmem:[#allocation7 + $0x4e0] sm:$0xff]
        %v569 = vld [vmem:[#allocation7 + $0x4e8] sm:$0xff]
        %v570 = vld [vmem:[#allocation7 + $0x4f0] sm:$0xff]
        %v571 = vld [vmem:[#allocation7 + $0x4f8] sm:$0xff]
        %v572 = vld [vmem:[#allocation7 + $0x500] sm:$0xff]
        %v573 = vld [vmem:[#allocation7 + $0x508] sm:$0xff]
        %v574 = vld [vmem:[#allocation7 + $0x510] sm:$0xff]
        %v575 = vld [vmem:[#allocation7 + $0x518] sm:$0xff]
        %v576 = vld [vmem:[#allocation7 + $0x520] sm:$0xff]
        %v577 = vld [vmem:[#allocation7 + $0x528] sm:$0xff]
        %v578 = vld [vmem:[#allocation7 + $0x530] sm:$0xff]
        %v579 = vld [vmem:[#allocation7 + $0x538] sm:$0xff]
        %v580 = vld [vmem:[#allocation7 + $0x540] sm:$0xff]
        %v581 = vld [vmem:[#allocation7 + $0x548] sm:$0xff]
        %v582 = vld [vmem:[#allocation7 + $0x550] sm:$0xff]
        %v583 = vld [vmem:[#allocation7 + $0x558] sm:$0xff]
        %v584 = vld [vmem:[#allocation7 + $0x560] sm:$0xff]
        %v585 = vld [vmem:[#allocation7 + $0x568] sm:$0xff]
        %v586 = vld [vmem:[#allocation7 + $0x570] sm:$0xff]
        %v587 = vld [vmem:[#allocation7 + $0x578] sm:$0xff]
        %v588 = vld [vmem:[#allocation7 + $0x580] sm:$0xff]
        %v589 = vld [vmem:[#allocation7 + $0x588] sm:$0xff]
        %v590 = vld [vmem:[#allocation7 + $0x590] sm:$0xff]
        %v591 = vld [vmem:[#allocation7 + $0x598] sm:$0xff]
        %v592 = vld [vmem:[#allocation7 + $0x5a0] sm:$0xff]
        %v593 = vld [vmem:[#allocation7 + $0x5a8] sm:$0xff]
        %v594 = vld [vmem:[#allocation7 + $0x5b0] sm:$0xff]
        %v595 = vld [vmem:[#allocation7 + $0x5b8] sm:$0xff]
        %v596 = vld [vmem:[#allocation7 + $0x5c0] sm:$0xff]
        %v597 = vld [vmem:[#allocation7 + $0x5c8] sm:$0xff]
        %v598 = vld [vmem:[#allocation7 + $0x5d0] sm:$0xff]
        %v599 = vld [vmem:[#allocation7 + $0x5d8] sm:$0xff]
        %v600 = vld [vmem:[#allocation7 + $0x5e0] sm:$0xff]
        %v601 = vld [vmem:[#allocation7 + $0x5e8] sm:$0xff]
        %v602 = vld [vmem:[#allocation7 + $0x5f0] sm:$0xff]
        %v603 = vld [vmem:[#allocation7 + $0x5f8] sm:$0xff]
        %v604 = vpack.c.bf16 %v410, %v410
        %v605 = vpack.c.bf16 %v411, %v411
        %v606 = vpack.c.bf16 %v418, %v412
        %v607 = vpack.c.bf16 %v419, %v413
        %v608 = vpack.c.bf16 %v420, %v414
        %v609 = vpack.c.bf16 %v421, %v415
        %v610 = vpack.c.bf16 %v422, %v416
        %v611 = vpack.c.bf16 %v423, %v417
        %v612 = vpack.c.bf16 %v430, %v424
        %v613 = vpack.c.bf16 %v431, %v425
        %v614 = vpack.c.bf16 %v432, %v426
        %v615 = vpack.c.bf16 %v433, %v427
        %v616 = vpack.c.bf16 %v434, %v428
        %v617 = vpack.c.bf16 %v435, %v429
        %v618 = vpack.c.bf16 %v442, %v436
        %v619 = vpack.c.bf16 %v443, %v437
        %v620 = vpack.c.bf16 %v444, %v438
        %v621 = vpack.c.bf16 %v445, %v439
        %v622 = vpack.c.bf16 %v446, %v440
        %v623 = vpack.c.bf16 %v447, %v441
        %v624 = vpack.c.bf16 %v454, %v448
        %v625 = vpack.c.bf16 %v455, %v449
        %v626 = vpack.c.bf16 %v456, %v450
        %v627 = vpack.c.bf16 %v457, %v451
        %v628 = vpack.c.bf16 %v458, %v452
        %v629 = vpack.c.bf16 %v459, %v453
        %v630 = vpack.c.bf16 %v466, %v460
        %v631 = vpack.c.bf16 %v467, %v461
        %v632 = vpack.c.bf16 %v468, %v462
        %v633 = vpack.c.bf16 %v469, %v463
        %v634 = vpack.c.bf16 %v470, %v464
        %v635 = vpack.c.bf16 %v471, %v465
        %v636 = vpack.c.bf16 %v478, %v472
        %v637 = vpack.c.bf16 %v479, %v473
        %v638 = vpack.c.bf16 %v480, %v474
        %v639 = vpack.c.bf16 %v481, %v475
        %v640 = vpack.c.bf16 %v482, %v476
        %v641 = vpack.c.bf16 %v483, %v477
        %v642 = vpack.c.bf16 %v490, %v484
        %v643 = vpack.c.bf16 %v491, %v485
        %v644 = vpack.c.bf16 %v492, %v486
        %v645 = vpack.c.bf16 %v493, %v487
        %v646 = vpack.c.bf16 %v494, %v488
        %v647 = vpack.c.bf16 %v495, %v489
        %v648 = vpack.c.bf16 %v502, %v496
        %v649 = vpack.c.bf16 %v503, %v497
        %v650 = vpack.c.bf16 %v504, %v498
        %v651 = vpack.c.bf16 %v505, %v499
        %v652 = vpack.c.bf16 %v506, %v500
        %v653 = vpack.c.bf16 %v507, %v501
        %v654 = vpack.c.bf16 %v514, %v508
        %v655 = vpack.c.bf16 %v515, %v509
        %v656 = vpack.c.bf16 %v516, %v510
        %v657 = vpack.c.bf16 %v517, %v511
        %v658 = vpack.c.bf16 %v518, %v512
        %v659 = vpack.c.bf16 %v519, %v513
        %v660 = vpack.c.bf16 %v526, %v520
        %v661 = vpack.c.bf16 %v527, %v521
        %v662 = vpack.c.bf16 %v528, %v522
        %v663 = vpack.c.bf16 %v529, %v523
        %v664 = vpack.c.bf16 %v530, %v524
        %v665 = vpack.c.bf16 %v531, %v525
        %v666 = vpack.c.bf16 %v538, %v532
        %v667 = vpack.c.bf16 %v539, %v533
        %v668 = vpack.c.bf16 %v540, %v534
        %v669 = vpack.c.bf16 %v541, %v535
        %v670 = vpack.c.bf16 %v542, %v536
        %v671 = vpack.c.bf16 %v543, %v537
        %v672 = vpack.c.bf16 %v550, %v544
        %v673 = vpack.c.bf16 %v551, %v545
        %v674 = vpack.c.bf16 %v552, %v546
        %v675 = vpack.c.bf16 %v553, %v547
        %v676 = vpack.c.bf16 %v554, %v548
        %v677 = vpack.c.bf16 %v555, %v549
        %v678 = vpack.c.bf16 %v562, %v556
        %v679 = vpack.c.bf16 %v563, %v557
        %v680 = vpack.c.bf16 %v564, %v558
        %v681 = vpack.c.bf16 %v565, %v559
        %v682 = vpack.c.bf16 %v566, %v560
        %v683 = vpack.c.bf16 %v567, %v561
        %v684 = vpack.c.bf16 %v574, %v568
        %v685 = vpack.c.bf16 %v575, %v569
        %v686 = vpack.c.bf16 %v576, %v570
        %v687 = vpack.c.bf16 %v577, %v571
        %v688 = vpack.c.bf16 %v578, %v572
        %v689 = vpack.c.bf16 %v579, %v573
        %v690 = vpack.c.bf16 %v586, %v580
        %v691 = vpack.c.bf16 %v587, %v581
        %v692 = vpack.c.bf16 %v588, %v582
        %v693 = vpack.c.bf16 %v589, %v583
        %v694 = vpack.c.bf16 %v590, %v584
        %v695 = vpack.c.bf16 %v591, %v585
        %v696 = vpack.c.bf16 %v598, %v592
        %v697 = vpack.c.bf16 %v599, %v593
        %v698 = vpack.c.bf16 %v600, %v594
        %v699 = vpack.c.bf16 %v601, %v595
        %v700 = vpack.c.bf16 %v602, %v596
        %v701 = vpack.c.bf16 %v603, %v597
        %v702 = vld [vmem:[#allocation8] sm:$0x3f]
        %v704 = vlaneseq
        %v705 = vshrl.u32 %v704, 7
        %v706 = vsub.s32 0, %v705
        %v707 = vrot.slane %v702, %v706
        %v708 = vlaneseq
        %v709 = vshrl.u32 %v708, 7
        %v710 = vsub.s32 1, %v709
        %v711 = vrot.slane %v702, %v710
        %v712 = vlaneseq
        %v713 = vshrl.u32 %v712, 7
        %v714 = vsub.s32 2, %v713
        %v715 = vrot.slane %v702, %v714
        %v716 = vlaneseq
        %v717 = vshrl.u32 %v716, 7
        %v718 = vsub.s32 3, %v717
        %v719 = vrot.slane %v702, %v718
        %v720 = vlaneseq
        %v721 = vshrl.u32 %v720, 7
        %v722 = vsub.s32 4, %v721
        %v723 = vrot.slane %v702, %v722
        %v724 = vlaneseq
        %v725 = vshrl.u32 %v724, 7
        %v726 = vsub.s32 5, %v725
        %v727 = vrot.slane %v702, %v726
        %734 = vmatprep.subr.bf16.mxu0 %v607
        %735 = vmatpush1.bf16.msra.mxu0 %v606
        %736 = vmatprep.subr.bf16.mxu0 %v613
        %737 = vmatpush1.bf16.msra.mxu0 %v612
        %738 = vmatprep.subr.bf16.mxu0 %v619
        %739 = vmatpush1.bf16.msra.mxu0 %v618
        %740 = vmatprep.subr.bf16.mxu0 %v625
        %741 = vmatpush1.bf16.msra.mxu0 %v624
        %742 = vmatprep.subr.bf16.mxu0 %v631
        %743 = vmatpush1.bf16.msra.mxu0 %v630
        %744 = vmatprep.subr.bf16.mxu0 %v637
        %745 = vmatpush1.bf16.msra.mxu0 %v636
        %746 = vmatprep.subr.bf16.mxu0 %v643
        %747 = vmatpush1.bf16.msra.mxu0 %v642
        %748 = vmatprep.subr.bf16.mxu0 %v649
        %749 = vmatpush1.bf16.msra.mxu0 %v648
        %750 = vmatprep.subr.bf16.mxu0 %v655
        %751 = vmatpush1.bf16.msra.mxu0 %v654
        %752 = vmatprep.subr.bf16.mxu0 %v661
        %753 = vmatpush1.bf16.msra.mxu0 %v660
        %754 = vmatprep.subr.bf16.mxu0 %v667
        %755 = vmatpush1.bf16.msra.mxu0 %v666
        %756 = vmatprep.subr.bf16.mxu0 %v673
        %757 = vmatpush1.bf16.msra.mxu0 %v672
        %758 = vmatprep.subr.bf16.mxu0 %v679
        %759 = vmatpush1.bf16.msra.mxu0 %v678
        %760 = vmatprep.subr.bf16.mxu0 %v685
        %761 = vmatpush1.bf16.msra.mxu0 %v684
        %762 = vmatprep.subr.bf16.mxu0 %v691
        %763 = vmatpush1.bf16.msra.mxu0 %v690
        %764 = vmatprep.subr.bf16.mxu0 %v697
        %765 = vmatpush1.bf16.msra.mxu0 %v696
        %766 = vmatprep.mubr.bf16.mxu0 %v605
        %767 = vmatmul.mubr.bf16.gmra.mrb[0].mxu0 %v604
        %v768 = vpop.f32.mrb[0].mxu0
        %v769 = vadd.f32 %v707, %v768
        %v770 = vpop.f32.mrb[0].mxu0
        %v771 = vadd.f32 %v711, %v770
        %v772 = vpop.f32.mrb[0].mxu0
        %v773 = vpop.f32.mrb[0].mxu0
        %774 = vdwg.mxu0
        %775 = vmatprep.subr.bf16.mxu0 %v609
        %776 = vmatpush1.bf16.msra.mxu0 %v608
        %777 = vmatprep.subr.bf16.mxu0 %v615
        %778 = vmatpush1.bf16.msra.mxu0 %v614
        %779 = vmatprep.subr.bf16.mxu0 %v621
        %780 = vmatpush1.bf16.msra.mxu0 %v620
        %781 = vmatprep.subr.bf16.mxu0 %v627
        %782 = vmatpush1.bf16.msra.mxu0 %v626
        %783 = vmatprep.subr.bf16.mxu0 %v633
        %784 = vmatpush1.bf16.msra.mxu0 %v632
        %785 = vmatprep.subr.bf16.mxu0 %v639
        %786 = vmatpush1.bf16.msra.mxu0 %v638
        %787 = vmatprep.subr.bf16.mxu0 %v645
        %788 = vmatpush1.bf16.msra.mxu0 %v644
        %789 = vmatprep.subr.bf16.mxu0 %v651
        %790 = vmatpush1.bf16.msra.mxu0 %v650
        %791 = vmatprep.subr.bf16.mxu0 %v657
        %792 = vmatpush1.bf16.msra.mxu0 %v656
        %793 = vmatprep.subr.bf16.mxu0 %v663
        %794 = vmatpush1.bf16.msra.mxu0 %v662
        %795 = vmatprep.subr.bf16.mxu0 %v669
        %796 = vmatpush1.bf16.msra.mxu0 %v668
        %797 = vmatprep.subr.bf16.mxu0 %v675
        %798 = vmatpush1.bf16.msra.mxu0 %v674
        %799 = vmatprep.subr.bf16.mxu0 %v681
        %800 = vmatpush1.bf16.msra.mxu0 %v680
        %801 = vmatprep.subr.bf16.mxu0 %v687
        %802 = vmatpush1.bf16.msra.mxu0 %v686
        %803 = vmatprep.subr.bf16.mxu0 %v693
        %804 = vmatpush1.bf16.msra.mxu0 %v692
        %805 = vmatprep.subr.bf16.mxu0 %v699
        %806 = vmatpush1.bf16.msra.mxu0 %v698
        %807 = vmatprep.mubr.bf16.mxu0 %v605
        %808 = vmatmul.mubr.bf16.gmra.mrb[0].mxu0 %v604
        %v809 = vpop.f32.mrb[0].mxu0
        %v810 = vadd.f32 %v715, %v809
        %v811 = vpop.f32.mrb[0].mxu0
        %v812 = vadd.f32 %v719, %v811
        %v813 = vpop.f32.mrb[0].mxu0
        %v814 = vpop.f32.mrb[0].mxu0
        %815 = vdwg.mxu0
        %816 = vmatprep.subr.bf16.mxu0 %v611
        %817 = vmatpush1.bf16.msra.mxu0 %v610
        %818 = vmatprep.subr.bf16.mxu0 %v617
        %819 = vmatpush1.bf16.msra.mxu0 %v616
        %820 = vmatprep.subr.bf16.mxu0 %v623
        %821 = vmatpush1.bf16.msra.mxu0 %v622
        %822 = vmatprep.subr.bf16.mxu0 %v629
        %823 = vmatpush1.bf16.msra.mxu0 %v628
        %824 = vmatprep.subr.bf16.mxu0 %v635
        %825 = vmatpush1.bf16.msra.mxu0 %v634
        %826 = vmatprep.subr.bf16.mxu0 %v641
        %827 = vmatpush1.bf16.msra.mxu0 %v640
        %828 = vmatprep.subr.bf16.mxu0 %v647
        %829 = vmatpush1.bf16.msra.mxu0 %v646
        %830 = vmatprep.subr.bf16.mxu0 %v653
        %831 = vmatpush1.bf16.msra.mxu0 %v652
        %832 = vmatprep.subr.bf16.mxu0 %v659
        %833 = vmatpush1.bf16.msra.mxu0 %v658
        %834 = vmatprep.subr.bf16.mxu0 %v665
        %835 = vmatpush1.bf16.msra.mxu0 %v664
        %836 = vmatprep.subr.bf16.mxu0 %v671
        %837 = vmatpush1.bf16.msra.mxu0 %v670
        %838 = vmatprep.subr.bf16.mxu0 %v677
        %839 = vmatpush1.bf16.msra.mxu0 %v676
        %840 = vmatprep.subr.bf16.mxu0 %v683
        %841 = vmatpush1.bf16.msra.mxu0 %v682
        %842 = vmatprep.subr.bf16.mxu0 %v689
        %843 = vmatpush1.bf16.msra.mxu0 %v688
        %844 = vmatprep.subr.bf16.mxu0 %v695
        %845 = vmatpush1.bf16.msra.mxu0 %v694
        %846 = vmatprep.subr.bf16.mxu0 %v701
        %847 = vmatpush1.bf16.msra.mxu0 %v700
        %848 = vmatprep.mubr.bf16.mxu0 %v605
        %849 = vmatmul.mubr.bf16.gmra.mrb[0].mxu0 %v604
        %v850 = vpop.f32.mrb[0].mxu0
        %v851 = vadd.f32 %v723, %v850
        %v852 = vpop.f32.mrb[0].mxu0
        %v853 = vadd.f32 %v727, %v852
        %v854 = vpop.f32.mrb[0].mxu0
        %v855 = vpop.f32.mrb[0].mxu0
        %856 = vdwg.mxu0
        %v857 = vpack.c.bf16 %v769, %v769
        %v858 = vpack.c.bf16 %v810, %v810
        %859 = vmatprep.subr.bf16.mxu0 0
        %860 = vmatpush1.bf16.xpose.msra.mxu0 %v858
        %861 = vmatprep.subr.bf16.mxu0 0
        %862 = vmatpush1.bf16.xpose.msra.mxu0 0
        %863 = vmatprep.subr.bf16.mxu0 0
        %864 = vmatpush1.bf16.xpose.msra.mxu0 0
        %865 = vmatprep.subr.bf16.mxu0 0
        %866 = vmatpush1.bf16.xpose.msra.mxu0 0
        %867 = vmatprep.subr.bf16.mxu0 0
        %868 = vmatpush1.bf16.xpose.msra.mxu0 0
        %869 = vmatprep.subr.bf16.mxu0 0
        %870 = vmatpush1.bf16.xpose.msra.mxu0 0
        %871 = vmatprep.subr.bf16.mxu0 0
        %872 = vmatpush1.bf16.xpose.msra.mxu0 0
        %873 = vmatprep.subr.bf16.mxu0 0
        %874 = vmatpush1.bf16.xpose.msra.mxu0 0
        %875 = vmatprep.subr.bf16.mxu0 0
        %876 = vmatpush1.bf16.xpose.msra.mxu0 0
        %877 = vmatprep.subr.bf16.mxu0 0
        %878 = vmatpush1.bf16.xpose.msra.mxu0 0
        %879 = vmatprep.subr.bf16.mxu0 0
        %880 = vmatpush1.bf16.xpose.msra.mxu0 0
        %881 = vmatprep.subr.bf16.mxu0 0
        %882 = vmatpush1.bf16.xpose.msra.mxu0 0
        %883 = vmatprep.subr.bf16.mxu0 0
        %884 = vmatpush1.bf16.xpose.msra.mxu0 0
        %885 = vmatprep.subr.bf16.mxu0 0
        %886 = vmatpush1.bf16.xpose.msra.mxu0 0
        %887 = vmatprep.subr.bf16.mxu0 0
        %888 = vmatpush1.bf16.xpose.msra.mxu0 0
        %889 = vmatprep.subr.bf16.mxu0 0
        %890 = vmatpush1.bf16.xpose.msra.mxu0 0
        %891 = vmatprep.mubr.bf16.mxu0 0
        %892 = vmatmul.mubr.bf16.gmra.mrb[0].mxu0 %v857
        %v893 = vpop.f32.mrb[0].mxu0
        %v894 = vadd.f32 0.0, %v893
        %v895 = vpop.f32.mrb[0].mxu0
        %v896 = vpop.f32.mrb[0].mxu0
        %v897 = vpop.f32.mrb[0].mxu0
        %898 = vdwg.mxu0
        %v899 = vmul.f32 %v894, 0.088388346
        %vm900 = vcmask 36864
        %v901 = vsel %vm900, %v899, -inf
        %902 = vmax.xlane.f32.xlu0 %v901
        %v903 = vpop.xlane.xlu0 %902
        %v904 = vsub.f32 %v899, %v903
        %v905 = vmul.f32 %v904, 1.442695
        %v906 = vpow.pop %v905
        %v907 = vsel %vm900, %v906, 0.0
        %908 = vadd.xlane.f32.xlu0 %v907
        %v909 = vpop.xlane.xlu0 %908
        %v910 = vrcp.pop %v909
        %v911 = vmul.f32 %v906, %v910
        %v912 = vpack.c.bf16 %v911, %v911
        %v913 = vpack.c.bf16 %v851, %v851
        %vm914 = vcmask 39936
        %v916 = vsel %vm914, %v912, 0
        %vm918 = vcmask 1041408
        %vm919 = vcmask 1042432
        %v920 = vsel %vm918, 4294967295, 65535
        %v921 = vsel %vm919, %v920, 0
        %v923 = vand.u32 %v913, %v921
        %925 = vmatprep.subr.bf16.mxu0 0
        %926 = vmatpush1.bf16.msra.mxu0 %v923
        %927 = vmatprep.subr.bf16.mxu0 0
        %928 = vmatpush1.bf16.msra.mxu0 0
        %929 = vmatprep.subr.bf16.mxu0 0
        %930 = vmatpush1.bf16.msra.mxu0 0
        %931 = vmatprep.subr.bf16.mxu0 0
        %932 = vmatpush1.bf16.msra.mxu0 0
        %933 = vmatprep.subr.bf16.mxu0 0
        %934 = vmatpush1.bf16.msra.mxu0 0
        %935 = vmatprep.subr.bf16.mxu0 0
        %936 = vmatpush1.bf16.msra.mxu0 0
        %937 = vmatprep.subr.bf16.mxu0 0
        %938 = vmatpush1.bf16.msra.mxu0 0
        %939 = vmatprep.subr.bf16.mxu0 0
        %940 = vmatpush1.bf16.msra.mxu0 0
        %941 = vmatprep.subr.bf16.mxu0 0
        %942 = vmatpush1.bf16.msra.mxu0 0
        %943 = vmatprep.subr.bf16.mxu0 0
        %944 = vmatpush1.bf16.msra.mxu0 0
        %945 = vmatprep.subr.bf16.mxu0 0
        %946 = vmatpush1.bf16.msra.mxu0 0
        %947 = vmatprep.subr.bf16.mxu0 0
        %948 = vmatpush1.bf16.msra.mxu0 0
        %949 = vmatprep.subr.bf16.mxu0 0
        %950 = vmatpush1.bf16.msra.mxu0 0
        %951 = vmatprep.subr.bf16.mxu0 0
        %952 = vmatpush1.bf16.msra.mxu0 0
        %953 = vmatprep.subr.bf16.mxu0 0
        %954 = vmatpush1.bf16.msra.mxu0 0
        %955 = vmatprep.subr.bf16.mxu0 0
        %956 = vmatpush1.bf16.msra.mxu0 0
        %957 = vmatprep.mubr.bf16.mxu0 0
        %958 = vmatmul.mubr.bf16.gmra.mrb[0].mxu0 %v916
        %v959 = vpop.f32.mrb[0].mxu0
        %v960 = vadd.f32 0.0, %v959
        %v961 = vpop.f32.mrb[0].mxu0
        %v962 = vpop.f32.mrb[0].mxu0
        %v963 = vpop.f32.mrb[0].mxu0
        %964 = vdwg.mxu0
        %965 = vst [vmem:[#allocation2] sm:$0x1f] %v960
        %v966 = vpack.c.bf16 %v771, %v771
        %v967 = vpack.c.bf16 %v812, %v812
        %968 = vmatprep.subr.bf16.mxu0 0
        %969 = vmatpush1.bf16.xpose.msra.mxu0 %v967
        %970 = vmatprep.subr.bf16.mxu0 0
        %971 = vmatpush1.bf16.xpose.msra.mxu0 0
        %972 = vmatprep.subr.bf16.mxu0 0
        %973 = vmatpush1.bf16.xpose.msra.mxu0 0
        %974 = vmatprep.subr.bf16.mxu0 0
        %975 = vmatpush1.bf16.xpose.msra.mxu0 0
        %976 = vmatprep.subr.bf16.mxu0 0
        %977 = vmatpush1.bf16.xpose.msra.mxu0 0
        %978 = vmatprep.subr.bf16.mxu0 0
        %979 = vmatpush1.bf16.xpose.msra.mxu0 0
        %980 = vmatprep.subr.bf16.mxu0 0
        %981 = vmatpush1.bf16.xpose.msra.mxu0 0
        %982 = vmatprep.subr.bf16.mxu0 0
        %983 = vmatpush1.bf16.xpose.msra.mxu0 0
        %984 = vmatprep.subr.bf16.mxu0 0
        %985 = vmatpush1.bf16.xpose.msra.mxu0 0
        %986 = vmatprep.subr.bf16.mxu0 0
        %987 = vmatpush1.bf16.xpose.msra.mxu0 0
        %988 = vmatprep.subr.bf16.mxu0 0
        %989 = vmatpush1.bf16.xpose.msra.mxu0 0
        %990 = vmatprep.subr.bf16.mxu0 0
        %991 = vmatpush1.bf16.xpose.msra.mxu0 0
        %992 = vmatprep.subr.bf16.mxu0 0
        %993 = vmatpush1.bf16.xpose.msra.mxu0 0
        %994 = vmatprep.subr.bf16.mxu0 0
        %995 = vmatpush1.bf16.xpose.msra.mxu0 0
        %996 = vmatprep.subr.bf16.mxu0 0
        %997 = vmatpush1.bf16.xpose.msra.mxu0 0
        %998 = vmatprep.subr.bf16.mxu0 0
        %999 = vmatpush1.bf16.xpose.msra.mxu0 0
        %1000 = vmatprep.mubr.bf16.mxu0 0
        %1001 = vmatmul.mubr.bf16.gmra.mrb[0].mxu0 %v966
        %v1002 = vpop.f32.mrb[0].mxu0
        %v1003 = vadd.f32 0.0, %v1002
        %v1004 = vpop.f32.mrb[0].mxu0
        %v1005 = vpop.f32.mrb[0].mxu0
        %v1006 = vpop.f32.mrb[0].mxu0
        %1007 = vdwg.mxu0
        %v1008 = vmul.f32 %v1003, 0.088388346
        %v1009 = vsel %vm900, %v1008, -inf
        %1010 = vmax.xlane.f32.xlu0 %v1009
        %v1011 = vpop.xlane.xlu0 %1010
        %v1012 = vsub.f32 %v1008, %v1011
        %v1013 = vmul.f32 %v1012, 1.442695
        %v1014 = vpow.pop %v1013
        %v1015 = vsel %vm900, %v1014, 0.0
        %1016 = vadd.xlane.f32.xlu0 %v1015
        %v1017 = vpop.xlane.xlu0 %1016
        %v1018 = vrcp.pop %v1017
        %v1019 = vmul.f32 %v1014, %v1018
        %v1020 = vpack.c.bf16 %v1019, %v1019
        %v1021 = vpack.c.bf16 %v853, %v853
        %v1023 = vsel %vm914, %v1020, 0
        %v1026 = vand.u32 %v1021, %v921
        %1028 = vmatprep.subr.bf16.mxu0 0
        %1029 = vmatpush1.bf16.msra.mxu0 %v1026
        %1030 = vmatprep.subr.bf16.mxu0 0
        %1031 = vmatpush1.bf16.msra.mxu0 0
        %1032 = vmatprep.subr.bf16.mxu0 0
        %1033 = vmatpush1.bf16.msra.mxu0 0
        %1034 = vmatprep.subr.bf16.mxu0 0
        %1035 = vmatpush1.bf16.msra.mxu0 0
        %1036 = vmatprep.subr.bf16.mxu0 0
        %1037 = vmatpush1.bf16.msra.mxu0 0
        %1038 = vmatprep.subr.bf16.mxu0 0
        %1039 = vmatpush1.bf16.msra.mxu0 0
        %1040 = vmatprep.subr.bf16.mxu0 0
        %1041 = vmatpush1.bf16.msra.mxu0 0
        %1042 = vmatprep.subr.bf16.mxu0 0
        %1043 = vmatpush1.bf16.msra.mxu0 0
        %1044 = vmatprep.subr.bf16.mxu0 0
        %1045 = vmatpush1.bf16.msra.mxu0 0
        %1046 = vmatprep.subr.bf16.mxu0 0
        %1047 = vmatpush1.bf16.msra.mxu0 0
        %1048 = vmatprep.subr.bf16.mxu0 0
        %1049 = vmatpush1.bf16.msra.mxu0 0
        %1050 = vmatprep.subr.bf16.mxu0 0
        %1051 = vmatpush1.bf16.msra.mxu0 0
        %1052 = vmatprep.subr.bf16.mxu0 0
        %1053 = vmatpush1.bf16.msra.mxu0 0
        %1054 = vmatprep.subr.bf16.mxu0 0
        %1055 = vmatpush1.bf16.msra.mxu0 0
        %1056 = vmatprep.subr.bf16.mxu0 0
        %1057 = vmatpush1.bf16.msra.mxu0 0
        %1058 = vmatprep.subr.bf16.mxu0 0
        %1059 = vmatpush1.bf16.msra.mxu0 0
        %1060 = vmatprep.mubr.bf16.mxu0 0
        %1061 = vmatmul.mubr.bf16.gmra.mrb[0].mxu0 %v1023
        %v1062 = vpop.f32.mrb[0].mxu0
        %v1063 = vadd.f32 0.0, %v1062
        %v1064 = vpop.f32.mrb[0].mxu0
        %v1065 = vpop.f32.mrb[0].mxu0
        %v1066 = vpop.f32.mrb[0].mxu0
        %1067 = vdwg.mxu0
        %1068 = vst [vmem:[#allocation2 + $0x8] sm:$0x1f] %v1063
        %v1069 = vld [vmem:[#allocation2] sm:$0x1f]
        %v1070 = vld [vmem:[#allocation2 + $0x8] sm:$0x1f]
        %v1071 = vld [vmem:[#allocation10] sm:$0xff]
        %v1072 = vld [vmem:[#allocation10 + $0x8] sm:$0xff]
        %v1073 = vld [vmem:[#allocation10 + $0x10] sm:$0xff]
        %v1074 = vld [vmem:[#allocation10 + $0x18] sm:$0xff]
        %v1075 = vld [vmem:[#allocation10 + $0x20] sm:$0xff]
        %v1076 = vld [vmem:[#allocation10 + $0x28] sm:$0xff]
        %v1077 = vld [vmem:[#allocation10 + $0x30] sm:$0xff]
        %v1078 = vld [vmem:[#allocation10 + $0x38] sm:$0xff]
        %v1079 = vld [vmem:[#allocation10 + $0x40] sm:$0xff]
        %v1080 = vld [vmem:[#allocation10 + $0x48] sm:$0xff]
        %v1081 = vld [vmem:[#allocation10 + $0x50] sm:$0xff]
        %v1082 = vld [vmem:[#allocation10 + $0x58] sm:$0xff]
        %v1083 = vld [vmem:[#allocation10 + $0x60] sm:$0xff]
        %v1084 = vld [vmem:[#allocation10 + $0x68] sm:$0xff]
        %v1085 = vld [vmem:[#allocation10 + $0x70] sm:$0xff]
        %v1086 = vld [vmem:[#allocation10 + $0x78] sm:$0xff]
        %v1087 = vld [vmem:[#allocation10 + $0x80] sm:$0xff]
        %v1088 = vld [vmem:[#allocation10 + $0x88] sm:$0xff]
        %v1089 = vld [vmem:[#allocation10 + $0x90] sm:$0xff]
        %v1090 = vld [vmem:[#allocation10 + $0x98] sm:$0xff]
        %v1091 = vld [vmem:[#allocation10 + $0xa0] sm:$0xff]
        %v1092 = vld [vmem:[#allocation10 + $0xa8] sm:$0xff]
        %v1093 = vld [vmem:[#allocation10 + $0xb0] sm:$0xff]
        %v1094 = vld [vmem:[#allocation10 + $0xb8] sm:$0xff]
        %v1095 = vld [vmem:[#allocation10 + $0xc0] sm:$0xff]
        %v1096 = vld [vmem:[#allocation10 + $0xc8] sm:$0xff]
        %v1097 = vld [vmem:[#allocation10 + $0xd0] sm:$0xff]
        %v1098 = vld [vmem:[#allocation10 + $0xd8] sm:$0xff]
        %v1099 = vld [vmem:[#allocation10 + $0xe0] sm:$0xff]
        %v1100 = vld [vmem:[#allocation10 + $0xe8] sm:$0xff]
        %v1101 = vld [vmem:[#allocation10 + $0xf0] sm:$0xff]
        %v1102 = vld [vmem:[#allocation10 + $0xf8] sm:$0xff]
        %v1103 = vld [vmem:[#allocation10 + $0x100] sm:$0xff]
        %v1104 = vld [vmem:[#allocation10 + $0x108] sm:$0xff]
        %v1105 = vld [vmem:[#allocation10 + $0x110] sm:$0xff]
        %v1106 = vld [vmem:[#allocation10 + $0x118] sm:$0xff]
        %v1107 = vld [vmem:[#allocation10 + $0x120] sm:$0xff]
        %v1108 = vld [vmem:[#allocation10 + $0x128] sm:$0xff]
        %v1109 = vld [vmem:[#allocation10 + $0x130] sm:$0xff]
        %v1110 = vld [vmem:[#allocation10 + $0x138] sm:$0xff]
        %v1111 = vld [vmem:[#allocation10 + $0x140] sm:$0xff]
        %v1112 = vld [vmem:[#allocation10 + $0x148] sm:$0xff]
        %v1113 = vld [vmem:[#allocation10 + $0x150] sm:$0xff]
        %v1114 = vld [vmem:[#allocation10 + $0x158] sm:$0xff]
        %v1115 = vld [vmem:[#allocation10 + $0x160] sm:$0xff]
        %v1116 = vld [vmem:[#allocation10 + $0x168] sm:$0xff]
        %v1117 = vld [vmem:[#allocation10 + $0x170] sm:$0xff]
        %v1118 = vld [vmem:[#allocation10 + $0x178] sm:$0xff]
        %v1119 = vld [vmem:[#allocation10 + $0x180] sm:$0xff]
        %v1120 = vld [vmem:[#allocation10 + $0x188] sm:$0xff]
        %v1121 = vld [vmem:[#allocation10 + $0x190] sm:$0xff]
        %v1122 = vld [vmem:[#allocation10 + $0x198] sm:$0xff]
        %v1123 = vld [vmem:[#allocation10 + $0x1a0] sm:$0xff]
        %v1124 = vld [vmem:[#allocation10 + $0x1a8] sm:$0xff]
        %v1125 = vld [vmem:[#allocation10 + $0x1b0] sm:$0xff]
        %v1126 = vld [vmem:[#allocation10 + $0x1b8] sm:$0xff]
        %v1127 = vld [vmem:[#allocation10 + $0x1c0] sm:$0xff]
        %v1128 = vld [vmem:[#allocation10 + $0x1c8] sm:$0xff]
        %v1129 = vld [vmem:[#allocation10 + $0x1d0] sm:$0xff]
        %v1130 = vld [vmem:[#allocation10 + $0x1d8] sm:$0xff]
        %v1131 = vld [vmem:[#allocation10 + $0x1e0] sm:$0xff]
        %v1132 = vld [vmem:[#allocation10 + $0x1e8] sm:$0xff]
        %v1133 = vld [vmem:[#allocation10 + $0x1f0] sm:$0xff]
        %v1134 = vld [vmem:[#allocation10 + $0x1f8] sm:$0xff]
        %v1135 = vpack.c.bf16 %v1069, %v1069
        %v1136 = vpack.c.bf16 %v1070, %v1070
        %v1137 = vpack.c.bf16 %v1073, %v1071
        %v1138 = vpack.c.bf16 %v1074, %v1072
        %v1139 = vpack.c.bf16 %v1077, %v1075
        %v1140 = vpack.c.bf16 %v1078, %v1076
        %v1141 = vpack.c.bf16 %v1081, %v1079
        %v1142 = vpack.c.bf16 %v1082, %v1080
        %v1143 = vpack.c.bf16 %v1085, %v1083
        %v1144 = vpack.c.bf16 %v1086, %v1084
        %v1145 = vpack.c.bf16 %v1089, %v1087
        %v1146 = vpack.c.bf16 %v1090, %v1088
        %v1147 = vpack.c.bf16 %v1093, %v1091
        %v1148 = vpack.c.bf16 %v1094, %v1092
        %v1149 = vpack.c.bf16 %v1097, %v1095
        %v1150 = vpack.c.bf16 %v1098, %v1096
        %v1151 = vpack.c.bf16 %v1101, %v1099
        %v1152 = vpack.c.bf16 %v1102, %v1100
        %v1153 = vpack.c.bf16 %v1105, %v1103
        %v1154 = vpack.c.bf16 %v1106, %v1104
        %v1155 = vpack.c.bf16 %v1109, %v1107
        %v1156 = vpack.c.bf16 %v1110, %v1108
        %v1157 = vpack.c.bf16 %v1113, %v1111
        %v1158 = vpack.c.bf16 %v1114, %v1112
        %v1159 = vpack.c.bf16 %v1117, %v1115
        %v1160 = vpack.c.bf16 %v1118, %v1116
        %v1161 = vpack.c.bf16 %v1121, %v1119
        %v1162 = vpack.c.bf16 %v1122, %v1120
        %v1163 = vpack.c.bf16 %v1125, %v1123
        %v1164 = vpack.c.bf16 %v1126, %v1124
        %v1165 = vpack.c.bf16 %v1129, %v1127
        %v1166 = vpack.c.bf16 %v1130, %v1128
        %v1167 = vpack.c.bf16 %v1133, %v1131
        %v1168 = vpack.c.bf16 %v1134, %v1132
        %v1169 = vld [vmem:[#allocation11] sm:$0x3]
        %v1171 = vlaneseq
        %v1172 = vshrl.u32 %v1171, 7
        %v1173 = vsub.s32 0, %v1172
        %v1174 = vrot.slane %v1169, %v1173
        %v1175 = vlaneseq
        %v1176 = vshrl.u32 %v1175, 7
        %v1177 = vsub.s32 1, %v1176
        %v1178 = vrot.slane %v1169, %v1177
        %1181 = vmatprep.subr.bf16.mxu0 %v1138
        %1182 = vmatpush1.bf16.msra.mxu0 %v1137
        %1183 = vmatprep.subr.bf16.mxu0 %v1140
        %1184 = vmatpush1.bf16.msra.mxu0 %v1139
        %1185 = vmatprep.subr.bf16.mxu0 %v1142
        %1186 = vmatpush1.bf16.msra.mxu0 %v1141
        %1187 = vmatprep.subr.bf16.mxu0 %v1144
        %1188 = vmatpush1.bf16.msra.mxu0 %v1143
        %1189 = vmatprep.subr.bf16.mxu0 %v1146
        %1190 = vmatpush1.bf16.msra.mxu0 %v1145
        %1191 = vmatprep.subr.bf16.mxu0 %v1148
        %1192 = vmatpush1.bf16.msra.mxu0 %v1147
        %1193 = vmatprep.subr.bf16.mxu0 %v1150
        %1194 = vmatpush1.bf16.msra.mxu0 %v1149
        %1195 = vmatprep.subr.bf16.mxu0 %v1152
        %1196 = vmatpush1.bf16.msra.mxu0 %v1151
        %1197 = vmatprep.subr.bf16.mxu0 %v1154
        %1198 = vmatpush1.bf16.msra.mxu0 %v1153
        %1199 = vmatprep.subr.bf16.mxu0 %v1156
        %1200 = vmatpush1.bf16.msra.mxu0 %v1155
        %1201 = vmatprep.subr.bf16.mxu0 %v1158
        %1202 = vmatpush1.bf16.msra.mxu0 %v1157
        %1203 = vmatprep.subr.bf16.mxu0 %v1160
        %1204 = vmatpush1.bf16.msra.mxu0 %v1159
        %1205 = vmatprep.subr.bf16.mxu0 %v1162
        %1206 = vmatpush1.bf16.msra.mxu0 %v1161
        %1207 = vmatprep.subr.bf16.mxu0 %v1164
        %1208 = vmatpush1.bf16.msra.mxu0 %v1163
        %1209 = vmatprep.subr.bf16.mxu0 %v1166
        %1210 = vmatpush1.bf16.msra.mxu0 %v1165
        %1211 = vmatprep.subr.bf16.mxu0 %v1168
        %1212 = vmatpush1.bf16.msra.mxu0 %v1167
        %1213 = vmatprep.mubr.bf16.mxu0 %v1136
        %1214 = vmatmul.mubr.bf16.gmra.mrb[0].mxu0 %v1135
        %v1215 = vpop.f32.mrb[0].mxu0
        %v1216 = vadd.f32 %v1174, %v1215
        %v1217 = vpop.f32.mrb[0].mxu0
        %v1218 = vadd.f32 %v1178, %v1217
        %v1219 = vpop.f32.mrb[0].mxu0
        %v1220 = vpop.f32.mrb[0].mxu0
        %1221 = vdwg.mxu0
        %v1222 = vadd.f32 %v360, %v1216
        %v1223 = vadd.f32 %v361, %v1218
        %1224 = vst [vmem:[%s358] sm:$0x1f] %v1222
        %1225 = vst [vmem:[%s358 + $0x8] sm:$0x1f] %v1223
        %p1226 = scmp.lt.s32.totalorder %s22, 1
        %s1227 = scalar_select %p1226, %s22, 1
        %s1228 = smul.addr %s1227, 2
        %s1229 = smul.addr %s1228, 8
        %s1230 = scalar_lea.vmem %s7, %s1229
        // Predicated region
        $region73: #{clip_targeter_forward.6} parent=47 // pred_check
          %p1231 = pneg %p192
        $region74: #{clip_targeter_forward.6} parent=47 // pred_check_branch
          %1233 = sbr.rel (%p1231) target = $region76
        $region75: #{clip_targeter_forward.6} parent=47 // pred_region
          _
        $region76: #{clip_targeter_forward.6} parent=47 // pred_fallthru
          _
      $region48: #{clip_targeter_forward.6} parent=5 // pred_fallthru
        _
      %p1234 = scmp.le.s32.totalorder 2, %s17
      // Predicated region
      $region77: #{clip_targeter_forward.6} parent=5 // pred_check
        %p1235 = pneg %p1234
      $region78: #{clip_targeter_forward.6} parent=5 // pred_check_branch
        %1237 = sbr.rel (%p1235) target = $region80
      $region79: #{clip_targeter_forward.6} parent=5 // pred_region
        %s1238 = ssub.s32 %s17, 2
        // Predicated region
        $region81: #{clip_targeter_forward.6} parent=79 // pred_check
          %p1239 = pneg %p198
        $region82: #{clip_targeter_forward.6} parent=79 // pred_check_branch
          %1241 = sbr.rel (%p1239) target = $region84
        $region83: #{clip_targeter_forward.6} parent=79 // pred_region
          %p1242 = scmp.lt.s32.totalorder %s23, 1
          %s1243 = scalar_select %p1242, %s23, 1
          %s1244 = smul.addr %s1243, 2
          %s1245 = smul.addr %s1244, 8
          %s1246 = scalar_lea.vmem %s7, %s1245
        $region84: #{clip_targeter_forward.6} parent=79 // pred_fallthru
          _
      $region80: #{clip_targeter_forward.6} parent=5 // pred_fallthru
        _
    $region6: #{clip_targeter_forward.6} parent=1 // loop_footer
      %s21 = sadd.s32 1, %s17
    $region7: #{clip_targeter_forward.6} parent=1 // loop_footer_branch
      %16 = sbr.rel target = $region3
    $region8: #{clip_targeter_forward.6} parent=1 // loop_exit
      _
    %1247 = vsyncpa [#allocation4], 1
    %s1248 = scalar_lea.sflag [#allocation4], 1
    %1249 = vsyncpa %s1248, 1
    %1250 = vsyncpa [#allocation6], 1
    %1251 = vsyncpa [#allocation9], 1
    %1252 = vsyncpa [#allocation12], 1

// kernel: clip_targeter_forward.9
$region0: #{clip_targeter_forward.9}
  #allocation0 [shape = 'u32[]', space=smem, size = 0x4, offset = 0x4, fixed_abs, tag = 'smem constant byte address 0x4 - core index']
  #allocation1 [shape = 'u32[144,128]{1,0:T(1,128)}', space=vmem, size = 0x12000, scoped, tag = 'internal scratch']
  %s0 = inlined_call_operand.vmem [shape: f32[2,5,256], index: 0, kind: input, shape index: {}]
  %s1 = inlined_call_operand.vmem [shape: f32[1,256], index: 1, kind: input, shape index: {}]
  %s2 = inlined_call_operand.vmem [shape: f32[1,256], index: 2, kind: input, shape index: {}]
  %s3 = inlined_call_operand.vmem [shape: f32[256,1024], index: 3, kind: input, shape index: {}]
  %s4 = inlined_call_operand.vmem [shape: f32[1,1024], index: 4, kind: input, shape index: {}]
  %s5 = inlined_call_operand.vmem [shape: f32[1024,256], index: 5, kind: input, shape index: {}]
  %s6 = inlined_call_operand.vmem [shape: f32[1,256], index: 6, kind: input, shape index: {}]
  %s7 = inlined_call_operand.vmem [shape: f32[1,256], index: 7, kind: input, shape index: {}]
  %s8 = inlined_call_operand.vmem [shape: f32[1,256], index: 8, kind: input, shape index: {}]
  %s9 = inlined_call_operand.vmem [shape: f32[2,5,256], index: 9, kind: output, shape index: {}]
  %s10 = sld [smem:[#allocation0]]
  $region69: #{clip_targeter_forward.9} parent=0
    _
  %s12 = ssub.s32 1, %s10
  %s13 = scalar_select 0, %s12, %s10
  loop: start=0, step=1, limit=4
  $region2: #{clip_targeter_forward.9} parent=0 // loop_pre_header
    _
  $region3: #{clip_targeter_forward.9} parent=0 // loop_header
    %s15 = sphi 0, %s19
    %p16 = scmp.ge.s32.totalorder %s15, 4
    %s25 = sphi 0, %s27
    %s28 = sphi 0, %s25
    %s29 = sphi 0, %s28
    %s45 = sphi 0, %s29
    %s49 = sphi 0, %s49
    %s51 = sphi 0, %s49
    %s52 = sphi 0, %s51
    %s66 = sphi 0, %s52
    %s70 = sphi 0, %s70
    %s72 = sphi 0, %s70
    %s73 = sphi 0, %s72
    %s87 = sphi 0, %s73
    %s91 = sphi 0, %s91
    %s93 = sphi 0, %s91
    %s94 = sphi 0, %s93
    %s108 = sphi 0, %s94
    %s112 = sphi 0, %s112
    %s114 = sphi 0, %s112
    %s115 = sphi 0, %s114
    %s129 = sphi 0, %s115
    %s133 = sphi 0, %s133
    %s135 = sphi 0, %s133
    %s136 = sphi 0, %s135
    %s150 = sphi 0, %s136
    %s154 = sphi 0, %s154
    %s156 = sphi 0, %s154
    %s157 = sphi 0, %s156
    %s171 = sphi 0, %s157
    %s175 = sphi 0, %s175
    %s177 = sphi 0, %s175
    %s178 = sphi 0, %s177
    %s192 = sphi 0, %s178
    %s196 = sphi 0, %s196
    %s198 = sphi 0, %s196
    %s199 = sphi 0, %s198
    %s213 = sphi 0, %s199
    %s219 = sphi 0, %s221
    %s222 = sphi 0, %s219
    %s223 = sphi 0, %s222
    %s239 = sphi 0, %s223
  $region4: #{clip_targeter_forward.9} parent=0 // loop_header_branch
    %18 = sbr.rel (%p16) target = $region8
  $region5: #{clip_targeter_forward.9} parent=0 // loop_body
    %s20 = ssub.s32 %s15, 1
    %s21 = ssub.s32 %s15, 2
    %s22 = sadd.s32 %s15, 1
    %s23 = ssub.s32 %s15, %s22
    %p24 = scmp.eq.s32.totalorder %s23, 0
    %s26 = sadd.s32 %s25, 1
    %s27 = scalar_select %p24, %s25, %s26
    %p30 = pneg %p24
    %p31 = scmp.eq.s32.totalorder %s15, 1
    %p32 = por %p30, %p31
    %p33 = scmp.ne.s32.totalorder %s25, %s28
    %p34 = scmp.eq.s32.totalorder %s15, 0
    %p35 = por %p33, %p34
    %p36 = scmp.ne.s32.totalorder %s25, %s28
    %p37 = scmp.eq.s32.totalorder %s20, 1
    %p38 = por %p36, %p37
    %p39 = scmp.ne.s32.totalorder %s28, %s29
    %p40 = scmp.eq.s32.totalorder %s20, 0
    %p41 = por %p39, %p40
    %p42 = scmp.ne.s32.totalorder %s28, %s29
    %p43 = scmp.eq.s32.totalorder %s21, 1
    %p44 = por %p42, %p43
    %p46 = scmp.ne.s32.totalorder %s29, %s45
    %p47 = scmp.eq.s32.totalorder %s21, 0
    %p48 = por %p46, %p47
    %s50 = sadd.s32 %s49, 1
    %p53 = scmp.eq.s32.totalorder %s15, 1
    %p54 = scmp.ne.s32.totalorder %s49, %s51
    %p55 = scmp.eq.s32.totalorder %s15, 0
    %p56 = por %p54, %p55
    %p57 = scmp.ne.s32.totalorder %s49, %s51
    %p58 = scmp.eq.s32.totalorder %s20, 1
    %p59 = por %p57, %p58
    %p60 = scmp.ne.s32.totalorder %s51, %s52
    %p61 = scmp.eq.s32.totalorder %s20, 0
    %p62 = por %p60, %p61
    %p63 = scmp.ne.s32.totalorder %s51, %s52
    %p64 = scmp.eq.s32.totalorder %s21, 1
    %p65 = por %p63, %p64
    %p67 = scmp.ne.s32.totalorder %s52, %s66
    %p68 = scmp.eq.s32.totalorder %s21, 0
    %p69 = por %p67, %p68
    %s71 = sadd.s32 %s70, 1
    %p74 = scmp.eq.s32.totalorder %s15, 1
    %p75 = scmp.ne.s32.totalorder %s70, %s72
    %p76 = scmp.eq.s32.totalorder %s15, 0
    %p77 = por %p75, %p76
    %p78 = scmp.ne.s32.totalorder %s70, %s72
    %p79 = scmp.eq.s32.totalorder %s20, 1
    %p80 = por %p78, %p79
    %p81 = scmp.ne.s32.totalorder %s72, %s73
    %p82 = scmp.eq.s32.totalorder %s20, 0
    %p83 = por %p81, %p82
    %p84 = scmp.ne.s32.totalorder %s72, %s73
    %p85 = scmp.eq.s32.totalorder %s21, 1
    %p86 = por %p84, %p85
    %p88 = scmp.ne.s32.totalorder %s73, %s87
    %p89 = scmp.eq.s32.totalorder %s21, 0
    %p90 = por %p88, %p89
    %s92 = sadd.s32 %s91, 1
    %p95 = scmp.eq.s32.totalorder %s15, 1
    %p96 = scmp.ne.s32.totalorder %s91, %s93
    %p97 = scmp.eq.s32.totalorder %s15, 0
    %p98 = por %p96, %p97
    %p99 = scmp.ne.s32.totalorder %s91, %s93
    %p100 = scmp.eq.s32.totalorder %s20, 1
    %p101 = por %p99, %p100
    %p102 = scmp.ne.s32.totalorder %s93, %s94
    %p103 = scmp.eq.s32.totalorder %s20, 0
    %p104 = por %p102, %p103
    %p105 = scmp.ne.s32.totalorder %s93, %s94
    %p106 = scmp.eq.s32.totalorder %s21, 1
    %p107 = por %p105, %p106
    %p109 = scmp.ne.s32.totalorder %s94, %s108
    %p110 = scmp.eq.s32.totalorder %s21, 0
    %p111 = por %p109, %p110
    %s113 = sadd.s32 %s112, 1
    %p116 = scmp.eq.s32.totalorder %s15, 1
    %p117 = scmp.ne.s32.totalorder %s112, %s114
    %p118 = scmp.eq.s32.totalorder %s15, 0
    %p119 = por %p117, %p118
    %p120 = scmp.ne.s32.totalorder %s112, %s114
    %p121 = scmp.eq.s32.totalorder %s20, 1
    %p122 = por %p120, %p121
    %p123 = scmp.ne.s32.totalorder %s114, %s115
    %p124 = scmp.eq.s32.totalorder %s20, 0
    %p125 = por %p123, %p124
    %p126 = scmp.ne.s32.totalorder %s114, %s115
    %p127 = scmp.eq.s32.totalorder %s21, 1
    %p128 = por %p126, %p127
    %p130 = scmp.ne.s32.totalorder %s115, %s129
    %p131 = scmp.eq.s32.totalorder %s21, 0
    %p132 = por %p130, %p131
    %s134 = sadd.s32 %s133, 1
    %p137 = scmp.eq.s32.totalorder %s15, 1
    %p138 = scmp.ne.s32.totalorder %s133, %s135
    %p139 = scmp.eq.s32.totalorder %s15, 0
    %p140 = por %p138, %p139
    %p141 = scmp.ne.s32.totalorder %s133, %s135
    %p142 = scmp.eq.s32.totalorder %s20, 1
    %p143 = por %p141, %p142
    %p144 = scmp.ne.s32.totalorder %s135, %s136
    %p145 = scmp.eq.s32.totalorder %s20, 0
    %p146 = por %p144, %p145
    %p147 = scmp.ne.s32.totalorder %s135, %s136
    %p148 = scmp.eq.s32.totalorder %s21, 1
    %p149 = por %p147, %p148
    %p151 = scmp.ne.s32.totalorder %s136, %s150
    %p152 = scmp.eq.s32.totalorder %s21, 0
    %p153 = por %p151, %p152
    %s155 = sadd.s32 %s154, 1
    %p158 = scmp.eq.s32.totalorder %s15, 1
    %p159 = scmp.ne.s32.totalorder %s154, %s156
    %p160 = scmp.eq.s32.totalorder %s15, 0
    %p161 = por %p159, %p160
    %p162 = scmp.ne.s32.totalorder %s154, %s156
    %p163 = scmp.eq.s32.totalorder %s20, 1
    %p164 = por %p162, %p163
    %p165 = scmp.ne.s32.totalorder %s156, %s157
    %p166 = scmp.eq.s32.totalorder %s20, 0
    %p167 = por %p165, %p166
    %p168 = scmp.ne.s32.totalorder %s156, %s157
    %p169 = scmp.eq.s32.totalorder %s21, 1
    %p170 = por %p168, %p169
    %p172 = scmp.ne.s32.totalorder %s157, %s171
    %p173 = scmp.eq.s32.totalorder %s21, 0
    %p174 = por %p172, %p173
    %s176 = sadd.s32 %s175, 1
    %p179 = scmp.eq.s32.totalorder %s15, 1
    %p180 = scmp.ne.s32.totalorder %s175, %s177
    %p181 = scmp.eq.s32.totalorder %s15, 0
    %p182 = por %p180, %p181
    %p183 = scmp.ne.s32.totalorder %s175, %s177
    %p184 = scmp.eq.s32.totalorder %s20, 1
    %p185 = por %p183, %p184
    %p186 = scmp.ne.s32.totalorder %s177, %s178
    %p187 = scmp.eq.s32.totalorder %s20, 0
    %p188 = por %p186, %p187
    %p189 = scmp.ne.s32.totalorder %s177, %s178
    %p190 = scmp.eq.s32.totalorder %s21, 1
    %p191 = por %p189, %p190
    %p193 = scmp.ne.s32.totalorder %s178, %s192
    %p194 = scmp.eq.s32.totalorder %s21, 0
    %p195 = por %p193, %p194
    %s197 = sadd.s32 %s196, 1
    %p200 = scmp.eq.s32.totalorder %s15, 1
    %p201 = scmp.ne.s32.totalorder %s196, %s198
    %p202 = scmp.eq.s32.totalorder %s15, 0
    %p203 = por %p201, %p202
    %p204 = scmp.ne.s32.totalorder %s196, %s198
    %p205 = scmp.eq.s32.totalorder %s20, 1
    %p206 = por %p204, %p205
    %p207 = scmp.ne.s32.totalorder %s198, %s199
    %p208 = scmp.eq.s32.totalorder %s20, 0
    %p209 = por %p207, %p208
    %p210 = scmp.ne.s32.totalorder %s198, %s199
    %p211 = scmp.eq.s32.totalorder %s21, 1
    %p212 = por %p210, %p211
    %p214 = scmp.ne.s32.totalorder %s199, %s213
    %p215 = scmp.eq.s32.totalorder %s21, 0
    %p216 = por %p214, %p215
    %s217 = ssub.s32 %s15, %s22
    %p218 = scmp.eq.s32.totalorder %s217, 0
    %s220 = sadd.s32 %s219, 1
    %s221 = scalar_select %p218, %s219, %s220
    %p224 = pneg %p218
    %p225 = scmp.eq.s32.totalorder %s15, 1
    %p226 = por %p224, %p225
    %p227 = scmp.ne.s32.totalorder %s219, %s222
    %p228 = scmp.eq.s32.totalorder %s15, 0
    %p229 = por %p227, %p228
    %p230 = scmp.ne.s32.totalorder %s219, %s222
    %p231 = scmp.eq.s32.totalorder %s20, 1
    %p232 = por %p230, %p231
    %p233 = scmp.ne.s32.totalorder %s222, %s223
    %p234 = scmp.eq.s32.totalorder %s20, 0
    %p235 = por %p233, %p234
    %p236 = scmp.ne.s32.totalorder %s222, %s223
    %p237 = scmp.eq.s32.totalorder %s21, 1
    %p238 = por %p236, %p237
    %p240 = scmp.ne.s32.totalorder %s223, %s239
    %p241 = scmp.eq.s32.totalorder %s21, 0
    %p242 = por %p240, %p241
    %p243 = scmp.le.s32.totalorder 1, %s15
    %p244 = scmp.lt.s32.totalorder %s15, 3
    %p245 = pnand %p243, %p244
    %p246 = pneg %p245
    // Predicated region
    $region9: #{clip_targeter_forward.9} parent=5 // pred_check
      _
    $region10: #{clip_targeter_forward.9} parent=5 // pred_check_branch
      %248 = sbr.rel (%p245) target = $region12
    $region11: #{clip_targeter_forward.9} parent=5 // pred_region
      %s249 = ssub.s32 %s15, 1
      // Predicated region
      $region13: #{clip_targeter_forward.9} parent=11 // pred_check
        %p250 = pneg %p62
      $region14: #{clip_targeter_forward.9} parent=11 // pred_check_branch
        %252 = sbr.rel (%p250) target = $region16
      $region15: #{clip_targeter_forward.9} parent=11 // pred_region
        _
      $region16: #{clip_targeter_forward.9} parent=11 // pred_fallthru
        _
      // Predicated region
      $region17: #{clip_targeter_forward.9} parent=11 // pred_check
        %p253 = pneg %p83
      $region18: #{clip_targeter_forward.9} parent=11 // pred_check_branch
        %255 = sbr.rel (%p253) target = $region20
      $region19: #{clip_targeter_forward.9} parent=11 // pred_region
        _
      $region20: #{clip_targeter_forward.9} parent=11 // pred_fallthru
        _
      // Predicated region
      $region21: #{clip_targeter_forward.9} parent=11 // pred_check
        %p256 = pneg %p104
      $region22: #{clip_targeter_forward.9} parent=11 // pred_check_branch
        %258 = sbr.rel (%p256) target = $region24
      $region23: #{clip_targeter_forward.9} parent=11 // pred_region
        _
      $region24: #{clip_targeter_forward.9} parent=11 // pred_fallthru
        _
      // Predicated region
      $region25: #{clip_targeter_forward.9} parent=11 // pred_check
        %p259 = pneg %p125
      $region26: #{clip_targeter_forward.9} parent=11 // pred_check_branch
        %261 = sbr.rel (%p259) target = $region28
      $region27: #{clip_targeter_forward.9} parent=11 // pred_region
        _
      $region28: #{clip_targeter_forward.9} parent=11 // pred_fallthru
        _
      // Predicated region
      $region29: #{clip_targeter_forward.9} parent=11 // pred_check
        %p262 = pneg %p146
      $region30: #{clip_targeter_forward.9} parent=11 // pred_check_branch
        %264 = sbr.rel (%p262) target = $region32
      $region31: #{clip_targeter_forward.9} parent=11 // pred_region
        _
      $region32: #{clip_targeter_forward.9} parent=11 // pred_fallthru
        _
      // Predicated region
      $region33: #{clip_targeter_forward.9} parent=11 // pred_check
        %p265 = pneg %p167
      $region34: #{clip_targeter_forward.9} parent=11 // pred_check_branch
        %267 = sbr.rel (%p265) target = $region36
      $region35: #{clip_targeter_forward.9} parent=11 // pred_region
        _
      $region36: #{clip_targeter_forward.9} parent=11 // pred_fallthru
        _
      // Predicated region
      $region37: #{clip_targeter_forward.9} parent=11 // pred_check
        %p268 = pneg %p188
      $region38: #{clip_targeter_forward.9} parent=11 // pred_check_branch
        %270 = sbr.rel (%p268) target = $region40
      $region39: #{clip_targeter_forward.9} parent=11 // pred_region
        _
      $region40: #{clip_targeter_forward.9} parent=11 // pred_fallthru
        _
      // Predicated region
      $region41: #{clip_targeter_forward.9} parent=11 // pred_check
        %p271 = pneg %p209
      $region42: #{clip_targeter_forward.9} parent=11 // pred_check_branch
        %273 = sbr.rel (%p271) target = $region44
      $region43: #{clip_targeter_forward.9} parent=11 // pred_region
        _
      $region44: #{clip_targeter_forward.9} parent=11 // pred_fallthru
        _
    $region12: #{clip_targeter_forward.9} parent=5 // pred_fallthru
      _
    %p274 = scmp.lt.s32.totalorder %s15, 2
    // Predicated region
    $region45: #{clip_targeter_forward.9} parent=5 // pred_check
      %p275 = pneg %p274
    $region46: #{clip_targeter_forward.9} parent=5 // pred_check_branch
      %277 = sbr.rel (%p275) target = $region48
    $region47: #{clip_targeter_forward.9} parent=5 // pred_region
      // Predicated region
      $region49: #{clip_targeter_forward.9} parent=47 // pred_check
        %p278 = pneg %p35
      $region50: #{clip_targeter_forward.9} parent=47 // pred_check_branch
        %280 = sbr.rel (%p278) target = $region52
      $region51: #{clip_targeter_forward.9} parent=47 // pred_region
        %p281 = scmp.lt.s32.totalorder %s15, 1
        %s282 = scalar_select %p281, %s15, 1
        %s283 = smul.addr %s282, 2
        %s284 = smul.addr %s283, 8
        %s285 = scalar_lea.vmem %s0, %s284
      $region52: #{clip_targeter_forward.9} parent=47 // pred_fallthru
        _
    $region48: #{clip_targeter_forward.9} parent=5 // pred_fallthru
      _
    %p286 = scmp.le.s32.totalorder 1, %s15
    %p287 = scmp.lt.s32.totalorder %s15, 3
    %p288 = pnand %p286, %p287
    %p289 = pneg %p288
    // Predicated region
    $region53: #{clip_targeter_forward.9} parent=5 // pred_check
      _
    $region54: #{clip_targeter_forward.9} parent=5 // pred_check_branch
      %291 = sbr.rel (%p288) target = $region56
    $region55: #{clip_targeter_forward.9} parent=5 // pred_region
      %s292 = ssub.s32 %s15, 1
      %p293 = scmp.lt.s32.totalorder %s20, 1
      %s294 = scalar_select %p293, %s20, 1
      %s295 = smul.addr %s294, 2
      %s296 = smul.addr %s295, 8
      %s297 = scalar_lea.vmem %s0, %s296
      %p298 = pneg %p41
      %p299 = pneg %p38
      %p300 = pneg %p62
      %p301 = pneg %p59
      %p302 = pneg %p83
      %p303 = pneg %p80
      %p304 = pneg %p104
      %p305 = pneg %p101
      %p306 = pneg %p125
      %p307 = pneg %p122
      %p308 = pneg %p146
      %p309 = pneg %p143
      %p310 = pneg %p167
      %p311 = pneg %p164
      %p312 = pneg %p188
      %p313 = pneg %p185
      %p314 = pneg %p209
      %p315 = pneg %p206
      %p316 = pneg %p235
      %p317 = pneg %p232
      %p318 = scmp.lt.s32.totalorder %s20, 1
      %s319 = scalar_select %p318, %s20, 1
      %s320 = smul.addr %s319, 2
      %s321 = smul.addr %s320, 8
      %s322 = scalar_lea.vmem %s9, %s321
      %p323 = scmp.lt.s32.totalorder %s20, 1
      %s324 = scalar_select %p323, %s20, 1
      %s325 = smul.addr %s324, 2
      %s326 = smul.addr %s325, 8
      %s327 = scalar_lea.vmem %s0, %s326
      %p328 = scmp.lt.s32.totalorder %s20, 1
      %s329 = scalar_select %p328, %s20, 1
      %s330 = smul.addr %s329, 2
      %s331 = smul.addr %s330, 8
      %s332 = scalar_lea.vmem %s9, %s331
      %v333 = vld [vmem:[%s327] sm:$0x1f]
      %v334 = vld [vmem:[%s327 + $0x8] sm:$0x1f]
      %v335 = vld [vmem:[%s1] sm:$0x3]
      %v336 = vld [vmem:[%s2] sm:$0x3]
      %vm337 = vcmask 1044480
      %v338 = vsel %vm337, %v333, 0.0
      %v339 = vsel %vm337, %v334, 0.0
      %v340 = vadd.f32 %v338, %v339
      %341 = vadd.xlane.f32.xlu0 %v340
      %v342 = vpop.xlane.xlu0 %341
      %v343 = vrcp.pop 256.0
      %v344 = vmul.f32 %v342, %v343
      %v345 = vsub.f32 %v333, %v344
      %v346 = vsub.f32 %v334, %v344
      %v347 = vmul.f32 %v345, %v345
      %v348 = vmul.f32 %v346, %v346
      %v349 = vsel %vm337, %v347, 0.0
      %v350 = vsel %vm337, %v348, 0.0
      %v351 = vadd.f32 %v349, %v350
      %352 = vadd.xlane.f32.xlu0 %v351
      %v353 = vpop.xlane.xlu0 %352
      %v354 = vmul.f32 %v353, %v343
      %v355 = vadd.f32 %v354, 1e-05
      %v356 = vrsqrt.pop %v355
      %v357 = vmul.f32 %v345, %v356
      %v358 = vmul.f32 %v346, %v356
      %v360 = vlaneseq
      %v361 = vshrl.u32 %v360, 7
      %v362 = vsub.s32 0, %v361
      %v363 = vrot.slane %v335, %v362
      %v364 = vlaneseq
      %v365 = vshrl.u32 %v364, 7
      %v366 = vsub.s32 1, %v365
      %v367 = vrot.slane %v335, %v366
      %v370 = vmul.f32 %v357, %v363
      %v371 = vmul.f32 %v358, %v367
      %v373 = vlaneseq
      %v374 = vshrl.u32 %v373, 7
      %v375 = vsub.s32 0, %v374
      %v376 = vrot.slane %v336, %v375
      %v377 = vlaneseq
      %v378 = vshrl.u32 %v377, 7
      %v379 = vsub.s32 1, %v378
      %v380 = vrot.slane %v336, %v379
      %v383 = vadd.f32 %v370, %v376
      %v384 = vadd.f32 %v371, %v380
      %v385 = vld [vmem:[%s3] sm:$0xff]
      %v386 = vld [vmem:[%s3 + $0x8] sm:$0xff]
      %v387 = vld [vmem:[%s3 + $0x10] sm:$0xff]
      %v388 = vld [vmem:[%s3 + $0x18] sm:$0xff]
      %v389 = vld [vmem:[%s3 + $0x20] sm:$0xff]
      %v390 = vld [vmem:[%s3 + $0x28] sm:$0xff]
      %v391 = vld [vmem:[%s3 + $0x30] sm:$0xff]
      %v392 = vld [vmem:[%s3 + $0x38] sm:$0xff]
      %v393 = vld [vmem:[%s3 + $0x40] sm:$0xff]
      %v394 = vld [vmem:[%s3 + $0x48] sm:$0xff]
      %v395 = vld [vmem:[%s3 + $0x50] sm:$0xff]
      %v396 = vld [vmem:[%s3 + $0x58] sm:$0xff]
      %v397 = vld [vmem:[%s3 + $0x60] sm:$0xff]
      %v398 = vld [vmem:[%s3 + $0x68] sm:$0xff]
      %v399 = vld [vmem:[%s3 + $0x70] sm:$0xff]
      %v400 = vld [vmem:[%s3 + $0x78] sm:$0xff]
      %v401 = vld [vmem:[%s3 + $0x80] sm:$0xff]
      %v402 = vld [vmem:[%s3 + $0x88] sm:$0xff]
      %v403 = vld [vmem:[%s3 + $0x90] sm:$0xff]
      %v404 = vld [vmem:[%s3 + $0x98] sm:$0xff]
      %v405 = vld [vmem:[%s3 + $0xa0] sm:$0xff]
      %v406 = vld [vmem:[%s3 + $0xa8] sm:$0xff]
      %v407 = vld [vmem:[%s3 + $0xb0] sm:$0xff]
      %v408 = vld [vmem:[%s3 + $0xb8] sm:$0xff]
      %v409 = vld [vmem:[%s3 + $0xc0] sm:$0xff]
      %v410 = vld [vmem:[%s3 + $0xc8] sm:$0xff]
      %v411 = vld [vmem:[%s3 + $0xd0] sm:$0xff]
      %v412 = vld [vmem:[%s3 + $0xd8] sm:$0xff]
      %v413 = vld [vmem:[%s3 + $0xe0] sm:$0xff]
      %v414 = vld [vmem:[%s3 + $0xe8] sm:$0xff]
      %v415 = vld [vmem:[%s3 + $0xf0] sm:$0xff]
      %v416 = vld [vmem:[%s3 + $0xf8] sm:$0xff]
      %v417 = vld [vmem:[%s3 + $0x100] sm:$0xff]
      %v418 = vld [vmem:[%s3 + $0x108] sm:$0xff]
      %v419 = vld [vmem:[%s3 + $0x110] sm:$0xff]
      %v420 = vld [vmem:[%s3 + $0x118] sm:$0xff]
      %v421 = vld [vmem:[%s3 + $0x120] sm:$0xff]
      %v422 = vld [vmem:[%s3 + $0x128] sm:$0xff]
      %v423 = vld [vmem:[%s3 + $0x130] sm:$0xff]
      %v424 = vld [vmem:[%s3 + $0x138] sm:$0xff]
      %v425 = vld [vmem:[%s3 + $0x140] sm:$0xff]
      %v426 = vld [vmem:[%s3 + $0x148] sm:$0xff]
      %v427 = vld [vmem:[%s3 + $0x150] sm:$0xff]
      %v428 = vld [vmem:[%s3 + $0x158] sm:$0xff]
      %v429 = vld [vmem:[%s3 + $0x160] sm:$0xff]
      %v430 = vld [vmem:[%s3 + $0x168] sm:$0xff]
      %v431 = vld [vmem:[%s3 + $0x170] sm:$0xff]
      %v432 = vld [vmem:[%s3 + $0x178] sm:$0xff]
      %v433 = vld [vmem:[%s3 + $0x180] sm:$0xff]
      %v434 = vld [vmem:[%s3 + $0x188] sm:$0xff]
      %v435 = vld [vmem:[%s3 + $0x190] sm:$0xff]
      %v436 = vld [vmem:[%s3 + $0x198] sm:$0xff]
      %v437 = vld [vmem:[%s3 + $0x1a0] sm:$0xff]
      %v438 = vld [vmem:[%s3 + $0x1a8] sm:$0xff]
      %v439 = vld [vmem:[%s3 + $0x1b0] sm:$0xff]
      %v440 = vld [vmem:[%s3 + $0x1b8] sm:$0xff]
      %v441 = vld [vmem:[%s3 + $0x1c0] sm:$0xff]
      %v442 = vld [vmem:[%s3 + $0x1c8] sm:$0xff]
      %v443 = vld [vmem:[%s3 + $0x1d0] sm:$0xff]
      %v444 = vld [vmem:[%s3 + $0x1d8] sm:$0xff]
      %v445 = vld [vmem:[%s3 + $0x1e0] sm:$0xff]
      %v446 = vld [vmem:[%s3 + $0x1e8] sm:$0xff]
      %v447 = vld [vmem:[%s3 + $0x1f0] sm:$0xff]
      %v448 = vld [vmem:[%s3 + $0x1f8] sm:$0xff]
      %v449 = vld [vmem:[%s3 + $0x200] sm:$0xff]
      %v450 = vld [vmem:[%s3 + $0x208] sm:$0xff]
      %v451 = vld [vmem:[%s3 + $0x210] sm:$0xff]
      %v452 = vld [vmem:[%s3 + $0x218] sm:$0xff]
      %v453 = vld [vmem:[%s3 + $0x220] sm:$0xff]
      %v454 = vld [vmem:[%s3 + $0x228] sm:$0xff]
      %v455 = vld [vmem:[%s3 + $0x230] sm:$0xff]
      %v456 = vld [vmem:[%s3 + $0x238] sm:$0xff]
      %v457 = vld [vmem:[%s3 + $0x240] sm:$0xff]
      %v458 = vld [vmem:[%s3 + $0x248] sm:$0xff]
      %v459 = vld [vmem:[%s3 + $0x250] sm:$0xff]
      %v460 = vld [vmem:[%s3 + $0x258] sm:$0xff]
      %v461 = vld [vmem:[%s3 + $0x260] sm:$0xff]
      %v462 = vld [vmem:[%s3 + $0x268] sm:$0xff]
      %v463 = vld [vmem:[%s3 + $0x270] sm:$0xff]
      %v464 = vld [vmem:[%s3 + $0x278] sm:$0xff]
      %v465 = vld [vmem:[%s3 + $0x280] sm:$0xff]
      %v466 = vld [vmem:[%s3 + $0x288] sm:$0xff]
      %v467 = vld [vmem:[%s3 + $0x290] sm:$0xff]
      %v468 = vld [vmem:[%s3 + $0x298] sm:$0xff]
      %v469 = vld [vmem:[%s3 + $0x2a0] sm:$0xff]
      %v470 = vld [vmem:[%s3 + $0x2a8] sm:$0xff]
      %v471 = vld [vmem:[%s3 + $0x2b0] sm:$0xff]
      %v472 = vld [vmem:[%s3 + $0x2b8] sm:$0xff]
      %v473 = vld [vmem:[%s3 + $0x2c0] sm:$0xff]
      %v474 = vld [vmem:[%s3 + $0x2c8] sm:$0xff]
      %v475 = vld [vmem:[%s3 + $0x2d0] sm:$0xff]
      %v476 = vld [vmem:[%s3 + $0x2d8] sm:$0xff]
      %v477 = vld [vmem:[%s3 + $0x2e0] sm:$0xff]
      %v478 = vld [vmem:[%s3 + $0x2e8] sm:$0xff]
      %v479 = vld [vmem:[%s3 + $0x2f0] sm:$0xff]
      %v480 = vld [vmem:[%s3 + $0x2f8] sm:$0xff]
      %v481 = vld [vmem:[%s3 + $0x300] sm:$0xff]
      %v482 = vld [vmem:[%s3 + $0x308] sm:$0xff]
      %v483 = vld [vmem:[%s3 + $0x310] sm:$0xff]
      %v484 = vld [vmem:[%s3 + $0x318] sm:$0xff]
      %v485 = vld [vmem:[%s3 + $0x320] sm:$0xff]
      %v486 = vld [vmem:[%s3 + $0x328] sm:$0xff]
      %v487 = vld [vmem:[%s3 + $0x330] sm:$0xff]
      %v488 = vld [vmem:[%s3 + $0x338] sm:$0xff]
      %v489 = vld [vmem:[%s3 + $0x340] sm:$0xff]
      %v490 = vld [vmem:[%s3 + $0x348] sm:$0xff]
      %v491 = vld [vmem:[%s3 + $0x350] sm:$0xff]
      %v492 = vld [vmem:[%s3 + $0x358] sm:$0xff]
      %v493 = vld [vmem:[%s3 + $0x360] sm:$0xff]
      %v494 = vld [vmem:[%s3 + $0x368] sm:$0xff]
      %v495 = vld [vmem:[%s3 + $0x370] sm:$0xff]
      %v496 = vld [vmem:[%s3 + $0x378] sm:$0xff]
      %v497 = vld [vmem:[%s3 + $0x380] sm:$0xff]
      %v498 = vld [vmem:[%s3 + $0x388] sm:$0xff]
      %v499 = vld [vmem:[%s3 + $0x390] sm:$0xff]
      %v500 = vld [vmem:[%s3 + $0x398] sm:$0xff]
      %v501 = vld [vmem:[%s3 + $0x3a0] sm:$0xff]
      %v502 = vld [vmem:[%s3 + $0x3a8] sm:$0xff]
      %v503 = vld [vmem:[%s3 + $0x3b0] sm:$0xff]
      %v504 = vld [vmem:[%s3 + $0x3b8] sm:$0xff]
      %v505 = vld [vmem:[%s3 + $0x3c0] sm:$0xff]
      %v506 = vld [vmem:[%s3 + $0x3c8] sm:$0xff]
      %v507 = vld [vmem:[%s3 + $0x3d0] sm:$0xff]
      %v508 = vld [vmem:[%s3 + $0x3d8] sm:$0xff]
      %v509 = vld [vmem:[%s3 + $0x3e0] sm:$0xff]
      %v510 = vld [vmem:[%s3 + $0x3e8] sm:$0xff]
      %v511 = vld [vmem:[%s3 + $0x3f0] sm:$0xff]
      %v512 = vld [vmem:[%s3 + $0x3f8] sm:$0xff]
      %v513 = vld [vmem:[%s3 + $0x400] sm:$0xff]
      %v514 = vld [vmem:[%s3 + $0x408] sm:$0xff]
      %v515 = vld [vmem:[%s3 + $0x410] sm:$0xff]
      %v516 = vld [vmem:[%s3 + $0x418] sm:$0xff]
      %v517 = vld [vmem:[%s3 + $0x420] sm:$0xff]
      %v518 = vld [vmem:[%s3 + $0x428] sm:$0xff]
      %v519 = vld [vmem:[%s3 + $0x430] sm:$0xff]
      %v520 = vld [vmem:[%s3 + $0x438] sm:$0xff]
      %v521 = vld [vmem:[%s3 + $0x440] sm:$0xff]
      %v522 = vld [vmem:[%s3 + $0x448] sm:$0xff]
      %v523 = vld [vmem:[%s3 + $0x450] sm:$0xff]
      %v524 = vld [vmem:[%s3 + $0x458] sm:$0xff]
      %v525 = vld [vmem:[%s3 + $0x460] sm:$0xff]
      %v526 = vld [vmem:[%s3 + $0x468] sm:$0xff]
      %v527 = vld [vmem:[%s3 + $0x470] sm:$0xff]
      %v528 = vld [vmem:[%s3 + $0x478] sm:$0xff]
      %v529 = vld [vmem:[%s3 + $0x480] sm:$0xff]
      %v530 = vld [vmem:[%s3 + $0x488] sm:$0xff]
      %v531 = vld [vmem:[%s3 + $0x490] sm:$0xff]
      %v532 = vld [vmem:[%s3 + $0x498] sm:$0xff]
      %v533 = vld [vmem:[%s3 + $0x4a0] sm:$0xff]
      %v534 = vld [vmem:[%s3 + $0x4a8] sm:$0xff]
      %v535 = vld [vmem:[%s3 + $0x4b0] sm:$0xff]
      %v536 = vld [vmem:[%s3 + $0x4b8] sm:$0xff]
      %v537 = vld [vmem:[%s3 + $0x4c0] sm:$0xff]
      %v538 = vld [vmem:[%s3 + $0x4c8] sm:$0xff]
      %v539 = vld [vmem:[%s3 + $0x4d0] sm:$0xff]
      %v540 = vld [vmem:[%s3 + $0x4d8] sm:$0xff]
      %v541 = vld [vmem:[%s3 + $0x4e0] sm:$0xff]
      %v542 = vld [vmem:[%s3 + $0x4e8] sm:$0xff]
      %v543 = vld [vmem:[%s3 + $0x4f0] sm:$0xff]
      %v544 = vld [vmem:[%s3 + $0x4f8] sm:$0xff]
      %v545 = vld [vmem:[%s3 + $0x500] sm:$0xff]
      %v546 = vld [vmem:[%s3 + $0x508] sm:$0xff]
      %v547 = vld [vmem:[%s3 + $0x510] sm:$0xff]
      %v548 = vld [vmem:[%s3 + $0x518] sm:$0xff]
      %v549 = vld [vmem:[%s3 + $0x520] sm:$0xff]
      %v550 = vld [vmem:[%s3 + $0x528] sm:$0xff]
      %v551 = vld [vmem:[%s3 + $0x530] sm:$0xff]
      %v552 = vld [vmem:[%s3 + $0x538] sm:$0xff]
      %v553 = vld [vmem:[%s3 + $0x540] sm:$0xff]
      %v554 = vld [vmem:[%s3 + $0x548] sm:$0xff]
      %v555 = vld [vmem:[%s3 + $0x550] sm:$0xff]
      %v556 = vld [vmem:[%s3 + $0x558] sm:$0xff]
      %v557 = vld [vmem:[%s3 + $0x560] sm:$0xff]
      %v558 = vld [vmem:[%s3 + $0x568] sm:$0xff]
      %v559 = vld [vmem:[%s3 + $0x570] sm:$0xff]
      %v560 = vld [vmem:[%s3 + $0x578] sm:$0xff]
      %v561 = vld [vmem:[%s3 + $0x580] sm:$0xff]
      %v562 = vld [vmem:[%s3 + $0x588] sm:$0xff]
      %v563 = vld [vmem:[%s3 + $0x590] sm:$0xff]
      %v564 = vld [vmem:[%s3 + $0x598] sm:$0xff]
      %v565 = vld [vmem:[%s3 + $0x5a0] sm:$0xff]
      %v566 = vld [vmem:[%s3 + $0x5a8] sm:$0xff]
      %v567 = vld [vmem:[%s3 + $0x5b0] sm:$0xff]
      %v568 = vld [vmem:[%s3 + $0x5b8] sm:$0xff]
      %v569 = vld [vmem:[%s3 + $0x5c0] sm:$0xff]
      %v570 = vld [vmem:[%s3 + $0x5c8] sm:$0xff]
      %v571 = vld [vmem:[%s3 + $0x5d0] sm:$0xff]
      %v572 = vld [vmem:[%s3 + $0x5d8] sm:$0xff]
      %v573 = vld [vmem:[%s3 + $0x5e0] sm:$0xff]
      %v574 = vld [vmem:[%s3 + $0x5e8] sm:$0xff]
      %v575 = vld [vmem:[%s3 + $0x5f0] sm:$0xff]
      %v576 = vld [vmem:[%s3 + $0x5f8] sm:$0xff]
      %v577 = vld [vmem:[%s3 + $0x600] sm:$0xff]
      %v578 = vld [vmem:[%s3 + $0x608] sm:$0xff]
      %v579 = vld [vmem:[%s3 + $0x610] sm:$0xff]
      %v580 = vld [vmem:[%s3 + $0x618] sm:$0xff]
      %v581 = vld [vmem:[%s3 + $0x620] sm:$0xff]
      %v582 = vld [vmem:[%s3 + $0x628] sm:$0xff]
      %v583 = vld [vmem:[%s3 + $0x630] sm:$0xff]
      %v584 = vld [vmem:[%s3 + $0x638] sm:$0xff]
      %v585 = vld [vmem:[%s3 + $0x640] sm:$0xff]
      %v586 = vld [vmem:[%s3 + $0x648] sm:$0xff]
      %v587 = vld [vmem:[%s3 + $0x650] sm:$0xff]
      %v588 = vld [vmem:[%s3 + $0x658] sm:$0xff]
      %v589 = vld [vmem:[%s3 + $0x660] sm:$0xff]
      %v590 = vld [vmem:[%s3 + $0x668] sm:$0xff]
      %v591 = vld [vmem:[%s3 + $0x670] sm:$0xff]
      %v592 = vld [vmem:[%s3 + $0x678] sm:$0xff]
      %v593 = vld [vmem:[%s3 + $0x680] sm:$0xff]
      %v594 = vld [vmem:[%s3 + $0x688] sm:$0xff]
      %v595 = vld [vmem:[%s3 + $0x690] sm:$0xff]
      %v596 = vld [vmem:[%s3 + $0x698] sm:$0xff]
      %v597 = vld [vmem:[%s3 + $0x6a0] sm:$0xff]
      %v598 = vld [vmem:[%s3 + $0x6a8] sm:$0xff]
      %v599 = vld [vmem:[%s3 + $0x6b0] sm:$0xff]
      %v600 = vld [vmem:[%s3 + $0x6b8] sm:$0xff]
      %v601 = vld [vmem:[%s3 + $0x6c0] sm:$0xff]
      %v602 = vld [vmem:[%s3 + $0x6c8] sm:$0xff]
      %v603 = vld [vmem:[%s3 + $0x6d0] sm:$0xff]
      %v604 = vld [vmem:[%s3 + $0x6d8] sm:$0xff]
      %v605 = vld [vmem:[%s3 + $0x6e0] sm:$0xff]
      %v606 = vld [vmem:[%s3 + $0x6e8] sm:$0xff]
      %v607 = vld [vmem:[%s3 + $0x6f0] sm:$0xff]
      %v608 = vld [vmem:[%s3 + $0x6f8] sm:$0xff]
      %v609 = vld [vmem:[%s3 + $0x700] sm:$0xff]
      %v610 = vld [vmem:[%s3 + $0x708] sm:$0xff]
      %v611 = vld [vmem:[%s3 + $0x710] sm:$0xff]
      %v612 = vld [vmem:[%s3 + $0x718] sm:$0xff]
      %v613 = vld [vmem:[%s3 + $0x720] sm:$0xff]
      %v614 = vld [vmem:[%s3 + $0x728] sm:$0xff]
      %v615 = vld [vmem:[%s3 + $0x730] sm:$0xff]
      %v616 = vld [vmem:[%s3 + $0x738] sm:$0xff]
      %v617 = vld [vmem:[%s3 + $0x740] sm:$0xff]
      %v618 = vld [vmem:[%s3 + $0x748] sm:$0xff]
      %v619 = vld [vmem:[%s3 + $0x750] sm:$0xff]
      %v620 = vld [vmem:[%s3 + $0x758] sm:$0xff]
      %v621 = vld [vmem:[%s3 + $0x760] sm:$0xff]
      %v622 = vld [vmem:[%s3 + $0x768] sm:$0xff]
      %v623 = vld [vmem:[%s3 + $0x770] sm:$0xff]
      %v624 = vld [vmem:[%s3 + $0x778] sm:$0xff]
      %v625 = vld [vmem:[%s3 + $0x780] sm:$0xff]
      %v626 = vld [vmem:[%s3 + $0x788] sm:$0xff]
      %v627 = vld [vmem:[%s3 + $0x790] sm:$0xff]
      %v628 = vld [vmem:[%s3 + $0x798] sm:$0xff]
      %v629 = vld [vmem:[%s3 + $0x7a0] sm:$0xff]
      %v630 = vld [vmem:[%s3 + $0x7a8] sm:$0xff]
      %v631 = vld [vmem:[%s3 + $0x7b0] sm:$0xff]
      %v632 = vld [vmem:[%s3 + $0x7b8] sm:$0xff]
      %v633 = vld [vmem:[%s3 + $0x7c0] sm:$0xff]
      %v634 = vld [vmem:[%s3 + $0x7c8] sm:$0xff]
      %v635 = vld [vmem:[%s3 + $0x7d0] sm:$0xff]
      %v636 = vld [vmem:[%s3 + $0x7d8] sm:$0xff]
      %v637 = vld [vmem:[%s3 + $0x7e0] sm:$0xff]
      %v638 = vld [vmem:[%s3 + $0x7e8] sm:$0xff]
      %v639 = vld [vmem:[%s3 + $0x7f0] sm:$0xff]
      %v640 = vld [vmem:[%s3 + $0x7f8] sm:$0xff]
      %v641 = vpack.c.bf16 %v383, %v383
      %v642 = vpack.c.bf16 %v384, %v384
      %v643 = vpack.c.bf16 %v393, %v385
      %v644 = vpack.c.bf16 %v394, %v386
      %v645 = vpack.c.bf16 %v395, %v387
      %v646 = vpack.c.bf16 %v396, %v388
      %v647 = vpack.c.bf16 %v397, %v389
      %v648 = vpack.c.bf16 %v398, %v390
      %v649 = vpack.c.bf16 %v399, %v391
      %v650 = vpack.c.bf16 %v400, %v392
      %v651 = vpack.c.bf16 %v409, %v401
      %v652 = vpack.c.bf16 %v410, %v402
      %v653 = vpack.c.bf16 %v411, %v403
      %v654 = vpack.c.bf16 %v412, %v404
      %v655 = vpack.c.bf16 %v413, %v405
      %v656 = vpack.c.bf16 %v414, %v406
      %v657 = vpack.c.bf16 %v415, %v407
      %v658 = vpack.c.bf16 %v416, %v408
      %v659 = vpack.c.bf16 %v425, %v417
      %v660 = vpack.c.bf16 %v426, %v418
      %v661 = vpack.c.bf16 %v427, %v419
      %v662 = vpack.c.bf16 %v428, %v420
      %v663 = vpack.c.bf16 %v429, %v421
      %v664 = vpack.c.bf16 %v430, %v422
      %v665 = vpack.c.bf16 %v431, %v423
      %v666 = vpack.c.bf16 %v432, %v424
      %v667 = vpack.c.bf16 %v441, %v433
      %v668 = vpack.c.bf16 %v442, %v434
      %v669 = vpack.c.bf16 %v443, %v435
      %v670 = vpack.c.bf16 %v444, %v436
      %v671 = vpack.c.bf16 %v445, %v437
      %v672 = vpack.c.bf16 %v446, %v438
      %v673 = vpack.c.bf16 %v447, %v439
      %v674 = vpack.c.bf16 %v448, %v440
      %v675 = vpack.c.bf16 %v457, %v449
      %v676 = vpack.c.bf16 %v458, %v450
      %v677 = vpack.c.bf16 %v459, %v451
      %v678 = vpack.c.bf16 %v460, %v452
      %v679 = vpack.c.bf16 %v461, %v453
      %v680 = vpack.c.bf16 %v462, %v454
      %v681 = vpack.c.bf16 %v463, %v455
      %v682 = vpack.c.bf16 %v464, %v456
      %v683 = vpack.c.bf16 %v473, %v465
      %v684 = vpack.c.bf16 %v474, %v466
      %v685 = vpack.c.bf16 %v475, %v467
      %v686 = vpack.c.bf16 %v476, %v468
      %v687 = vpack.c.bf16 %v477, %v469
      %v688 = vpack.c.bf16 %v478, %v470
      %v689 = vpack.c.bf16 %v479, %v471
      %v690 = vpack.c.bf16 %v480, %v472
      %v691 = vpack.c.bf16 %v489, %v481
      %v692 = vpack.c.bf16 %v490, %v482
      %v693 = vpack.c.bf16 %v491, %v483
      %v694 = vpack.c.bf16 %v492, %v484
      %v695 = vpack.c.bf16 %v493, %v485
      %v696 = vpack.c.bf16 %v494, %v486
      %v697 = vpack.c.bf16 %v495, %v487
      %v698 = vpack.c.bf16 %v496, %v488
      %v699 = vpack.c.bf16 %v505, %v497
      %v700 = vpack.c.bf16 %v506, %v498
      %v701 = vpack.c.bf16 %v507, %v499
      %v702 = vpack.c.bf16 %v508, %v500
      %v703 = vpack.c.bf16 %v509, %v501
      %v704 = vpack.c.bf16 %v510, %v502
      %v705 = vpack.c.bf16 %v511, %v503
      %v706 = vpack.c.bf16 %v512, %v504
      %v707 = vpack.c.bf16 %v521, %v513
      %v708 = vpack.c.bf16 %v522, %v514
      %v709 = vpack.c.bf16 %v523, %v515
      %v710 = vpack.c.bf16 %v524, %v516
      %v711 = vpack.c.bf16 %v525, %v517
      %v712 = vpack.c.bf16 %v526, %v518
      %v713 = vpack.c.bf16 %v527, %v519
      %v714 = vpack.c.bf16 %v528, %v520
      %v715 = vpack.c.bf16 %v537, %v529
      %v716 = vpack.c.bf16 %v538, %v530
      %v717 = vpack.c.bf16 %v539, %v531
      %v718 = vpack.c.bf16 %v540, %v532
      %v719 = vpack.c.bf16 %v541, %v533
      %v720 = vpack.c.bf16 %v542, %v534
      %v721 = vpack.c.bf16 %v543, %v535
      %v722 = vpack.c.bf16 %v544, %v536
      %v723 = vpack.c.bf16 %v553, %v545
      %v724 = vpack.c.bf16 %v554, %v546
      %v725 = vpack.c.bf16 %v555, %v547
      %v726 = vpack.c.bf16 %v556, %v548
      %v727 = vpack.c.bf16 %v557, %v549
      %v728 = vpack.c.bf16 %v558, %v550
      %v729 = vpack.c.bf16 %v559, %v551
      %v730 = vpack.c.bf16 %v560, %v552
      %v731 = vpack.c.bf16 %v569, %v561
      %v732 = vpack.c.bf16 %v570, %v562
      %v733 = vpack.c.bf16 %v571, %v563
      %v734 = vpack.c.bf16 %v572, %v564
      %v735 = vpack.c.bf16 %v573, %v565
      %v736 = vpack.c.bf16 %v574, %v566
      %v737 = vpack.c.bf16 %v575, %v567
      %v738 = vpack.c.bf16 %v576, %v568
      %v739 = vpack.c.bf16 %v585, %v577
      %v740 = vpack.c.bf16 %v586, %v578
      %v741 = vpack.c.bf16 %v587, %v579
      %v742 = vpack.c.bf16 %v588, %v580
      %v743 = vpack.c.bf16 %v589, %v581
      %v744 = vpack.c.bf16 %v590, %v582
      %v745 = vpack.c.bf16 %v591, %v583
      %v746 = vpack.c.bf16 %v592, %v584
      %v747 = vpack.c.bf16 %v601, %v593
      %v748 = vpack.c.bf16 %v602, %v594
      %v749 = vpack.c.bf16 %v603, %v595
      %v750 = vpack.c.bf16 %v604, %v596
      %v751 = vpack.c.bf16 %v605, %v597
      %v752 = vpack.c.bf16 %v606, %v598
      %v753 = vpack.c.bf16 %v607, %v599
      %v754 = vpack.c.bf16 %v608, %v600
      %v755 = vpack.c.bf16 %v617, %v609
      %v756 = vpack.c.bf16 %v618, %v610
      %v757 = vpack.c.bf16 %v619, %v611
      %v758 = vpack.c.bf16 %v620, %v612
      %v759 = vpack.c.bf16 %v621, %v613
      %v760 = vpack.c.bf16 %v622, %v614
      %v761 = vpack.c.bf16 %v623, %v615
      %v762 = vpack.c.bf16 %v624, %v616
      %v763 = vpack.c.bf16 %v633, %v625
      %v764 = vpack.c.bf16 %v634, %v626
      %v765 = vpack.c.bf16 %v635, %v627
      %v766 = vpack.c.bf16 %v636, %v628
      %v767 = vpack.c.bf16 %v637, %v629
      %v768 = vpack.c.bf16 %v638, %v630
      %v769 = vpack.c.bf16 %v639, %v631
      %v770 = vpack.c.bf16 %v640, %v632
      %v771 = vld [vmem:[%s4] sm:$0xff]
      %v773 = vlaneseq
      %v774 = vshrl.u32 %v773, 7
      %v775 = vsub.s32 0, %v774
      %v776 = vrot.slane %v771, %v775
      %v777 = vlaneseq
      %v778 = vshrl.u32 %v777, 7
      %v779 = vsub.s32 1, %v778
      %v780 = vrot.slane %v771, %v779
      %v781 = vlaneseq
      %v782 = vshrl.u32 %v781, 7
      %v783 = vsub.s32 2, %v782
      %v784 = vrot.slane %v771, %v783
      %v785 = vlaneseq
      %v786 = vshrl.u32 %v785, 7
      %v787 = vsub.s32 3, %v786
      %v788 = vrot.slane %v771, %v787
      %v789 = vlaneseq
      %v790 = vshrl.u32 %v789, 7
      %v791 = vsub.s32 4, %v790
      %v792 = vrot.slane %v771, %v791
      %v793 = vlaneseq
      %v794 = vshrl.u32 %v793, 7
      %v795 = vsub.s32 5, %v794
      %v796 = vrot.slane %v771, %v795
      %v797 = vlaneseq
      %v798 = vshrl.u32 %v797, 7
      %v799 = vsub.s32 6, %v798
      %v800 = vrot.slane %v771, %v799
      %v801 = vlaneseq
      %v802 = vshrl.u32 %v801, 7
      %v803 = vsub.s32 7, %v802
      %v804 = vrot.slane %v771, %v803
      %813 = vmatprep.subr.bf16.mxu0 %v644
      %814 = vmatpush1.bf16.msra.mxu0 %v643
      %815 = vmatprep.subr.bf16.mxu0 %v652
      %816 = vmatpush1.bf16.msra.mxu0 %v651
      %817 = vmatprep.subr.bf16.mxu0 %v660
      %818 = vmatpush1.bf16.msra.mxu0 %v659
      %819 = vmatprep.subr.bf16.mxu0 %v668
      %820 = vmatpush1.bf16.msra.mxu0 %v667
      %821 = vmatprep.subr.bf16.mxu0 %v676
      %822 = vmatpush1.bf16.msra.mxu0 %v675
      %823 = vmatprep.subr.bf16.mxu0 %v684
      %824 = vmatpush1.bf16.msra.mxu0 %v683
      %825 = vmatprep.subr.bf16.mxu0 %v692
      %826 = vmatpush1.bf16.msra.mxu0 %v691
      %827 = vmatprep.subr.bf16.mxu0 %v700
      %828 = vmatpush1.bf16.msra.mxu0 %v699
      %829 = vmatprep.subr.bf16.mxu0 %v708
      %830 = vmatpush1.bf16.msra.mxu0 %v707
      %831 = vmatprep.subr.bf16.mxu0 %v716
      %832 = vmatpush1.bf16.msra.mxu0 %v715
      %833 = vmatprep.subr.bf16.mxu0 %v724
      %834 = vmatpush1.bf16.msra.mxu0 %v723
      %835 = vmatprep.subr.bf16.mxu0 %v732
      %836 = vmatpush1.bf16.msra.mxu0 %v731
      %837 = vmatprep.subr.bf16.mxu0 %v740
      %838 = vmatpush1.bf16.msra.mxu0 %v739
      %839 = vmatprep.subr.bf16.mxu0 %v748
      %840 = vmatpush1.bf16.msra.mxu0 %v747
      %841 = vmatprep.subr.bf16.mxu0 %v756
      %842 = vmatpush1.bf16.msra.mxu0 %v755
      %843 = vmatprep.subr.bf16.mxu0 %v764
      %844 = vmatpush1.bf16.msra.mxu0 %v763
      %845 = vmatprep.mubr.bf16.mxu0 %v642
      %846 = vmatmul.mubr.bf16.gmra.mrb[0].mxu0 %v641
      %v847 = vpop.f32.mrb[0].mxu0
      %v848 = vadd.f32 %v776, %v847
      %v849 = vpop.f32.mrb[0].mxu0
      %v850 = vadd.f32 %v780, %v849
      %v851 = vpop.f32.mrb[0].mxu0
      %v852 = vpop.f32.mrb[0].mxu0
      %853 = vdwg.mxu0
      %854 = vmatprep.subr.bf16.mxu0 %v646
      %855 = vmatpush1.bf16.msra.mxu0 %v645
      %856 = vmatprep.subr.bf16.mxu0 %v654
      %857 = vmatpush1.bf16.msra.mxu0 %v653
      %858 = vmatprep.subr.bf16.mxu0 %v662
      %859 = vmatpush1.bf16.msra.mxu0 %v661
      %860 = vmatprep.subr.bf16.mxu0 %v670
      %861 = vmatpush1.bf16.msra.mxu0 %v669
      %862 = vmatprep.subr.bf16.mxu0 %v678
      %863 = vmatpush1.bf16.msra.mxu0 %v677
      %864 = vmatprep.subr.bf16.mxu0 %v686
      %865 = vmatpush1.bf16.msra.mxu0 %v685
      %866 = vmatprep.subr.bf16.mxu0 %v694
      %867 = vmatpush1.bf16.msra.mxu0 %v693
      %868 = vmatprep.subr.bf16.mxu0 %v702
      %869 = vmatpush1.bf16.msra.mxu0 %v701
      %870 = vmatprep.subr.bf16.mxu0 %v710
      %871 = vmatpush1.bf16.msra.mxu0 %v709
      %872 = vmatprep.subr.bf16.mxu0 %v718
      %873 = vmatpush1.bf16.msra.mxu0 %v717
      %874 = vmatprep.subr.bf16.mxu0 %v726
      %875 = vmatpush1.bf16.msra.mxu0 %v725
      %876 = vmatprep.subr.bf16.mxu0 %v734
      %877 = vmatpush1.bf16.msra.mxu0 %v733
      %878 = vmatprep.subr.bf16.mxu0 %v742
      %879 = vmatpush1.bf16.msra.mxu0 %v741
      %880 = vmatprep.subr.bf16.mxu0 %v750
      %881 = vmatpush1.bf16.msra.mxu0 %v749
      %882 = vmatprep.subr.bf16.mxu0 %v758
      %883 = vmatpush1.bf16.msra.mxu0 %v757
      %884 = vmatprep.subr.bf16.mxu0 %v766
      %885 = vmatpush1.bf16.msra.mxu0 %v765
      %886 = vmatprep.mubr.bf16.mxu0 %v642
      %887 = vmatmul.mubr.bf16.gmra.mrb[0].mxu0 %v641
      %v888 = vpop.f32.mrb[0].mxu0
      %v889 = vadd.f32 %v784, %v888
      %v890 = vpop.f32.mrb[0].mxu0
      %v891 = vadd.f32 %v788, %v890
      %v892 = vpop.f32.mrb[0].mxu0
      %v893 = vpop.f32.mrb[0].mxu0
      %894 = vdwg.mxu0
      %895 = vmatprep.subr.bf16.mxu0 %v648
      %896 = vmatpush1.bf16.msra.mxu0 %v647
      %897 = vmatprep.subr.bf16.mxu0 %v656
      %898 = vmatpush1.bf16.msra.mxu0 %v655
      %899 = vmatprep.subr.bf16.mxu0 %v664
      %900 = vmatpush1.bf16.msra.mxu0 %v663
      %901 = vmatprep.subr.bf16.mxu0 %v672
      %902 = vmatpush1.bf16.msra.mxu0 %v671
      %903 = vmatprep.subr.bf16.mxu0 %v680
      %904 = vmatpush1.bf16.msra.mxu0 %v679
      %905 = vmatprep.subr.bf16.mxu0 %v688
      %906 = vmatpush1.bf16.msra.mxu0 %v687
      %907 = vmatprep.subr.bf16.mxu0 %v696
      %908 = vmatpush1.bf16.msra.mxu0 %v695
      %909 = vmatprep.subr.bf16.mxu0 %v704
      %910 = vmatpush1.bf16.msra.mxu0 %v703
      %911 = vmatprep.subr.bf16.mxu0 %v712
      %912 = vmatpush1.bf16.msra.mxu0 %v711
      %913 = vmatprep.subr.bf16.mxu0 %v720
      %914 = vmatpush1.bf16.msra.mxu0 %v719
      %915 = vmatprep.subr.bf16.mxu0 %v728
      %916 = vmatpush1.bf16.msra.mxu0 %v727
      %917 = vmatprep.subr.bf16.mxu0 %v736
      %918 = vmatpush1.bf16.msra.mxu0 %v735
      %919 = vmatprep.subr.bf16.mxu0 %v744
      %920 = vmatpush1.bf16.msra.mxu0 %v743
      %921 = vmatprep.subr.bf16.mxu0 %v752
      %922 = vmatpush1.bf16.msra.mxu0 %v751
      %923 = vmatprep.subr.bf16.mxu0 %v760
      %924 = vmatpush1.bf16.msra.mxu0 %v759
      %925 = vmatprep.subr.bf16.mxu0 %v768
      %926 = vmatpush1.bf16.msra.mxu0 %v767
      %927 = vmatprep.mubr.bf16.mxu0 %v642
      %928 = vmatmul.mubr.bf16.gmra.mrb[0].mxu0 %v641
      %v929 = vpop.f32.mrb[0].mxu0
      %v930 = vadd.f32 %v792, %v929
      %v931 = vpop.f32.mrb[0].mxu0
      %v932 = vadd.f32 %v796, %v931
      %v933 = vpop.f32.mrb[0].mxu0
      %v934 = vpop.f32.mrb[0].mxu0
      %935 = vdwg.mxu0
      %936 = vmatprep.subr.bf16.mxu0 %v650
      %937 = vmatpush1.bf16.msra.mxu0 %v649
      %938 = vmatprep.subr.bf16.mxu0 %v658
      %939 = vmatpush1.bf16.msra.mxu0 %v657
      %940 = vmatprep.subr.bf16.mxu0 %v666
      %941 = vmatpush1.bf16.msra.mxu0 %v665
      %942 = vmatprep.subr.bf16.mxu0 %v674
      %943 = vmatpush1.bf16.msra.mxu0 %v673
      %944 = vmatprep.subr.bf16.mxu0 %v682
      %945 = vmatpush1.bf16.msra.mxu0 %v681
      %946 = vmatprep.subr.bf16.mxu0 %v690
      %947 = vmatpush1.bf16.msra.mxu0 %v689
      %948 = vmatprep.subr.bf16.mxu0 %v698
      %949 = vmatpush1.bf16.msra.mxu0 %v697
      %950 = vmatprep.subr.bf16.mxu0 %v706
      %951 = vmatpush1.bf16.msra.mxu0 %v705
      %952 = vmatprep.subr.bf16.mxu0 %v714
      %953 = vmatpush1.bf16.msra.mxu0 %v713
      %954 = vmatprep.subr.bf16.mxu0 %v722
      %955 = vmatpush1.bf16.msra.mxu0 %v721
      %956 = vmatprep.subr.bf16.mxu0 %v730
      %957 = vmatpush1.bf16.msra.mxu0 %v729
      %958 = vmatprep.subr.bf16.mxu0 %v738
      %959 = vmatpush1.bf16.msra.mxu0 %v737
      %960 = vmatprep.subr.bf16.mxu0 %v746
      %961 = vmatpush1.bf16.msra.mxu0 %v745
      %962 = vmatprep.subr.bf16.mxu0 %v754
      %963 = vmatpush1.bf16.msra.mxu0 %v753
      %964 = vmatprep.subr.bf16.mxu0 %v762
      %965 = vmatpush1.bf16.msra.mxu0 %v761
      %966 = vmatprep.subr.bf16.mxu0 %v770
      %967 = vmatpush1.bf16.msra.mxu0 %v769
      %968 = vmatprep.mubr.bf16.mxu0 %v642
      %969 = vmatmul.mubr.bf16.gmra.mrb[0].mxu0 %v641
      %v970 = vpop.f32.mrb[0].mxu0
      %v971 = vadd.f32 %v800, %v970
      %v972 = vpop.f32.mrb[0].mxu0
      %v973 = vadd.f32 %v804, %v972
      %v974 = vpop.f32.mrb[0].mxu0
      %v975 = vpop.f32.mrb[0].mxu0
      %976 = vdwg.mxu0
      %v977 = vmul.f32 %v848, 1.702
      %v978 = vmul.f32 %v850, 1.702
      %v979 = vmul.f32 %v889, 1.702
      %v980 = vmul.f32 %v891, 1.702
      %v981 = vmul.f32 %v930, 1.702
      %v982 = vmul.f32 %v932, 1.702
      %v983 = vmul.f32 %v971, 1.702
      %v984 = vmul.f32 %v973, 1.702
      %v985 = vxor.u32 %v977, 2147483648
      %v986 = vxor.u32 %v978, 2147483648
      %v987 = vxor.u32 %v979, 2147483648
      %v988 = vxor.u32 %v980, 2147483648
      %v989 = vxor.u32 %v981, 2147483648
      %v990 = vxor.u32 %v982, 2147483648
      %v991 = vxor.u32 %v983, 2147483648
      %v992 = vxor.u32 %v984, 2147483648
      %v993 = vmul.f32 %v985, 1.442695
      %v994 = vpow.pop %v993
      %v995 = vmul.f32 %v986, 1.442695
      %v996 = vpow.pop %v995
      %v997 = vmul.f32 %v987, 1.442695
      %v998 = vpow.pop %v997
      %v999 = vmul.f32 %v988, 1.442695
      %v1000 = vpow.pop %v999
      %v1001 = vmul.f32 %v989, 1.442695
      %v1002 = vpow.pop %v1001
      %v1003 = vmul.f32 %v990, 1.442695
      %v1004 = vpow.pop %v1003
      %v1005 = vmul.f32 %v991, 1.442695
      %v1006 = vpow.pop %v1005
      %v1007 = vmul.f32 %v992, 1.442695
      %v1008 = vpow.pop %v1007
      %v1009 = vadd.f32 %v994, 1.0
      %v1010 = vadd.f32 %v996, 1.0
      %v1011 = vadd.f32 %v998, 1.0
      %v1012 = vadd.f32 %v1000, 1.0
      %v1013 = vadd.f32 %v1002, 1.0
      %v1014 = vadd.f32 %v1004, 1.0
      %v1015 = vadd.f32 %v1006, 1.0
      %v1016 = vadd.f32 %v1008, 1.0
      %v1017 = vrcp.pop %v1009
      %v1018 = vmul.f32 1.0, %v1017
      %v1019 = vrcp.pop %v1010
      %v1020 = vmul.f32 1.0, %v1019
      %v1021 = vrcp.pop %v1011
      %v1022 = vmul.f32 1.0, %v1021
      %v1023 = vrcp.pop %v1012
      %v1024 = vmul.f32 1.0, %v1023
      %v1025 = vrcp.pop %v1013
      %v1026 = vmul.f32 1.0, %v1025
      %v1027 = vrcp.pop %v1014
      %v1028 = vmul.f32 1.0, %v1027
      %v1029 = vrcp.pop %v1015
      %v1030 = vmul.f32 1.0, %v1029
      %v1031 = vrcp.pop %v1016
      %v1032 = vmul.f32 1.0, %v1031
      %v1033 = vmul.f32 %v848, %v1018
      %v1034 = vmul.f32 %v850, %v1020
      %v1035 = vmul.f32 %v889, %v1022
      %v1036 = vmul.f32 %v891, %v1024
      %v1037 = vmul.f32 %v930, %v1026
      %v1038 = vmul.f32 %v932, %v1028
      %v1039 = vmul.f32 %v971, %v1030
      %v1040 = vmul.f32 %v973, %v1032
      %v1041 = vld [vmem:[%s5] sm:$0xff]
      %v1042 = vld [vmem:[%s5 + $0x8] sm:$0xff]
      %v1043 = vld [vmem:[%s5 + $0x10] sm:$0xff]
      %v1044 = vld [vmem:[%s5 + $0x18] sm:$0xff]
      %v1045 = vld [vmem:[%s5 + $0x20] sm:$0xff]
      %v1046 = vld [vmem:[%s5 + $0x28] sm:$0xff]
      %v1047 = vld [vmem:[%s5 + $0x30] sm:$0xff]
      %v1048 = vld [vmem:[%s5 + $0x38] sm:$0xff]
      %v1049 = vld [vmem:[%s5 + $0x40] sm:$0xff]
      %v1050 = vld [vmem:[%s5 + $0x48] sm:$0xff]
      %v1051 = vld [vmem:[%s5 + $0x50] sm:$0xff]
      %v1052 = vld [vmem:[%s5 + $0x58] sm:$0xff]
      %v1053 = vld [vmem:[%s5 + $0x60] sm:$0xff]
      %v1054 = vld [vmem:[%s5 + $0x68] sm:$0xff]
      %v1055 = vld [vmem:[%s5 + $0x70] sm:$0xff]
      %v1056 = vld [vmem:[%s5 + $0x78] sm:$0xff]
      %v1057 = vld [vmem:[%s5 + $0x80] sm:$0xff]
      %v1058 = vld [vmem:[%s5 + $0x88] sm:$0xff]
      %v1059 = vld [vmem:[%s5 + $0x90] sm:$0xff]
      %v1060 = vld [vmem:[%s5 + $0x98] sm:$0xff]
      %v1061 = vld [vmem:[%s5 + $0xa0] sm:$0xff]
      %v1062 = vld [vmem:[%s5 + $0xa8] sm:$0xff]
      %v1063 = vld [vmem:[%s5 + $0xb0] sm:$0xff]
      %v1064 = vld [vmem:[%s5 + $0xb8] sm:$0xff]
      %v1065 = vld [vmem:[%s5 + $0xc0] sm:$0xff]
      %v1066 = vld [vmem:[%s5 + $0xc8] sm:$0xff]
      %v1067 = vld [vmem:[%s5 + $0xd0] sm:$0xff]
      %v1068 = vld [vmem:[%s5 + $0xd8] sm:$0xff]
      %v1069 = vld [vmem:[%s5 + $0xe0] sm:$0xff]
      %v1070 = vld [vmem:[%s5 + $0xe8] sm:$0xff]
      %v1071 = vld [vmem:[%s5 + $0xf0] sm:$0xff]
      %v1072 = vld [vmem:[%s5 + $0xf8] sm:$0xff]
      %v1073 = vld [vmem:[%s5 + $0x100] sm:$0xff]
      %v1074 = vld [vmem:[%s5 + $0x108] sm:$0xff]
      %v1075 = vld [vmem:[%s5 + $0x110] sm:$0xff]
      %v1076 = vld [vmem:[%s5 + $0x118] sm:$0xff]
      %v1077 = vld [vmem:[%s5 + $0x120] sm:$0xff]
      %v1078 = vld [vmem:[%s5 + $0x128] sm:$0xff]
      %v1079 = vld [vmem:[%s5 + $0x130] sm:$0xff]
      %v1080 = vld [vmem:[%s5 + $0x138] sm:$0xff]
      %v1081 = vld [vmem:[%s5 + $0x140] sm:$0xff]
      %v1082 = vld [vmem:[%s5 + $0x148] sm:$0xff]
      %v1083 = vld [vmem:[%s5 + $0x150] sm:$0xff]
      %v1084 = vld [vmem:[%s5 + $0x158] sm:$0xff]
      %v1085 = vld [vmem:[%s5 + $0x160] sm:$0xff]
      %v1086 = vld [vmem:[%s5 + $0x168] sm:$0xff]
      %v1087 = vld [vmem:[%s5 + $0x170] sm:$0xff]
      %v1088 = vld [vmem:[%s5 + $0x178] sm:$0xff]
      %v1089 = vld [vmem:[%s5 + $0x180] sm:$0xff]
      %v1090 = vld [vmem:[%s5 + $0x188] sm:$0xff]
      %v1091 = vld [vmem:[%s5 + $0x190] sm:$0xff]
      %v1092 = vld [vmem:[%s5 + $0x198] sm:$0xff]
      %v1093 = vld [vmem:[%s5 + $0x1a0] sm:$0xff]
      %v1094 = vld [vmem:[%s5 + $0x1a8] sm:$0xff]
      %v1095 = vld [vmem:[%s5 + $0x1b0] sm:$0xff]
      %v1096 = vld [vmem:[%s5 + $0x1b8] sm:$0xff]
      %v1097 = vld [vmem:[%s5 + $0x1c0] sm:$0xff]
      %v1098 = vld [vmem:[%s5 + $0x1c8] sm:$0xff]
      %v1099 = vld [vmem:[%s5 + $0x1d0] sm:$0xff]
      %v1100 = vld [vmem:[%s5 + $0x1d8] sm:$0xff]
      %v1101 = vld [vmem:[%s5 + $0x1e0] sm:$0xff]
      %v1102 = vld [vmem:[%s5 + $0x1e8] sm:$0xff]
      %v1103 = vld [vmem:[%s5 + $0x1f0] sm:$0xff]
      %v1104 = vld [vmem:[%s5 + $0x1f8] sm:$0xff]
      %v1105 = vld [vmem:[%s5 + $0x200] sm:$0xff]
      %v1106 = vld [vmem:[%s5 + $0x208] sm:$0xff]
      %v1107 = vld [vmem:[%s5 + $0x210] sm:$0xff]
      %v1108 = vld [vmem:[%s5 + $0x218] sm:$0xff]
      %v1109 = vld [vmem:[%s5 + $0x220] sm:$0xff]
      %v1110 = vld [vmem:[%s5 + $0x228] sm:$0xff]
      %v1111 = vld [vmem:[%s5 + $0x230] sm:$0xff]
      %v1112 = vld [vmem:[%s5 + $0x238] sm:$0xff]
      %v1113 = vld [vmem:[%s5 + $0x240] sm:$0xff]
      %v1114 = vld [vmem:[%s5 + $0x248] sm:$0xff]
      %v1115 = vld [vmem:[%s5 + $0x250] sm:$0xff]
      %v1116 = vld [vmem:[%s5 + $0x258] sm:$0xff]
      %v1117 = vld [vmem:[%s5 + $0x260] sm:$0xff]
      %v1118 = vld [vmem:[%s5 + $0x268] sm:$0xff]
      %v1119 = vld [vmem:[%s5 + $0x270] sm:$0xff]
      %v1120 = vld [vmem:[%s5 + $0x278] sm:$0xff]
      %v1121 = vld [vmem:[%s5 + $0x280] sm:$0xff]
      %v1122 = vld [vmem:[%s5 + $0x288] sm:$0xff]
      %v1123 = vld [vmem:[%s5 + $0x290] sm:$0xff]
      %v1124 = vld [vmem:[%s5 + $0x298] sm:$0xff]
      %v1125 = vld [vmem:[%s5 + $0x2a0] sm:$0xff]
      %v1126 = vld [vmem:[%s5 + $0x2a8] sm:$0xff]
      %v1127 = vld [vmem:[%s5 + $0x2b0] sm:$0xff]
      %v1128 = vld [vmem:[%s5 + $0x2b8] sm:$0xff]
      %v1129 = vld [vmem:[%s5 + $0x2c0] sm:$0xff]
      %v1130 = vld [vmem:[%s5 + $0x2c8] sm:$0xff]
      %v1131 = vld [vmem:[%s5 + $0x2d0] sm:$0xff]
      %v1132 = vld [vmem:[%s5 + $0x2d8] sm:$0xff]
      %v1133 = vld [vmem:[%s5 + $0x2e0] sm:$0xff]
      %v1134 = vld [vmem:[%s5 + $0x2e8] sm:$0xff]
      %v1135 = vld [vmem:[%s5 + $0x2f0] sm:$0xff]
      %v1136 = vld [vmem:[%s5 + $0x2f8] sm:$0xff]
      %v1137 = vld [vmem:[%s5 + $0x300] sm:$0xff]
      %v1138 = vld [vmem:[%s5 + $0x308] sm:$0xff]
      %v1139 = vld [vmem:[%s5 + $0x310] sm:$0xff]
      %v1140 = vld [vmem:[%s5 + $0x318] sm:$0xff]
      %v1141 = vld [vmem:[%s5 + $0x320] sm:$0xff]
      %v1142 = vld [vmem:[%s5 + $0x328] sm:$0xff]
      %v1143 = vld [vmem:[%s5 + $0x330] sm:$0xff]
      %v1144 = vld [vmem:[%s5 + $0x338] sm:$0xff]
      %v1145 = vld [vmem:[%s5 + $0x340] sm:$0xff]
      %v1146 = vld [vmem:[%s5 + $0x348] sm:$0xff]
      %v1147 = vld [vmem:[%s5 + $0x350] sm:$0xff]
      %v1148 = vld [vmem:[%s5 + $0x358] sm:$0xff]
      %v1149 = vld [vmem:[%s5 + $0x360] sm:$0xff]
      %v1150 = vld [vmem:[%s5 + $0x368] sm:$0xff]
      %v1151 = vld [vmem:[%s5 + $0x370] sm:$0xff]
      %v1152 = vld [vmem:[%s5 + $0x378] sm:$0xff]
      %v1153 = vld [vmem:[%s5 + $0x380] sm:$0xff]
      %v1154 = vld [vmem:[%s5 + $0x388] sm:$0xff]
      %v1155 = vld [vmem:[%s5 + $0x390] sm:$0xff]
      %v1156 = vld [vmem:[%s5 + $0x398] sm:$0xff]
      %v1157 = vld [vmem:[%s5 + $0x3a0] sm:$0xff]
      %v1158 = vld [vmem:[%s5 + $0x3a8] sm:$0xff]
      %v1159 = vld [vmem:[%s5 + $0x3b0] sm:$0xff]
      %v1160 = vld [vmem:[%s5 + $0x3b8] sm:$0xff]
      %v1161 = vld [vmem:[%s5 + $0x3c0] sm:$0xff]
      %v1162 = vld [vmem:[%s5 + $0x3c8] sm:$0xff]
      %v1163 = vld [vmem:[%s5 + $0x3d0] sm:$0xff]
      %v1164 = vld [vmem:[%s5 + $0x3d8] sm:$0xff]
      %v1165 = vld [vmem:[%s5 + $0x3e0] sm:$0xff]
      %v1166 = vld [vmem:[%s5 + $0x3e8] sm:$0xff]
      %v1167 = vld [vmem:[%s5 + $0x3f0] sm:$0xff]
      %v1168 = vld [vmem:[%s5 + $0x3f8] sm:$0xff]
      %v1169 = vld [vmem:[%s5 + $0x400] sm:$0xff]
      %v1170 = vld [vmem:[%s5 + $0x408] sm:$0xff]
      %v1171 = vld [vmem:[%s5 + $0x410] sm:$0xff]
      %v1172 = vld [vmem:[%s5 + $0x418] sm:$0xff]
      %v1173 = vld [vmem:[%s5 + $0x420] sm:$0xff]
      %v1174 = vld [vmem:[%s5 + $0x428] sm:$0xff]
      %v1175 = vld [vmem:[%s5 + $0x430] sm:$0xff]
      %v1176 = vld [vmem:[%s5 + $0x438] sm:$0xff]
      %v1177 = vld [vmem:[%s5 + $0x440] sm:$0xff]
      %v1178 = vld [vmem:[%s5 + $0x448] sm:$0xff]
      %v1179 = vld [vmem:[%s5 + $0x450] sm:$0xff]
      %v1180 = vld [vmem:[%s5 + $0x458] sm:$0xff]
      %v1181 = vld [vmem:[%s5 + $0x460] sm:$0xff]
      %v1182 = vld [vmem:[%s5 + $0x468] sm:$0xff]
      %v1183 = vld [vmem:[%s5 + $0x470] sm:$0xff]
      %v1184 = vld [vmem:[%s5 + $0x478] sm:$0xff]
      %v1185 = vld [vmem:[%s5 + $0x480] sm:$0xff]
      %v1186 = vld [vmem:[%s5 + $0x488] sm:$0xff]
      %v1187 = vld [vmem:[%s5 + $0x490] sm:$0xff]
      %v1188 = vld [vmem:[%s5 + $0x498] sm:$0xff]
      %v1189 = vld [vmem:[%s5 + $0x4a0] sm:$0xff]
      %v1190 = vld [vmem:[%s5 + $0x4a8] sm:$0xff]
      %v1191 = vld [vmem:[%s5 + $0x4b0] sm:$0xff]
      %v1192 = vld [vmem:[%s5 + $0x4b8] sm:$0xff]
      %v1193 = vld [vmem:[%s5 + $0x4c0] sm:$0xff]
      %v1194 = vld [vmem:[%s5 + $0x4c8] sm:$0xff]
      %v1195 = vld [vmem:[%s5 + $0x4d0] sm:$0xff]
      %v1196 = vld [vmem:[%s5 + $0x4d8] sm:$0xff]
      %v1197 = vld [vmem:[%s5 + $0x4e0] sm:$0xff]
      %v1198 = vld [vmem:[%s5 + $0x4e8] sm:$0xff]
      %v1199 = vld [vmem:[%s5 + $0x4f0] sm:$0xff]
      %v1200 = vld [vmem:[%s5 + $0x4f8] sm:$0xff]
      %v1201 = vld [vmem:[%s5 + $0x500] sm:$0xff]
      %v1202 = vld [vmem:[%s5 + $0x508] sm:$0xff]
      %v1203 = vld [vmem:[%s5 + $0x510] sm:$0xff]
      %v1204 = vld [vmem:[%s5 + $0x518] sm:$0xff]
      %v1205 = vld [vmem:[%s5 + $0x520] sm:$0xff]
      %v1206 = vld [vmem:[%s5 + $0x528] sm:$0xff]
      %v1207 = vld [vmem:[%s5 + $0x530] sm:$0xff]
      %v1208 = vld [vmem:[%s5 + $0x538] sm:$0xff]
      %v1209 = vld [vmem:[%s5 + $0x540] sm:$0xff]
      %v1210 = vld [vmem:[%s5 + $0x548] sm:$0xff]
      %v1211 = vld [vmem:[%s5 + $0x550] sm:$0xff]
      %v1212 = vld [vmem:[%s5 + $0x558] sm:$0xff]
      %v1213 = vld [vmem:[%s5 + $0x560] sm:$0xff]
      %v1214 = vld [vmem:[%s5 + $0x568] sm:$0xff]
      %v1215 = vld [vmem:[%s5 + $0x570] sm:$0xff]
      %v1216 = vld [vmem:[%s5 + $0x578] sm:$0xff]
      %v1217 = vld [vmem:[%s5 + $0x580] sm:$0xff]
      %v1218 = vld [vmem:[%s5 + $0x588] sm:$0xff]
      %v1219 = vld [vmem:[%s5 + $0x590] sm:$0xff]
      %v1220 = vld [vmem:[%s5 + $0x598] sm:$0xff]
      %v1221 = vld [vmem:[%s5 + $0x5a0] sm:$0xff]
      %v1222 = vld [vmem:[%s5 + $0x5a8] sm:$0xff]
      %v1223 = vld [vmem:[%s5 + $0x5b0] sm:$0xff]
      %v1224 = vld [vmem:[%s5 + $0x5b8] sm:$0xff]
      %v1225 = vld [vmem:[%s5 + $0x5c0] sm:$0xff]
      %v1226 = vld [vmem:[%s5 + $0x5c8] sm:$0xff]
      %v1227 = vld [vmem:[%s5 + $0x5d0] sm:$0xff]
      %v1228 = vld [vmem:[%s5 + $0x5d8] sm:$0xff]
      %v1229 = vld [vmem:[%s5 + $0x5e0] sm:$0xff]
      %v1230 = vld [vmem:[%s5 + $0x5e8] sm:$0xff]
      %v1231 = vld [vmem:[%s5 + $0x5f0] sm:$0xff]
      %v1232 = vld [vmem:[%s5 + $0x5f8] sm:$0xff]
      %v1233 = vld [vmem:[%s5 + $0x600] sm:$0xff]
      %v1234 = vld [vmem:[%s5 + $0x608] sm:$0xff]
      %v1235 = vld [vmem:[%s5 + $0x610] sm:$0xff]
      %v1236 = vld [vmem:[%s5 + $0x618] sm:$0xff]
      %v1237 = vld [vmem:[%s5 + $0x620] sm:$0xff]
      %v1238 = vld [vmem:[%s5 + $0x628] sm:$0xff]
      %v1239 = vld [vmem:[%s5 + $0x630] sm:$0xff]
      %v1240 = vld [vmem:[%s5 + $0x638] sm:$0xff]
      %v1241 = vld [vmem:[%s5 + $0x640] sm:$0xff]
      %v1242 = vld [vmem:[%s5 + $0x648] sm:$0xff]
      %v1243 = vld [vmem:[%s5 + $0x650] sm:$0xff]
      %v1244 = vld [vmem:[%s5 + $0x658] sm:$0xff]
      %v1245 = vld [vmem:[%s5 + $0x660] sm:$0xff]
      %v1246 = vld [vmem:[%s5 + $0x668] sm:$0xff]
      %v1247 = vld [vmem:[%s5 + $0x670] sm:$0xff]
      %v1248 = vld [vmem:[%s5 + $0x678] sm:$0xff]
      %v1249 = vld [vmem:[%s5 + $0x680] sm:$0xff]
      %v1250 = vld [vmem:[%s5 + $0x688] sm:$0xff]
      %v1251 = vld [vmem:[%s5 + $0x690] sm:$0xff]
      %v1252 = vld [vmem:[%s5 + $0x698] sm:$0xff]
      %v1253 = vld [vmem:[%s5 + $0x6a0] sm:$0xff]
      %v1254 = vld [vmem:[%s5 + $0x6a8] sm:$0xff]
      %v1255 = vld [vmem:[%s5 + $0x6b0] sm:$0xff]
      %v1256 = vld [vmem:[%s5 + $0x6b8] sm:$0xff]
      %v1257 = vld [vmem:[%s5 + $0x6c0] sm:$0xff]
      %v1258 = vld [vmem:[%s5 + $0x6c8] sm:$0xff]
      %v1259 = vld [vmem:[%s5 + $0x6d0] sm:$0xff]
      %v1260 = vld [vmem:[%s5 + $0x6d8] sm:$0xff]
      %v1261 = vld [vmem:[%s5 + $0x6e0] sm:$0xff]
      %v1262 = vld [vmem:[%s5 + $0x6e8] sm:$0xff]
      %v1263 = vld [vmem:[%s5 + $0x6f0] sm:$0xff]
      %v1264 = vld [vmem:[%s5 + $0x6f8] sm:$0xff]
      %v1265 = vld [vmem:[%s5 + $0x700] sm:$0xff]
      %v1266 = vld [vmem:[%s5 + $0x708] sm:$0xff]
      %v1267 = vld [vmem:[%s5 + $0x710] sm:$0xff]
      %v1268 = vld [vmem:[%s5 + $0x718] sm:$0xff]
      %v1269 = vld [vmem:[%s5 + $0x720] sm:$0xff]
      %v1270 = vld [vmem:[%s5 + $0x728] sm:$0xff]
      %v1271 = vld [vmem:[%s5 + $0x730] sm:$0xff]
      %v1272 = vld [vmem:[%s5 + $0x738] sm:$0xff]
      %v1273 = vld [vmem:[%s5 + $0x740] sm:$0xff]
      %v1274 = vld [vmem:[%s5 + $0x748] sm:$0xff]
      %v1275 = vld [vmem:[%s5 + $0x750] sm:$0xff]
      %v1276 = vld [vmem:[%s5 + $0x758] sm:$0xff]
      %v1277 = vld [vmem:[%s5 + $0x760] sm:$0xff]
      %v1278 = vld [vmem:[%s5 + $0x768] sm:$0xff]
      %v1279 = vld [vmem:[%s5 + $0x770] sm:$0xff]
      %v1280 = vld [vmem:[%s5 + $0x778] sm:$0xff]
      %v1281 = vld [vmem:[%s5 + $0x780] sm:$0xff]
      %v1282 = vld [vmem:[%s5 + $0x788] sm:$0xff]
      %v1283 = vld [vmem:[%s5 + $0x790] sm:$0xff]
      %v1284 = vld [vmem:[%s5 + $0x798] sm:$0xff]
      %v1285 = vld [vmem:[%s5 + $0x7a0] sm:$0xff]
      %v1286 = vld [vmem:[%s5 + $0x7a8] sm:$0xff]
      %v1287 = vld [vmem:[%s5 + $0x7b0] sm:$0xff]
      %v1288 = vld [vmem:[%s5 + $0x7b8] sm:$0xff]
      %v1289 = vld [vmem:[%s5 + $0x7c0] sm:$0xff]
      %v1290 = vld [vmem:[%s5 + $0x7c8] sm:$0xff]
      %v1291 = vld [vmem:[%s5 + $0x7d0] sm:$0xff]
      %v1292 = vld [vmem:[%s5 + $0x7d8] sm:$0xff]
      %v1293 = vld [vmem:[%s5 + $0x7e0] sm:$0xff]
      %v1294 = vld [vmem:[%s5 + $0x7e8] sm:$0xff]
      %v1295 = vld [vmem:[%s5 + $0x7f0] sm:$0xff]
      %v1296 = vld [vmem:[%s5 + $0x7f8] sm:$0xff]
      %v1297 = vpack.c.bf16 %v1033, %v1033
      %v1298 = vpack.c.bf16 %v1034, %v1034
      %v1299 = vpack.c.bf16 %v1035, %v1035
      %v1300 = vpack.c.bf16 %v1036, %v1036
      %v1301 = vpack.c.bf16 %v1037, %v1037
      %v1302 = vpack.c.bf16 %v1038, %v1038
      %v1303 = vpack.c.bf16 %v1039, %v1039
      %v1304 = vpack.c.bf16 %v1040, %v1040
      %v1305 = vpack.c.bf16 %v1043, %v1041
      %v1306 = vpack.c.bf16 %v1044, %v1042
      %v1307 = vpack.c.bf16 %v1047, %v1045
      %v1308 = vpack.c.bf16 %v1048, %v1046
      %v1309 = vpack.c.bf16 %v1051, %v1049
      %v1310 = vpack.c.bf16 %v1052, %v1050
      %v1311 = vpack.c.bf16 %v1055, %v1053
      %v1312 = vpack.c.bf16 %v1056, %v1054
      %v1313 = vpack.c.bf16 %v1059, %v1057
      %v1314 = vpack.c.bf16 %v1060, %v1058
      %v1315 = vpack.c.bf16 %v1063, %v1061
      %v1316 = vpack.c.bf16 %v1064, %v1062
      %v1317 = vpack.c.bf16 %v1067, %v1065
      %v1318 = vpack.c.bf16 %v1068, %v1066
      %v1319 = vpack.c.bf16 %v1071, %v1069
      %v1320 = vpack.c.bf16 %v1072, %v1070
      %v1321 = vpack.c.bf16 %v1075, %v1073
      %v1322 = vpack.c.bf16 %v1076, %v1074
      %v1323 = vpack.c.bf16 %v1079, %v1077
      %v1324 = vpack.c.bf16 %v1080, %v1078
      %v1325 = vpack.c.bf16 %v1083, %v1081
      %v1326 = vpack.c.bf16 %v1084, %v1082
      %v1327 = vpack.c.bf16 %v1087, %v1085
      %v1328 = vpack.c.bf16 %v1088, %v1086
      %v1329 = vpack.c.bf16 %v1091, %v1089
      %v1330 = vpack.c.bf16 %v1092, %v1090
      %v1331 = vpack.c.bf16 %v1095, %v1093
      %v1332 = vpack.c.bf16 %v1096, %v1094
      %v1333 = vpack.c.bf16 %v1099, %v1097
      %v1334 = vpack.c.bf16 %v1100, %v1098
      %v1335 = vpack.c.bf16 %v1103, %v1101
      %v1336 = vpack.c.bf16 %v1104, %v1102
      %v1337 = vpack.c.bf16 %v1107, %v1105
      %v1338 = vpack.c.bf16 %v1108, %v1106
      %v1339 = vpack.c.bf16 %v1111, %v1109
      %v1340 = vpack.c.bf16 %v1112, %v1110
      %v1341 = vpack.c.bf16 %v1115, %v1113
      %v1342 = vpack.c.bf16 %v1116, %v1114
      %v1343 = vpack.c.bf16 %v1119, %v1117
      %v1344 = vpack.c.bf16 %v1120, %v1118
      %v1345 = vpack.c.bf16 %v1123, %v1121
      %v1346 = vpack.c.bf16 %v1124, %v1122
      %v1347 = vpack.c.bf16 %v1127, %v1125
      %v1348 = vpack.c.bf16 %v1128, %v1126
      %v1349 = vpack.c.bf16 %v1131, %v1129
      %v1350 = vpack.c.bf16 %v1132, %v1130
      %v1351 = vpack.c.bf16 %v1135, %v1133
      %v1352 = vpack.c.bf16 %v1136, %v1134
      %v1353 = vpack.c.bf16 %v1139, %v1137
      %v1354 = vpack.c.bf16 %v1140, %v1138
      %v1355 = vpack.c.bf16 %v1143, %v1141
      %v1356 = vpack.c.bf16 %v1144, %v1142
      %v1357 = vpack.c.bf16 %v1147, %v1145
      %v1358 = vpack.c.bf16 %v1148, %v1146
      %v1359 = vpack.c.bf16 %v1151, %v1149
      %v1360 = vpack.c.bf16 %v1152, %v1150
      %v1361 = vpack.c.bf16 %v1155, %v1153
      %v1362 = vpack.c.bf16 %v1156, %v1154
      %v1363 = vpack.c.bf16 %v1159, %v1157
      %v1364 = vpack.c.bf16 %v1160, %v1158
      %v1365 = vpack.c.bf16 %v1163, %v1161
      %v1366 = vpack.c.bf16 %v1164, %v1162
      %v1367 = vpack.c.bf16 %v1167, %v1165
      %v1368 = vpack.c.bf16 %v1168, %v1166
      %v1369 = vpack.c.bf16 %v1171, %v1169
      %v1370 = vpack.c.bf16 %v1172, %v1170
      %v1371 = vpack.c.bf16 %v1175, %v1173
      %v1372 = vpack.c.bf16 %v1176, %v1174
      %v1373 = vpack.c.bf16 %v1179, %v1177
      %v1374 = vpack.c.bf16 %v1180, %v1178
      %v1375 = vpack.c.bf16 %v1183, %v1181
      %v1376 = vpack.c.bf16 %v1184, %v1182
      %v1377 = vpack.c.bf16 %v1187, %v1185
      %v1378 = vpack.c.bf16 %v1188, %v1186
      %v1379 = vpack.c.bf16 %v1191, %v1189
      %v1380 = vpack.c.bf16 %v1192, %v1190
      %v1381 = vpack.c.bf16 %v1195, %v1193
      %v1382 = vpack.c.bf16 %v1196, %v1194
      %v1383 = vpack.c.bf16 %v1199, %v1197
      %v1384 = vpack.c.bf16 %v1200, %v1198
      %v1385 = vpack.c.bf16 %v1203, %v1201
      %v1386 = vpack.c.bf16 %v1204, %v1202
      %v1387 = vpack.c.bf16 %v1207, %v1205
      %v1388 = vpack.c.bf16 %v1208, %v1206
      %v1389 = vpack.c.bf16 %v1211, %v1209
      %v1390 = vpack.c.bf16 %v1212, %v1210
      %v1391 = vpack.c.bf16 %v1215, %v1213
      %v1392 = vpack.c.bf16 %v1216, %v1214
      %v1393 = vpack.c.bf16 %v1219, %v1217
      %v1394 = vpack.c.bf16 %v1220, %v1218
      %v1395 = vpack.c.bf16 %v1223, %v1221
      %v1396 = vpack.c.bf16 %v1224, %v1222
      %v1397 = vpack.c.bf16 %v1227, %v1225
      %v1398 = vpack.c.bf16 %v1228, %v1226
      %v1399 = vpack.c.bf16 %v1231, %v1229
      %v1400 = vpack.c.bf16 %v1232, %v1230
      %v1401 = vpack.c.bf16 %v1235, %v1233
      %v1402 = vpack.c.bf16 %v1236, %v1234
      %v1403 = vpack.c.bf16 %v1239, %v1237
      %v1404 = vpack.c.bf16 %v1240, %v1238
      %v1405 = vpack.c.bf16 %v1243, %v1241
      %v1406 = vpack.c.bf16 %v1244, %v1242
      %v1407 = vpack.c.bf16 %v1247, %v1245
      %v1408 = vpack.c.bf16 %v1248, %v1246
      %v1409 = vpack.c.bf16 %v1251, %v1249
      %v1410 = vpack.c.bf16 %v1252, %v1250
      %v1411 = vpack.c.bf16 %v1255, %v1253
      %v1412 = vpack.c.bf16 %v1256, %v1254
      %v1413 = vpack.c.bf16 %v1259, %v1257
      %v1414 = vpack.c.bf16 %v1260, %v1258
      %v1415 = vpack.c.bf16 %v1263, %v1261
      %v1416 = vpack.c.bf16 %v1264, %v1262
      %v1417 = vpack.c.bf16 %v1267, %v1265
      %v1418 = vpack.c.bf16 %v1268, %v1266
      %v1419 = vpack.c.bf16 %v1271, %v1269
      %v1420 = vpack.c.bf16 %v1272, %v1270
      %v1421 = vpack.c.bf16 %v1275, %v1273
      %v1422 = vpack.c.bf16 %v1276, %v1274
      %v1423 = vpack.c.bf16 %v1279, %v1277
      %v1424 = vpack.c.bf16 %v1280, %v1278
      %v1425 = vpack.c.bf16 %v1283, %v1281
      %v1426 = vpack.c.bf16 %v1284, %v1282
      %v1427 = vpack.c.bf16 %v1287, %v1285
      %v1428 = vpack.c.bf16 %v1288, %v1286
      %v1429 = vpack.c.bf16 %v1291, %v1289
      %v1430 = vpack.c.bf16 %v1292, %v1290
      %v1431 = vpack.c.bf16 %v1295, %v1293
      %v1432 = vpack.c.bf16 %v1296, %v1294
      %v1433 = vld [vmem:[%s6] sm:$0x3]
      %v1435 = vlaneseq
      %v1436 = vshrl.u32 %v1435, 7
      %v1437 = vsub.s32 0, %v1436
      %v1438 = vrot.slane %v1433, %v1437
      %v1439 = vlaneseq
      %v1440 = vshrl.u32 %v1439, 7
      %v1441 = vsub.s32 1, %v1440
      %v1442 = vrot.slane %v1433, %v1441
      %1445 = vmatprep.subr.bf16.mxu0 %v1306
      %1446 = vmatpush1.bf16.msra.mxu0 %v1305
      %1447 = vmatprep.subr.bf16.mxu0 %v1308
      %1448 = vmatpush1.bf16.msra.mxu0 %v1307
      %1449 = vmatprep.subr.bf16.mxu0 %v1310
      %1450 = vmatpush1.bf16.msra.mxu0 %v1309
      %1451 = vmatprep.subr.bf16.mxu0 %v1312
      %1452 = vmatpush1.bf16.msra.mxu0 %v1311
      %1453 = vmatprep.subr.bf16.mxu0 %v1314
      %1454 = vmatpush1.bf16.msra.mxu0 %v1313
      %1455 = vmatprep.subr.bf16.mxu0 %v1316
      %1456 = vmatpush1.bf16.msra.mxu0 %v1315
      %1457 = vmatprep.subr.bf16.mxu0 %v1318
      %1458 = vmatpush1.bf16.msra.mxu0 %v1317
      %1459 = vmatprep.subr.bf16.mxu0 %v1320
      %1460 = vmatpush1.bf16.msra.mxu0 %v1319
      %1461 = vmatprep.subr.bf16.mxu0 %v1322
      %1462 = vmatpush1.bf16.msra.mxu0 %v1321
      %1463 = vmatprep.subr.bf16.mxu0 %v1324
      %1464 = vmatpush1.bf16.msra.mxu0 %v1323
      %1465 = vmatprep.subr.bf16.mxu0 %v1326
      %1466 = vmatpush1.bf16.msra.mxu0 %v1325
      %1467 = vmatprep.subr.bf16.mxu0 %v1328
      %1468 = vmatpush1.bf16.msra.mxu0 %v1327
      %1469 = vmatprep.subr.bf16.mxu0 %v1330
      %1470 = vmatpush1.bf16.msra.mxu0 %v1329
      %1471 = vmatprep.subr.bf16.mxu0 %v1332
      %1472 = vmatpush1.bf16.msra.mxu0 %v1331
      %1473 = vmatprep.subr.bf16.mxu0 %v1334
      %1474 = vmatpush1.bf16.msra.mxu0 %v1333
      %1475 = vmatprep.subr.bf16.mxu0 %v1336
      %1476 = vmatpush1.bf16.msra.mxu0 %v1335
      %1477 = vmatprep.mubr.bf16.mxu0 %v1298
      %1478 = vmatmul.mubr.bf16.gmra.mrb[0].mxu0 %v1297
      %v1479 = vpop.f32.mrb[0].mxu0
      %v1480 = vadd.f32 %v1438, %v1479
      %v1481 = vpop.f32.mrb[0].mxu0
      %v1482 = vadd.f32 %v1442, %v1481
      %v1483 = vpop.f32.mrb[0].mxu0
      %v1484 = vpop.f32.mrb[0].mxu0
      %1485 = vdwg.mxu0
      %1486 = vmatprep.subr.bf16.mxu0 %v1338
      %1487 = vmatpush1.bf16.msra.mxu0 %v1337
      %1488 = vmatprep.subr.bf16.mxu0 %v1340
      %1489 = vmatpush1.bf16.msra.mxu0 %v1339
      %1490 = vmatprep.subr.bf16.mxu0 %v1342
      %1491 = vmatpush1.bf16.msra.mxu0 %v1341
      %1492 = vmatprep.subr.bf16.mxu0 %v1344
      %1493 = vmatpush1.bf16.msra.mxu0 %v1343
      %1494 = vmatprep.subr.bf16.mxu0 %v1346
      %1495 = vmatpush1.bf16.msra.mxu0 %v1345
      %1496 = vmatprep.subr.bf16.mxu0 %v1348
      %1497 = vmatpush1.bf16.msra.mxu0 %v1347
      %1498 = vmatprep.subr.bf16.mxu0 %v1350
      %1499 = vmatpush1.bf16.msra.mxu0 %v1349
      %1500 = vmatprep.subr.bf16.mxu0 %v1352
      %1501 = vmatpush1.bf16.msra.mxu0 %v1351
      %1502 = vmatprep.subr.bf16.mxu0 %v1354
      %1503 = vmatpush1.bf16.msra.mxu0 %v1353
      %1504 = vmatprep.subr.bf16.mxu0 %v1356
      %1505 = vmatpush1.bf16.msra.mxu0 %v1355
      %1506 = vmatprep.subr.bf16.mxu0 %v1358
      %1507 = vmatpush1.bf16.msra.mxu0 %v1357
      %1508 = vmatprep.subr.bf16.mxu0 %v1360
      %1509 = vmatpush1.bf16.msra.mxu0 %v1359
      %1510 = vmatprep.subr.bf16.mxu0 %v1362
      %1511 = vmatpush1.bf16.msra.mxu0 %v1361
      %1512 = vmatprep.subr.bf16.mxu0 %v1364
      %1513 = vmatpush1.bf16.msra.mxu0 %v1363
      %1514 = vmatprep.subr.bf16.mxu0 %v1366
      %1515 = vmatpush1.bf16.msra.mxu0 %v1365
      %1516 = vmatprep.subr.bf16.mxu0 %v1368
      %1517 = vmatpush1.bf16.msra.mxu0 %v1367
      %1518 = vmatprep.mubr.bf16.mxu0 %v1300
      %1519 = vmatmul.mubr.bf16.gmra.mrb[0].mxu0 %v1299
      %v1520 = vpop.f32.mrb[0].mxu0
      %v1521 = vadd.f32 %v1480, %v1520
      %v1522 = vpop.f32.mrb[0].mxu0
      %v1523 = vadd.f32 %v1482, %v1522
      %v1524 = vpop.f32.mrb[0].mxu0
      %v1525 = vpop.f32.mrb[0].mxu0
      %1526 = vdwg.mxu0
      %1527 = vmatprep.subr.bf16.mxu0 %v1370
      %1528 = vmatpush1.bf16.msra.mxu0 %v1369
      %1529 = vmatprep.subr.bf16.mxu0 %v1372
      %1530 = vmatpush1.bf16.msra.mxu0 %v1371
      %1531 = vmatprep.subr.bf16.mxu0 %v1374
      %1532 = vmatpush1.bf16.msra.mxu0 %v1373
      %1533 = vmatprep.subr.bf16.mxu0 %v1376
      %1534 = vmatpush1.bf16.msra.mxu0 %v1375
      %1535 = vmatprep.subr.bf16.mxu0 %v1378
      %1536 = vmatpush1.bf16.msra.mxu0 %v1377
      %1537 = vmatprep.subr.bf16.mxu0 %v1380
      %1538 = vmatpush1.bf16.msra.mxu0 %v1379
      %1539 = vmatprep.subr.bf16.mxu0 %v1382
      %1540 = vmatpush1.bf16.msra.mxu0 %v1381
      %1541 = vmatprep.subr.bf16.mxu0 %v1384
      %1542 = vmatpush1.bf16.msra.mxu0 %v1383
      %1543 = vmatprep.subr.bf16.mxu0 %v1386
      %1544 = vmatpush1.bf16.msra.mxu0 %v1385
      %1545 = vmatprep.subr.bf16.mxu0 %v1388
      %1546 = vmatpush1.bf16.msra.mxu0 %v1387
      %1547 = vmatprep.subr.bf16.mxu0 %v1390
      %1548 = vmatpush1.bf16.msra.mxu0 %v1389
      %1549 = vmatprep.subr.bf16.mxu0 %v1392
      %1550 = vmatpush1.bf16.msra.mxu0 %v1391
      %1551 = vmatprep.subr.bf16.mxu0 %v1394
      %1552 = vmatpush1.bf16.msra.mxu0 %v1393
      %1553 = vmatprep.subr.bf16.mxu0 %v1396
      %1554 = vmatpush1.bf16.msra.mxu0 %v1395
      %1555 = vmatprep.subr.bf16.mxu0 %v1398
      %1556 = vmatpush1.bf16.msra.mxu0 %v1397
      %1557 = vmatprep.subr.bf16.mxu0 %v1400
      %1558 = vmatpush1.bf16.msra.mxu0 %v1399
      %1559 = vmatprep.mubr.bf16.mxu0 %v1302
      %1560 = vmatmul.mubr.bf16.gmra.mrb[0].mxu0 %v1301
      %v1561 = vpop.f32.mrb[0].mxu0
      %v1562 = vadd.f32 %v1521, %v1561
      %v1563 = vpop.f32.mrb[0].mxu0
      %v1564 = vadd.f32 %v1523, %v1563
      %v1565 = vpop.f32.mrb[0].mxu0
      %v1566 = vpop.f32.mrb[0].mxu0
      %1567 = vdwg.mxu0
      %1568 = vmatprep.subr.bf16.mxu0 %v1402
      %1569 = vmatpush1.bf16.msra.mxu0 %v1401
      %1570 = vmatprep.subr.bf16.mxu0 %v1404
      %1571 = vmatpush1.bf16.msra.mxu0 %v1403
      %1572 = vmatprep.subr.bf16.mxu0 %v1406
      %1573 = vmatpush1.bf16.msra.mxu0 %v1405
      %1574 = vmatprep.subr.bf16.mxu0 %v1408
      %1575 = vmatpush1.bf16.msra.mxu0 %v1407
      %1576 = vmatprep.subr.bf16.mxu0 %v1410
      %1577 = vmatpush1.bf16.msra.mxu0 %v1409
      %1578 = vmatprep.subr.bf16.mxu0 %v1412
      %1579 = vmatpush1.bf16.msra.mxu0 %v1411
      %1580 = vmatprep.subr.bf16.mxu0 %v1414
      %1581 = vmatpush1.bf16.msra.mxu0 %v1413
      %1582 = vmatprep.subr.bf16.mxu0 %v1416
      %1583 = vmatpush1.bf16.msra.mxu0 %v1415
      %1584 = vmatprep.subr.bf16.mxu0 %v1418
      %1585 = vmatpush1.bf16.msra.mxu0 %v1417
      %1586 = vmatprep.subr.bf16.mxu0 %v1420
      %1587 = vmatpush1.bf16.msra.mxu0 %v1419
      %1588 = vmatprep.subr.bf16.mxu0 %v1422
      %1589 = vmatpush1.bf16.msra.mxu0 %v1421
      %1590 = vmatprep.subr.bf16.mxu0 %v1424
      %1591 = vmatpush1.bf16.msra.mxu0 %v1423
      %1592 = vmatprep.subr.bf16.mxu0 %v1426
      %1593 = vmatpush1.bf16.msra.mxu0 %v1425
      %1594 = vmatprep.subr.bf16.mxu0 %v1428
      %1595 = vmatpush1.bf16.msra.mxu0 %v1427
      %1596 = vmatprep.subr.bf16.mxu0 %v1430
      %1597 = vmatpush1.bf16.msra.mxu0 %v1429
      %1598 = vmatprep.subr.bf16.mxu0 %v1432
      %1599 = vmatpush1.bf16.msra.mxu0 %v1431
      %1600 = vmatprep.mubr.bf16.mxu0 %v1304
      %1601 = vmatmul.mubr.bf16.gmra.mrb[0].mxu0 %v1303
      %v1602 = vpop.f32.mrb[0].mxu0
      %v1603 = vadd.f32 %v1562, %v1602
      %v1604 = vpop.f32.mrb[0].mxu0
      %v1605 = vadd.f32 %v1564, %v1604
      %v1606 = vpop.f32.mrb[0].mxu0
      %v1607 = vpop.f32.mrb[0].mxu0
      %1608 = vdwg.mxu0
      %v1609 = vadd.f32 %v333, %v1603
      %v1610 = vadd.f32 %v334, %v1605
      %v1611 = vld [vmem:[%s7] sm:$0x3]
      %v1612 = vld [vmem:[%s8] sm:$0x3]
      %v1613 = vsel %vm337, %v1609, 0.0
      %v1614 = vsel %vm337, %v1610, 0.0
      %v1615 = vadd.f32 %v1613, %v1614
      %1616 = vadd.xlane.f32.xlu0 %v1615
      %v1617 = vpop.xlane.xlu0 %1616
      %v1618 = vmul.f32 %v1617, %v343
      %v1619 = vsub.f32 %v1609, %v1618
      %v1620 = vsub.f32 %v1610, %v1618
      %v1621 = vmul.f32 %v1619, %v1619
      %v1622 = vmul.f32 %v1620, %v1620
      %v1623 = vsel %vm337, %v1621, 0.0
      %v1624 = vsel %vm337, %v1622, 0.0
      %v1625 = vadd.f32 %v1623, %v1624
      %1626 = vadd.xlane.f32.xlu0 %v1625
      %v1627 = vpop.xlane.xlu0 %1626
      %v1628 = vmul.f32 %v1627, %v343
      %v1629 = vadd.f32 %v1628, 1e-05
      %v1630 = vrsqrt.pop %v1629
      %v1631 = vmul.f32 %v1619, %v1630
      %v1632 = vmul.f32 %v1620, %v1630
      %v1634 = vlaneseq
      %v1635 = vshrl.u32 %v1634, 7
      %v1636 = vsub.s32 0, %v1635
      %v1637 = vrot.slane %v1611, %v1636
      %v1638 = vlaneseq
      %v1639 = vshrl.u32 %v1638, 7
      %v1640 = vsub.s32 1, %v1639
      %v1641 = vrot.slane %v1611, %v1640
      %v1644 = vmul.f32 %v1631, %v1637
      %v1645 = vmul.f32 %v1632, %v1641
      %v1647 = vlaneseq
      %v1648 = vshrl.u32 %v1647, 7
      %v1649 = vsub.s32 0, %v1648
      %v1650 = vrot.slane %v1612, %v1649
      %v1651 = vlaneseq
      %v1652 = vshrl.u32 %v1651, 7
      %v1653 = vsub.s32 1, %v1652
      %v1654 = vrot.slane %v1612, %v1653
      %v1657 = vadd.f32 %v1644, %v1650
      %v1658 = vadd.f32 %v1645, %v1654
      %1659 = vst [vmem:[%s332] sm:$0x1f] %v1657
      %1660 = vst [vmem:[%s332 + $0x8] sm:$0x1f] %v1658
      %p1661 = scmp.lt.s32.totalorder %s20, 1
      %s1662 = scalar_select %p1661, %s20, 1
      %s1663 = smul.addr %s1662, 2
      %s1664 = smul.addr %s1663, 8
      %s1665 = scalar_lea.vmem %s9, %s1664
      // Predicated region
      $region57: #{clip_targeter_forward.9} parent=55 // pred_check
        %p1666 = pneg %p232
      $region58: #{clip_targeter_forward.9} parent=55 // pred_check_branch
        %1668 = sbr.rel (%p1666) target = $region60
      $region59: #{clip_targeter_forward.9} parent=55 // pred_region
        _
      $region60: #{clip_targeter_forward.9} parent=55 // pred_fallthru
        _
    $region56: #{clip_targeter_forward.9} parent=5 // pred_fallthru
      _
    %p1669 = scmp.le.s32.totalorder 2, %s15
    // Predicated region
    $region61: #{clip_targeter_forward.9} parent=5 // pred_check
      %p1670 = pneg %p1669
    $region62: #{clip_targeter_forward.9} parent=5 // pred_check_branch
      %1672 = sbr.rel (%p1670) target = $region64
    $region63: #{clip_targeter_forward.9} parent=5 // pred_region
      %s1673 = ssub.s32 %s15, 2
      // Predicated region
      $region65: #{clip_targeter_forward.9} parent=63 // pred_check
        %p1674 = pneg %p238
      $region66: #{clip_targeter_forward.9} parent=63 // pred_check_branch
        %1676 = sbr.rel (%p1674) target = $region68
      $region67: #{clip_targeter_forward.9} parent=63 // pred_region
        %p1677 = scmp.lt.s32.totalorder %s21, 1
        %s1678 = scalar_select %p1677, %s21, 1
        %s1679 = smul.addr %s1678, 2
        %s1680 = smul.addr %s1679, 8
        %s1681 = scalar_lea.vmem %s9, %s1680
      $region68: #{clip_targeter_forward.9} parent=63 // pred_fallthru
        _
    $region64: #{clip_targeter_forward.9} parent=5 // pred_fallthru
      _
  $region6: #{clip_targeter_forward.9} parent=0 // loop_footer
    %s19 = sadd.s32 1, %s15
  $region7: #{clip_targeter_forward.9} parent=0 // loop_footer_branch
    %14 = sbr.rel target = $region3
  $region8: #{clip_targeter_forward.9} parent=0 // loop_exit
    _

</llo_original>
